<compile_context>
chip_gen: v5e
topology: v5e:2x2
jax: 0.10.0
libtpu: 0.0.40
codegen_flags: <defaults>
</compile_context>

<pallas_src>
import functools

import jax
import jax.numpy as jnp
from jax import lax
from jax.experimental import pallas as pl
from jax.experimental.pallas import tpu as pltpu


# ----------------------------------------------------------------------------
# Fused GRU recurrence + fc head kernel.
# Grid is over time blocks; hidden states are carried across blocks in VMEM scratch.
# ----------------------------------------------------------------------------
def _gru_fc_kernel(gi0_ref,                     # (TT, B, 3H) hoisted layer-0 input proj (fused gates r|z|n)
                   whh0_ref, wih1_ref, whh1_ref,  # (H, 3H) fused-gate weights
                   wfc_ref,                     # (2H, A)  fc weight (pre-transposed)
                   o_ref,                       # (B, A)   final output
                   h0_sc, h1_sc,                # VMEM (B, H) fp32 hidden-state carries
                   *, unroll):
    n = pl.program_id(0)
    TT = gi0_ref.shape[0]
    B, H = h0_sc.shape
    w_dtype = whh0_ref.dtype
    # Full f32 MXU passes when operands are f32; irrelevant for bf16 operands.
    prec = lax.Precision.HIGHEST if w_dtype == jnp.float32 else None

    @pl.when(n == 0)
    def _():
        h0_sc[...] = jnp.zeros_like(h0_sc)
        h1_sc[...] = jnp.zeros_like(h1_sc)

    def gru_gates(gi, gh, h_prev):
        # gi, gh: (B, 3H) fused pre-activations [r | z | n]; all elementwise math in fp32.
        r = jax.nn.sigmoid(gi[:, :H] + gh[:, :H])
        z = jax.nn.sigmoid(gi[:, H:2 * H] + gh[:, H:2 * H])
        c = jnp.tanh(gi[:, 2 * H:] + r * gh[:, 2 * H:])
        return (1.0 - z) * c + z * h_prev

    def body(tt, carry):
        h0, h1 = carry
        # One fused (B,H)@(H,3H) matmul per projection.  Weights are re-read from
        # VMEM each iteration (vld slots have slack; keeps vreg pressure low).
        gh0 = jnp.dot(h0.astype(w_dtype), whh0_ref[...],
                      preferred_element_type=jnp.float32, precision=prec)
        gh1 = jnp.dot(h1.astype(w_dtype), whh1_ref[...],
                      preferred_element_type=jnp.float32, precision=prec)
        # Layer 0: input projection was hoisted out of the recurrence.
        gi0 = gi0_ref[tt].astype(jnp.float32)
        h0_new = gru_gates(gi0, gh0, h0)
        # Layer 1: its input projection truly depends on h0_new.
        gi1 = jnp.dot(h0_new.astype(w_dtype), wih1_ref[...],
                      preferred_element_type=jnp.float32, precision=prec)
        h1_new = gru_gates(gi1, gh1, h1)
        return h0_new, h1_new

    h0, h1 = lax.fori_loop(0, TT, body, (h0_sc[...], h1_sc[...]), unroll=unroll)
    h0_sc[...] = h0
    h1_sc[...] = h1

    @pl.when(n == pl.num_programs(0) - 1)
    def _():
        # Fused fc head reproducing torch's h_out.view(-1, 2H) exactly:
        # output row r is [chunk_{2r}, chunk_{2r+1}] where chunk_idx = layer*B + batch.
        # The row gather is done with 0/1 selection matmuls (exact with HIGHEST
        # precision) -- no masked sub-lane stores, no scratch, no reshape.
        r_idx = lax.broadcasted_iota(jnp.int32, (B, B), 0)   # output row
        c_idx = lax.broadcasted_iota(jnp.int32, (B, B), 1)   # candidate source row

        def gather_chunk(chunk):   # chunk[r, c] == flattened chunk index wanted by row r
            pick0 = ((chunk < B) & (c_idx == chunk)).astype(jnp.float32)
            pick1 = ((chunk >= B) & (c_idx == chunk - B)).astype(jnp.float32)
            return (jnp.dot(pick0, h0, preferred_element_type=jnp.float32,
                            precision=lax.Precision.HIGHEST)
                    + jnp.dot(pick1, h1, preferred_element_type=jnp.float32,
                              precision=lax.Precision.HIGHEST))

        even = gather_chunk(2 * r_idx)        # -> lanes [0, H)  of view(-1, 2H)
        odd = gather_chunk(2 * r_idx + 1)     # -> lanes [H, 2H) of view(-1, 2H)
        o = (jnp.dot(even.astype(w_dtype), wfc_ref[0:H, :],
                     preferred_element_type=jnp.float32, precision=prec)
             + jnp.dot(odd.astype(w_dtype), wfc_ref[H:2 * H, :],
                       preferred_element_type=jnp.float32, precision=prec))
        o_ref[...] = o.astype(o_ref.dtype)


# ----------------------------------------------------------------------------
# Forward pass: hoisted input projection (XLA) + fused Pallas recurrence/fc.
# ----------------------------------------------------------------------------
def deep_lstm_forward(x, params, *, time_block_size=None):
    """x: (B, T, F) batch_first, exactly like the PyTorch module."""
    mxu_dtype = params["w_hh0"].dtype          # fp32 or bf16 MXU operands
    x_tbf = jnp.transpose(x, (1, 0, 2)).astype(jnp.float32)   # (T, B, F)
    T, B, _F = x_tbf.shape
    H = params["w_hh0"].shape[0]
    A = params["w_fc"].shape[1]

    # Hoisted layer-0 input projection: one large, lane-dense (T, B, 3H) matmul over
    # all timesteps, off the serial critical path (single DMA stream into the kernel).
    if mxu_dtype == jnp.float32:
        gi0 = jnp.einsum("tbf,fn->tbn", x_tbf, params["w_ih0"],
                         precision=lax.Precision.HIGHEST,
                         preferred_element_type=jnp.float32)
    else:
        gi0 = jnp.einsum("tbf,fn->tbn", x_tbf.astype(mxu_dtype), params["w_ih0"],
                         preferred_element_type=jnp.float32).astype(mxu_dtype)

    # Time blocking: keep gi0 streaming (double-buffered) for long sequences.
    if time_block_size is None:
        TT = T if T <= 64 else max(d for d in range(1, 65) if T % d == 0)
    else:
        TT = time_block_size
    assert T % TT == 0, "time_block_size must divide T"
    num_blocks = T // TT

    itemsize = jnp.dtype(mxu_dtype).itemsize
    weight_bytes = (3 * H * 3 * H + 2 * H * A) * itemsize
    gi0_block_bytes = TT * B * 3 * H * itemsize
    scratch_bytes = 2 * B * H * 4
    vmem_needed = 2 * (weight_bytes + gi0_block_bytes + B * A * 4) + scratch_bytes
    # Explicit VMEM budget (capped at v7x's 64 MiB physical VMEM).
    vmem_limit = int(min(64 * 1024 * 1024, max(8 * 1024 * 1024, 2 * vmem_needed)))

    flops = T * (18 * B * H * H + 36 * B * H) + 2 * B * (2 * H) * A + 4 * B * B * H
    transcendentals = T * 6 * B * H
    bytes_accessed = (T * B * 3 * H + 3 * H * 3 * H + 2 * H * A) * itemsize + 4 * B * A

    kernel = functools.partial(_gru_fc_kernel, unroll=min(8, TT))

    # NOTE: weight BlockSpecs have constant index maps; at large H they could be
    # single-buffered (pipeline_mode=pl.Buffered(1)) to halve resident weight VMEM.
    return pl.pallas_call(
        kernel,
        out_shape=jax.ShapeDtypeStruct((B, A), jnp.float32),
        grid_spec=pltpu.PrefetchScalarGridSpec(
            num_scalar_prefetch=0,
            grid=(num_blocks,),
            in_specs=[
                pl.BlockSpec((TT, B, 3 * H), lambda n: (n, 0, 0)),   # gi0 stream
                pl.BlockSpec((H, 3 * H), lambda n: (0, 0)),          # whh0
                pl.BlockSpec((H, 3 * H), lambda n: (0, 0)),          # wih1
                pl.BlockSpec((H, 3 * H), lambda n: (0, 0)),          # whh1
                pl.BlockSpec((2 * H, A), lambda n: (0, 0)),          # w_fc
            ],
            out_specs=pl.BlockSpec((B, A), lambda n: (0, 0)),
            scratch_shapes=[
                pltpu.VMEM((B, H), jnp.float32),     # h0 carry
                pltpu.VMEM((B, H), jnp.float32),     # h1 carry
            ],
        ),
        compiler_params=pltpu.CompilerParams(
            dimension_semantics=("arbitrary",),       # time axis is a recurrence
            vmem_limit_bytes=vmem_limit),
        cost_estimate=pl.CostEstimate(
            flops=flops, transcendentals=transcendentals,
            bytes_accessed=bytes_accessed),
    )(gi0, params["w_hh0"], params["w_ih1"], params["w_hh1"], params["w_fc"])


# ----------------------------------------------------------------------------
# Parameter init (PyTorch layout) + one-time conversion to kernel layout.
# ----------------------------------------------------------------------------
def init_torch_layout_params(key, num_features, num_actions, hidden_size, num_layers=2):
    assert num_layers == 2, "kernel is specialized for num_layers=2 (module default)"
    k = jax.random.split(key, 5)
    bg = 1.0 / jnp.sqrt(hidden_size)
    bf = 1.0 / jnp.sqrt(hidden_size * num_layers)
    u = lambda kk, shape, b: jax.random.uniform(kk, shape, jnp.float32, -b, b)
    return {
        # PyTorch GRU weight layout: (3H, in), gates row-stacked [r, z, n].
        "w_ih_l0": u(k[0], (3 * hidden_size, num_features), bg),
        "w_hh_l0": u(k[1], (3 * hidden_size, hidden_size), bg),
        "w_ih_l1": u(k[2], (3 * hidden_size, hidden_size), bg),
        "w_hh_l1": u(k[3], (3 * hidden_size, hidden_size), bg),
        # nn.Linear weight layout: (num_actions, hidden*num_layers).
        "w_fc": u(k[4], (num_actions, hidden_size * num_layers), bf),
    }


def prepare_kernel_params(torch_params, hidden_size, mxu_dtype=jnp.float32):
    """One-time conversion PyTorch layout -> fused-gate, pre-transposed kernel layout.

    (3H, K) row-stacked [r, z, n] -> (K, 3H) with gates concatenated along lanes.
    Optionally cast MXU operands (all weights) to bf16 for v6e/v7x.
    """
    del hidden_size  # layout conversion is just a transpose for fused gates
    t = lambda w: jnp.transpose(w, (1, 0)).astype(mxu_dtype)
    return {
        "w_ih0": t(torch_params["w_ih_l0"]),   # (F, 3H)
        "w_hh0": t(torch_params["w_hh_l0"]),   # (H, 3H)
        "w_ih1": t(torch_params["w_ih_l1"]),   # (H, 3H)
        "w_hh1": t(torch_params["w_hh_l1"]),   # (H, 3H)
        "w_fc": t(torch_params["w_fc"]),       # (2H, A)
    }


# ----------------------------------------------------------------------------
# Pure-JAX reference (PyTorch semantics) for the numerical correctness check.
# ----------------------------------------------------------------------------
def reference_forward(x, tp, hidden_size):
    B, T, _ = x.shape
    H = hidden_size
    hp = lax.Precision.HIGHEST

    def cell(inp, h_prev, w_ih, w_hh):
        gi = jnp.dot(inp, w_ih.T, precision=hp)
        gh = jnp.dot(h_prev, w_hh.T, precision=hp)
        i_r, i_z, i_n = jnp.split(gi, 3, axis=1)
        h_r, h_z, h_n = jnp.split(gh, 3, axis=1)
        r = jax.nn.sigmoid(i_r + h_r)
        z = jax.nn.sigmoid(i_z + h_z)
        c = jnp.tanh(i_n + r * h_n)
        return (1.0 - z) * c + z * h_prev

    h0 = jnp.zeros((B, H), jnp.float32)
    h1 = jnp.zeros((B, H), jnp.float32)
    for t in range(T):
        h0 = cell(x[:, t], h0, tp["w_ih_l0"], tp["w_hh_l0"])
        h1 = cell(h0, h1, tp["w_ih_l1"], tp["w_hh_l1"])
    h_out = jnp.stack([h0, h1], axis=0)            # (num_layers, B, H)
    h2d = h_out.reshape(-1, 2 * H)                 # the module's view(-1, 2H) quirk
    return jnp.dot(h2d, tp["w_fc"].T, precision=hp)


if __name__ == "__main__":
    B, T, F = 2, 8, 4          # batch, seq, num_features
    H, A = 32, 3               # hidden_size, num_actions

    key = jax.random.PRNGKey(0)
    k_x, k_p = jax.random.split(key)
    x = jax.random.normal(k_x, (B, T, F), dtype=jnp.float32)
    torch_params = init_torch_layout_params(k_p, F, A, H)
    ref = reference_forward(x, torch_params, H)

    fwd = jax.jit(deep_lstm_forward)

    # fp32 MXU-operand path (tight check; HIGHEST-precision f32 matmuls in kernel).
    params_f32 = prepare_kernel_params(torch_params, H, mxu_dtype=jnp.float32)
    out_f32 = fwd(x, params_f32)
    jax.block_until_ready(out_f32)
    assert out_f32.shape == (B, A), out_f32.shape
    err_f32 = float(jnp.max(jnp.abs(out_f32 - ref)))
    # Typically ~1e-6; keep margin for backends whose default f32 matmul uses bf16 passes.
    assert err_f32 < 5e-3, f"fp32 kernel/reference mismatch: max abs err {err_f32}"

    # bf16 MXU-operand path (the perf path on v6e/v7x): looser tolerance by design.
    params_bf16 = prepare_kernel_params(torch_params, H, mxu_dtype=jnp.bfloat16)
    out_bf16 = fwd(x, params_bf16)
    jax.block_until_ready(out_bf16)
    assert out_bf16.shape == (B, A), out_bf16.shape
    err_bf16 = float(jnp.max(jnp.abs(out_bf16 - ref)))
    assert err_bf16 < 5e-2, f"bf16 kernel/reference mismatch: max abs err {err_bf16}"

    print("KERNEL_OK")
</pallas_src>

<mosaic_0001>
module attributes {stable_mosaic.version = 11 : i64} {
  func.func @_gru_fc_kernel(%arg0: i32, %arg1: memref<8x2x96xf32, #tpu.memory_space<vmem>>, %arg2: memref<32x96xf32, #tpu.memory_space<vmem>>, %arg3: memref<32x96xf32, #tpu.memory_space<vmem>>, %arg4: memref<32x96xf32, #tpu.memory_space<vmem>>, %arg5: memref<64x3xf32, #tpu.memory_space<vmem>>, %arg6: memref<2x3xf32, #tpu.memory_space<vmem>>, %arg7: memref<2x32xf32, #tpu.memory_space<vmem>>, %arg8: memref<2x32xf32, #tpu.memory_space<vmem>>) attributes {dimension_semantics = [#tpu.dimension_semantics<arbitrary>], iteration_bounds = array<i64: 1>, scalar_prefetch = 0 : i64, scratch_operands = 2 : i64, tpu.core_type = #tpu.core_type<tc>, window_params = [{transform_indices = @transform_0, window_bounds = array<i64: 8, 2, 96>}, {pipeline_mode = #tpu.pipeline_mode<synchronous>, transform_indices = @transform_1, window_bounds = array<i64: 32, 96>}, {pipeline_mode = #tpu.pipeline_mode<synchronous>, transform_indices = @transform_2, window_bounds = array<i64: 32, 96>}, {pipeline_mode = #tpu.pipeline_mode<synchronous>, transform_indices = @transform_3, window_bounds = array<i64: 32, 96>}, {pipeline_mode = #tpu.pipeline_mode<synchronous>, transform_indices = @transform_4, window_bounds = array<i64: 64, 3>}, {pipeline_mode = #tpu.pipeline_mode<synchronous>, transform_indices = @transform_5, window_bounds = array<i64: 2, 3>}]} {
    %c0_i32 = arith.constant 0 : i32
    %0 = arith.cmpi eq, %arg0, %c0_i32 : i32
    %1 = arith.extui %0 : i1 to i32
    %c0_i32_0 = arith.constant 0 : i32
    %2 = arith.cmpi ne, %1, %c0_i32_0 : i32
    scf.if %2 {
      %cst_146 = arith.constant 0.000000e+00 : f32
      %498 = vector.broadcast %cst_146 : f32 to vector<2x32xf32>
      %c0_147 = arith.constant 0 : index
      %c0_148 = arith.constant 0 : index
      %499 = vector.load %arg7[%c0_147, %c0_148] : memref<2x32xf32, #tpu.memory_space<vmem>>, vector<2x32xf32>
      tpu.vector_store %arg7[%c0_147, %c0_148], %498 {strides = array<i32>} : memref<2x32xf32, #tpu.memory_space<vmem>>, vector<2x32xf32>,
      %cst_149 = arith.constant 0.000000e+00 : f32
      %500 = vector.broadcast %cst_149 : f32 to vector<2x32xf32>
      %c0_150 = arith.constant 0 : index
      %c0_151 = arith.constant 0 : index
      %501 = vector.load %arg8[%c0_150, %c0_151] : memref<2x32xf32, #tpu.memory_space<vmem>>, vector<2x32xf32>
      tpu.vector_store %arg8[%c0_150, %c0_151], %500 {strides = array<i32>} : memref<2x32xf32, #tpu.memory_space<vmem>>, vector<2x32xf32>,
    } else {
    }
    %c0 = arith.constant 0 : index
    %c0_1 = arith.constant 0 : index
    %3 = vector.load %arg7[%c0, %c0_1] : memref<2x32xf32, #tpu.memory_space<vmem>>, vector<2x32xf32>
    %c0_2 = arith.constant 0 : index
    %c0_3 = arith.constant 0 : index
    %4 = vector.load %arg8[%c0_2, %c0_3] : memref<2x32xf32, #tpu.memory_space<vmem>>, vector<2x32xf32>
    %c0_i32_4 = arith.constant 0 : i32
    %c0_5 = arith.constant 0 : index
    %c0_6 = arith.constant 0 : index
    %5 = vector.load %arg2[%c0_5, %c0_6] : memref<32x96xf32, #tpu.memory_space<vmem>>, vector<32x96xf32>
    %cst = arith.constant dense<0.000000e+00> : vector<2x96xf32>
    %6 = tpu.matmul %3, %5, %cst {dimension_numbers = #tpu.dot_dimension_numbers<[1], [0], [0], [1], [0, 0, 1, 1], [], []>, precision = #tpu.contract_precision<fp32>} : vector<2x32xf32>, vector<32x96xf32>, vector<2x96xf32> -> vector<2x96xf32>
    %c0_7 = arith.constant 0 : index
    %c0_8 = arith.constant 0 : index
    %7 = vector.load %arg4[%c0_7, %c0_8] : memref<32x96xf32, #tpu.memory_space<vmem>>, vector<32x96xf32>
    %cst_9 = arith.constant dense<0.000000e+00> : vector<2x96xf32>
    %8 = tpu.matmul %4, %7, %cst_9 {dimension_numbers = #tpu.dot_dimension_numbers<[1], [0], [0], [1], [0, 0, 1, 1], [], []>, precision = #tpu.contract_precision<fp32>} : vector<2x32xf32>, vector<32x96xf32>, vector<2x96xf32> -> vector<2x96xf32>
    %9 = arith.index_cast %c0_i32_4 : i32 to index
    %c0_10 = arith.constant 0 : index
    %c0_11 = arith.constant 0 : index
    %10 = vector.load %arg1[%9, %c0_10, %c0_11] : memref<8x2x96xf32, #tpu.memory_space<vmem>>, vector<1x2x96xf32>
    %11 = vector.shape_cast %10 : vector<1x2x96xf32> to vector<2x96xf32>
    %12 = vector.extract_strided_slice %11 {offsets = [0, 0], sizes = [2, 32], strides = [1, 1]} : vector<2x96xf32> to vector<2x32xf32>
    %13 = vector.extract_strided_slice %6 {offsets = [0, 0], sizes = [2, 32], strides = [1, 1]} : vector<2x96xf32> to vector<2x32xf32>
    %14 = arith.addf %12, %13 : vector<2x32xf32>
    %15 = arith.negf %14 : vector<2x32xf32>
    %16 = math.exp %15 : vector<2x32xf32>
    %cst_12 = arith.constant 1.000000e+00 : f32
    %17 = vector.broadcast %cst_12 : f32 to vector<2x32xf32>
    %18 = arith.addf %17, %16 : vector<2x32xf32>
    %19 = arith.divf %17, %18 : vector<2x32xf32>
    %20 = vector.extract_strided_slice %11 {offsets = [0, 32], sizes = [2, 32], strides = [1, 1]} : vector<2x96xf32> to vector<2x32xf32>
    %21 = vector.extract_strided_slice %6 {offsets = [0, 32], sizes = [2, 32], strides = [1, 1]} : vector<2x96xf32> to vector<2x32xf32>
    %22 = arith.addf %20, %21 : vector<2x32xf32>
    %23 = arith.negf %22 : vector<2x32xf32>
    %24 = math.exp %23 : vector<2x32xf32>
    %cst_13 = arith.constant 1.000000e+00 : f32
    %25 = vector.broadcast %cst_13 : f32 to vector<2x32xf32>
    %26 = arith.addf %25, %24 : vector<2x32xf32>
    %27 = arith.divf %25, %26 : vector<2x32xf32>
    %28 = vector.extract_strided_slice %11 {offsets = [0, 64], sizes = [2, 32], strides = [1, 1]} : vector<2x96xf32> to vector<2x32xf32>
    %29 = vector.extract_strided_slice %6 {offsets = [0, 64], sizes = [2, 32], strides = [1, 1]} : vector<2x96xf32> to vector<2x32xf32>
    %30 = arith.mulf %19, %29 : vector<2x32xf32>
    %31 = arith.addf %28, %30 : vector<2x32xf32>
    %32 = math.tanh %31 : vector<2x32xf32>
    %cst_14 = arith.constant 1.000000e+00 : f32
    %33 = vector.broadcast %cst_14 : f32 to vector<2x32xf32>
    %34 = arith.subf %33, %27 : vector<2x32xf32>
    %35 = arith.mulf %34, %32 : vector<2x32xf32>
    %36 = arith.mulf %27, %3 : vector<2x32xf32>
    %37 = arith.addf %35, %36 : vector<2x32xf32>
    %c0_15 = arith.constant 0 : index
    %c0_16 = arith.constant 0 : index
    %38 = vector.load %arg3[%c0_15, %c0_16] : memref<32x96xf32, #tpu.memory_space<vmem>>, vector<32x96xf32>
    %cst_17 = arith.constant dense<0.000000e+00> : vector<2x96xf32>
    %39 = tpu.matmul %37, %38, %cst_17 {dimension_numbers = #tpu.dot_dimension_numbers<[1], [0], [0], [1], [0, 0, 1, 1], [], []>, precision = #tpu.contract_precision<fp32>} : vector<2x32xf32>, vector<32x96xf32>, vector<2x96xf32> -> vector<2x96xf32>
    %40 = vector.extract_strided_slice %39 {offsets = [0, 0], sizes = [2, 32], strides = [1, 1]} : vector<2x96xf32> to vector<2x32xf32>
    %41 = vector.extract_strided_slice %8 {offsets = [0, 0], sizes = [2, 32], strides = [1, 1]} : vector<2x96xf32> to vector<2x32xf32>
    %42 = arith.addf %40, %41 : vector<2x32xf32>
    %43 = arith.negf %42 : vector<2x32xf32>
    %44 = math.exp %43 : vector<2x32xf32>
    %cst_18 = arith.constant 1.000000e+00 : f32
    %45 = vector.broadcast %cst_18 : f32 to vector<2x32xf32>
    %46 = arith.addf %45, %44 : vector<2x32xf32>
    %47 = arith.divf %45, %46 : vector<2x32xf32>
    %48 = vector.extract_strided_slice %39 {offsets = [0, 32], sizes = [2, 32], strides = [1, 1]} : vector<2x96xf32> to vector<2x32xf32>
    %49 = vector.extract_strided_slice %8 {offsets = [0, 32], sizes = [2, 32], strides = [1, 1]} : vector<2x96xf32> to vector<2x32xf32>
    %50 = arith.addf %48, %49 : vector<2x32xf32>
    %51 = arith.negf %50 : vector<2x32xf32>
    %52 = math.exp %51 : vector<2x32xf32>
    %cst_19 = arith.constant 1.000000e+00 : f32
    %53 = vector.broadcast %cst_19 : f32 to vector<2x32xf32>
    %54 = arith.addf %53, %52 : vector<2x32xf32>
    %55 = arith.divf %53, %54 : vector<2x32xf32>
    %56 = vector.extract_strided_slice %39 {offsets = [0, 64], sizes = [2, 32], strides = [1, 1]} : vector<2x96xf32> to vector<2x32xf32>
    %57 = vector.extract_strided_slice %8 {offsets = [0, 64], sizes = [2, 32], strides = [1, 1]} : vector<2x96xf32> to vector<2x32xf32>
    %58 = arith.mulf %47, %57 : vector<2x32xf32>
    %59 = arith.addf %56, %58 : vector<2x32xf32>
    %60 = math.tanh %59 : vector<2x32xf32>
    %cst_20 = arith.constant 1.000000e+00 : f32
    %61 = vector.broadcast %cst_20 : f32 to vector<2x32xf32>
    %62 = arith.subf %61, %55 : vector<2x32xf32>
    %63 = arith.mulf %62, %60 : vector<2x32xf32>
    %64 = arith.mulf %55, %4 : vector<2x32xf32>
    %65 = arith.addf %63, %64 : vector<2x32xf32>
    %c1_i32 = arith.constant 1 : i32
    %c0_21 = arith.constant 0 : index
    %c0_22 = arith.constant 0 : index
    %66 = vector.load %arg2[%c0_21, %c0_22] : memref<32x96xf32, #tpu.memory_space<vmem>>, vector<32x96xf32>
    %cst_23 = arith.constant dense<0.000000e+00> : vector<2x96xf32>
    %67 = tpu.matmul %37, %66, %cst_23 {dimension_numbers = #tpu.dot_dimension_numbers<[1], [0], [0], [1], [0, 0, 1, 1], [], []>, precision = #tpu.contract_precision<fp32>} : vector<2x32xf32>, vector<32x96xf32>, vector<2x96xf32> -> vector<2x96xf32>
    %c0_24 = arith.constant 0 : index
    %c0_25 = arith.constant 0 : index
    %68 = vector.load %arg4[%c0_24, %c0_25] : memref<32x96xf32, #tpu.memory_space<vmem>>, vector<32x96xf32>
    %cst_26 = arith.constant dense<0.000000e+00> : vector<2x96xf32>
    %69 = tpu.matmul %65, %68, %cst_26 {dimension_numbers = #tpu.dot_dimension_numbers<[1], [0], [0], [1], [0, 0, 1, 1], [], []>, precision = #tpu.contract_precision<fp32>} : vector<2x32xf32>, vector<32x96xf32>, vector<2x96xf32> -> vector<2x96xf32>
    %70 = arith.index_cast %c1_i32 : i32 to index
    %c0_27 = arith.constant 0 : index
    %c0_28 = arith.constant 0 : index
    %71 = vector.load %arg1[%70, %c0_27, %c0_28] : memref<8x2x96xf32, #tpu.memory_space<vmem>>, vector<1x2x96xf32>
    %72 = vector.shape_cast %71 : vector<1x2x96xf32> to vector<2x96xf32>
    %73 = vector.extract_strided_slice %72 {offsets = [0, 0], sizes = [2, 32], strides = [1, 1]} : vector<2x96xf32> to vector<2x32xf32>
    %74 = vector.extract_strided_slice %67 {offsets = [0, 0], sizes = [2, 32], strides = [1, 1]} : vector<2x96xf32> to vector<2x32xf32>
    %75 = arith.addf %73, %74 : vector<2x32xf32>
    %76 = arith.negf %75 : vector<2x32xf32>
    %77 = math.exp %76 : vector<2x32xf32>
    %cst_29 = arith.constant 1.000000e+00 : f32
    %78 = vector.broadcast %cst_29 : f32 to vector<2x32xf32>
    %79 = arith.addf %78, %77 : vector<2x32xf32>
    %80 = arith.divf %78, %79 : vector<2x32xf32>
    %81 = vector.extract_strided_slice %72 {offsets = [0, 32], sizes = [2, 32], strides = [1, 1]} : vector<2x96xf32> to vector<2x32xf32>
    %82 = vector.extract_strided_slice %67 {offsets = [0, 32], sizes = [2, 32], strides = [1, 1]} : vector<2x96xf32> to vector<2x32xf32>
    %83 = arith.addf %81, %82 : vector<2x32xf32>
    %84 = arith.negf %83 : vector<2x32xf32>
    %85 = math.exp %84 : vector<2x32xf32>
    %cst_30 = arith.constant 1.000000e+00 : f32
    %86 = vector.broadcast %cst_30 : f32 to vector<2x32xf32>
    %87 = arith.addf %86, %85 : vector<2x32xf32>
    %88 = arith.divf %86, %87 : vector<2x32xf32>
    %89 = vector.extract_strided_slice %72 {offsets = [0, 64], sizes = [2, 32], strides = [1, 1]} : vector<2x96xf32> to vector<2x32xf32>
    %90 = vector.extract_strided_slice %67 {offsets = [0, 64], sizes = [2, 32], strides = [1, 1]} : vector<2x96xf32> to vector<2x32xf32>
    %91 = arith.mulf %80, %90 : vector<2x32xf32>
    %92 = arith.addf %89, %91 : vector<2x32xf32>
    %93 = math.tanh %92 : vector<2x32xf32>
    %cst_31 = arith.constant 1.000000e+00 : f32
    %94 = vector.broadcast %cst_31 : f32 to vector<2x32xf32>
    %95 = arith.subf %94, %88 : vector<2x32xf32>
    %96 = arith.mulf %95, %93 : vector<2x32xf32>
    %97 = arith.mulf %88, %37 : vector<2x32xf32>
    %98 = arith.addf %96, %97 : vector<2x32xf32>
    %c0_32 = arith.constant 0 : index
    %c0_33 = arith.constant 0 : index
    %99 = vector.load %arg3[%c0_32, %c0_33] : memref<32x96xf32, #tpu.memory_space<vmem>>, vector<32x96xf32>
    %cst_34 = arith.constant dense<0.000000e+00> : vector<2x96xf32>
    %100 = tpu.matmul %98, %99, %cst_34 {dimension_numbers = #tpu.dot_dimension_numbers<[1], [0], [0], [1], [0, 0, 1, 1], [], []>, precision = #tpu.contract_precision<fp32>} : vector<2x32xf32>, vector<32x96xf32>, vector<2x96xf32> -> vector<2x96xf32>
    %101 = vector.extract_strided_slice %100 {offsets = [0, 0], sizes = [2, 32], strides = [1, 1]} : vector<2x96xf32> to vector<2x32xf32>
    %102 = vector.extract_strided_slice %69 {offsets = [0, 0], sizes = [2, 32], strides = [1, 1]} : vector<2x96xf32> to vector<2x32xf32>
    %103 = arith.addf %101, %102 : vector<2x32xf32>
    %104 = arith.negf %103 : vector<2x32xf32>
    %105 = math.exp %104 : vector<2x32xf32>
    %cst_35 = arith.constant 1.000000e+00 : f32
    %106 = vector.broadcast %cst_35 : f32 to vector<2x32xf32>
    %107 = arith.addf %106, %105 : vector<2x32xf32>
    %108 = arith.divf %106, %107 : vector<2x32xf32>
    %109 = vector.extract_strided_slice %100 {offsets = [0, 32], sizes = [2, 32], strides = [1, 1]} : vector<2x96xf32> to vector<2x32xf32>
    %110 = vector.extract_strided_slice %69 {offsets = [0, 32], sizes = [2, 32], strides = [1, 1]} : vector<2x96xf32> to vector<2x32xf32>
    %111 = arith.addf %109, %110 : vector<2x32xf32>
    %112 = arith.negf %111 : vector<2x32xf32>
    %113 = math.exp %112 : vector<2x32xf32>
    %cst_36 = arith.constant 1.000000e+00 : f32
    %114 = vector.broadcast %cst_36 : f32 to vector<2x32xf32>
    %115 = arith.addf %114, %113 : vector<2x32xf32>
    %116 = arith.divf %114, %115 : vector<2x32xf32>
    %117 = vector.extract_strided_slice %100 {offsets = [0, 64], sizes = [2, 32], strides = [1, 1]} : vector<2x96xf32> to vector<2x32xf32>
    %118 = vector.extract_strided_slice %69 {offsets = [0, 64], sizes = [2, 32], strides = [1, 1]} : vector<2x96xf32> to vector<2x32xf32>
    %119 = arith.mulf %108, %118 : vector<2x32xf32>
    %120 = arith.addf %117, %119 : vector<2x32xf32>
    %121 = math.tanh %120 : vector<2x32xf32>
    %cst_37 = arith.constant 1.000000e+00 : f32
    %122 = vector.broadcast %cst_37 : f32 to vector<2x32xf32>
    %123 = arith.subf %122, %116 : vector<2x32xf32>
    %124 = arith.mulf %123, %121 : vector<2x32xf32>
    %125 = arith.mulf %116, %65 : vector<2x32xf32>
    %126 = arith.addf %124, %125 : vector<2x32xf32>
    %c2_i32 = arith.constant 2 : i32
    %c0_38 = arith.constant 0 : index
    %c0_39 = arith.constant 0 : index
    %127 = vector.load %arg2[%c0_38, %c0_39] : memref<32x96xf32, #tpu.memory_space<vmem>>, vector<32x96xf32>
    %cst_40 = arith.constant dense<0.000000e+00> : vector<2x96xf32>
    %128 = tpu.matmul %98, %127, %cst_40 {dimension_numbers = #tpu.dot_dimension_numbers<[1], [0], [0], [1], [0, 0, 1, 1], [], []>, precision = #tpu.contract_precision<fp32>} : vector<2x32xf32>, vector<32x96xf32>, vector<2x96xf32> -> vector<2x96xf32>
    %c0_41 = arith.constant 0 : index
    %c0_42 = arith.constant 0 : index
    %129 = vector.load %arg4[%c0_41, %c0_42] : memref<32x96xf32, #tpu.memory_space<vmem>>, vector<32x96xf32>
    %cst_43 = arith.constant dense<0.000000e+00> : vector<2x96xf32>
    %130 = tpu.matmul %126, %129, %cst_43 {dimension_numbers = #tpu.dot_dimension_numbers<[1], [0], [0], [1], [0, 0, 1, 1], [], []>, precision = #tpu.contract_precision<fp32>} : vector<2x32xf32>, vector<32x96xf32>, vector<2x96xf32> -> vector<2x96xf32>
    %131 = arith.index_cast %c2_i32 : i32 to index
    %c0_44 = arith.constant 0 : index
    %c0_45 = arith.constant 0 : index
    %132 = vector.load %arg1[%131, %c0_44, %c0_45] : memref<8x2x96xf32, #tpu.memory_space<vmem>>, vector<1x2x96xf32>
    %133 = vector.shape_cast %132 : vector<1x2x96xf32> to vector<2x96xf32>
    %134 = vector.extract_strided_slice %133 {offsets = [0, 0], sizes = [2, 32], strides = [1, 1]} : vector<2x96xf32> to vector<2x32xf32>
    %135 = vector.extract_strided_slice %128 {offsets = [0, 0], sizes = [2, 32], strides = [1, 1]} : vector<2x96xf32> to vector<2x32xf32>
    %136 = arith.addf %134, %135 : vector<2x32xf32>
    %137 = arith.negf %136 : vector<2x32xf32>
    %138 = math.exp %137 : vector<2x32xf32>
    %cst_46 = arith.constant 1.000000e+00 : f32
    %139 = vector.broadcast %cst_46 : f32 to vector<2x32xf32>
    %140 = arith.addf %139, %138 : vector<2x32xf32>
    %141 = arith.divf %139, %140 : vector<2x32xf32>
    %142 = vector.extract_strided_slice %133 {offsets = [0, 32], sizes = [2, 32], strides = [1, 1]} : vector<2x96xf32> to vector<2x32xf32>
    %143 = vector.extract_strided_slice %128 {offsets = [0, 32], sizes = [2, 32], strides = [1, 1]} : vector<2x96xf32> to vector<2x32xf32>
    %144 = arith.addf %142, %143 : vector<2x32xf32>
    %145 = arith.negf %144 : vector<2x32xf32>
    %146 = math.exp %145 : vector<2x32xf32>
    %cst_47 = arith.constant 1.000000e+00 : f32
    %147 = vector.broadcast %cst_47 : f32 to vector<2x32xf32>
    %148 = arith.addf %147, %146 : vector<2x32xf32>
    %149 = arith.divf %147, %148 : vector<2x32xf32>
    %150 = vector.extract_strided_slice %133 {offsets = [0, 64], sizes = [2, 32], strides = [1, 1]} : vector<2x96xf32> to vector<2x32xf32>
    %151 = vector.extract_strided_slice %128 {offsets = [0, 64], sizes = [2, 32], strides = [1, 1]} : vector<2x96xf32> to vector<2x32xf32>
    %152 = arith.mulf %141, %151 : vector<2x32xf32>
    %153 = arith.addf %150, %152 : vector<2x32xf32>
    %154 = math.tanh %153 : vector<2x32xf32>
    %cst_48 = arith.constant 1.000000e+00 : f32
    %155 = vector.broadcast %cst_48 : f32 to vector<2x32xf32>
    %156 = arith.subf %155, %149 : vector<2x32xf32>
    %157 = arith.mulf %156, %154 : vector<2x32xf32>
    %158 = arith.mulf %149, %98 : vector<2x32xf32>
    %159 = arith.addf %157, %158 : vector<2x32xf32>
    %c0_49 = arith.constant 0 : index
    %c0_50 = arith.constant 0 : index
    %160 = vector.load %arg3[%c0_49, %c0_50] : memref<32x96xf32, #tpu.memory_space<vmem>>, vector<32x96xf32>
    %cst_51 = arith.constant dense<0.000000e+00> : vector<2x96xf32>
    %161 = tpu.matmul %159, %160, %cst_51 {dimension_numbers = #tpu.dot_dimension_numbers<[1], [0], [0], [1], [0, 0, 1, 1], [], []>, precision = #tpu.contract_precision<fp32>} : vector<2x32xf32>, vector<32x96xf32>, vector<2x96xf32> -> vector<2x96xf32>
    %162 = vector.extract_strided_slice %161 {offsets = [0, 0], sizes = [2, 32], strides = [1, 1]} : vector<2x96xf32> to vector<2x32xf32>
    %163 = vector.extract_strided_slice %130 {offsets = [0, 0], sizes = [2, 32], strides = [1, 1]} : vector<2x96xf32> to vector<2x32xf32>
    %164 = arith.addf %162, %163 : vector<2x32xf32>
    %165 = arith.negf %164 : vector<2x32xf32>
    %166 = math.exp %165 : vector<2x32xf32>
    %cst_52 = arith.constant 1.000000e+00 : f32
    %167 = vector.broadcast %cst_52 : f32 to vector<2x32xf32>
    %168 = arith.addf %167, %166 : vector<2x32xf32>
    %169 = arith.divf %167, %168 : vector<2x32xf32>
    %170 = vector.extract_strided_slice %161 {offsets = [0, 32], sizes = [2, 32], strides = [1, 1]} : vector<2x96xf32> to vector<2x32xf32>
    %171 = vector.extract_strided_slice %130 {offsets = [0, 32], sizes = [2, 32], strides = [1, 1]} : vector<2x96xf32> to vector<2x32xf32>
    %172 = arith.addf %170, %171 : vector<2x32xf32>
    %173 = arith.negf %172 : vector<2x32xf32>
    %174 = math.exp %173 : vector<2x32xf32>
    %cst_53 = arith.constant 1.000000e+00 : f32
    %175 = vector.broadcast %cst_53 : f32 to vector<2x32xf32>
    %176 = arith.addf %175, %174 : vector<2x32xf32>
    %177 = arith.divf %175, %176 : vector<2x32xf32>
    %178 = vector.extract_strided_slice %161 {offsets = [0, 64], sizes = [2, 32], strides = [1, 1]} : vector<2x96xf32> to vector<2x32xf32>
    %179 = vector.extract_strided_slice %130 {offsets = [0, 64], sizes = [2, 32], strides = [1, 1]} : vector<2x96xf32> to vector<2x32xf32>
    %180 = arith.mulf %169, %179 : vector<2x32xf32>
    %181 = arith.addf %178, %180 : vector<2x32xf32>
    %182 = math.tanh %181 : vector<2x32xf32>
    %cst_54 = arith.constant 1.000000e+00 : f32
    %183 = vector.broadcast %cst_54 : f32 to vector<2x32xf32>
    %184 = arith.subf %183, %177 : vector<2x32xf32>
    %185 = arith.mulf %184, %182 : vector<2x32xf32>
    %186 = arith.mulf %177, %126 : vector<2x32xf32>
    %187 = arith.addf %185, %186 : vector<2x32xf32>
    %c3_i32 = arith.constant 3 : i32
    %c0_55 = arith.constant 0 : index
    %c0_56 = arith.constant 0 : index
    %188 = vector.load %arg2[%c0_55, %c0_56] : memref<32x96xf32, #tpu.memory_space<vmem>>, vector<32x96xf32>
    %cst_57 = arith.constant dense<0.000000e+00> : vector<2x96xf32>
    %189 = tpu.matmul %159, %188, %cst_57 {dimension_numbers = #tpu.dot_dimension_numbers<[1], [0], [0], [1], [0, 0, 1, 1], [], []>, precision = #tpu.contract_precision<fp32>} : vector<2x32xf32>, vector<32x96xf32>, vector<2x96xf32> -> vector<2x96xf32>
    %c0_58 = arith.constant 0 : index
    %c0_59 = arith.constant 0 : index
    %190 = vector.load %arg4[%c0_58, %c0_59] : memref<32x96xf32, #tpu.memory_space<vmem>>, vector<32x96xf32>
    %cst_60 = arith.constant dense<0.000000e+00> : vector<2x96xf32>
    %191 = tpu.matmul %187, %190, %cst_60 {dimension_numbers = #tpu.dot_dimension_numbers<[1], [0], [0], [1], [0, 0, 1, 1], [], []>, precision = #tpu.contract_precision<fp32>} : vector<2x32xf32>, vector<32x96xf32>, vector<2x96xf32> -> vector<2x96xf32>
    %192 = arith.index_cast %c3_i32 : i32 to index
    %c0_61 = arith.constant 0 : index
    %c0_62 = arith.constant 0 : index
    %193 = vector.load %arg1[%192, %c0_61, %c0_62] : memref<8x2x96xf32, #tpu.memory_space<vmem>>, vector<1x2x96xf32>
    %194 = vector.shape_cast %193 : vector<1x2x96xf32> to vector<2x96xf32>
    %195 = vector.extract_strided_slice %194 {offsets = [0, 0], sizes = [2, 32], strides = [1, 1]} : vector<2x96xf32> to vector<2x32xf32>
    %196 = vector.extract_strided_slice %189 {offsets = [0, 0], sizes = [2, 32], strides = [1, 1]} : vector<2x96xf32> to vector<2x32xf32>
    %197 = arith.addf %195, %196 : vector<2x32xf32>
    %198 = arith.negf %197 : vector<2x32xf32>
    %199 = math.exp %198 : vector<2x32xf32>
    %cst_63 = arith.constant 1.000000e+00 : f32
    %200 = vector.broadcast %cst_63 : f32 to vector<2x32xf32>
    %201 = arith.addf %200, %199 : vector<2x32xf32>
    %202 = arith.divf %200, %201 : vector<2x32xf32>
    %203 = vector.extract_strided_slice %194 {offsets = [0, 32], sizes = [2, 32], strides = [1, 1]} : vector<2x96xf32> to vector<2x32xf32>
    %204 = vector.extract_strided_slice %189 {offsets = [0, 32], sizes = [2, 32], strides = [1, 1]} : vector<2x96xf32> to vector<2x32xf32>
    %205 = arith.addf %203, %204 : vector<2x32xf32>
    %206 = arith.negf %205 : vector<2x32xf32>
    %207 = math.exp %206 : vector<2x32xf32>
    %cst_64 = arith.constant 1.000000e+00 : f32
    %208 = vector.broadcast %cst_64 : f32 to vector<2x32xf32>
    %209 = arith.addf %208, %207 : vector<2x32xf32>
    %210 = arith.divf %208, %209 : vector<2x32xf32>
    %211 = vector.extract_strided_slice %194 {offsets = [0, 64], sizes = [2, 32], strides = [1, 1]} : vector<2x96xf32> to vector<2x32xf32>
    %212 = vector.extract_strided_slice %189 {offsets = [0, 64], sizes = [2, 32], strides = [1, 1]} : vector<2x96xf32> to vector<2x32xf32>
    %213 = arith.mulf %202, %212 : vector<2x32xf32>
    %214 = arith.addf %211, %213 : vector<2x32xf32>
    %215 = math.tanh %214 : vector<2x32xf32>
    %cst_65 = arith.constant 1.000000e+00 : f32
    %216 = vector.broadcast %cst_65 : f32 to vector<2x32xf32>
    %217 = arith.subf %216, %210 : vector<2x32xf32>
    %218 = arith.mulf %217, %215 : vector<2x32xf32>
    %219 = arith.mulf %210, %159 : vector<2x32xf32>
    %220 = arith.addf %218, %219 : vector<2x32xf32>
    %c0_66 = arith.constant 0 : index
    %c0_67 = arith.constant 0 : index
    %221 = vector.load %arg3[%c0_66, %c0_67] : memref<32x96xf32, #tpu.memory_space<vmem>>, vector<32x96xf32>
    %cst_68 = arith.constant dense<0.000000e+00> : vector<2x96xf32>
    %222 = tpu.matmul %220, %221, %cst_68 {dimension_numbers = #tpu.dot_dimension_numbers<[1], [0], [0], [1], [0, 0, 1, 1], [], []>, precision = #tpu.contract_precision<fp32>} : vector<2x32xf32>, vector<32x96xf32>, vector<2x96xf32> -> vector<2x96xf32>
    %223 = vector.extract_strided_slice %222 {offsets = [0, 0], sizes = [2, 32], strides = [1, 1]} : vector<2x96xf32> to vector<2x32xf32>
    %224 = vector.extract_strided_slice %191 {offsets = [0, 0], sizes = [2, 32], strides = [1, 1]} : vector<2x96xf32> to vector<2x32xf32>
    %225 = arith.addf %223, %224 : vector<2x32xf32>
    %226 = arith.negf %225 : vector<2x32xf32>
    %227 = math.exp %226 : vector<2x32xf32>
    %cst_69 = arith.constant 1.000000e+00 : f32
    %228 = vector.broadcast %cst_69 : f32 to vector<2x32xf32>
    %229 = arith.addf %228, %227 : vector<2x32xf32>
    %230 = arith.divf %228, %229 : vector<2x32xf32>
    %231 = vector.extract_strided_slice %222 {offsets = [0, 32], sizes = [2, 32], strides = [1, 1]} : vector<2x96xf32> to vector<2x32xf32>
    %232 = vector.extract_strided_slice %191 {offsets = [0, 32], sizes = [2, 32], strides = [1, 1]} : vector<2x96xf32> to vector<2x32xf32>
    %233 = arith.addf %231, %232 : vector<2x32xf32>
    %234 = arith.negf %233 : vector<2x32xf32>
    %235 = math.exp %234 : vector<2x32xf32>
    %cst_70 = arith.constant 1.000000e+00 : f32
    %236 = vector.broadcast %cst_70 : f32 to vector<2x32xf32>
    %237 = arith.addf %236, %235 : vector<2x32xf32>
    %238 = arith.divf %236, %237 : vector<2x32xf32>
    %239 = vector.extract_strided_slice %222 {offsets = [0, 64], sizes = [2, 32], strides = [1, 1]} : vector<2x96xf32> to vector<2x32xf32>
    %240 = vector.extract_strided_slice %191 {offsets = [0, 64], sizes = [2, 32], strides = [1, 1]} : vector<2x96xf32> to vector<2x32xf32>
    %241 = arith.mulf %230, %240 : vector<2x32xf32>
    %242 = arith.addf %239, %241 : vector<2x32xf32>
    %243 = math.tanh %242 : vector<2x32xf32>
    %cst_71 = arith.constant 1.000000e+00 : f32
    %244 = vector.broadcast %cst_71 : f32 to vector<2x32xf32>
    %245 = arith.subf %244, %238 : vector<2x32xf32>
    %246 = arith.mulf %245, %243 : vector<2x32xf32>
    %247 = arith.mulf %238, %187 : vector<2x32xf32>
    %248 = arith.addf %246, %247 : vector<2x32xf32>
    %c4_i32 = arith.constant 4 : i32
    %c0_72 = arith.constant 0 : index
    %c0_73 = arith.constant 0 : index
    %249 = vector.load %arg2[%c0_72, %c0_73] : memref<32x96xf32, #tpu.memory_space<vmem>>, vector<32x96xf32>
    %cst_74 = arith.constant dense<0.000000e+00> : vector<2x96xf32>
    %250 = tpu.matmul %220, %249, %cst_74 {dimension_numbers = #tpu.dot_dimension_numbers<[1], [0], [0], [1], [0, 0, 1, 1], [], []>, precision = #tpu.contract_precision<fp32>} : vector<2x32xf32>, vector<32x96xf32>, vector<2x96xf32> -> vector<2x96xf32>
    %c0_75 = arith.constant 0 : index
    %c0_76 = arith.constant 0 : index
    %251 = vector.load %arg4[%c0_75, %c0_76] : memref<32x96xf32, #tpu.memory_space<vmem>>, vector<32x96xf32>
    %cst_77 = arith.constant dense<0.000000e+00> : vector<2x96xf32>
    %252 = tpu.matmul %248, %251, %cst_77 {dimension_numbers = #tpu.dot_dimension_numbers<[1], [0], [0], [1], [0, 0, 1, 1], [], []>, precision = #tpu.contract_precision<fp32>} : vector<2x32xf32>, vector<32x96xf32>, vector<2x96xf32> -> vector<2x96xf32>
    %253 = arith.index_cast %c4_i32 : i32 to index
    %c0_78 = arith.constant 0 : index
    %c0_79 = arith.constant 0 : index
    %254 = vector.load %arg1[%253, %c0_78, %c0_79] : memref<8x2x96xf32, #tpu.memory_space<vmem>>, vector<1x2x96xf32>
    %255 = vector.shape_cast %254 : vector<1x2x96xf32> to vector<2x96xf32>
    %256 = vector.extract_strided_slice %255 {offsets = [0, 0], sizes = [2, 32], strides = [1, 1]} : vector<2x96xf32> to vector<2x32xf32>
    %257 = vector.extract_strided_slice %250 {offsets = [0, 0], sizes = [2, 32], strides = [1, 1]} : vector<2x96xf32> to vector<2x32xf32>
    %258 = arith.addf %256, %257 : vector<2x32xf32>
    %259 = arith.negf %258 : vector<2x32xf32>
    %260 = math.exp %259 : vector<2x32xf32>
    %cst_80 = arith.constant 1.000000e+00 : f32
    %261 = vector.broadcast %cst_80 : f32 to vector<2x32xf32>
    %262 = arith.addf %261, %260 : vector<2x32xf32>
    %263 = arith.divf %261, %262 : vector<2x32xf32>
    %264 = vector.extract_strided_slice %255 {offsets = [0, 32], sizes = [2, 32], strides = [1, 1]} : vector<2x96xf32> to vector<2x32xf32>
    %265 = vector.extract_strided_slice %250 {offsets = [0, 32], sizes = [2, 32], strides = [1, 1]} : vector<2x96xf32> to vector<2x32xf32>
    %266 = arith.addf %264, %265 : vector<2x32xf32>
    %267 = arith.negf %266 : vector<2x32xf32>
    %268 = math.exp %267 : vector<2x32xf32>
    %cst_81 = arith.constant 1.000000e+00 : f32
    %269 = vector.broadcast %cst_81 : f32 to vector<2x32xf32>
    %270 = arith.addf %269, %268 : vector<2x32xf32>
    %271 = arith.divf %269, %270 : vector<2x32xf32>
    %272 = vector.extract_strided_slice %255 {offsets = [0, 64], sizes = [2, 32], strides = [1, 1]} : vector<2x96xf32> to vector<2x32xf32>
    %273 = vector.extract_strided_slice %250 {offsets = [0, 64], sizes = [2, 32], strides = [1, 1]} : vector<2x96xf32> to vector<2x32xf32>
    %274 = arith.mulf %263, %273 : vector<2x32xf32>
    %275 = arith.addf %272, %274 : vector<2x32xf32>
    %276 = math.tanh %275 : vector<2x32xf32>
    %cst_82 = arith.constant 1.000000e+00 : f32
    %277 = vector.broadcast %cst_82 : f32 to vector<2x32xf32>
    %278 = arith.subf %277, %271 : vector<2x32xf32>
    %279 = arith.mulf %278, %276 : vector<2x32xf32>
    %280 = arith.mulf %271, %220 : vector<2x32xf32>
    %281 = arith.addf %279, %280 : vector<2x32xf32>
    %c0_83 = arith.constant 0 : index
    %c0_84 = arith.constant 0 : index
    %282 = vector.load %arg3[%c0_83, %c0_84] : memref<32x96xf32, #tpu.memory_space<vmem>>, vector<32x96xf32>
    %cst_85 = arith.constant dense<0.000000e+00> : vector<2x96xf32>
    %283 = tpu.matmul %281, %282, %cst_85 {dimension_numbers = #tpu.dot_dimension_numbers<[1], [0], [0], [1], [0, 0, 1, 1], [], []>, precision = #tpu.contract_precision<fp32>} : vector<2x32xf32>, vector<32x96xf32>, vector<2x96xf32> -> vector<2x96xf32>
    %284 = vector.extract_strided_slice %283 {offsets = [0, 0], sizes = [2, 32], strides = [1, 1]} : vector<2x96xf32> to vector<2x32xf32>
    %285 = vector.extract_strided_slice %252 {offsets = [0, 0], sizes = [2, 32], strides = [1, 1]} : vector<2x96xf32> to vector<2x32xf32>
    %286 = arith.addf %284, %285 : vector<2x32xf32>
    %287 = arith.negf %286 : vector<2x32xf32>
    %288 = math.exp %287 : vector<2x32xf32>
    %cst_86 = arith.constant 1.000000e+00 : f32
    %289 = vector.broadcast %cst_86 : f32 to vector<2x32xf32>
    %290 = arith.addf %289, %288 : vector<2x32xf32>
    %291 = arith.divf %289, %290 : vector<2x32xf32>
    %292 = vector.extract_strided_slice %283 {offsets = [0, 32], sizes = [2, 32], strides = [1, 1]} : vector<2x96xf32> to vector<2x32xf32>
    %293 = vector.extract_strided_slice %252 {offsets = [0, 32], sizes = [2, 32], strides = [1, 1]} : vector<2x96xf32> to vector<2x32xf32>
    %294 = arith.addf %292, %293 : vector<2x32xf32>
    %295 = arith.negf %294 : vector<2x32xf32>
    %296 = math.exp %295 : vector<2x32xf32>
    %cst_87 = arith.constant 1.000000e+00 : f32
    %297 = vector.broadcast %cst_87 : f32 to vector<2x32xf32>
    %298 = arith.addf %297, %296 : vector<2x32xf32>
    %299 = arith.divf %297, %298 : vector<2x32xf32>
    %300 = vector.extract_strided_slice %283 {offsets = [0, 64], sizes = [2, 32], strides = [1, 1]} : vector<2x96xf32> to vector<2x32xf32>
    %301 = vector.extract_strided_slice %252 {offsets = [0, 64], sizes = [2, 32], strides = [1, 1]} : vector<2x96xf32> to vector<2x32xf32>
    %302 = arith.mulf %291, %301 : vector<2x32xf32>
    %303 = arith.addf %300, %302 : vector<2x32xf32>
    %304 = math.tanh %303 : vector<2x32xf32>
    %cst_88 = arith.constant 1.000000e+00 : f32
    %305 = vector.broadcast %cst_88 : f32 to vector<2x32xf32>
    %306 = arith.subf %305, %299 : vector<2x32xf32>
    %307 = arith.mulf %306, %304 : vector<2x32xf32>
    %308 = arith.mulf %299, %248 : vector<2x32xf32>
    %309 = arith.addf %307, %308 : vector<2x32xf32>
    %c5_i32 = arith.constant 5 : i32
    %c0_89 = arith.constant 0 : index
    %c0_90 = arith.constant 0 : index
    %310 = vector.load %arg2[%c0_89, %c0_90] : memref<32x96xf32, #tpu.memory_space<vmem>>, vector<32x96xf32>
    %cst_91 = arith.constant dense<0.000000e+00> : vector<2x96xf32>
    %311 = tpu.matmul %281, %310, %cst_91 {dimension_numbers = #tpu.dot_dimension_numbers<[1], [0], [0], [1], [0, 0, 1, 1], [], []>, precision = #tpu.contract_precision<fp32>} : vector<2x32xf32>, vector<32x96xf32>, vector<2x96xf32> -> vector<2x96xf32>
    %c0_92 = arith.constant 0 : index
    %c0_93 = arith.constant 0 : index
    %312 = vector.load %arg4[%c0_92, %c0_93] : memref<32x96xf32, #tpu.memory_space<vmem>>, vector<32x96xf32>
    %cst_94 = arith.constant dense<0.000000e+00> : vector<2x96xf32>
    %313 = tpu.matmul %309, %312, %cst_94 {dimension_numbers = #tpu.dot_dimension_numbers<[1], [0], [0], [1], [0, 0, 1, 1], [], []>, precision = #tpu.contract_precision<fp32>} : vector<2x32xf32>, vector<32x96xf32>, vector<2x96xf32> -> vector<2x96xf32>
    %314 = arith.index_cast %c5_i32 : i32 to index
    %c0_95 = arith.constant 0 : index
    %c0_96 = arith.constant 0 : index
    %315 = vector.load %arg1[%314, %c0_95, %c0_96] : memref<8x2x96xf32, #tpu.memory_space<vmem>>, vector<1x2x96xf32>
    %316 = vector.shape_cast %315 : vector<1x2x96xf32> to vector<2x96xf32>
    %317 = vector.extract_strided_slice %316 {offsets = [0, 0], sizes = [2, 32], strides = [1, 1]} : vector<2x96xf32> to vector<2x32xf32>
    %318 = vector.extract_strided_slice %311 {offsets = [0, 0], sizes = [2, 32], strides = [1, 1]} : vector<2x96xf32> to vector<2x32xf32>
    %319 = arith.addf %317, %318 : vector<2x32xf32>
    %320 = arith.negf %319 : vector<2x32xf32>
    %321 = math.exp %320 : vector<2x32xf32>
    %cst_97 = arith.constant 1.000000e+00 : f32
    %322 = vector.broadcast %cst_97 : f32 to vector<2x32xf32>
    %323 = arith.addf %322, %321 : vector<2x32xf32>
    %324 = arith.divf %322, %323 : vector<2x32xf32>
    %325 = vector.extract_strided_slice %316 {offsets = [0, 32], sizes = [2, 32], strides = [1, 1]} : vector<2x96xf32> to vector<2x32xf32>
    %326 = vector.extract_strided_slice %311 {offsets = [0, 32], sizes = [2, 32], strides = [1, 1]} : vector<2x96xf32> to vector<2x32xf32>
    %327 = arith.addf %325, %326 : vector<2x32xf32>
    %328 = arith.negf %327 : vector<2x32xf32>
    %329 = math.exp %328 : vector<2x32xf32>
    %cst_98 = arith.constant 1.000000e+00 : f32
    %330 = vector.broadcast %cst_98 : f32 to vector<2x32xf32>
    %331 = arith.addf %330, %329 : vector<2x32xf32>
    %332 = arith.divf %330, %331 : vector<2x32xf32>
    %333 = vector.extract_strided_slice %316 {offsets = [0, 64], sizes = [2, 32], strides = [1, 1]} : vector<2x96xf32> to vector<2x32xf32>
    %334 = vector.extract_strided_slice %311 {offsets = [0, 64], sizes = [2, 32], strides = [1, 1]} : vector<2x96xf32> to vector<2x32xf32>
    %335 = arith.mulf %324, %334 : vector<2x32xf32>
    %336 = arith.addf %333, %335 : vector<2x32xf32>
    %337 = math.tanh %336 : vector<2x32xf32>
    %cst_99 = arith.constant 1.000000e+00 : f32
    %338 = vector.broadcast %cst_99 : f32 to vector<2x32xf32>
    %339 = arith.subf %338, %332 : vector<2x32xf32>
    %340 = arith.mulf %339, %337 : vector<2x32xf32>
    %341 = arith.mulf %332, %281 : vector<2x32xf32>
    %342 = arith.addf %340, %341 : vector<2x32xf32>
    %c0_100 = arith.constant 0 : index
    %c0_101 = arith.constant 0 : index
    %343 = vector.load %arg3[%c0_100, %c0_101] : memref<32x96xf32, #tpu.memory_space<vmem>>, vector<32x96xf32>
    %cst_102 = arith.constant dense<0.000000e+00> : vector<2x96xf32>
    %344 = tpu.matmul %342, %343, %cst_102 {dimension_numbers = #tpu.dot_dimension_numbers<[1], [0], [0], [1], [0, 0, 1, 1], [], []>, precision = #tpu.contract_precision<fp32>} : vector<2x32xf32>, vector<32x96xf32>, vector<2x96xf32> -> vector<2x96xf32>
    %345 = vector.extract_strided_slice %344 {offsets = [0, 0], sizes = [2, 32], strides = [1, 1]} : vector<2x96xf32> to vector<2x32xf32>
    %346 = vector.extract_strided_slice %313 {offsets = [0, 0], sizes = [2, 32], strides = [1, 1]} : vector<2x96xf32> to vector<2x32xf32>
    %347 = arith.addf %345, %346 : vector<2x32xf32>
    %348 = arith.negf %347 : vector<2x32xf32>
    %349 = math.exp %348 : vector<2x32xf32>
    %cst_103 = arith.constant 1.000000e+00 : f32
    %350 = vector.broadcast %cst_103 : f32 to vector<2x32xf32>
    %351 = arith.addf %350, %349 : vector<2x32xf32>
    %352 = arith.divf %350, %351 : vector<2x32xf32>
    %353 = vector.extract_strided_slice %344 {offsets = [0, 32], sizes = [2, 32], strides = [1, 1]} : vector<2x96xf32> to vector<2x32xf32>
    %354 = vector.extract_strided_slice %313 {offsets = [0, 32], sizes = [2, 32], strides = [1, 1]} : vector<2x96xf32> to vector<2x32xf32>
    %355 = arith.addf %353, %354 : vector<2x32xf32>
    %356 = arith.negf %355 : vector<2x32xf32>
    %357 = math.exp %356 : vector<2x32xf32>
    %cst_104 = arith.constant 1.000000e+00 : f32
    %358 = vector.broadcast %cst_104 : f32 to vector<2x32xf32>
    %359 = arith.addf %358, %357 : vector<2x32xf32>
    %360 = arith.divf %358, %359 : vector<2x32xf32>
    %361 = vector.extract_strided_slice %344 {offsets = [0, 64], sizes = [2, 32], strides = [1, 1]} : vector<2x96xf32> to vector<2x32xf32>
    %362 = vector.extract_strided_slice %313 {offsets = [0, 64], sizes = [2, 32], strides = [1, 1]} : vector<2x96xf32> to vector<2x32xf32>
    %363 = arith.mulf %352, %362 : vector<2x32xf32>
    %364 = arith.addf %361, %363 : vector<2x32xf32>
    %365 = math.tanh %364 : vector<2x32xf32>
    %cst_105 = arith.constant 1.000000e+00 : f32
    %366 = vector.broadcast %cst_105 : f32 to vector<2x32xf32>
    %367 = arith.subf %366, %360 : vector<2x32xf32>
    %368 = arith.mulf %367, %365 : vector<2x32xf32>
    %369 = arith.mulf %360, %309 : vector<2x32xf32>
    %370 = arith.addf %368, %369 : vector<2x32xf32>
    %c6_i32 = arith.constant 6 : i32
    %c0_106 = arith.constant 0 : index
    %c0_107 = arith.constant 0 : index
    %371 = vector.load %arg2[%c0_106, %c0_107] : memref<32x96xf32, #tpu.memory_space<vmem>>, vector<32x96xf32>
    %cst_108 = arith.constant dense<0.000000e+00> : vector<2x96xf32>
    %372 = tpu.matmul %342, %371, %cst_108 {dimension_numbers = #tpu.dot_dimension_numbers<[1], [0], [0], [1], [0, 0, 1, 1], [], []>, precision = #tpu.contract_precision<fp32>} : vector<2x32xf32>, vector<32x96xf32>, vector<2x96xf32> -> vector<2x96xf32>
    %c0_109 = arith.constant 0 : index
    %c0_110 = arith.constant 0 : index
    %373 = vector.load %arg4[%c0_109, %c0_110] : memref<32x96xf32, #tpu.memory_space<vmem>>, vector<32x96xf32>
    %cst_111 = arith.constant dense<0.000000e+00> : vector<2x96xf32>
    %374 = tpu.matmul %370, %373, %cst_111 {dimension_numbers = #tpu.dot_dimension_numbers<[1], [0], [0], [1], [0, 0, 1, 1], [], []>, precision = #tpu.contract_precision<fp32>} : vector<2x32xf32>, vector<32x96xf32>, vector<2x96xf32> -> vector<2x96xf32>
    %375 = arith.index_cast %c6_i32 : i32 to index
    %c0_112 = arith.constant 0 : index
    %c0_113 = arith.constant 0 : index
    %376 = vector.load %arg1[%375, %c0_112, %c0_113] : memref<8x2x96xf32, #tpu.memory_space<vmem>>, vector<1x2x96xf32>
    %377 = vector.shape_cast %376 : vector<1x2x96xf32> to vector<2x96xf32>
    %378 = vector.extract_strided_slice %377 {offsets = [0, 0], sizes = [2, 32], strides = [1, 1]} : vector<2x96xf32> to vector<2x32xf32>
    %379 = vector.extract_strided_slice %372 {offsets = [0, 0], sizes = [2, 32], strides = [1, 1]} : vector<2x96xf32> to vector<2x32xf32>
    %380 = arith.addf %378, %379 : vector<2x32xf32>
    %381 = arith.negf %380 : vector<2x32xf32>
    %382 = math.exp %381 : vector<2x32xf32>
    %cst_114 = arith.constant 1.000000e+00 : f32
    %383 = vector.broadcast %cst_114 : f32 to vector<2x32xf32>
    %384 = arith.addf %383, %382 : vector<2x32xf32>
    %385 = arith.divf %383, %384 : vector<2x32xf32>
    %386 = vector.extract_strided_slice %377 {offsets = [0, 32], sizes = [2, 32], strides = [1, 1]} : vector<2x96xf32> to vector<2x32xf32>
    %387 = vector.extract_strided_slice %372 {offsets = [0, 32], sizes = [2, 32], strides = [1, 1]} : vector<2x96xf32> to vector<2x32xf32>
    %388 = arith.addf %386, %387 : vector<2x32xf32>
    %389 = arith.negf %388 : vector<2x32xf32>
    %390 = math.exp %389 : vector<2x32xf32>
    %cst_115 = arith.constant 1.000000e+00 : f32
    %391 = vector.broadcast %cst_115 : f32 to vector<2x32xf32>
    %392 = arith.addf %391, %390 : vector<2x32xf32>
    %393 = arith.divf %391, %392 : vector<2x32xf32>
    %394 = vector.extract_strided_slice %377 {offsets = [0, 64], sizes = [2, 32], strides = [1, 1]} : vector<2x96xf32> to vector<2x32xf32>
    %395 = vector.extract_strided_slice %372 {offsets = [0, 64], sizes = [2, 32], strides = [1, 1]} : vector<2x96xf32> to vector<2x32xf32>
    %396 = arith.mulf %385, %395 : vector<2x32xf32>
    %397 = arith.addf %394, %396 : vector<2x32xf32>
    %398 = math.tanh %397 : vector<2x32xf32>
    %cst_116 = arith.constant 1.000000e+00 : f32
    %399 = vector.broadcast %cst_116 : f32 to vector<2x32xf32>
    %400 = arith.subf %399, %393 : vector<2x32xf32>
    %401 = arith.mulf %400, %398 : vector<2x32xf32>
    %402 = arith.mulf %393, %342 : vector<2x32xf32>
    %403 = arith.addf %401, %402 : vector<2x32xf32>
    %c0_117 = arith.constant 0 : index
    %c0_118 = arith.constant 0 : index
    %404 = vector.load %arg3[%c0_117, %c0_118] : memref<32x96xf32, #tpu.memory_space<vmem>>, vector<32x96xf32>
    %cst_119 = arith.constant dense<0.000000e+00> : vector<2x96xf32>
    %405 = tpu.matmul %403, %404, %cst_119 {dimension_numbers = #tpu.dot_dimension_numbers<[1], [0], [0], [1], [0, 0, 1, 1], [], []>, precision = #tpu.contract_precision<fp32>} : vector<2x32xf32>, vector<32x96xf32>, vector<2x96xf32> -> vector<2x96xf32>
    %406 = vector.extract_strided_slice %405 {offsets = [0, 0], sizes = [2, 32], strides = [1, 1]} : vector<2x96xf32> to vector<2x32xf32>
    %407 = vector.extract_strided_slice %374 {offsets = [0, 0], sizes = [2, 32], strides = [1, 1]} : vector<2x96xf32> to vector<2x32xf32>
    %408 = arith.addf %406, %407 : vector<2x32xf32>
    %409 = arith.negf %408 : vector<2x32xf32>
    %410 = math.exp %409 : vector<2x32xf32>
    %cst_120 = arith.constant 1.000000e+00 : f32
    %411 = vector.broadcast %cst_120 : f32 to vector<2x32xf32>
    %412 = arith.addf %411, %410 : vector<2x32xf32>
    %413 = arith.divf %411, %412 : vector<2x32xf32>
    %414 = vector.extract_strided_slice %405 {offsets = [0, 32], sizes = [2, 32], strides = [1, 1]} : vector<2x96xf32> to vector<2x32xf32>
    %415 = vector.extract_strided_slice %374 {offsets = [0, 32], sizes = [2, 32], strides = [1, 1]} : vector<2x96xf32> to vector<2x32xf32>
    %416 = arith.addf %414, %415 : vector<2x32xf32>
    %417 = arith.negf %416 : vector<2x32xf32>
    %418 = math.exp %417 : vector<2x32xf32>
    %cst_121 = arith.constant 1.000000e+00 : f32
    %419 = vector.broadcast %cst_121 : f32 to vector<2x32xf32>
    %420 = arith.addf %419, %418 : vector<2x32xf32>
    %421 = arith.divf %419, %420 : vector<2x32xf32>
    %422 = vector.extract_strided_slice %405 {offsets = [0, 64], sizes = [2, 32], strides = [1, 1]} : vector<2x96xf32> to vector<2x32xf32>
    %423 = vector.extract_strided_slice %374 {offsets = [0, 64], sizes = [2, 32], strides = [1, 1]} : vector<2x96xf32> to vector<2x32xf32>
    %424 = arith.mulf %413, %423 : vector<2x32xf32>
    %425 = arith.addf %422, %424 : vector<2x32xf32>
    %426 = math.tanh %425 : vector<2x32xf32>
    %cst_122 = arith.constant 1.000000e+00 : f32
    %427 = vector.broadcast %cst_122 : f32 to vector<2x32xf32>
    %428 = arith.subf %427, %421 : vector<2x32xf32>
    %429 = arith.mulf %428, %426 : vector<2x32xf32>
    %430 = arith.mulf %421, %370 : vector<2x32xf32>
    %431 = arith.addf %429, %430 : vector<2x32xf32>
    %c7_i32 = arith.constant 7 : i32
    %c0_123 = arith.constant 0 : index
    %c0_124 = arith.constant 0 : index
    %432 = vector.load %arg2[%c0_123, %c0_124] : memref<32x96xf32, #tpu.memory_space<vmem>>, vector<32x96xf32>
    %cst_125 = arith.constant dense<0.000000e+00> : vector<2x96xf32>
    %433 = tpu.matmul %403, %432, %cst_125 {dimension_numbers = #tpu.dot_dimension_numbers<[1], [0], [0], [1], [0, 0, 1, 1], [], []>, precision = #tpu.contract_precision<fp32>} : vector<2x32xf32>, vector<32x96xf32>, vector<2x96xf32> -> vector<2x96xf32>
    %c0_126 = arith.constant 0 : index
    %c0_127 = arith.constant 0 : index
    %434 = vector.load %arg4[%c0_126, %c0_127] : memref<32x96xf32, #tpu.memory_space<vmem>>, vector<32x96xf32>
    %cst_128 = arith.constant dense<0.000000e+00> : vector<2x96xf32>
    %435 = tpu.matmul %431, %434, %cst_128 {dimension_numbers = #tpu.dot_dimension_numbers<[1], [0], [0], [1], [0, 0, 1, 1], [], []>, precision = #tpu.contract_precision<fp32>} : vector<2x32xf32>, vector<32x96xf32>, vector<2x96xf32> -> vector<2x96xf32>
    %436 = arith.index_cast %c7_i32 : i32 to index
    %c0_129 = arith.constant 0 : index
    %c0_130 = arith.constant 0 : index
    %437 = vector.load %arg1[%436, %c0_129, %c0_130] : memref<8x2x96xf32, #tpu.memory_space<vmem>>, vector<1x2x96xf32>
    %438 = vector.shape_cast %437 : vector<1x2x96xf32> to vector<2x96xf32>
    %439 = vector.extract_strided_slice %438 {offsets = [0, 0], sizes = [2, 32], strides = [1, 1]} : vector<2x96xf32> to vector<2x32xf32>
    %440 = vector.extract_strided_slice %433 {offsets = [0, 0], sizes = [2, 32], strides = [1, 1]} : vector<2x96xf32> to vector<2x32xf32>
    %441 = arith.addf %439, %440 : vector<2x32xf32>
    %442 = arith.negf %441 : vector<2x32xf32>
    %443 = math.exp %442 : vector<2x32xf32>
    %cst_131 = arith.constant 1.000000e+00 : f32
    %444 = vector.broadcast %cst_131 : f32 to vector<2x32xf32>
    %445 = arith.addf %444, %443 : vector<2x32xf32>
    %446 = arith.divf %444, %445 : vector<2x32xf32>
    %447 = vector.extract_strided_slice %438 {offsets = [0, 32], sizes = [2, 32], strides = [1, 1]} : vector<2x96xf32> to vector<2x32xf32>
    %448 = vector.extract_strided_slice %433 {offsets = [0, 32], sizes = [2, 32], strides = [1, 1]} : vector<2x96xf32> to vector<2x32xf32>
    %449 = arith.addf %447, %448 : vector<2x32xf32>
    %450 = arith.negf %449 : vector<2x32xf32>
    %451 = math.exp %450 : vector<2x32xf32>
    %cst_132 = arith.constant 1.000000e+00 : f32
    %452 = vector.broadcast %cst_132 : f32 to vector<2x32xf32>
    %453 = arith.addf %452, %451 : vector<2x32xf32>
    %454 = arith.divf %452, %453 : vector<2x32xf32>
    %455 = vector.extract_strided_slice %438 {offsets = [0, 64], sizes = [2, 32], strides = [1, 1]} : vector<2x96xf32> to vector<2x32xf32>
    %456 = vector.extract_strided_slice %433 {offsets = [0, 64], sizes = [2, 32], strides = [1, 1]} : vector<2x96xf32> to vector<2x32xf32>
    %457 = arith.mulf %446, %456 : vector<2x32xf32>
    %458 = arith.addf %455, %457 : vector<2x32xf32>
    %459 = math.tanh %458 : vector<2x32xf32>
    %cst_133 = arith.constant 1.000000e+00 : f32
    %460 = vector.broadcast %cst_133 : f32 to vector<2x32xf32>
    %461 = arith.subf %460, %454 : vector<2x32xf32>
    %462 = arith.mulf %461, %459 : vector<2x32xf32>
    %463 = arith.mulf %454, %403 : vector<2x32xf32>
    %464 = arith.addf %462, %463 : vector<2x32xf32>
    %c0_134 = arith.constant 0 : index
    %c0_135 = arith.constant 0 : index
    %465 = vector.load %arg3[%c0_134, %c0_135] : memref<32x96xf32, #tpu.memory_space<vmem>>, vector<32x96xf32>
    %cst_136 = arith.constant dense<0.000000e+00> : vector<2x96xf32>
    %466 = tpu.matmul %464, %465, %cst_136 {dimension_numbers = #tpu.dot_dimension_numbers<[1], [0], [0], [1], [0, 0, 1, 1], [], []>, precision = #tpu.contract_precision<fp32>} : vector<2x32xf32>, vector<32x96xf32>, vector<2x96xf32> -> vector<2x96xf32>
    %467 = vector.extract_strided_slice %466 {offsets = [0, 0], sizes = [2, 32], strides = [1, 1]} : vector<2x96xf32> to vector<2x32xf32>
    %468 = vector.extract_strided_slice %435 {offsets = [0, 0], sizes = [2, 32], strides = [1, 1]} : vector<2x96xf32> to vector<2x32xf32>
    %469 = arith.addf %467, %468 : vector<2x32xf32>
    %470 = arith.negf %469 : vector<2x32xf32>
    %471 = math.exp %470 : vector<2x32xf32>
    %cst_137 = arith.constant 1.000000e+00 : f32
    %472 = vector.broadcast %cst_137 : f32 to vector<2x32xf32>
    %473 = arith.addf %472, %471 : vector<2x32xf32>
    %474 = arith.divf %472, %473 : vector<2x32xf32>
    %475 = vector.extract_strided_slice %466 {offsets = [0, 32], sizes = [2, 32], strides = [1, 1]} : vector<2x96xf32> to vector<2x32xf32>
    %476 = vector.extract_strided_slice %435 {offsets = [0, 32], sizes = [2, 32], strides = [1, 1]} : vector<2x96xf32> to vector<2x32xf32>
    %477 = arith.addf %475, %476 : vector<2x32xf32>
    %478 = arith.negf %477 : vector<2x32xf32>
    %479 = math.exp %478 : vector<2x32xf32>
    %cst_138 = arith.constant 1.000000e+00 : f32
    %480 = vector.broadcast %cst_138 : f32 to vector<2x32xf32>
    %481 = arith.addf %480, %479 : vector<2x32xf32>
    %482 = arith.divf %480, %481 : vector<2x32xf32>
    %483 = vector.extract_strided_slice %466 {offsets = [0, 64], sizes = [2, 32], strides = [1, 1]} : vector<2x96xf32> to vector<2x32xf32>
    %484 = vector.extract_strided_slice %435 {offsets = [0, 64], sizes = [2, 32], strides = [1, 1]} : vector<2x96xf32> to vector<2x32xf32>
    %485 = arith.mulf %474, %484 : vector<2x32xf32>
    %486 = arith.addf %483, %485 : vector<2x32xf32>
    %487 = math.tanh %486 : vector<2x32xf32>
    %cst_139 = arith.constant 1.000000e+00 : f32
    %488 = vector.broadcast %cst_139 : f32 to vector<2x32xf32>
    %489 = arith.subf %488, %482 : vector<2x32xf32>
    %490 = arith.mulf %489, %487 : vector<2x32xf32>
    %491 = arith.mulf %482, %431 : vector<2x32xf32>
    %492 = arith.addf %490, %491 : vector<2x32xf32>
    %c8_i32 = arith.constant 8 : i32
    %c0_140 = arith.constant 0 : index
    %c0_141 = arith.constant 0 : index
    %493 = vector.load %arg7[%c0_140, %c0_141] : memref<2x32xf32, #tpu.memory_space<vmem>>, vector<2x32xf32>
    tpu.vector_store %arg7[%c0_140, %c0_141], %464 {strides = array<i32>} : memref<2x32xf32, #tpu.memory_space<vmem>>, vector<2x32xf32>,
    %c0_142 = arith.constant 0 : index
    %c0_143 = arith.constant 0 : index
    %494 = vector.load %arg8[%c0_142, %c0_143] : memref<2x32xf32, #tpu.memory_space<vmem>>, vector<2x32xf32>
    tpu.vector_store %arg8[%c0_142, %c0_143], %492 {strides = array<i32>} : memref<2x32xf32, #tpu.memory_space<vmem>>, vector<2x32xf32>,
    %c0_i32_144 = arith.constant 0 : i32
    %495 = arith.cmpi eq, %arg0, %c0_i32_144 : i32
    %496 = arith.extui %495 : i1 to i32
    %c0_i32_145 = arith.constant 0 : i32
    %497 = arith.cmpi ne, %496, %c0_i32_145 : i32
    scf.if %497 {
      %498 = tpu.iota {dimensions = array<i32: 0>} : vector<2x2xi32>
      %499 = tpu.iota {dimensions = array<i32: 1>} : vector<2x2xi32>
      %c2_i32_146 = arith.constant 2 : i32
      %500 = vector.broadcast %c2_i32_146 : i32 to vector<2x2xi32>
      %501 = arith.muli %500, %498 : vector<2x2xi32>
      %c2_i32_147 = arith.constant 2 : i32
      %502 = vector.broadcast %c2_i32_147 : i32 to vector<2x2xi32>
      %503 = arith.cmpi slt, %501, %502 : vector<2x2xi32>
      %504 = arith.cmpi eq, %499, %501 : vector<2x2xi32>
      %505 = arith.andi %503, %504 : vector<2x2xi1>
      %506 = arith.extui %505 : vector<2x2xi1> to vector<2x2xi32>
      %507 = arith.sitofp %506 : vector<2x2xi32> to vector<2x2xf32>
      %c2_i32_148 = arith.constant 2 : i32
      %508 = vector.broadcast %c2_i32_148 : i32 to vector<2x2xi32>
      %509 = arith.cmpi sge, %501, %508 : vector<2x2xi32>
      %c2_i32_149 = arith.constant 2 : i32
      %510 = vector.broadcast %c2_i32_149 : i32 to vector<2x2xi32>
      %511 = arith.subi %501, %510 : vector<2x2xi32>
      %512 = arith.cmpi eq, %499, %511 : vector<2x2xi32>
      %513 = arith.andi %509, %512 : vector<2x2xi1>
      %514 = arith.extui %513 : vector<2x2xi1> to vector<2x2xi32>
      %515 = arith.sitofp %514 : vector<2x2xi32> to vector<2x2xf32>
      %cst_150 = arith.constant dense<0.000000e+00> : vector<2x32xf32>
      %516 = tpu.matmul %507, %464, %cst_150 {dimension_numbers = #tpu.dot_dimension_numbers<[1], [0], [0], [1], [0, 0, 1, 1], [], []>, precision = #tpu.contract_precision<fp32>} : vector<2x2xf32>, vector<2x32xf32>, vector<2x32xf32> -> vector<2x32xf32>
      %cst_151 = arith.constant dense<0.000000e+00> : vector<2x32xf32>
      %517 = tpu.matmul %515, %492, %cst_151 {dimension_numbers = #tpu.dot_dimension_numbers<[1], [0], [0], [1], [0, 0, 1, 1], [], []>, precision = #tpu.contract_precision<fp32>} : vector<2x2xf32>, vector<2x32xf32>, vector<2x32xf32> -> vector<2x32xf32>
      %518 = arith.addf %516, %517 : vector<2x32xf32>
      %c2_i32_152 = arith.constant 2 : i32
      %519 = vector.broadcast %c2_i32_152 : i32 to vector<2x2xi32>
      %520 = arith.muli %519, %498 : vector<2x2xi32>
      %c1_i32_153 = arith.constant 1 : i32
      %521 = vector.broadcast %c1_i32_153 : i32 to vector<2x2xi32>
      %522 = arith.addi %520, %521 : vector<2x2xi32>
      %c2_i32_154 = arith.constant 2 : i32
      %523 = vector.broadcast %c2_i32_154 : i32 to vector<2x2xi32>
      %524 = arith.cmpi slt, %522, %523 : vector<2x2xi32>
      %525 = arith.cmpi eq, %499, %522 : vector<2x2xi32>
      %526 = arith.andi %524, %525 : vector<2x2xi1>
      %527 = arith.extui %526 : vector<2x2xi1> to vector<2x2xi32>
      %528 = arith.sitofp %527 : vector<2x2xi32> to vector<2x2xf32>
      %c2_i32_155 = arith.constant 2 : i32
      %529 = vector.broadcast %c2_i32_155 : i32 to vector<2x2xi32>
      %530 = arith.cmpi sge, %522, %529 : vector<2x2xi32>
      %c2_i32_156 = arith.constant 2 : i32
      %531 = vector.broadcast %c2_i32_156 : i32 to vector<2x2xi32>
      %532 = arith.subi %522, %531 : vector<2x2xi32>
      %533 = arith.cmpi eq, %499, %532 : vector<2x2xi32>
      %534 = arith.andi %530, %533 : vector<2x2xi1>
      %535 = arith.extui %534 : vector<2x2xi1> to vector<2x2xi32>
      %536 = arith.sitofp %535 : vector<2x2xi32> to vector<2x2xf32>
      %cst_157 = arith.constant dense<0.000000e+00> : vector<2x32xf32>
      %537 = tpu.matmul %528, %464, %cst_157 {dimension_numbers = #tpu.dot_dimension_numbers<[1], [0], [0], [1], [0, 0, 1, 1], [], []>, precision = #tpu.contract_precision<fp32>} : vector<2x2xf32>, vector<2x32xf32>, vector<2x32xf32> -> vector<2x32xf32>
      %cst_158 = arith.constant dense<0.000000e+00> : vector<2x32xf32>
      %538 = tpu.matmul %536, %492, %cst_158 {dimension_numbers = #tpu.dot_dimension_numbers<[1], [0], [0], [1], [0, 0, 1, 1], [], []>, precision = #tpu.contract_precision<fp32>} : vector<2x2xf32>, vector<2x32xf32>, vector<2x32xf32> -> vector<2x32xf32>
      %539 = arith.addf %537, %538 : vector<2x32xf32>
      %c0_159 = arith.constant 0 : index
      %c0_160 = arith.constant 0 : index
      %540 = vector.load %arg5[%c0_159, %c0_160] : memref<64x3xf32, #tpu.memory_space<vmem>>, vector<32x3xf32>
      %cst_161 = arith.constant dense<0.000000e+00> : vector<2x3xf32>
      %541 = tpu.matmul %518, %540, %cst_161 {dimension_numbers = #tpu.dot_dimension_numbers<[1], [0], [0], [1], [0, 0, 1, 1], [], []>, precision = #tpu.contract_precision<fp32>} : vector<2x32xf32>, vector<32x3xf32>, vector<2x3xf32> -> vector<2x3xf32>
      %c32 = arith.constant 32 : index
      %c0_162 = arith.constant 0 : index
      %542 = vector.load %arg5[%c32, %c0_162] : memref<64x3xf32, #tpu.memory_space<vmem>>, vector<32x3xf32>
      %cst_163 = arith.constant dense<0.000000e+00> : vector<2x3xf32>
      %543 = tpu.matmul %539, %542, %cst_163 {dimension_numbers = #tpu.dot_dimension_numbers<[1], [0], [0], [1], [0, 0, 1, 1], [], []>, precision = #tpu.contract_precision<fp32>} : vector<2x32xf32>, vector<32x3xf32>, vector<2x3xf32> -> vector<2x3xf32>
      %544 = arith.addf %541, %543 : vector<2x3xf32>
      %c0_164 = arith.constant 0 : index
      %c0_165 = arith.constant 0 : index
      %545 = vector.load %arg6[%c0_164, %c0_165] : memref<2x3xf32, #tpu.memory_space<vmem>>, vector<2x3xf32>
      tpu.vector_store %arg6[%c0_164, %c0_165], %544 {strides = array<i32>} : memref<2x3xf32, #tpu.memory_space<vmem>>, vector<2x3xf32>,
    } else {
    }
    return
  }
  func.func @transform_0(%arg0: i32) -> (i32, i32, i32) {
    %c0_i32 = arith.constant 0 : i32
    %c0_i32_0 = arith.constant 0 : i32
    %c0_i32_1 = arith.constant 0 : i32
    return %arg0, %c0_i32, %c0_i32_0 : i32, i32, i32
  }
  func.func @transform_1(%arg0: i32) -> (i32, i32) {
    %c0_i32 = arith.constant 0 : i32
    %c0_i32_0 = arith.constant 0 : i32
    %c0_i32_1 = arith.constant 0 : i32
    return %c0_i32, %c0_i32_0 : i32, i32
  }
  func.func @transform_2(%arg0: i32) -> (i32, i32) {
    %c0_i32 = arith.constant 0 : i32
    %c0_i32_0 = arith.constant 0 : i32
    %c0_i32_1 = arith.constant 0 : i32
    return %c0_i32, %c0_i32_0 : i32, i32
  }
  func.func @transform_3(%arg0: i32) -> (i32, i32) {
    %c0_i32 = arith.constant 0 : i32
    %c0_i32_0 = arith.constant 0 : i32
    %c0_i32_1 = arith.constant 0 : i32
    return %c0_i32, %c0_i32_0 : i32, i32
  }
  func.func @transform_4(%arg0: i32) -> (i32, i32) {
    %c0_i32 = arith.constant 0 : i32
    %c0_i32_0 = arith.constant 0 : i32
    %c0_i32_1 = arith.constant 0 : i32
    return %c0_i32, %c0_i32_0 : i32, i32
  }
  func.func @transform_5(%arg0: i32) -> (i32, i32) {
    %c0_i32 = arith.constant 0 : i32
    %c0_i32_0 = arith.constant 0 : i32
    %c0_i32_1 = arith.constant 0 : i32
    return %c0_i32, %c0_i32_0 : i32, i32
  }
}

</mosaic_0001>

<llo_original>
// kernel: deep_lstm_forward.1
$region0: #{deep_lstm_forward.1}
  #allocation0 [shape = 'u32[]', space=smem, size = 0x4, offset = 0x4, fixed_abs, tag = 'smem constant byte address 0x4 - core index']
  #allocation1 [shape = 'u32[72,128]{1,0:T(1,128)}', space=vmem, size = 0x9000, scoped, tag = 'internal scratch']
  #allocation2 [shape = 'f32[2,32]{1,0:T(2,128)}', space=vmem, size = 0x400, scoped, tag = 'scratch operand']
  #allocation3 [shape = 'f32[2,32]{1,0:T(2,128)}', space=vmem, size = 0x400, scoped, tag = 'scratch operand']
  %s0 = inlined_call_operand.vmem [shape: f32[8,2,96], index: 0, kind: input, shape index: {}]
  %s1 = inlined_call_operand.vmem [shape: f32[32,96], index: 1, kind: input, shape index: {}]
  %s2 = inlined_call_operand.vmem [shape: f32[32,96], index: 2, kind: input, shape index: {}]
  %s3 = inlined_call_operand.vmem [shape: f32[32,96], index: 3, kind: input, shape index: {}]
  %s4 = inlined_call_operand.vmem [shape: f32[64,3], index: 4, kind: input, shape index: {}]
  %s5 = inlined_call_operand.hbm [shape: f32[2,3], index: 5, kind: output, shape index: {}]
  %s6 = sld [smem:[#allocation0]]
  $region38: #{deep_lstm_forward.1} parent=0
    _
  %s8 = ssub.s32 1, %s6
  %s9 = scalar_select 0, %s8, %s6
  $region1: #{deep_lstm_forward.1} parent=0
    #allocation4 [shape = 'u8[1024]{0}', space=vmem, size = 0x400, scoped, tag = 'output window, operand 0, single buffered']
    #allocation5 [shape = 's32[1]{0}', space=sflag, size = 0x4, scoped, tag = 'scoped memory for deep_lstm_forward.1']
    %10 = vsyncpa [#allocation5], 0
    // Predicated region
    $region2: #{deep_lstm_forward.1} parent=1 // pred_check
      _
    $region3: #{deep_lstm_forward.1} parent=1 // pred_check_branch
      %12 = sbr.rel (0) target = $region5
    $region4: #{deep_lstm_forward.1} parent=1 // pred_region
      _
    $region5: #{deep_lstm_forward.1} parent=1 // pred_fallthru
      _
    // Predicated region
    $region6: #{deep_lstm_forward.1} parent=1 // pred_check
      _
    $region7: #{deep_lstm_forward.1} parent=1 // pred_check_branch
      %14 = sbr.rel (0) target = $region9
    $region8: #{deep_lstm_forward.1} parent=1 // pred_region
      _
    $region9: #{deep_lstm_forward.1} parent=1 // pred_fallthru
      _
    // Predicated region
    $region10: #{deep_lstm_forward.1} parent=1 // pred_check
      _
    $region11: #{deep_lstm_forward.1} parent=1 // pred_check_branch
      %16 = sbr.rel (0) target = $region13
    $region12: #{deep_lstm_forward.1} parent=1 // pred_region
      _
    $region13: #{deep_lstm_forward.1} parent=1 // pred_fallthru
      _
    // Predicated region
    $region14: #{deep_lstm_forward.1} parent=1 // pred_check
      _
    $region15: #{deep_lstm_forward.1} parent=1 // pred_check_branch
      %18 = sbr.rel (0) target = $region17
    $region16: #{deep_lstm_forward.1} parent=1 // pred_region
      _
    $region17: #{deep_lstm_forward.1} parent=1 // pred_fallthru
      _
    // Predicated region
    $region18: #{deep_lstm_forward.1} parent=1 // pred_check
      _
    $region19: #{deep_lstm_forward.1} parent=1 // pred_check_branch
      %20 = sbr.rel (0) target = $region21
    $region20: #{deep_lstm_forward.1} parent=1 // pred_region
      _
    $region21: #{deep_lstm_forward.1} parent=1 // pred_fallthru
      _
    %p21 = scmp.eq.s32.totalorder 0, 0
    // Predicated region
    $region22: #{deep_lstm_forward.1} parent=1 // pred_check
      %p22 = pneg %p21
    $region23: #{deep_lstm_forward.1} parent=1 // pred_check_branch
      %24 = sbr.rel (%p22) target = $region25
    $region24: #{deep_lstm_forward.1} parent=1 // pred_region
      %vm25 = vcmask 254976
      %26 = vst.msk [vmem:[#allocation2] sm:$0x3] %vm25, 0.0
      %27 = vst.msk [vmem:[#allocation3] sm:$0x3] %vm25, 0.0
    $region25: #{deep_lstm_forward.1} parent=1 // pred_fallthru
      _
    %v28 = vld [vmem:[#allocation2] sm:$0x3]
    %v29 = vld [vmem:[#allocation3] sm:$0x3]
    %v30 = vld [vmem:[%s1] sm:$0xff]
    %v31 = vld [vmem:[%s1 + $0x8] sm:$0xff]
    %v32 = vld [vmem:[%s1 + $0x10] sm:$0xff]
    %v33 = vld [vmem:[%s1 + $0x18] sm:$0xff]
    %vm34 = vcmask 261120
    %v36 = vsel %vm34, %v28, 0
    %38 = vmatpush.msra.mxu0 0.0
    %39 = vmatpush.msra.mxu0 0.0
    %40 = vmatpush.msra.mxu0 0.0
    %41 = vmatpush.msra.mxu0 0.0
    %42 = vmatpush.msra.mxu0 0.0
    %43 = vmatpush.msra.mxu0 0.0
    %44 = vmatpush.msra.mxu0 0.0
    %45 = vmatpush.msra.mxu0 0.0
    %46 = vmatpush.msra.mxu0 0.0
    %47 = vmatpush.msra.mxu0 0.0
    %48 = vmatpush.msra.mxu0 0.0
    %49 = vmatpush.msra.mxu0 0.0
    %v50 = vand.u32 %v33, 4294901760
    %51 = vmatpush.msra.mxu0 %v50
    %v52 = vand.u32 %v32, 4294901760
    %53 = vmatpush.msra.mxu0 %v52
    %v54 = vand.u32 %v31, 4294901760
    %55 = vmatpush.msra.mxu0 %v54
    %v56 = vand.u32 %v30, 4294901760
    %57 = vmatpush.msra.mxu0 %v56
    %v58 = vand.u32 %v36, 4294901760
    %v59 = vsub.f32 %v36, %v58
    %v60 = vand.u32 %v59, 4294901760
    %v61 = vsub.f32 %v59, %v60
    %v62 = vand.u32 %v61, 4294901760
    %63 = vmatmul.f32.gmra.mxu0 %v62
    %v64 = vpop.f32.mrf.mxu0
    %v65 = vadd.f32 0.0, %v64
    %66 = vdwg.mxu0
    %67 = vmatpush.msra.mxu0 0.0
    %68 = vmatpush.msra.mxu0 0.0
    %69 = vmatpush.msra.mxu0 0.0
    %70 = vmatpush.msra.mxu0 0.0
    %71 = vmatpush.msra.mxu0 0.0
    %72 = vmatpush.msra.mxu0 0.0
    %73 = vmatpush.msra.mxu0 0.0
    %74 = vmatpush.msra.mxu0 0.0
    %75 = vmatpush.msra.mxu0 0.0
    %76 = vmatpush.msra.mxu0 0.0
    %77 = vmatpush.msra.mxu0 0.0
    %78 = vmatpush.msra.mxu0 0.0
    %v79 = vand.u32 %v33, 4294901760
    %v80 = vsub.f32 %v33, %v79
    %v81 = vand.u32 %v80, 4294901760
    %v82 = vsub.f32 %v80, %v81
    %v83 = vand.u32 %v82, 4294901760
    %84 = vmatpush.msra.mxu0 %v83
    %v85 = vand.u32 %v32, 4294901760
    %v86 = vsub.f32 %v32, %v85
    %v87 = vand.u32 %v86, 4294901760
    %v88 = vsub.f32 %v86, %v87
    %v89 = vand.u32 %v88, 4294901760
    %90 = vmatpush.msra.mxu0 %v89
    %v91 = vand.u32 %v31, 4294901760
    %v92 = vsub.f32 %v31, %v91
    %v93 = vand.u32 %v92, 4294901760
    %v94 = vsub.f32 %v92, %v93
    %v95 = vand.u32 %v94, 4294901760
    %96 = vmatpush.msra.mxu0 %v95
    %v97 = vand.u32 %v30, 4294901760
    %v98 = vsub.f32 %v30, %v97
    %v99 = vand.u32 %v98, 4294901760
    %v100 = vsub.f32 %v98, %v99
    %v101 = vand.u32 %v100, 4294901760
    %102 = vmatpush.msra.mxu0 %v101
    %v103 = vand.u32 %v36, 4294901760
    %104 = vmatmul.f32.gmra.mxu0 %v103
    %v105 = vpop.f32.mrf.mxu0
    %v106 = vadd.f32 %v65, %v105
    %107 = vdwg.mxu0
    %108 = vmatpush.msra.mxu0 0.0
    %109 = vmatpush.msra.mxu0 0.0
    %110 = vmatpush.msra.mxu0 0.0
    %111 = vmatpush.msra.mxu0 0.0
    %112 = vmatpush.msra.mxu0 0.0
    %113 = vmatpush.msra.mxu0 0.0
    %114 = vmatpush.msra.mxu0 0.0
    %115 = vmatpush.msra.mxu0 0.0
    %116 = vmatpush.msra.mxu0 0.0
    %117 = vmatpush.msra.mxu0 0.0
    %118 = vmatpush.msra.mxu0 0.0
    %119 = vmatpush.msra.mxu0 0.0
    %v120 = vand.u32 %v33, 4294901760
    %v121 = vsub.f32 %v33, %v120
    %122 = vmatpush.msra.mxu0 %v121
    %v123 = vand.u32 %v32, 4294901760
    %v124 = vsub.f32 %v32, %v123
    %125 = vmatpush.msra.mxu0 %v124
    %v126 = vand.u32 %v31, 4294901760
    %v127 = vsub.f32 %v31, %v126
    %128 = vmatpush.msra.mxu0 %v127
    %v129 = vand.u32 %v30, 4294901760
    %v130 = vsub.f32 %v30, %v129
    %131 = vmatpush.msra.mxu0 %v130
    %v132 = vand.u32 %v36, 4294901760
    %v133 = vsub.f32 %v36, %v132
    %134 = vmatmul.f32.gmra.mxu0 %v133
    %v135 = vpop.f32.mrf.mxu0
    %v136 = vadd.f32 %v106, %v135
    %137 = vdwg.mxu0
    %138 = vmatpush.msra.mxu0 0.0
    %139 = vmatpush.msra.mxu0 0.0
    %140 = vmatpush.msra.mxu0 0.0
    %141 = vmatpush.msra.mxu0 0.0
    %142 = vmatpush.msra.mxu0 0.0
    %143 = vmatpush.msra.mxu0 0.0
    %144 = vmatpush.msra.mxu0 0.0
    %145 = vmatpush.msra.mxu0 0.0
    %146 = vmatpush.msra.mxu0 0.0
    %147 = vmatpush.msra.mxu0 0.0
    %148 = vmatpush.msra.mxu0 0.0
    %149 = vmatpush.msra.mxu0 0.0
    %v150 = vand.u32 %v33, 4294901760
    %151 = vmatpush.msra.mxu0 %v150
    %v152 = vand.u32 %v32, 4294901760
    %153 = vmatpush.msra.mxu0 %v152
    %v154 = vand.u32 %v31, 4294901760
    %155 = vmatpush.msra.mxu0 %v154
    %v156 = vand.u32 %v30, 4294901760
    %157 = vmatpush.msra.mxu0 %v156
    %v158 = vand.u32 %v36, 4294901760
    %v159 = vsub.f32 %v36, %v158
    %v160 = vand.u32 %v159, 4294901760
    %161 = vmatmul.f32.gmra.mxu0 %v160
    %v162 = vpop.f32.mrf.mxu0
    %v163 = vadd.f32 %v136, %v162
    %164 = vdwg.mxu0
    %165 = vmatpush.msra.mxu0 0.0
    %166 = vmatpush.msra.mxu0 0.0
    %167 = vmatpush.msra.mxu0 0.0
    %168 = vmatpush.msra.mxu0 0.0
    %169 = vmatpush.msra.mxu0 0.0
    %170 = vmatpush.msra.mxu0 0.0
    %171 = vmatpush.msra.mxu0 0.0
    %172 = vmatpush.msra.mxu0 0.0
    %173 = vmatpush.msra.mxu0 0.0
    %174 = vmatpush.msra.mxu0 0.0
    %175 = vmatpush.msra.mxu0 0.0
    %176 = vmatpush.msra.mxu0 0.0
    %v177 = vand.u32 %v33, 4294901760
    %v178 = vsub.f32 %v33, %v177
    %v179 = vand.u32 %v178, 4294901760
    %180 = vmatpush.msra.mxu0 %v179
    %v181 = vand.u32 %v32, 4294901760
    %v182 = vsub.f32 %v32, %v181
    %v183 = vand.u32 %v182, 4294901760
    %184 = vmatpush.msra.mxu0 %v183
    %v185 = vand.u32 %v31, 4294901760
    %v186 = vsub.f32 %v31, %v185
    %v187 = vand.u32 %v186, 4294901760
    %188 = vmatpush.msra.mxu0 %v187
    %v189 = vand.u32 %v30, 4294901760
    %v190 = vsub.f32 %v30, %v189
    %v191 = vand.u32 %v190, 4294901760
    %192 = vmatpush.msra.mxu0 %v191
    %v193 = vand.u32 %v36, 4294901760
    %194 = vmatmul.f32.gmra.mxu0 %v193
    %v195 = vpop.f32.mrf.mxu0
    %v196 = vadd.f32 %v163, %v195
    %197 = vdwg.mxu0
    %198 = vmatpush.msra.mxu0 0.0
    %199 = vmatpush.msra.mxu0 0.0
    %200 = vmatpush.msra.mxu0 0.0
    %201 = vmatpush.msra.mxu0 0.0
    %202 = vmatpush.msra.mxu0 0.0
    %203 = vmatpush.msra.mxu0 0.0
    %204 = vmatpush.msra.mxu0 0.0
    %205 = vmatpush.msra.mxu0 0.0
    %206 = vmatpush.msra.mxu0 0.0
    %207 = vmatpush.msra.mxu0 0.0
    %208 = vmatpush.msra.mxu0 0.0
    %209 = vmatpush.msra.mxu0 0.0
    %v210 = vand.u32 %v33, 4294901760
    %211 = vmatpush.msra.mxu0 %v210
    %v212 = vand.u32 %v32, 4294901760
    %213 = vmatpush.msra.mxu0 %v212
    %v214 = vand.u32 %v31, 4294901760
    %215 = vmatpush.msra.mxu0 %v214
    %v216 = vand.u32 %v30, 4294901760
    %217 = vmatpush.msra.mxu0 %v216
    %v218 = vand.u32 %v36, 4294901760
    %219 = vmatmul.f32.gmra.mxu0 %v218
    %v220 = vpop.f32.mrf.mxu0
    %v221 = vadd.f32 %v196, %v220
    %222 = vdwg.mxu0
    %v223 = vld [vmem:[%s3] sm:$0xff]
    %v224 = vld [vmem:[%s3 + $0x8] sm:$0xff]
    %v225 = vld [vmem:[%s3 + $0x10] sm:$0xff]
    %v226 = vld [vmem:[%s3 + $0x18] sm:$0xff]
    %v228 = vsel %vm34, %v29, 0
    %230 = vmatpush.msra.mxu0 0.0
    %231 = vmatpush.msra.mxu0 0.0
    %232 = vmatpush.msra.mxu0 0.0
    %233 = vmatpush.msra.mxu0 0.0
    %234 = vmatpush.msra.mxu0 0.0
    %235 = vmatpush.msra.mxu0 0.0
    %236 = vmatpush.msra.mxu0 0.0
    %237 = vmatpush.msra.mxu0 0.0
    %238 = vmatpush.msra.mxu0 0.0
    %239 = vmatpush.msra.mxu0 0.0
    %240 = vmatpush.msra.mxu0 0.0
    %241 = vmatpush.msra.mxu0 0.0
    %v242 = vand.u32 %v226, 4294901760
    %243 = vmatpush.msra.mxu0 %v242
    %v244 = vand.u32 %v225, 4294901760
    %245 = vmatpush.msra.mxu0 %v244
    %v246 = vand.u32 %v224, 4294901760
    %247 = vmatpush.msra.mxu0 %v246
    %v248 = vand.u32 %v223, 4294901760
    %249 = vmatpush.msra.mxu0 %v248
    %v250 = vand.u32 %v228, 4294901760
    %v251 = vsub.f32 %v228, %v250
    %v252 = vand.u32 %v251, 4294901760
    %v253 = vsub.f32 %v251, %v252
    %v254 = vand.u32 %v253, 4294901760
    %255 = vmatmul.f32.gmra.mxu0 %v254
    %v256 = vpop.f32.mrf.mxu0
    %v257 = vadd.f32 0.0, %v256
    %258 = vdwg.mxu0
    %259 = vmatpush.msra.mxu0 0.0
    %260 = vmatpush.msra.mxu0 0.0
    %261 = vmatpush.msra.mxu0 0.0
    %262 = vmatpush.msra.mxu0 0.0
    %263 = vmatpush.msra.mxu0 0.0
    %264 = vmatpush.msra.mxu0 0.0
    %265 = vmatpush.msra.mxu0 0.0
    %266 = vmatpush.msra.mxu0 0.0
    %267 = vmatpush.msra.mxu0 0.0
    %268 = vmatpush.msra.mxu0 0.0
    %269 = vmatpush.msra.mxu0 0.0
    %270 = vmatpush.msra.mxu0 0.0
    %v271 = vand.u32 %v226, 4294901760
    %v272 = vsub.f32 %v226, %v271
    %v273 = vand.u32 %v272, 4294901760
    %v274 = vsub.f32 %v272, %v273
    %v275 = vand.u32 %v274, 4294901760
    %276 = vmatpush.msra.mxu0 %v275
    %v277 = vand.u32 %v225, 4294901760
    %v278 = vsub.f32 %v225, %v277
    %v279 = vand.u32 %v278, 4294901760
    %v280 = vsub.f32 %v278, %v279
    %v281 = vand.u32 %v280, 4294901760
    %282 = vmatpush.msra.mxu0 %v281
    %v283 = vand.u32 %v224, 4294901760
    %v284 = vsub.f32 %v224, %v283
    %v285 = vand.u32 %v284, 4294901760
    %v286 = vsub.f32 %v284, %v285
    %v287 = vand.u32 %v286, 4294901760
    %288 = vmatpush.msra.mxu0 %v287
    %v289 = vand.u32 %v223, 4294901760
    %v290 = vsub.f32 %v223, %v289
    %v291 = vand.u32 %v290, 4294901760
    %v292 = vsub.f32 %v290, %v291
    %v293 = vand.u32 %v292, 4294901760
    %294 = vmatpush.msra.mxu0 %v293
    %v295 = vand.u32 %v228, 4294901760
    %296 = vmatmul.f32.gmra.mxu0 %v295
    %v297 = vpop.f32.mrf.mxu0
    %v298 = vadd.f32 %v257, %v297
    %299 = vdwg.mxu0
    %300 = vmatpush.msra.mxu0 0.0
    %301 = vmatpush.msra.mxu0 0.0
    %302 = vmatpush.msra.mxu0 0.0
    %303 = vmatpush.msra.mxu0 0.0
    %304 = vmatpush.msra.mxu0 0.0
    %305 = vmatpush.msra.mxu0 0.0
    %306 = vmatpush.msra.mxu0 0.0
    %307 = vmatpush.msra.mxu0 0.0
    %308 = vmatpush.msra.mxu0 0.0
    %309 = vmatpush.msra.mxu0 0.0
    %310 = vmatpush.msra.mxu0 0.0
    %311 = vmatpush.msra.mxu0 0.0
    %v312 = vand.u32 %v226, 4294901760
    %v313 = vsub.f32 %v226, %v312
    %314 = vmatpush.msra.mxu0 %v313
    %v315 = vand.u32 %v225, 4294901760
    %v316 = vsub.f32 %v225, %v315
    %317 = vmatpush.msra.mxu0 %v316
    %v318 = vand.u32 %v224, 4294901760
    %v319 = vsub.f32 %v224, %v318
    %320 = vmatpush.msra.mxu0 %v319
    %v321 = vand.u32 %v223, 4294901760
    %v322 = vsub.f32 %v223, %v321
    %323 = vmatpush.msra.mxu0 %v322
    %v324 = vand.u32 %v228, 4294901760
    %v325 = vsub.f32 %v228, %v324
    %326 = vmatmul.f32.gmra.mxu0 %v325
    %v327 = vpop.f32.mrf.mxu0
    %v328 = vadd.f32 %v298, %v327
    %329 = vdwg.mxu0
    %330 = vmatpush.msra.mxu0 0.0
    %331 = vmatpush.msra.mxu0 0.0
    %332 = vmatpush.msra.mxu0 0.0
    %333 = vmatpush.msra.mxu0 0.0
    %334 = vmatpush.msra.mxu0 0.0
    %335 = vmatpush.msra.mxu0 0.0
    %336 = vmatpush.msra.mxu0 0.0
    %337 = vmatpush.msra.mxu0 0.0
    %338 = vmatpush.msra.mxu0 0.0
    %339 = vmatpush.msra.mxu0 0.0
    %340 = vmatpush.msra.mxu0 0.0
    %341 = vmatpush.msra.mxu0 0.0
    %v342 = vand.u32 %v226, 4294901760
    %343 = vmatpush.msra.mxu0 %v342
    %v344 = vand.u32 %v225, 4294901760
    %345 = vmatpush.msra.mxu0 %v344
    %v346 = vand.u32 %v224, 4294901760
    %347 = vmatpush.msra.mxu0 %v346
    %v348 = vand.u32 %v223, 4294901760
    %349 = vmatpush.msra.mxu0 %v348
    %v350 = vand.u32 %v228, 4294901760
    %v351 = vsub.f32 %v228, %v350
    %v352 = vand.u32 %v351, 4294901760
    %353 = vmatmul.f32.gmra.mxu0 %v352
    %v354 = vpop.f32.mrf.mxu0
    %v355 = vadd.f32 %v328, %v354
    %356 = vdwg.mxu0
    %357 = vmatpush.msra.mxu0 0.0
    %358 = vmatpush.msra.mxu0 0.0
    %359 = vmatpush.msra.mxu0 0.0
    %360 = vmatpush.msra.mxu0 0.0
    %361 = vmatpush.msra.mxu0 0.0
    %362 = vmatpush.msra.mxu0 0.0
    %363 = vmatpush.msra.mxu0 0.0
    %364 = vmatpush.msra.mxu0 0.0
    %365 = vmatpush.msra.mxu0 0.0
    %366 = vmatpush.msra.mxu0 0.0
    %367 = vmatpush.msra.mxu0 0.0
    %368 = vmatpush.msra.mxu0 0.0
    %v369 = vand.u32 %v226, 4294901760
    %v370 = vsub.f32 %v226, %v369
    %v371 = vand.u32 %v370, 4294901760
    %372 = vmatpush.msra.mxu0 %v371
    %v373 = vand.u32 %v225, 4294901760
    %v374 = vsub.f32 %v225, %v373
    %v375 = vand.u32 %v374, 4294901760
    %376 = vmatpush.msra.mxu0 %v375
    %v377 = vand.u32 %v224, 4294901760
    %v378 = vsub.f32 %v224, %v377
    %v379 = vand.u32 %v378, 4294901760
    %380 = vmatpush.msra.mxu0 %v379
    %v381 = vand.u32 %v223, 4294901760
    %v382 = vsub.f32 %v223, %v381
    %v383 = vand.u32 %v382, 4294901760
    %384 = vmatpush.msra.mxu0 %v383
    %v385 = vand.u32 %v228, 4294901760
    %386 = vmatmul.f32.gmra.mxu0 %v385
    %v387 = vpop.f32.mrf.mxu0
    %v388 = vadd.f32 %v355, %v387
    %389 = vdwg.mxu0
    %390 = vmatpush.msra.mxu0 0.0
    %391 = vmatpush.msra.mxu0 0.0
    %392 = vmatpush.msra.mxu0 0.0
    %393 = vmatpush.msra.mxu0 0.0
    %394 = vmatpush.msra.mxu0 0.0
    %395 = vmatpush.msra.mxu0 0.0
    %396 = vmatpush.msra.mxu0 0.0
    %397 = vmatpush.msra.mxu0 0.0
    %398 = vmatpush.msra.mxu0 0.0
    %399 = vmatpush.msra.mxu0 0.0
    %400 = vmatpush.msra.mxu0 0.0
    %401 = vmatpush.msra.mxu0 0.0
    %v402 = vand.u32 %v226, 4294901760
    %403 = vmatpush.msra.mxu0 %v402
    %v404 = vand.u32 %v225, 4294901760
    %405 = vmatpush.msra.mxu0 %v404
    %v406 = vand.u32 %v224, 4294901760
    %407 = vmatpush.msra.mxu0 %v406
    %v408 = vand.u32 %v223, 4294901760
    %409 = vmatpush.msra.mxu0 %v408
    %v410 = vand.u32 %v228, 4294901760
    %411 = vmatmul.f32.gmra.mxu0 %v410
    %v412 = vpop.f32.mrf.mxu0
    %v413 = vadd.f32 %v388, %v412
    %414 = vdwg.mxu0
    %v415 = vld [vmem:[%s0] sm:$0x3]
    %v416 = vadd.f32 %v415, %v221
    %v417 = vxor.u32 %v416, 2147483648
    %v418 = vmul.f32 %v417, 1.442695
    %v419 = vpow.pop %v418
    %v420 = vadd.f32 %v419, 1.0
    %v421 = vrcp.pop %v420
    %v422 = vmul.f32 %v420, %v421
    %v423 = vsub.f32 1.0, %v422
    %v424 = vmul.f32 %v421, %v423
    %v425 = vadd.f32 %v421, %v424
    %vm426 = vweird.f32 %v420
    %vm427 = vweird.f32 %v421
    %vm428 = vmor %vm426, %vm427
    %v429 = vsel %vm428, %v421, %v425
    %v430 = vand.u32 2147483647, %v420
    %vm431 = vcmp.eq.f32.partialorder %v430, 8.507059e+37
    %v432 = vand.u32 %v420, 2147483648
    %v433 = vor.u32 1.1754944e-38, %v432
    %v434 = vsel %vm431, %v433, %v429
    %v435 = vmul.f32 1.0, %v434
    %437 = vrot.lane.b32.xlu0 %v221, 64
    %v438 = vpop.permute.xlu0 %437
    %v440 = vmul.f32 %v435, %v438
    %442 = vrot.lane.b32.xlu0 %v440, 64
    %v443 = vpop.permute.xlu0 %442
    %v445 = vadd.f32 %v415, %v443
    %v446 = vtanh.pop %v445
    %v447 = vsub.f32 1.0, %v435
    %449 = vrot.lane.b32.xlu0 %v446, 96
    %v450 = vpop.permute.xlu0 %449
    %v452 = vmul.f32 %v447, %v450
    %453 = vrot.lane.b32.xlu0 %v28, 32
    %v454 = vpop.permute.xlu0 %453
    %v456 = vmul.f32 %v435, %v454
    %v457 = vadd.f32 %v452, %v456
    %v458 = vld [vmem:[%s2] sm:$0xff]
    %v459 = vld [vmem:[%s2 + $0x8] sm:$0xff]
    %v460 = vld [vmem:[%s2 + $0x10] sm:$0xff]
    %v461 = vld [vmem:[%s2 + $0x18] sm:$0xff]
    %463 = vrot.lane.b32.xlu0 %v457, 96
    %v464 = vpop.permute.xlu0 %463
    %v465 = vsel %vm34, %v464, 0
    %467 = vmatpush.msra.mxu0 0.0
    %468 = vmatpush.msra.mxu0 0.0
    %469 = vmatpush.msra.mxu0 0.0
    %470 = vmatpush.msra.mxu0 0.0
    %471 = vmatpush.msra.mxu0 0.0
    %472 = vmatpush.msra.mxu0 0.0
    %473 = vmatpush.msra.mxu0 0.0
    %474 = vmatpush.msra.mxu0 0.0
    %475 = vmatpush.msra.mxu0 0.0
    %476 = vmatpush.msra.mxu0 0.0
    %477 = vmatpush.msra.mxu0 0.0
    %478 = vmatpush.msra.mxu0 0.0
    %v479 = vand.u32 %v461, 4294901760
    %480 = vmatpush.msra.mxu0 %v479
    %v481 = vand.u32 %v460, 4294901760
    %482 = vmatpush.msra.mxu0 %v481
    %v483 = vand.u32 %v459, 4294901760
    %484 = vmatpush.msra.mxu0 %v483
    %v485 = vand.u32 %v458, 4294901760
    %486 = vmatpush.msra.mxu0 %v485
    %v487 = vand.u32 %v465, 4294901760
    %v488 = vsub.f32 %v465, %v487
    %v489 = vand.u32 %v488, 4294901760
    %v490 = vsub.f32 %v488, %v489
    %v491 = vand.u32 %v490, 4294901760
    %492 = vmatmul.f32.gmra.mxu0 %v491
    %v493 = vpop.f32.mrf.mxu0
    %v494 = vadd.f32 0.0, %v493
    %495 = vdwg.mxu0
    %496 = vmatpush.msra.mxu0 0.0
    %497 = vmatpush.msra.mxu0 0.0
    %498 = vmatpush.msra.mxu0 0.0
    %499 = vmatpush.msra.mxu0 0.0
    %500 = vmatpush.msra.mxu0 0.0
    %501 = vmatpush.msra.mxu0 0.0
    %502 = vmatpush.msra.mxu0 0.0
    %503 = vmatpush.msra.mxu0 0.0
    %504 = vmatpush.msra.mxu0 0.0
    %505 = vmatpush.msra.mxu0 0.0
    %506 = vmatpush.msra.mxu0 0.0
    %507 = vmatpush.msra.mxu0 0.0
    %v508 = vand.u32 %v461, 4294901760
    %v509 = vsub.f32 %v461, %v508
    %v510 = vand.u32 %v509, 4294901760
    %v511 = vsub.f32 %v509, %v510
    %v512 = vand.u32 %v511, 4294901760
    %513 = vmatpush.msra.mxu0 %v512
    %v514 = vand.u32 %v460, 4294901760
    %v515 = vsub.f32 %v460, %v514
    %v516 = vand.u32 %v515, 4294901760
    %v517 = vsub.f32 %v515, %v516
    %v518 = vand.u32 %v517, 4294901760
    %519 = vmatpush.msra.mxu0 %v518
    %v520 = vand.u32 %v459, 4294901760
    %v521 = vsub.f32 %v459, %v520
    %v522 = vand.u32 %v521, 4294901760
    %v523 = vsub.f32 %v521, %v522
    %v524 = vand.u32 %v523, 4294901760
    %525 = vmatpush.msra.mxu0 %v524
    %v526 = vand.u32 %v458, 4294901760
    %v527 = vsub.f32 %v458, %v526
    %v528 = vand.u32 %v527, 4294901760
    %v529 = vsub.f32 %v527, %v528
    %v530 = vand.u32 %v529, 4294901760
    %531 = vmatpush.msra.mxu0 %v530
    %v532 = vand.u32 %v465, 4294901760
    %533 = vmatmul.f32.gmra.mxu0 %v532
    %v534 = vpop.f32.mrf.mxu0
    %v535 = vadd.f32 %v494, %v534
    %536 = vdwg.mxu0
    %537 = vmatpush.msra.mxu0 0.0
    %538 = vmatpush.msra.mxu0 0.0
    %539 = vmatpush.msra.mxu0 0.0
    %540 = vmatpush.msra.mxu0 0.0
    %541 = vmatpush.msra.mxu0 0.0
    %542 = vmatpush.msra.mxu0 0.0
    %543 = vmatpush.msra.mxu0 0.0
    %544 = vmatpush.msra.mxu0 0.0
    %545 = vmatpush.msra.mxu0 0.0
    %546 = vmatpush.msra.mxu0 0.0
    %547 = vmatpush.msra.mxu0 0.0
    %548 = vmatpush.msra.mxu0 0.0
    %v549 = vand.u32 %v461, 4294901760
    %v550 = vsub.f32 %v461, %v549
    %551 = vmatpush.msra.mxu0 %v550
    %v552 = vand.u32 %v460, 4294901760
    %v553 = vsub.f32 %v460, %v552
    %554 = vmatpush.msra.mxu0 %v553
    %v555 = vand.u32 %v459, 4294901760
    %v556 = vsub.f32 %v459, %v555
    %557 = vmatpush.msra.mxu0 %v556
    %v558 = vand.u32 %v458, 4294901760
    %v559 = vsub.f32 %v458, %v558
    %560 = vmatpush.msra.mxu0 %v559
    %v561 = vand.u32 %v465, 4294901760
    %v562 = vsub.f32 %v465, %v561
    %563 = vmatmul.f32.gmra.mxu0 %v562
    %v564 = vpop.f32.mrf.mxu0
    %v565 = vadd.f32 %v535, %v564
    %566 = vdwg.mxu0
    %567 = vmatpush.msra.mxu0 0.0
    %568 = vmatpush.msra.mxu0 0.0
    %569 = vmatpush.msra.mxu0 0.0
    %570 = vmatpush.msra.mxu0 0.0
    %571 = vmatpush.msra.mxu0 0.0
    %572 = vmatpush.msra.mxu0 0.0
    %573 = vmatpush.msra.mxu0 0.0
    %574 = vmatpush.msra.mxu0 0.0
    %575 = vmatpush.msra.mxu0 0.0
    %576 = vmatpush.msra.mxu0 0.0
    %577 = vmatpush.msra.mxu0 0.0
    %578 = vmatpush.msra.mxu0 0.0
    %v579 = vand.u32 %v461, 4294901760
    %580 = vmatpush.msra.mxu0 %v579
    %v581 = vand.u32 %v460, 4294901760
    %582 = vmatpush.msra.mxu0 %v581
    %v583 = vand.u32 %v459, 4294901760
    %584 = vmatpush.msra.mxu0 %v583
    %v585 = vand.u32 %v458, 4294901760
    %586 = vmatpush.msra.mxu0 %v585
    %v587 = vand.u32 %v465, 4294901760
    %v588 = vsub.f32 %v465, %v587
    %v589 = vand.u32 %v588, 4294901760
    %590 = vmatmul.f32.gmra.mxu0 %v589
    %v591 = vpop.f32.mrf.mxu0
    %v592 = vadd.f32 %v565, %v591
    %593 = vdwg.mxu0
    %594 = vmatpush.msra.mxu0 0.0
    %595 = vmatpush.msra.mxu0 0.0
    %596 = vmatpush.msra.mxu0 0.0
    %597 = vmatpush.msra.mxu0 0.0
    %598 = vmatpush.msra.mxu0 0.0
    %599 = vmatpush.msra.mxu0 0.0
    %600 = vmatpush.msra.mxu0 0.0
    %601 = vmatpush.msra.mxu0 0.0
    %602 = vmatpush.msra.mxu0 0.0
    %603 = vmatpush.msra.mxu0 0.0
    %604 = vmatpush.msra.mxu0 0.0
    %605 = vmatpush.msra.mxu0 0.0
    %v606 = vand.u32 %v461, 4294901760
    %v607 = vsub.f32 %v461, %v606
    %v608 = vand.u32 %v607, 4294901760
    %609 = vmatpush.msra.mxu0 %v608
    %v610 = vand.u32 %v460, 4294901760
    %v611 = vsub.f32 %v460, %v610
    %v612 = vand.u32 %v611, 4294901760
    %613 = vmatpush.msra.mxu0 %v612
    %v614 = vand.u32 %v459, 4294901760
    %v615 = vsub.f32 %v459, %v614
    %v616 = vand.u32 %v615, 4294901760
    %617 = vmatpush.msra.mxu0 %v616
    %v618 = vand.u32 %v458, 4294901760
    %v619 = vsub.f32 %v458, %v618
    %v620 = vand.u32 %v619, 4294901760
    %621 = vmatpush.msra.mxu0 %v620
    %v622 = vand.u32 %v465, 4294901760
    %623 = vmatmul.f32.gmra.mxu0 %v622
    %v624 = vpop.f32.mrf.mxu0
    %v625 = vadd.f32 %v592, %v624
    %626 = vdwg.mxu0
    %627 = vmatpush.msra.mxu0 0.0
    %628 = vmatpush.msra.mxu0 0.0
    %629 = vmatpush.msra.mxu0 0.0
    %630 = vmatpush.msra.mxu0 0.0
    %631 = vmatpush.msra.mxu0 0.0
    %632 = vmatpush.msra.mxu0 0.0
    %633 = vmatpush.msra.mxu0 0.0
    %634 = vmatpush.msra.mxu0 0.0
    %635 = vmatpush.msra.mxu0 0.0
    %636 = vmatpush.msra.mxu0 0.0
    %637 = vmatpush.msra.mxu0 0.0
    %638 = vmatpush.msra.mxu0 0.0
    %v639 = vand.u32 %v461, 4294901760
    %640 = vmatpush.msra.mxu0 %v639
    %v641 = vand.u32 %v460, 4294901760
    %642 = vmatpush.msra.mxu0 %v641
    %v643 = vand.u32 %v459, 4294901760
    %644 = vmatpush.msra.mxu0 %v643
    %v645 = vand.u32 %v458, 4294901760
    %646 = vmatpush.msra.mxu0 %v645
    %v647 = vand.u32 %v465, 4294901760
    %648 = vmatmul.f32.gmra.mxu0 %v647
    %v649 = vpop.f32.mrf.mxu0
    %v650 = vadd.f32 %v625, %v649
    %651 = vdwg.mxu0
    %v652 = vadd.f32 %v650, %v413
    %v653 = vxor.u32 %v652, 2147483648
    %v654 = vmul.f32 %v653, 1.442695
    %v655 = vpow.pop %v654
    %v656 = vadd.f32 %v655, 1.0
    %v657 = vrcp.pop %v656
    %v658 = vmul.f32 %v656, %v657
    %v659 = vsub.f32 1.0, %v658
    %v660 = vmul.f32 %v657, %v659
    %v661 = vadd.f32 %v657, %v660
    %vm662 = vweird.f32 %v656
    %vm663 = vweird.f32 %v657
    %vm664 = vmor %vm662, %vm663
    %v665 = vsel %vm664, %v657, %v661
    %v666 = vand.u32 2147483647, %v656
    %vm667 = vcmp.eq.f32.partialorder %v666, 8.507059e+37
    %v668 = vand.u32 %v656, 2147483648
    %v669 = vor.u32 1.1754944e-38, %v668
    %v670 = vsel %vm667, %v669, %v665
    %v671 = vmul.f32 1.0, %v670
    %673 = vrot.lane.b32.xlu0 %v413, 64
    %v674 = vpop.permute.xlu0 %673
    %v676 = vmul.f32 %v671, %v674
    %678 = vrot.lane.b32.xlu0 %v676, 64
    %v679 = vpop.permute.xlu0 %678
    %v681 = vadd.f32 %v650, %v679
    %v682 = vtanh.pop %v681
    %v683 = vsub.f32 1.0, %v671
    %685 = vrot.lane.b32.xlu0 %v682, 96
    %v686 = vpop.permute.xlu0 %685
    %v688 = vmul.f32 %v683, %v686
    %689 = vrot.lane.b32.xlu0 %v29, 32
    %v690 = vpop.permute.xlu0 %689
    %v692 = vmul.f32 %v671, %v690
    %v693 = vadd.f32 %v688, %v692
    %694 = vmatpush.msra.mxu0 0.0
    %695 = vmatpush.msra.mxu0 0.0
    %696 = vmatpush.msra.mxu0 0.0
    %697 = vmatpush.msra.mxu0 0.0
    %698 = vmatpush.msra.mxu0 0.0
    %699 = vmatpush.msra.mxu0 0.0
    %700 = vmatpush.msra.mxu0 0.0
    %701 = vmatpush.msra.mxu0 0.0
    %702 = vmatpush.msra.mxu0 0.0
    %703 = vmatpush.msra.mxu0 0.0
    %704 = vmatpush.msra.mxu0 0.0
    %705 = vmatpush.msra.mxu0 0.0
    %v706 = vand.u32 %v33, 4294901760
    %707 = vmatpush.msra.mxu0 %v706
    %v708 = vand.u32 %v32, 4294901760
    %709 = vmatpush.msra.mxu0 %v708
    %v710 = vand.u32 %v31, 4294901760
    %711 = vmatpush.msra.mxu0 %v710
    %v712 = vand.u32 %v30, 4294901760
    %713 = vmatpush.msra.mxu0 %v712
    %v714 = vand.u32 %v465, 4294901760
    %v715 = vsub.f32 %v465, %v714
    %v716 = vand.u32 %v715, 4294901760
    %v717 = vsub.f32 %v715, %v716
    %v718 = vand.u32 %v717, 4294901760
    %719 = vmatmul.f32.gmra.mxu0 %v718
    %v720 = vpop.f32.mrf.mxu0
    %v721 = vadd.f32 0.0, %v720
    %722 = vdwg.mxu0
    %723 = vmatpush.msra.mxu0 0.0
    %724 = vmatpush.msra.mxu0 0.0
    %725 = vmatpush.msra.mxu0 0.0
    %726 = vmatpush.msra.mxu0 0.0
    %727 = vmatpush.msra.mxu0 0.0
    %728 = vmatpush.msra.mxu0 0.0
    %729 = vmatpush.msra.mxu0 0.0
    %730 = vmatpush.msra.mxu0 0.0
    %731 = vmatpush.msra.mxu0 0.0
    %732 = vmatpush.msra.mxu0 0.0
    %733 = vmatpush.msra.mxu0 0.0
    %734 = vmatpush.msra.mxu0 0.0
    %v735 = vand.u32 %v33, 4294901760
    %v736 = vsub.f32 %v33, %v735
    %v737 = vand.u32 %v736, 4294901760
    %v738 = vsub.f32 %v736, %v737
    %v739 = vand.u32 %v738, 4294901760
    %740 = vmatpush.msra.mxu0 %v739
    %v741 = vand.u32 %v32, 4294901760
    %v742 = vsub.f32 %v32, %v741
    %v743 = vand.u32 %v742, 4294901760
    %v744 = vsub.f32 %v742, %v743
    %v745 = vand.u32 %v744, 4294901760
    %746 = vmatpush.msra.mxu0 %v745
    %v747 = vand.u32 %v31, 4294901760
    %v748 = vsub.f32 %v31, %v747
    %v749 = vand.u32 %v748, 4294901760
    %v750 = vsub.f32 %v748, %v749
    %v751 = vand.u32 %v750, 4294901760
    %752 = vmatpush.msra.mxu0 %v751
    %v753 = vand.u32 %v30, 4294901760
    %v754 = vsub.f32 %v30, %v753
    %v755 = vand.u32 %v754, 4294901760
    %v756 = vsub.f32 %v754, %v755
    %v757 = vand.u32 %v756, 4294901760
    %758 = vmatpush.msra.mxu0 %v757
    %v759 = vand.u32 %v465, 4294901760
    %760 = vmatmul.f32.gmra.mxu0 %v759
    %v761 = vpop.f32.mrf.mxu0
    %v762 = vadd.f32 %v721, %v761
    %763 = vdwg.mxu0
    %764 = vmatpush.msra.mxu0 0.0
    %765 = vmatpush.msra.mxu0 0.0
    %766 = vmatpush.msra.mxu0 0.0
    %767 = vmatpush.msra.mxu0 0.0
    %768 = vmatpush.msra.mxu0 0.0
    %769 = vmatpush.msra.mxu0 0.0
    %770 = vmatpush.msra.mxu0 0.0
    %771 = vmatpush.msra.mxu0 0.0
    %772 = vmatpush.msra.mxu0 0.0
    %773 = vmatpush.msra.mxu0 0.0
    %774 = vmatpush.msra.mxu0 0.0
    %775 = vmatpush.msra.mxu0 0.0
    %v776 = vand.u32 %v33, 4294901760
    %v777 = vsub.f32 %v33, %v776
    %778 = vmatpush.msra.mxu0 %v777
    %v779 = vand.u32 %v32, 4294901760
    %v780 = vsub.f32 %v32, %v779
    %781 = vmatpush.msra.mxu0 %v780
    %v782 = vand.u32 %v31, 4294901760
    %v783 = vsub.f32 %v31, %v782
    %784 = vmatpush.msra.mxu0 %v783
    %v785 = vand.u32 %v30, 4294901760
    %v786 = vsub.f32 %v30, %v785
    %787 = vmatpush.msra.mxu0 %v786
    %v788 = vand.u32 %v465, 4294901760
    %v789 = vsub.f32 %v465, %v788
    %790 = vmatmul.f32.gmra.mxu0 %v789
    %v791 = vpop.f32.mrf.mxu0
    %v792 = vadd.f32 %v762, %v791
    %793 = vdwg.mxu0
    %794 = vmatpush.msra.mxu0 0.0
    %795 = vmatpush.msra.mxu0 0.0
    %796 = vmatpush.msra.mxu0 0.0
    %797 = vmatpush.msra.mxu0 0.0
    %798 = vmatpush.msra.mxu0 0.0
    %799 = vmatpush.msra.mxu0 0.0
    %800 = vmatpush.msra.mxu0 0.0
    %801 = vmatpush.msra.mxu0 0.0
    %802 = vmatpush.msra.mxu0 0.0
    %803 = vmatpush.msra.mxu0 0.0
    %804 = vmatpush.msra.mxu0 0.0
    %805 = vmatpush.msra.mxu0 0.0
    %v806 = vand.u32 %v33, 4294901760
    %807 = vmatpush.msra.mxu0 %v806
    %v808 = vand.u32 %v32, 4294901760
    %809 = vmatpush.msra.mxu0 %v808
    %v810 = vand.u32 %v31, 4294901760
    %811 = vmatpush.msra.mxu0 %v810
    %v812 = vand.u32 %v30, 4294901760
    %813 = vmatpush.msra.mxu0 %v812
    %v814 = vand.u32 %v465, 4294901760
    %v815 = vsub.f32 %v465, %v814
    %v816 = vand.u32 %v815, 4294901760
    %817 = vmatmul.f32.gmra.mxu0 %v816
    %v818 = vpop.f32.mrf.mxu0
    %v819 = vadd.f32 %v792, %v818
    %820 = vdwg.mxu0
    %821 = vmatpush.msra.mxu0 0.0
    %822 = vmatpush.msra.mxu0 0.0
    %823 = vmatpush.msra.mxu0 0.0
    %824 = vmatpush.msra.mxu0 0.0
    %825 = vmatpush.msra.mxu0 0.0
    %826 = vmatpush.msra.mxu0 0.0
    %827 = vmatpush.msra.mxu0 0.0
    %828 = vmatpush.msra.mxu0 0.0
    %829 = vmatpush.msra.mxu0 0.0
    %830 = vmatpush.msra.mxu0 0.0
    %831 = vmatpush.msra.mxu0 0.0
    %832 = vmatpush.msra.mxu0 0.0
    %v833 = vand.u32 %v33, 4294901760
    %v834 = vsub.f32 %v33, %v833
    %v835 = vand.u32 %v834, 4294901760
    %836 = vmatpush.msra.mxu0 %v835
    %v837 = vand.u32 %v32, 4294901760
    %v838 = vsub.f32 %v32, %v837
    %v839 = vand.u32 %v838, 4294901760
    %840 = vmatpush.msra.mxu0 %v839
    %v841 = vand.u32 %v31, 4294901760
    %v842 = vsub.f32 %v31, %v841
    %v843 = vand.u32 %v842, 4294901760
    %844 = vmatpush.msra.mxu0 %v843
    %v845 = vand.u32 %v30, 4294901760
    %v846 = vsub.f32 %v30, %v845
    %v847 = vand.u32 %v846, 4294901760
    %848 = vmatpush.msra.mxu0 %v847
    %v849 = vand.u32 %v465, 4294901760
    %850 = vmatmul.f32.gmra.mxu0 %v849
    %v851 = vpop.f32.mrf.mxu0
    %v852 = vadd.f32 %v819, %v851
    %853 = vdwg.mxu0
    %854 = vmatpush.msra.mxu0 0.0
    %855 = vmatpush.msra.mxu0 0.0
    %856 = vmatpush.msra.mxu0 0.0
    %857 = vmatpush.msra.mxu0 0.0
    %858 = vmatpush.msra.mxu0 0.0
    %859 = vmatpush.msra.mxu0 0.0
    %860 = vmatpush.msra.mxu0 0.0
    %861 = vmatpush.msra.mxu0 0.0
    %862 = vmatpush.msra.mxu0 0.0
    %863 = vmatpush.msra.mxu0 0.0
    %864 = vmatpush.msra.mxu0 0.0
    %865 = vmatpush.msra.mxu0 0.0
    %v866 = vand.u32 %v33, 4294901760
    %867 = vmatpush.msra.mxu0 %v866
    %v868 = vand.u32 %v32, 4294901760
    %869 = vmatpush.msra.mxu0 %v868
    %v870 = vand.u32 %v31, 4294901760
    %871 = vmatpush.msra.mxu0 %v870
    %v872 = vand.u32 %v30, 4294901760
    %873 = vmatpush.msra.mxu0 %v872
    %v874 = vand.u32 %v465, 4294901760
    %875 = vmatmul.f32.gmra.mxu0 %v874
    %v876 = vpop.f32.mrf.mxu0
    %v877 = vadd.f32 %v852, %v876
    %878 = vdwg.mxu0
    %880 = vrot.lane.b32.xlu0 %v693, 96
    %v881 = vpop.permute.xlu0 %880
    %v882 = vsel %vm34, %v881, 0
    %884 = vmatpush.msra.mxu0 0.0
    %885 = vmatpush.msra.mxu0 0.0
    %886 = vmatpush.msra.mxu0 0.0
    %887 = vmatpush.msra.mxu0 0.0
    %888 = vmatpush.msra.mxu0 0.0
    %889 = vmatpush.msra.mxu0 0.0
    %890 = vmatpush.msra.mxu0 0.0
    %891 = vmatpush.msra.mxu0 0.0
    %892 = vmatpush.msra.mxu0 0.0
    %893 = vmatpush.msra.mxu0 0.0
    %894 = vmatpush.msra.mxu0 0.0
    %895 = vmatpush.msra.mxu0 0.0
    %v896 = vand.u32 %v226, 4294901760
    %897 = vmatpush.msra.mxu0 %v896
    %v898 = vand.u32 %v225, 4294901760
    %899 = vmatpush.msra.mxu0 %v898
    %v900 = vand.u32 %v224, 4294901760
    %901 = vmatpush.msra.mxu0 %v900
    %v902 = vand.u32 %v223, 4294901760
    %903 = vmatpush.msra.mxu0 %v902
    %v904 = vand.u32 %v882, 4294901760
    %v905 = vsub.f32 %v882, %v904
    %v906 = vand.u32 %v905, 4294901760
    %v907 = vsub.f32 %v905, %v906
    %v908 = vand.u32 %v907, 4294901760
    %909 = vmatmul.f32.gmra.mxu0 %v908
    %v910 = vpop.f32.mrf.mxu0
    %v911 = vadd.f32 0.0, %v910
    %912 = vdwg.mxu0
    %913 = vmatpush.msra.mxu0 0.0
    %914 = vmatpush.msra.mxu0 0.0
    %915 = vmatpush.msra.mxu0 0.0
    %916 = vmatpush.msra.mxu0 0.0
    %917 = vmatpush.msra.mxu0 0.0
    %918 = vmatpush.msra.mxu0 0.0
    %919 = vmatpush.msra.mxu0 0.0
    %920 = vmatpush.msra.mxu0 0.0
    %921 = vmatpush.msra.mxu0 0.0
    %922 = vmatpush.msra.mxu0 0.0
    %923 = vmatpush.msra.mxu0 0.0
    %924 = vmatpush.msra.mxu0 0.0
    %v925 = vand.u32 %v226, 4294901760
    %v926 = vsub.f32 %v226, %v925
    %v927 = vand.u32 %v926, 4294901760
    %v928 = vsub.f32 %v926, %v927
    %v929 = vand.u32 %v928, 4294901760
    %930 = vmatpush.msra.mxu0 %v929
    %v931 = vand.u32 %v225, 4294901760
    %v932 = vsub.f32 %v225, %v931
    %v933 = vand.u32 %v932, 4294901760
    %v934 = vsub.f32 %v932, %v933
    %v935 = vand.u32 %v934, 4294901760
    %936 = vmatpush.msra.mxu0 %v935
    %v937 = vand.u32 %v224, 4294901760
    %v938 = vsub.f32 %v224, %v937
    %v939 = vand.u32 %v938, 4294901760
    %v940 = vsub.f32 %v938, %v939
    %v941 = vand.u32 %v940, 4294901760
    %942 = vmatpush.msra.mxu0 %v941
    %v943 = vand.u32 %v223, 4294901760
    %v944 = vsub.f32 %v223, %v943
    %v945 = vand.u32 %v944, 4294901760
    %v946 = vsub.f32 %v944, %v945
    %v947 = vand.u32 %v946, 4294901760
    %948 = vmatpush.msra.mxu0 %v947
    %v949 = vand.u32 %v882, 4294901760
    %950 = vmatmul.f32.gmra.mxu0 %v949
    %v951 = vpop.f32.mrf.mxu0
    %v952 = vadd.f32 %v911, %v951
    %953 = vdwg.mxu0
    %954 = vmatpush.msra.mxu0 0.0
    %955 = vmatpush.msra.mxu0 0.0
    %956 = vmatpush.msra.mxu0 0.0
    %957 = vmatpush.msra.mxu0 0.0
    %958 = vmatpush.msra.mxu0 0.0
    %959 = vmatpush.msra.mxu0 0.0
    %960 = vmatpush.msra.mxu0 0.0
    %961 = vmatpush.msra.mxu0 0.0
    %962 = vmatpush.msra.mxu0 0.0
    %963 = vmatpush.msra.mxu0 0.0
    %964 = vmatpush.msra.mxu0 0.0
    %965 = vmatpush.msra.mxu0 0.0
    %v966 = vand.u32 %v226, 4294901760
    %v967 = vsub.f32 %v226, %v966
    %968 = vmatpush.msra.mxu0 %v967
    %v969 = vand.u32 %v225, 4294901760
    %v970 = vsub.f32 %v225, %v969
    %971 = vmatpush.msra.mxu0 %v970
    %v972 = vand.u32 %v224, 4294901760
    %v973 = vsub.f32 %v224, %v972
    %974 = vmatpush.msra.mxu0 %v973
    %v975 = vand.u32 %v223, 4294901760
    %v976 = vsub.f32 %v223, %v975
    %977 = vmatpush.msra.mxu0 %v976
    %v978 = vand.u32 %v882, 4294901760
    %v979 = vsub.f32 %v882, %v978
    %980 = vmatmul.f32.gmra.mxu0 %v979
    %v981 = vpop.f32.mrf.mxu0
    %v982 = vadd.f32 %v952, %v981
    %983 = vdwg.mxu0
    %984 = vmatpush.msra.mxu0 0.0
    %985 = vmatpush.msra.mxu0 0.0
    %986 = vmatpush.msra.mxu0 0.0
    %987 = vmatpush.msra.mxu0 0.0
    %988 = vmatpush.msra.mxu0 0.0
    %989 = vmatpush.msra.mxu0 0.0
    %990 = vmatpush.msra.mxu0 0.0
    %991 = vmatpush.msra.mxu0 0.0
    %992 = vmatpush.msra.mxu0 0.0
    %993 = vmatpush.msra.mxu0 0.0
    %994 = vmatpush.msra.mxu0 0.0
    %995 = vmatpush.msra.mxu0 0.0
    %v996 = vand.u32 %v226, 4294901760
    %997 = vmatpush.msra.mxu0 %v996
    %v998 = vand.u32 %v225, 4294901760
    %999 = vmatpush.msra.mxu0 %v998
    %v1000 = vand.u32 %v224, 4294901760
    %1001 = vmatpush.msra.mxu0 %v1000
    %v1002 = vand.u32 %v223, 4294901760
    %1003 = vmatpush.msra.mxu0 %v1002
    %v1004 = vand.u32 %v882, 4294901760
    %v1005 = vsub.f32 %v882, %v1004
    %v1006 = vand.u32 %v1005, 4294901760
    %1007 = vmatmul.f32.gmra.mxu0 %v1006
    %v1008 = vpop.f32.mrf.mxu0
    %v1009 = vadd.f32 %v982, %v1008
    %1010 = vdwg.mxu0
    %1011 = vmatpush.msra.mxu0 0.0
    %1012 = vmatpush.msra.mxu0 0.0
    %1013 = vmatpush.msra.mxu0 0.0
    %1014 = vmatpush.msra.mxu0 0.0
    %1015 = vmatpush.msra.mxu0 0.0
    %1016 = vmatpush.msra.mxu0 0.0
    %1017 = vmatpush.msra.mxu0 0.0
    %1018 = vmatpush.msra.mxu0 0.0
    %1019 = vmatpush.msra.mxu0 0.0
    %1020 = vmatpush.msra.mxu0 0.0
    %1021 = vmatpush.msra.mxu0 0.0
    %1022 = vmatpush.msra.mxu0 0.0
    %v1023 = vand.u32 %v226, 4294901760
    %v1024 = vsub.f32 %v226, %v1023
    %v1025 = vand.u32 %v1024, 4294901760
    %1026 = vmatpush.msra.mxu0 %v1025
    %v1027 = vand.u32 %v225, 4294901760
    %v1028 = vsub.f32 %v225, %v1027
    %v1029 = vand.u32 %v1028, 4294901760
    %1030 = vmatpush.msra.mxu0 %v1029
    %v1031 = vand.u32 %v224, 4294901760
    %v1032 = vsub.f32 %v224, %v1031
    %v1033 = vand.u32 %v1032, 4294901760
    %1034 = vmatpush.msra.mxu0 %v1033
    %v1035 = vand.u32 %v223, 4294901760
    %v1036 = vsub.f32 %v223, %v1035
    %v1037 = vand.u32 %v1036, 4294901760
    %1038 = vmatpush.msra.mxu0 %v1037
    %v1039 = vand.u32 %v882, 4294901760
    %1040 = vmatmul.f32.gmra.mxu0 %v1039
    %v1041 = vpop.f32.mrf.mxu0
    %v1042 = vadd.f32 %v1009, %v1041
    %1043 = vdwg.mxu0
    %1044 = vmatpush.msra.mxu0 0.0
    %1045 = vmatpush.msra.mxu0 0.0
    %1046 = vmatpush.msra.mxu0 0.0
    %1047 = vmatpush.msra.mxu0 0.0
    %1048 = vmatpush.msra.mxu0 0.0
    %1049 = vmatpush.msra.mxu0 0.0
    %1050 = vmatpush.msra.mxu0 0.0
    %1051 = vmatpush.msra.mxu0 0.0
    %1052 = vmatpush.msra.mxu0 0.0
    %1053 = vmatpush.msra.mxu0 0.0
    %1054 = vmatpush.msra.mxu0 0.0
    %1055 = vmatpush.msra.mxu0 0.0
    %v1056 = vand.u32 %v226, 4294901760
    %1057 = vmatpush.msra.mxu0 %v1056
    %v1058 = vand.u32 %v225, 4294901760
    %1059 = vmatpush.msra.mxu0 %v1058
    %v1060 = vand.u32 %v224, 4294901760
    %1061 = vmatpush.msra.mxu0 %v1060
    %v1062 = vand.u32 %v223, 4294901760
    %1063 = vmatpush.msra.mxu0 %v1062
    %v1064 = vand.u32 %v882, 4294901760
    %1065 = vmatmul.f32.gmra.mxu0 %v1064
    %v1066 = vpop.f32.mrf.mxu0
    %v1067 = vadd.f32 %v1042, %v1066
    %1068 = vdwg.mxu0
    %s1069 = scalar_lea.vmem %s0, 2
    %v1070 = vld [vmem:[%s1069] sm:$0x3]
    %v1071 = vadd.f32 %v1070, %v877
    %v1072 = vxor.u32 %v1071, 2147483648
    %v1073 = vmul.f32 %v1072, 1.442695
    %v1074 = vpow.pop %v1073
    %v1075 = vadd.f32 %v1074, 1.0
    %v1076 = vrcp.pop %v1075
    %v1077 = vmul.f32 %v1075, %v1076
    %v1078 = vsub.f32 1.0, %v1077
    %v1079 = vmul.f32 %v1076, %v1078
    %v1080 = vadd.f32 %v1076, %v1079
    %vm1081 = vweird.f32 %v1075
    %vm1082 = vweird.f32 %v1076
    %vm1083 = vmor %vm1081, %vm1082
    %v1084 = vsel %vm1083, %v1076, %v1080
    %v1085 = vand.u32 2147483647, %v1075
    %vm1086 = vcmp.eq.f32.partialorder %v1085, 8.507059e+37
    %v1087 = vand.u32 %v1075, 2147483648
    %v1088 = vor.u32 1.1754944e-38, %v1087
    %v1089 = vsel %vm1086, %v1088, %v1084
    %v1090 = vmul.f32 1.0, %v1089
    %1092 = vrot.lane.b32.xlu0 %v877, 64
    %v1093 = vpop.permute.xlu0 %1092
    %v1095 = vmul.f32 %v1090, %v1093
    %1097 = vrot.lane.b32.xlu0 %v1095, 64
    %v1098 = vpop.permute.xlu0 %1097
    %v1100 = vadd.f32 %v1070, %v1098
    %v1101 = vtanh.pop %v1100
    %v1102 = vsub.f32 1.0, %v1090
    %1104 = vrot.lane.b32.xlu0 %v1101, 96
    %v1105 = vpop.permute.xlu0 %1104
    %v1107 = vmul.f32 %v1102, %v1105
    %v1108 = vmul.f32 %v1090, %v457
    %v1109 = vadd.f32 %v1107, %v1108
    %1111 = vrot.lane.b32.xlu0 %v1109, 96
    %v1112 = vpop.permute.xlu0 %1111
    %v1113 = vsel %vm34, %v1112, 0
    %1115 = vmatpush.msra.mxu0 0.0
    %1116 = vmatpush.msra.mxu0 0.0
    %1117 = vmatpush.msra.mxu0 0.0
    %1118 = vmatpush.msra.mxu0 0.0
    %1119 = vmatpush.msra.mxu0 0.0
    %1120 = vmatpush.msra.mxu0 0.0
    %1121 = vmatpush.msra.mxu0 0.0
    %1122 = vmatpush.msra.mxu0 0.0
    %1123 = vmatpush.msra.mxu0 0.0
    %1124 = vmatpush.msra.mxu0 0.0
    %1125 = vmatpush.msra.mxu0 0.0
    %1126 = vmatpush.msra.mxu0 0.0
    %v1127 = vand.u32 %v461, 4294901760
    %1128 = vmatpush.msra.mxu0 %v1127
    %v1129 = vand.u32 %v460, 4294901760
    %1130 = vmatpush.msra.mxu0 %v1129
    %v1131 = vand.u32 %v459, 4294901760
    %1132 = vmatpush.msra.mxu0 %v1131
    %v1133 = vand.u32 %v458, 4294901760
    %1134 = vmatpush.msra.mxu0 %v1133
    %v1135 = vand.u32 %v1113, 4294901760
    %v1136 = vsub.f32 %v1113, %v1135
    %v1137 = vand.u32 %v1136, 4294901760
    %v1138 = vsub.f32 %v1136, %v1137
    %v1139 = vand.u32 %v1138, 4294901760
    %1140 = vmatmul.f32.gmra.mxu0 %v1139
    %v1141 = vpop.f32.mrf.mxu0
    %v1142 = vadd.f32 0.0, %v1141
    %1143 = vdwg.mxu0
    %1144 = vmatpush.msra.mxu0 0.0
    %1145 = vmatpush.msra.mxu0 0.0
    %1146 = vmatpush.msra.mxu0 0.0
    %1147 = vmatpush.msra.mxu0 0.0
    %1148 = vmatpush.msra.mxu0 0.0
    %1149 = vmatpush.msra.mxu0 0.0
    %1150 = vmatpush.msra.mxu0 0.0
    %1151 = vmatpush.msra.mxu0 0.0
    %1152 = vmatpush.msra.mxu0 0.0
    %1153 = vmatpush.msra.mxu0 0.0
    %1154 = vmatpush.msra.mxu0 0.0
    %1155 = vmatpush.msra.mxu0 0.0
    %v1156 = vand.u32 %v461, 4294901760
    %v1157 = vsub.f32 %v461, %v1156
    %v1158 = vand.u32 %v1157, 4294901760
    %v1159 = vsub.f32 %v1157, %v1158
    %v1160 = vand.u32 %v1159, 4294901760
    %1161 = vmatpush.msra.mxu0 %v1160
    %v1162 = vand.u32 %v460, 4294901760
    %v1163 = vsub.f32 %v460, %v1162
    %v1164 = vand.u32 %v1163, 4294901760
    %v1165 = vsub.f32 %v1163, %v1164
    %v1166 = vand.u32 %v1165, 4294901760
    %1167 = vmatpush.msra.mxu0 %v1166
    %v1168 = vand.u32 %v459, 4294901760
    %v1169 = vsub.f32 %v459, %v1168
    %v1170 = vand.u32 %v1169, 4294901760
    %v1171 = vsub.f32 %v1169, %v1170
    %v1172 = vand.u32 %v1171, 4294901760
    %1173 = vmatpush.msra.mxu0 %v1172
    %v1174 = vand.u32 %v458, 4294901760
    %v1175 = vsub.f32 %v458, %v1174
    %v1176 = vand.u32 %v1175, 4294901760
    %v1177 = vsub.f32 %v1175, %v1176
    %v1178 = vand.u32 %v1177, 4294901760
    %1179 = vmatpush.msra.mxu0 %v1178
    %v1180 = vand.u32 %v1113, 4294901760
    %1181 = vmatmul.f32.gmra.mxu0 %v1180
    %v1182 = vpop.f32.mrf.mxu0
    %v1183 = vadd.f32 %v1142, %v1182
    %1184 = vdwg.mxu0
    %1185 = vmatpush.msra.mxu0 0.0
    %1186 = vmatpush.msra.mxu0 0.0
    %1187 = vmatpush.msra.mxu0 0.0
    %1188 = vmatpush.msra.mxu0 0.0
    %1189 = vmatpush.msra.mxu0 0.0
    %1190 = vmatpush.msra.mxu0 0.0
    %1191 = vmatpush.msra.mxu0 0.0
    %1192 = vmatpush.msra.mxu0 0.0
    %1193 = vmatpush.msra.mxu0 0.0
    %1194 = vmatpush.msra.mxu0 0.0
    %1195 = vmatpush.msra.mxu0 0.0
    %1196 = vmatpush.msra.mxu0 0.0
    %v1197 = vand.u32 %v461, 4294901760
    %v1198 = vsub.f32 %v461, %v1197
    %1199 = vmatpush.msra.mxu0 %v1198
    %v1200 = vand.u32 %v460, 4294901760
    %v1201 = vsub.f32 %v460, %v1200
    %1202 = vmatpush.msra.mxu0 %v1201
    %v1203 = vand.u32 %v459, 4294901760
    %v1204 = vsub.f32 %v459, %v1203
    %1205 = vmatpush.msra.mxu0 %v1204
    %v1206 = vand.u32 %v458, 4294901760
    %v1207 = vsub.f32 %v458, %v1206
    %1208 = vmatpush.msra.mxu0 %v1207
    %v1209 = vand.u32 %v1113, 4294901760
    %v1210 = vsub.f32 %v1113, %v1209
    %1211 = vmatmul.f32.gmra.mxu0 %v1210
    %v1212 = vpop.f32.mrf.mxu0
    %v1213 = vadd.f32 %v1183, %v1212
    %1214 = vdwg.mxu0
    %1215 = vmatpush.msra.mxu0 0.0
    %1216 = vmatpush.msra.mxu0 0.0
    %1217 = vmatpush.msra.mxu0 0.0
    %1218 = vmatpush.msra.mxu0 0.0
    %1219 = vmatpush.msra.mxu0 0.0
    %1220 = vmatpush.msra.mxu0 0.0
    %1221 = vmatpush.msra.mxu0 0.0
    %1222 = vmatpush.msra.mxu0 0.0
    %1223 = vmatpush.msra.mxu0 0.0
    %1224 = vmatpush.msra.mxu0 0.0
    %1225 = vmatpush.msra.mxu0 0.0
    %1226 = vmatpush.msra.mxu0 0.0
    %v1227 = vand.u32 %v461, 4294901760
    %1228 = vmatpush.msra.mxu0 %v1227
    %v1229 = vand.u32 %v460, 4294901760
    %1230 = vmatpush.msra.mxu0 %v1229
    %v1231 = vand.u32 %v459, 4294901760
    %1232 = vmatpush.msra.mxu0 %v1231
    %v1233 = vand.u32 %v458, 4294901760
    %1234 = vmatpush.msra.mxu0 %v1233
    %v1235 = vand.u32 %v1113, 4294901760
    %v1236 = vsub.f32 %v1113, %v1235
    %v1237 = vand.u32 %v1236, 4294901760
    %1238 = vmatmul.f32.gmra.mxu0 %v1237
    %v1239 = vpop.f32.mrf.mxu0
    %v1240 = vadd.f32 %v1213, %v1239
    %1241 = vdwg.mxu0
    %1242 = vmatpush.msra.mxu0 0.0
    %1243 = vmatpush.msra.mxu0 0.0
    %1244 = vmatpush.msra.mxu0 0.0
    %1245 = vmatpush.msra.mxu0 0.0
    %1246 = vmatpush.msra.mxu0 0.0
    %1247 = vmatpush.msra.mxu0 0.0
    %1248 = vmatpush.msra.mxu0 0.0
    %1249 = vmatpush.msra.mxu0 0.0
    %1250 = vmatpush.msra.mxu0 0.0
    %1251 = vmatpush.msra.mxu0 0.0
    %1252 = vmatpush.msra.mxu0 0.0
    %1253 = vmatpush.msra.mxu0 0.0
    %v1254 = vand.u32 %v461, 4294901760
    %v1255 = vsub.f32 %v461, %v1254
    %v1256 = vand.u32 %v1255, 4294901760
    %1257 = vmatpush.msra.mxu0 %v1256
    %v1258 = vand.u32 %v460, 4294901760
    %v1259 = vsub.f32 %v460, %v1258
    %v1260 = vand.u32 %v1259, 4294901760
    %1261 = vmatpush.msra.mxu0 %v1260
    %v1262 = vand.u32 %v459, 4294901760
    %v1263 = vsub.f32 %v459, %v1262
    %v1264 = vand.u32 %v1263, 4294901760
    %1265 = vmatpush.msra.mxu0 %v1264
    %v1266 = vand.u32 %v458, 4294901760
    %v1267 = vsub.f32 %v458, %v1266
    %v1268 = vand.u32 %v1267, 4294901760
    %1269 = vmatpush.msra.mxu0 %v1268
    %v1270 = vand.u32 %v1113, 4294901760
    %1271 = vmatmul.f32.gmra.mxu0 %v1270
    %v1272 = vpop.f32.mrf.mxu0
    %v1273 = vadd.f32 %v1240, %v1272
    %1274 = vdwg.mxu0
    %1275 = vmatpush.msra.mxu0 0.0
    %1276 = vmatpush.msra.mxu0 0.0
    %1277 = vmatpush.msra.mxu0 0.0
    %1278 = vmatpush.msra.mxu0 0.0
    %1279 = vmatpush.msra.mxu0 0.0
    %1280 = vmatpush.msra.mxu0 0.0
    %1281 = vmatpush.msra.mxu0 0.0
    %1282 = vmatpush.msra.mxu0 0.0
    %1283 = vmatpush.msra.mxu0 0.0
    %1284 = vmatpush.msra.mxu0 0.0
    %1285 = vmatpush.msra.mxu0 0.0
    %1286 = vmatpush.msra.mxu0 0.0
    %v1287 = vand.u32 %v461, 4294901760
    %1288 = vmatpush.msra.mxu0 %v1287
    %v1289 = vand.u32 %v460, 4294901760
    %1290 = vmatpush.msra.mxu0 %v1289
    %v1291 = vand.u32 %v459, 4294901760
    %1292 = vmatpush.msra.mxu0 %v1291
    %v1293 = vand.u32 %v458, 4294901760
    %1294 = vmatpush.msra.mxu0 %v1293
    %v1295 = vand.u32 %v1113, 4294901760
    %1296 = vmatmul.f32.gmra.mxu0 %v1295
    %v1297 = vpop.f32.mrf.mxu0
    %v1298 = vadd.f32 %v1273, %v1297
    %1299 = vdwg.mxu0
    %v1300 = vadd.f32 %v1298, %v1067
    %v1301 = vxor.u32 %v1300, 2147483648
    %v1302 = vmul.f32 %v1301, 1.442695
    %v1303 = vpow.pop %v1302
    %v1304 = vadd.f32 %v1303, 1.0
    %v1305 = vrcp.pop %v1304
    %v1306 = vmul.f32 %v1304, %v1305
    %v1307 = vsub.f32 1.0, %v1306
    %v1308 = vmul.f32 %v1305, %v1307
    %v1309 = vadd.f32 %v1305, %v1308
    %vm1310 = vweird.f32 %v1304
    %vm1311 = vweird.f32 %v1305
    %vm1312 = vmor %vm1310, %vm1311
    %v1313 = vsel %vm1312, %v1305, %v1309
    %v1314 = vand.u32 2147483647, %v1304
    %vm1315 = vcmp.eq.f32.partialorder %v1314, 8.507059e+37
    %v1316 = vand.u32 %v1304, 2147483648
    %v1317 = vor.u32 1.1754944e-38, %v1316
    %v1318 = vsel %vm1315, %v1317, %v1313
    %v1319 = vmul.f32 1.0, %v1318
    %1321 = vrot.lane.b32.xlu0 %v1067, 64
    %v1322 = vpop.permute.xlu0 %1321
    %v1324 = vmul.f32 %v1319, %v1322
    %1326 = vrot.lane.b32.xlu0 %v1324, 64
    %v1327 = vpop.permute.xlu0 %1326
    %v1329 = vadd.f32 %v1298, %v1327
    %v1330 = vtanh.pop %v1329
    %v1331 = vsub.f32 1.0, %v1319
    %1333 = vrot.lane.b32.xlu0 %v1330, 96
    %v1334 = vpop.permute.xlu0 %1333
    %v1336 = vmul.f32 %v1331, %v1334
    %v1337 = vmul.f32 %v1319, %v693
    %v1338 = vadd.f32 %v1336, %v1337
    %1339 = vmatpush.msra.mxu0 0.0
    %1340 = vmatpush.msra.mxu0 0.0
    %1341 = vmatpush.msra.mxu0 0.0
    %1342 = vmatpush.msra.mxu0 0.0
    %1343 = vmatpush.msra.mxu0 0.0
    %1344 = vmatpush.msra.mxu0 0.0
    %1345 = vmatpush.msra.mxu0 0.0
    %1346 = vmatpush.msra.mxu0 0.0
    %1347 = vmatpush.msra.mxu0 0.0
    %1348 = vmatpush.msra.mxu0 0.0
    %1349 = vmatpush.msra.mxu0 0.0
    %1350 = vmatpush.msra.mxu0 0.0
    %v1351 = vand.u32 %v33, 4294901760
    %1352 = vmatpush.msra.mxu0 %v1351
    %v1353 = vand.u32 %v32, 4294901760
    %1354 = vmatpush.msra.mxu0 %v1353
    %v1355 = vand.u32 %v31, 4294901760
    %1356 = vmatpush.msra.mxu0 %v1355
    %v1357 = vand.u32 %v30, 4294901760
    %1358 = vmatpush.msra.mxu0 %v1357
    %v1359 = vand.u32 %v1113, 4294901760
    %v1360 = vsub.f32 %v1113, %v1359
    %v1361 = vand.u32 %v1360, 4294901760
    %v1362 = vsub.f32 %v1360, %v1361
    %v1363 = vand.u32 %v1362, 4294901760
    %1364 = vmatmul.f32.gmra.mxu0 %v1363
    %v1365 = vpop.f32.mrf.mxu0
    %v1366 = vadd.f32 0.0, %v1365
    %1367 = vdwg.mxu0
    %1368 = vmatpush.msra.mxu0 0.0
    %1369 = vmatpush.msra.mxu0 0.0
    %1370 = vmatpush.msra.mxu0 0.0
    %1371 = vmatpush.msra.mxu0 0.0
    %1372 = vmatpush.msra.mxu0 0.0
    %1373 = vmatpush.msra.mxu0 0.0
    %1374 = vmatpush.msra.mxu0 0.0
    %1375 = vmatpush.msra.mxu0 0.0
    %1376 = vmatpush.msra.mxu0 0.0
    %1377 = vmatpush.msra.mxu0 0.0
    %1378 = vmatpush.msra.mxu0 0.0
    %1379 = vmatpush.msra.mxu0 0.0
    %v1380 = vand.u32 %v33, 4294901760
    %v1381 = vsub.f32 %v33, %v1380
    %v1382 = vand.u32 %v1381, 4294901760
    %v1383 = vsub.f32 %v1381, %v1382
    %v1384 = vand.u32 %v1383, 4294901760
    %1385 = vmatpush.msra.mxu0 %v1384
    %v1386 = vand.u32 %v32, 4294901760
    %v1387 = vsub.f32 %v32, %v1386
    %v1388 = vand.u32 %v1387, 4294901760
    %v1389 = vsub.f32 %v1387, %v1388
    %v1390 = vand.u32 %v1389, 4294901760
    %1391 = vmatpush.msra.mxu0 %v1390
    %v1392 = vand.u32 %v31, 4294901760
    %v1393 = vsub.f32 %v31, %v1392
    %v1394 = vand.u32 %v1393, 4294901760
    %v1395 = vsub.f32 %v1393, %v1394
    %v1396 = vand.u32 %v1395, 4294901760
    %1397 = vmatpush.msra.mxu0 %v1396
    %v1398 = vand.u32 %v30, 4294901760
    %v1399 = vsub.f32 %v30, %v1398
    %v1400 = vand.u32 %v1399, 4294901760
    %v1401 = vsub.f32 %v1399, %v1400
    %v1402 = vand.u32 %v1401, 4294901760
    %1403 = vmatpush.msra.mxu0 %v1402
    %v1404 = vand.u32 %v1113, 4294901760
    %1405 = vmatmul.f32.gmra.mxu0 %v1404
    %v1406 = vpop.f32.mrf.mxu0
    %v1407 = vadd.f32 %v1366, %v1406
    %1408 = vdwg.mxu0
    %1409 = vmatpush.msra.mxu0 0.0
    %1410 = vmatpush.msra.mxu0 0.0
    %1411 = vmatpush.msra.mxu0 0.0
    %1412 = vmatpush.msra.mxu0 0.0
    %1413 = vmatpush.msra.mxu0 0.0
    %1414 = vmatpush.msra.mxu0 0.0
    %1415 = vmatpush.msra.mxu0 0.0
    %1416 = vmatpush.msra.mxu0 0.0
    %1417 = vmatpush.msra.mxu0 0.0
    %1418 = vmatpush.msra.mxu0 0.0
    %1419 = vmatpush.msra.mxu0 0.0
    %1420 = vmatpush.msra.mxu0 0.0
    %v1421 = vand.u32 %v33, 4294901760
    %v1422 = vsub.f32 %v33, %v1421
    %1423 = vmatpush.msra.mxu0 %v1422
    %v1424 = vand.u32 %v32, 4294901760
    %v1425 = vsub.f32 %v32, %v1424
    %1426 = vmatpush.msra.mxu0 %v1425
    %v1427 = vand.u32 %v31, 4294901760
    %v1428 = vsub.f32 %v31, %v1427
    %1429 = vmatpush.msra.mxu0 %v1428
    %v1430 = vand.u32 %v30, 4294901760
    %v1431 = vsub.f32 %v30, %v1430
    %1432 = vmatpush.msra.mxu0 %v1431
    %v1433 = vand.u32 %v1113, 4294901760
    %v1434 = vsub.f32 %v1113, %v1433
    %1435 = vmatmul.f32.gmra.mxu0 %v1434
    %v1436 = vpop.f32.mrf.mxu0
    %v1437 = vadd.f32 %v1407, %v1436
    %1438 = vdwg.mxu0
    %1439 = vmatpush.msra.mxu0 0.0
    %1440 = vmatpush.msra.mxu0 0.0
    %1441 = vmatpush.msra.mxu0 0.0
    %1442 = vmatpush.msra.mxu0 0.0
    %1443 = vmatpush.msra.mxu0 0.0
    %1444 = vmatpush.msra.mxu0 0.0
    %1445 = vmatpush.msra.mxu0 0.0
    %1446 = vmatpush.msra.mxu0 0.0
    %1447 = vmatpush.msra.mxu0 0.0
    %1448 = vmatpush.msra.mxu0 0.0
    %1449 = vmatpush.msra.mxu0 0.0
    %1450 = vmatpush.msra.mxu0 0.0
    %v1451 = vand.u32 %v33, 4294901760
    %1452 = vmatpush.msra.mxu0 %v1451
    %v1453 = vand.u32 %v32, 4294901760
    %1454 = vmatpush.msra.mxu0 %v1453
    %v1455 = vand.u32 %v31, 4294901760
    %1456 = vmatpush.msra.mxu0 %v1455
    %v1457 = vand.u32 %v30, 4294901760
    %1458 = vmatpush.msra.mxu0 %v1457
    %v1459 = vand.u32 %v1113, 4294901760
    %v1460 = vsub.f32 %v1113, %v1459
    %v1461 = vand.u32 %v1460, 4294901760
    %1462 = vmatmul.f32.gmra.mxu0 %v1461
    %v1463 = vpop.f32.mrf.mxu0
    %v1464 = vadd.f32 %v1437, %v1463
    %1465 = vdwg.mxu0
    %1466 = vmatpush.msra.mxu0 0.0
    %1467 = vmatpush.msra.mxu0 0.0
    %1468 = vmatpush.msra.mxu0 0.0
    %1469 = vmatpush.msra.mxu0 0.0
    %1470 = vmatpush.msra.mxu0 0.0
    %1471 = vmatpush.msra.mxu0 0.0
    %1472 = vmatpush.msra.mxu0 0.0
    %1473 = vmatpush.msra.mxu0 0.0
    %1474 = vmatpush.msra.mxu0 0.0
    %1475 = vmatpush.msra.mxu0 0.0
    %1476 = vmatpush.msra.mxu0 0.0
    %1477 = vmatpush.msra.mxu0 0.0
    %v1478 = vand.u32 %v33, 4294901760
    %v1479 = vsub.f32 %v33, %v1478
    %v1480 = vand.u32 %v1479, 4294901760
    %1481 = vmatpush.msra.mxu0 %v1480
    %v1482 = vand.u32 %v32, 4294901760
    %v1483 = vsub.f32 %v32, %v1482
    %v1484 = vand.u32 %v1483, 4294901760
    %1485 = vmatpush.msra.mxu0 %v1484
    %v1486 = vand.u32 %v31, 4294901760
    %v1487 = vsub.f32 %v31, %v1486
    %v1488 = vand.u32 %v1487, 4294901760
    %1489 = vmatpush.msra.mxu0 %v1488
    %v1490 = vand.u32 %v30, 4294901760
    %v1491 = vsub.f32 %v30, %v1490
    %v1492 = vand.u32 %v1491, 4294901760
    %1493 = vmatpush.msra.mxu0 %v1492
    %v1494 = vand.u32 %v1113, 4294901760
    %1495 = vmatmul.f32.gmra.mxu0 %v1494
    %v1496 = vpop.f32.mrf.mxu0
    %v1497 = vadd.f32 %v1464, %v1496
    %1498 = vdwg.mxu0
    %1499 = vmatpush.msra.mxu0 0.0
    %1500 = vmatpush.msra.mxu0 0.0
    %1501 = vmatpush.msra.mxu0 0.0
    %1502 = vmatpush.msra.mxu0 0.0
    %1503 = vmatpush.msra.mxu0 0.0
    %1504 = vmatpush.msra.mxu0 0.0
    %1505 = vmatpush.msra.mxu0 0.0
    %1506 = vmatpush.msra.mxu0 0.0
    %1507 = vmatpush.msra.mxu0 0.0
    %1508 = vmatpush.msra.mxu0 0.0
    %1509 = vmatpush.msra.mxu0 0.0
    %1510 = vmatpush.msra.mxu0 0.0
    %v1511 = vand.u32 %v33, 4294901760
    %1512 = vmatpush.msra.mxu0 %v1511
    %v1513 = vand.u32 %v32, 4294901760
    %1514 = vmatpush.msra.mxu0 %v1513
    %v1515 = vand.u32 %v31, 4294901760
    %1516 = vmatpush.msra.mxu0 %v1515
    %v1517 = vand.u32 %v30, 4294901760
    %1518 = vmatpush.msra.mxu0 %v1517
    %v1519 = vand.u32 %v1113, 4294901760
    %1520 = vmatmul.f32.gmra.mxu0 %v1519
    %v1521 = vpop.f32.mrf.mxu0
    %v1522 = vadd.f32 %v1497, %v1521
    %1523 = vdwg.mxu0
    %1525 = vrot.lane.b32.xlu0 %v1338, 96
    %v1526 = vpop.permute.xlu0 %1525
    %v1527 = vsel %vm34, %v1526, 0
    %1529 = vmatpush.msra.mxu0 0.0
    %1530 = vmatpush.msra.mxu0 0.0
    %1531 = vmatpush.msra.mxu0 0.0
    %1532 = vmatpush.msra.mxu0 0.0
    %1533 = vmatpush.msra.mxu0 0.0
    %1534 = vmatpush.msra.mxu0 0.0
    %1535 = vmatpush.msra.mxu0 0.0
    %1536 = vmatpush.msra.mxu0 0.0
    %1537 = vmatpush.msra.mxu0 0.0
    %1538 = vmatpush.msra.mxu0 0.0
    %1539 = vmatpush.msra.mxu0 0.0
    %1540 = vmatpush.msra.mxu0 0.0
    %v1541 = vand.u32 %v226, 4294901760
    %1542 = vmatpush.msra.mxu0 %v1541
    %v1543 = vand.u32 %v225, 4294901760
    %1544 = vmatpush.msra.mxu0 %v1543
    %v1545 = vand.u32 %v224, 4294901760
    %1546 = vmatpush.msra.mxu0 %v1545
    %v1547 = vand.u32 %v223, 4294901760
    %1548 = vmatpush.msra.mxu0 %v1547
    %v1549 = vand.u32 %v1527, 4294901760
    %v1550 = vsub.f32 %v1527, %v1549
    %v1551 = vand.u32 %v1550, 4294901760
    %v1552 = vsub.f32 %v1550, %v1551
    %v1553 = vand.u32 %v1552, 4294901760
    %1554 = vmatmul.f32.gmra.mxu0 %v1553
    %v1555 = vpop.f32.mrf.mxu0
    %v1556 = vadd.f32 0.0, %v1555
    %1557 = vdwg.mxu0
    %1558 = vmatpush.msra.mxu0 0.0
    %1559 = vmatpush.msra.mxu0 0.0
    %1560 = vmatpush.msra.mxu0 0.0
    %1561 = vmatpush.msra.mxu0 0.0
    %1562 = vmatpush.msra.mxu0 0.0
    %1563 = vmatpush.msra.mxu0 0.0
    %1564 = vmatpush.msra.mxu0 0.0
    %1565 = vmatpush.msra.mxu0 0.0
    %1566 = vmatpush.msra.mxu0 0.0
    %1567 = vmatpush.msra.mxu0 0.0
    %1568 = vmatpush.msra.mxu0 0.0
    %1569 = vmatpush.msra.mxu0 0.0
    %v1570 = vand.u32 %v226, 4294901760
    %v1571 = vsub.f32 %v226, %v1570
    %v1572 = vand.u32 %v1571, 4294901760
    %v1573 = vsub.f32 %v1571, %v1572
    %v1574 = vand.u32 %v1573, 4294901760
    %1575 = vmatpush.msra.mxu0 %v1574
    %v1576 = vand.u32 %v225, 4294901760
    %v1577 = vsub.f32 %v225, %v1576
    %v1578 = vand.u32 %v1577, 4294901760
    %v1579 = vsub.f32 %v1577, %v1578
    %v1580 = vand.u32 %v1579, 4294901760
    %1581 = vmatpush.msra.mxu0 %v1580
    %v1582 = vand.u32 %v224, 4294901760
    %v1583 = vsub.f32 %v224, %v1582
    %v1584 = vand.u32 %v1583, 4294901760
    %v1585 = vsub.f32 %v1583, %v1584
    %v1586 = vand.u32 %v1585, 4294901760
    %1587 = vmatpush.msra.mxu0 %v1586
    %v1588 = vand.u32 %v223, 4294901760
    %v1589 = vsub.f32 %v223, %v1588
    %v1590 = vand.u32 %v1589, 4294901760
    %v1591 = vsub.f32 %v1589, %v1590
    %v1592 = vand.u32 %v1591, 4294901760
    %1593 = vmatpush.msra.mxu0 %v1592
    %v1594 = vand.u32 %v1527, 4294901760
    %1595 = vmatmul.f32.gmra.mxu0 %v1594
    %v1596 = vpop.f32.mrf.mxu0
    %v1597 = vadd.f32 %v1556, %v1596
    %1598 = vdwg.mxu0
    %1599 = vmatpush.msra.mxu0 0.0
    %1600 = vmatpush.msra.mxu0 0.0
    %1601 = vmatpush.msra.mxu0 0.0
    %1602 = vmatpush.msra.mxu0 0.0
    %1603 = vmatpush.msra.mxu0 0.0
    %1604 = vmatpush.msra.mxu0 0.0
    %1605 = vmatpush.msra.mxu0 0.0
    %1606 = vmatpush.msra.mxu0 0.0
    %1607 = vmatpush.msra.mxu0 0.0
    %1608 = vmatpush.msra.mxu0 0.0
    %1609 = vmatpush.msra.mxu0 0.0
    %1610 = vmatpush.msra.mxu0 0.0
    %v1611 = vand.u32 %v226, 4294901760
    %v1612 = vsub.f32 %v226, %v1611
    %1613 = vmatpush.msra.mxu0 %v1612
    %v1614 = vand.u32 %v225, 4294901760
    %v1615 = vsub.f32 %v225, %v1614
    %1616 = vmatpush.msra.mxu0 %v1615
    %v1617 = vand.u32 %v224, 4294901760
    %v1618 = vsub.f32 %v224, %v1617
    %1619 = vmatpush.msra.mxu0 %v1618
    %v1620 = vand.u32 %v223, 4294901760
    %v1621 = vsub.f32 %v223, %v1620
    %1622 = vmatpush.msra.mxu0 %v1621
    %v1623 = vand.u32 %v1527, 4294901760
    %v1624 = vsub.f32 %v1527, %v1623
    %1625 = vmatmul.f32.gmra.mxu0 %v1624
    %v1626 = vpop.f32.mrf.mxu0
    %v1627 = vadd.f32 %v1597, %v1626
    %1628 = vdwg.mxu0
    %1629 = vmatpush.msra.mxu0 0.0
    %1630 = vmatpush.msra.mxu0 0.0
    %1631 = vmatpush.msra.mxu0 0.0
    %1632 = vmatpush.msra.mxu0 0.0
    %1633 = vmatpush.msra.mxu0 0.0
    %1634 = vmatpush.msra.mxu0 0.0
    %1635 = vmatpush.msra.mxu0 0.0
    %1636 = vmatpush.msra.mxu0 0.0
    %1637 = vmatpush.msra.mxu0 0.0
    %1638 = vmatpush.msra.mxu0 0.0
    %1639 = vmatpush.msra.mxu0 0.0
    %1640 = vmatpush.msra.mxu0 0.0
    %v1641 = vand.u32 %v226, 4294901760
    %1642 = vmatpush.msra.mxu0 %v1641
    %v1643 = vand.u32 %v225, 4294901760
    %1644 = vmatpush.msra.mxu0 %v1643
    %v1645 = vand.u32 %v224, 4294901760
    %1646 = vmatpush.msra.mxu0 %v1645
    %v1647 = vand.u32 %v223, 4294901760
    %1648 = vmatpush.msra.mxu0 %v1647
    %v1649 = vand.u32 %v1527, 4294901760
    %v1650 = vsub.f32 %v1527, %v1649
    %v1651 = vand.u32 %v1650, 4294901760
    %1652 = vmatmul.f32.gmra.mxu0 %v1651
    %v1653 = vpop.f32.mrf.mxu0
    %v1654 = vadd.f32 %v1627, %v1653
    %1655 = vdwg.mxu0
    %1656 = vmatpush.msra.mxu0 0.0
    %1657 = vmatpush.msra.mxu0 0.0
    %1658 = vmatpush.msra.mxu0 0.0
    %1659 = vmatpush.msra.mxu0 0.0
    %1660 = vmatpush.msra.mxu0 0.0
    %1661 = vmatpush.msra.mxu0 0.0
    %1662 = vmatpush.msra.mxu0 0.0
    %1663 = vmatpush.msra.mxu0 0.0
    %1664 = vmatpush.msra.mxu0 0.0
    %1665 = vmatpush.msra.mxu0 0.0
    %1666 = vmatpush.msra.mxu0 0.0
    %1667 = vmatpush.msra.mxu0 0.0
    %v1668 = vand.u32 %v226, 4294901760
    %v1669 = vsub.f32 %v226, %v1668
    %v1670 = vand.u32 %v1669, 4294901760
    %1671 = vmatpush.msra.mxu0 %v1670
    %v1672 = vand.u32 %v225, 4294901760
    %v1673 = vsub.f32 %v225, %v1672
    %v1674 = vand.u32 %v1673, 4294901760
    %1675 = vmatpush.msra.mxu0 %v1674
    %v1676 = vand.u32 %v224, 4294901760
    %v1677 = vsub.f32 %v224, %v1676
    %v1678 = vand.u32 %v1677, 4294901760
    %1679 = vmatpush.msra.mxu0 %v1678
    %v1680 = vand.u32 %v223, 4294901760
    %v1681 = vsub.f32 %v223, %v1680
    %v1682 = vand.u32 %v1681, 4294901760
    %1683 = vmatpush.msra.mxu0 %v1682
    %v1684 = vand.u32 %v1527, 4294901760
    %1685 = vmatmul.f32.gmra.mxu0 %v1684
    %v1686 = vpop.f32.mrf.mxu0
    %v1687 = vadd.f32 %v1654, %v1686
    %1688 = vdwg.mxu0
    %1689 = vmatpush.msra.mxu0 0.0
    %1690 = vmatpush.msra.mxu0 0.0
    %1691 = vmatpush.msra.mxu0 0.0
    %1692 = vmatpush.msra.mxu0 0.0
    %1693 = vmatpush.msra.mxu0 0.0
    %1694 = vmatpush.msra.mxu0 0.0
    %1695 = vmatpush.msra.mxu0 0.0
    %1696 = vmatpush.msra.mxu0 0.0
    %1697 = vmatpush.msra.mxu0 0.0
    %1698 = vmatpush.msra.mxu0 0.0
    %1699 = vmatpush.msra.mxu0 0.0
    %1700 = vmatpush.msra.mxu0 0.0
    %v1701 = vand.u32 %v226, 4294901760
    %1702 = vmatpush.msra.mxu0 %v1701
    %v1703 = vand.u32 %v225, 4294901760
    %1704 = vmatpush.msra.mxu0 %v1703
    %v1705 = vand.u32 %v224, 4294901760
    %1706 = vmatpush.msra.mxu0 %v1705
    %v1707 = vand.u32 %v223, 4294901760
    %1708 = vmatpush.msra.mxu0 %v1707
    %v1709 = vand.u32 %v1527, 4294901760
    %1710 = vmatmul.f32.gmra.mxu0 %v1709
    %v1711 = vpop.f32.mrf.mxu0
    %v1712 = vadd.f32 %v1687, %v1711
    %1713 = vdwg.mxu0
    %s1714 = scalar_lea.vmem %s0, 4
    %v1715 = vld [vmem:[%s1714] sm:$0x3]
    %v1716 = vadd.f32 %v1715, %v1522
    %v1717 = vxor.u32 %v1716, 2147483648
    %v1718 = vmul.f32 %v1717, 1.442695
    %v1719 = vpow.pop %v1718
    %v1720 = vadd.f32 %v1719, 1.0
    %v1721 = vrcp.pop %v1720
    %v1722 = vmul.f32 %v1720, %v1721
    %v1723 = vsub.f32 1.0, %v1722
    %v1724 = vmul.f32 %v1721, %v1723
    %v1725 = vadd.f32 %v1721, %v1724
    %vm1726 = vweird.f32 %v1720
    %vm1727 = vweird.f32 %v1721
    %vm1728 = vmor %vm1726, %vm1727
    %v1729 = vsel %vm1728, %v1721, %v1725
    %v1730 = vand.u32 2147483647, %v1720
    %vm1731 = vcmp.eq.f32.partialorder %v1730, 8.507059e+37
    %v1732 = vand.u32 %v1720, 2147483648
    %v1733 = vor.u32 1.1754944e-38, %v1732
    %v1734 = vsel %vm1731, %v1733, %v1729
    %v1735 = vmul.f32 1.0, %v1734
    %1737 = vrot.lane.b32.xlu0 %v1522, 64
    %v1738 = vpop.permute.xlu0 %1737
    %v1740 = vmul.f32 %v1735, %v1738
    %1742 = vrot.lane.b32.xlu0 %v1740, 64
    %v1743 = vpop.permute.xlu0 %1742
    %v1745 = vadd.f32 %v1715, %v1743
    %v1746 = vtanh.pop %v1745
    %v1747 = vsub.f32 1.0, %v1735
    %1749 = vrot.lane.b32.xlu0 %v1746, 96
    %v1750 = vpop.permute.xlu0 %1749
    %v1752 = vmul.f32 %v1747, %v1750
    %v1753 = vmul.f32 %v1735, %v1109
    %v1754 = vadd.f32 %v1752, %v1753
    %1756 = vrot.lane.b32.xlu0 %v1754, 96
    %v1757 = vpop.permute.xlu0 %1756
    %v1758 = vsel %vm34, %v1757, 0
    %1760 = vmatpush.msra.mxu0 0.0
    %1761 = vmatpush.msra.mxu0 0.0
    %1762 = vmatpush.msra.mxu0 0.0
    %1763 = vmatpush.msra.mxu0 0.0
    %1764 = vmatpush.msra.mxu0 0.0
    %1765 = vmatpush.msra.mxu0 0.0
    %1766 = vmatpush.msra.mxu0 0.0
    %1767 = vmatpush.msra.mxu0 0.0
    %1768 = vmatpush.msra.mxu0 0.0
    %1769 = vmatpush.msra.mxu0 0.0
    %1770 = vmatpush.msra.mxu0 0.0
    %1771 = vmatpush.msra.mxu0 0.0
    %v1772 = vand.u32 %v461, 4294901760
    %1773 = vmatpush.msra.mxu0 %v1772
    %v1774 = vand.u32 %v460, 4294901760
    %1775 = vmatpush.msra.mxu0 %v1774
    %v1776 = vand.u32 %v459, 4294901760
    %1777 = vmatpush.msra.mxu0 %v1776
    %v1778 = vand.u32 %v458, 4294901760
    %1779 = vmatpush.msra.mxu0 %v1778
    %v1780 = vand.u32 %v1758, 4294901760
    %v1781 = vsub.f32 %v1758, %v1780
    %v1782 = vand.u32 %v1781, 4294901760
    %v1783 = vsub.f32 %v1781, %v1782
    %v1784 = vand.u32 %v1783, 4294901760
    %1785 = vmatmul.f32.gmra.mxu0 %v1784
    %v1786 = vpop.f32.mrf.mxu0
    %v1787 = vadd.f32 0.0, %v1786
    %1788 = vdwg.mxu0
    %1789 = vmatpush.msra.mxu0 0.0
    %1790 = vmatpush.msra.mxu0 0.0
    %1791 = vmatpush.msra.mxu0 0.0
    %1792 = vmatpush.msra.mxu0 0.0
    %1793 = vmatpush.msra.mxu0 0.0
    %1794 = vmatpush.msra.mxu0 0.0
    %1795 = vmatpush.msra.mxu0 0.0
    %1796 = vmatpush.msra.mxu0 0.0
    %1797 = vmatpush.msra.mxu0 0.0
    %1798 = vmatpush.msra.mxu0 0.0
    %1799 = vmatpush.msra.mxu0 0.0
    %1800 = vmatpush.msra.mxu0 0.0
    %v1801 = vand.u32 %v461, 4294901760
    %v1802 = vsub.f32 %v461, %v1801
    %v1803 = vand.u32 %v1802, 4294901760
    %v1804 = vsub.f32 %v1802, %v1803
    %v1805 = vand.u32 %v1804, 4294901760
    %1806 = vmatpush.msra.mxu0 %v1805
    %v1807 = vand.u32 %v460, 4294901760
    %v1808 = vsub.f32 %v460, %v1807
    %v1809 = vand.u32 %v1808, 4294901760
    %v1810 = vsub.f32 %v1808, %v1809
    %v1811 = vand.u32 %v1810, 4294901760
    %1812 = vmatpush.msra.mxu0 %v1811
    %v1813 = vand.u32 %v459, 4294901760
    %v1814 = vsub.f32 %v459, %v1813
    %v1815 = vand.u32 %v1814, 4294901760
    %v1816 = vsub.f32 %v1814, %v1815
    %v1817 = vand.u32 %v1816, 4294901760
    %1818 = vmatpush.msra.mxu0 %v1817
    %v1819 = vand.u32 %v458, 4294901760
    %v1820 = vsub.f32 %v458, %v1819
    %v1821 = vand.u32 %v1820, 4294901760
    %v1822 = vsub.f32 %v1820, %v1821
    %v1823 = vand.u32 %v1822, 4294901760
    %1824 = vmatpush.msra.mxu0 %v1823
    %v1825 = vand.u32 %v1758, 4294901760
    %1826 = vmatmul.f32.gmra.mxu0 %v1825
    %v1827 = vpop.f32.mrf.mxu0
    %v1828 = vadd.f32 %v1787, %v1827
    %1829 = vdwg.mxu0
    %1830 = vmatpush.msra.mxu0 0.0
    %1831 = vmatpush.msra.mxu0 0.0
    %1832 = vmatpush.msra.mxu0 0.0
    %1833 = vmatpush.msra.mxu0 0.0
    %1834 = vmatpush.msra.mxu0 0.0
    %1835 = vmatpush.msra.mxu0 0.0
    %1836 = vmatpush.msra.mxu0 0.0
    %1837 = vmatpush.msra.mxu0 0.0
    %1838 = vmatpush.msra.mxu0 0.0
    %1839 = vmatpush.msra.mxu0 0.0
    %1840 = vmatpush.msra.mxu0 0.0
    %1841 = vmatpush.msra.mxu0 0.0
    %v1842 = vand.u32 %v461, 4294901760
    %v1843 = vsub.f32 %v461, %v1842
    %1844 = vmatpush.msra.mxu0 %v1843
    %v1845 = vand.u32 %v460, 4294901760
    %v1846 = vsub.f32 %v460, %v1845
    %1847 = vmatpush.msra.mxu0 %v1846
    %v1848 = vand.u32 %v459, 4294901760
    %v1849 = vsub.f32 %v459, %v1848
    %1850 = vmatpush.msra.mxu0 %v1849
    %v1851 = vand.u32 %v458, 4294901760
    %v1852 = vsub.f32 %v458, %v1851
    %1853 = vmatpush.msra.mxu0 %v1852
    %v1854 = vand.u32 %v1758, 4294901760
    %v1855 = vsub.f32 %v1758, %v1854
    %1856 = vmatmul.f32.gmra.mxu0 %v1855
    %v1857 = vpop.f32.mrf.mxu0
    %v1858 = vadd.f32 %v1828, %v1857
    %1859 = vdwg.mxu0
    %1860 = vmatpush.msra.mxu0 0.0
    %1861 = vmatpush.msra.mxu0 0.0
    %1862 = vmatpush.msra.mxu0 0.0
    %1863 = vmatpush.msra.mxu0 0.0
    %1864 = vmatpush.msra.mxu0 0.0
    %1865 = vmatpush.msra.mxu0 0.0
    %1866 = vmatpush.msra.mxu0 0.0
    %1867 = vmatpush.msra.mxu0 0.0
    %1868 = vmatpush.msra.mxu0 0.0
    %1869 = vmatpush.msra.mxu0 0.0
    %1870 = vmatpush.msra.mxu0 0.0
    %1871 = vmatpush.msra.mxu0 0.0
    %v1872 = vand.u32 %v461, 4294901760
    %1873 = vmatpush.msra.mxu0 %v1872
    %v1874 = vand.u32 %v460, 4294901760
    %1875 = vmatpush.msra.mxu0 %v1874
    %v1876 = vand.u32 %v459, 4294901760
    %1877 = vmatpush.msra.mxu0 %v1876
    %v1878 = vand.u32 %v458, 4294901760
    %1879 = vmatpush.msra.mxu0 %v1878
    %v1880 = vand.u32 %v1758, 4294901760
    %v1881 = vsub.f32 %v1758, %v1880
    %v1882 = vand.u32 %v1881, 4294901760
    %1883 = vmatmul.f32.gmra.mxu0 %v1882
    %v1884 = vpop.f32.mrf.mxu0
    %v1885 = vadd.f32 %v1858, %v1884
    %1886 = vdwg.mxu0
    %1887 = vmatpush.msra.mxu0 0.0
    %1888 = vmatpush.msra.mxu0 0.0
    %1889 = vmatpush.msra.mxu0 0.0
    %1890 = vmatpush.msra.mxu0 0.0
    %1891 = vmatpush.msra.mxu0 0.0
    %1892 = vmatpush.msra.mxu0 0.0
    %1893 = vmatpush.msra.mxu0 0.0
    %1894 = vmatpush.msra.mxu0 0.0
    %1895 = vmatpush.msra.mxu0 0.0
    %1896 = vmatpush.msra.mxu0 0.0
    %1897 = vmatpush.msra.mxu0 0.0
    %1898 = vmatpush.msra.mxu0 0.0
    %v1899 = vand.u32 %v461, 4294901760
    %v1900 = vsub.f32 %v461, %v1899
    %v1901 = vand.u32 %v1900, 4294901760
    %1902 = vmatpush.msra.mxu0 %v1901
    %v1903 = vand.u32 %v460, 4294901760
    %v1904 = vsub.f32 %v460, %v1903
    %v1905 = vand.u32 %v1904, 4294901760
    %1906 = vmatpush.msra.mxu0 %v1905
    %v1907 = vand.u32 %v459, 4294901760
    %v1908 = vsub.f32 %v459, %v1907
    %v1909 = vand.u32 %v1908, 4294901760
    %1910 = vmatpush.msra.mxu0 %v1909
    %v1911 = vand.u32 %v458, 4294901760
    %v1912 = vsub.f32 %v458, %v1911
    %v1913 = vand.u32 %v1912, 4294901760
    %1914 = vmatpush.msra.mxu0 %v1913
    %v1915 = vand.u32 %v1758, 4294901760
    %1916 = vmatmul.f32.gmra.mxu0 %v1915
    %v1917 = vpop.f32.mrf.mxu0
    %v1918 = vadd.f32 %v1885, %v1917
    %1919 = vdwg.mxu0
    %1920 = vmatpush.msra.mxu0 0.0
    %1921 = vmatpush.msra.mxu0 0.0
    %1922 = vmatpush.msra.mxu0 0.0
    %1923 = vmatpush.msra.mxu0 0.0
    %1924 = vmatpush.msra.mxu0 0.0
    %1925 = vmatpush.msra.mxu0 0.0
    %1926 = vmatpush.msra.mxu0 0.0
    %1927 = vmatpush.msra.mxu0 0.0
    %1928 = vmatpush.msra.mxu0 0.0
    %1929 = vmatpush.msra.mxu0 0.0
    %1930 = vmatpush.msra.mxu0 0.0
    %1931 = vmatpush.msra.mxu0 0.0
    %v1932 = vand.u32 %v461, 4294901760
    %1933 = vmatpush.msra.mxu0 %v1932
    %v1934 = vand.u32 %v460, 4294901760
    %1935 = vmatpush.msra.mxu0 %v1934
    %v1936 = vand.u32 %v459, 4294901760
    %1937 = vmatpush.msra.mxu0 %v1936
    %v1938 = vand.u32 %v458, 4294901760
    %1939 = vmatpush.msra.mxu0 %v1938
    %v1940 = vand.u32 %v1758, 4294901760
    %1941 = vmatmul.f32.gmra.mxu0 %v1940
    %v1942 = vpop.f32.mrf.mxu0
    %v1943 = vadd.f32 %v1918, %v1942
    %1944 = vdwg.mxu0
    %v1945 = vadd.f32 %v1943, %v1712
    %v1946 = vxor.u32 %v1945, 2147483648
    %v1947 = vmul.f32 %v1946, 1.442695
    %v1948 = vpow.pop %v1947
    %v1949 = vadd.f32 %v1948, 1.0
    %v1950 = vrcp.pop %v1949
    %v1951 = vmul.f32 %v1949, %v1950
    %v1952 = vsub.f32 1.0, %v1951
    %v1953 = vmul.f32 %v1950, %v1952
    %v1954 = vadd.f32 %v1950, %v1953
    %vm1955 = vweird.f32 %v1949
    %vm1956 = vweird.f32 %v1950
    %vm1957 = vmor %vm1955, %vm1956
    %v1958 = vsel %vm1957, %v1950, %v1954
    %v1959 = vand.u32 2147483647, %v1949
    %vm1960 = vcmp.eq.f32.partialorder %v1959, 8.507059e+37
    %v1961 = vand.u32 %v1949, 2147483648
    %v1962 = vor.u32 1.1754944e-38, %v1961
    %v1963 = vsel %vm1960, %v1962, %v1958
    %v1964 = vmul.f32 1.0, %v1963
    %1966 = vrot.lane.b32.xlu0 %v1712, 64
    %v1967 = vpop.permute.xlu0 %1966
    %v1969 = vmul.f32 %v1964, %v1967
    %1971 = vrot.lane.b32.xlu0 %v1969, 64
    %v1972 = vpop.permute.xlu0 %1971
    %v1974 = vadd.f32 %v1943, %v1972
    %v1975 = vtanh.pop %v1974
    %v1976 = vsub.f32 1.0, %v1964
    %1978 = vrot.lane.b32.xlu0 %v1975, 96
    %v1979 = vpop.permute.xlu0 %1978
    %v1981 = vmul.f32 %v1976, %v1979
    %v1982 = vmul.f32 %v1964, %v1338
    %v1983 = vadd.f32 %v1981, %v1982
    %1984 = vmatpush.msra.mxu0 0.0
    %1985 = vmatpush.msra.mxu0 0.0
    %1986 = vmatpush.msra.mxu0 0.0
    %1987 = vmatpush.msra.mxu0 0.0
    %1988 = vmatpush.msra.mxu0 0.0
    %1989 = vmatpush.msra.mxu0 0.0
    %1990 = vmatpush.msra.mxu0 0.0
    %1991 = vmatpush.msra.mxu0 0.0
    %1992 = vmatpush.msra.mxu0 0.0
    %1993 = vmatpush.msra.mxu0 0.0
    %1994 = vmatpush.msra.mxu0 0.0
    %1995 = vmatpush.msra.mxu0 0.0
    %v1996 = vand.u32 %v33, 4294901760
    %1997 = vmatpush.msra.mxu0 %v1996
    %v1998 = vand.u32 %v32, 4294901760
    %1999 = vmatpush.msra.mxu0 %v1998
    %v2000 = vand.u32 %v31, 4294901760
    %2001 = vmatpush.msra.mxu0 %v2000
    %v2002 = vand.u32 %v30, 4294901760
    %2003 = vmatpush.msra.mxu0 %v2002
    %v2004 = vand.u32 %v1758, 4294901760
    %v2005 = vsub.f32 %v1758, %v2004
    %v2006 = vand.u32 %v2005, 4294901760
    %v2007 = vsub.f32 %v2005, %v2006
    %v2008 = vand.u32 %v2007, 4294901760
    %2009 = vmatmul.f32.gmra.mxu0 %v2008
    %v2010 = vpop.f32.mrf.mxu0
    %v2011 = vadd.f32 0.0, %v2010
    %2012 = vdwg.mxu0
    %2013 = vmatpush.msra.mxu0 0.0
    %2014 = vmatpush.msra.mxu0 0.0
    %2015 = vmatpush.msra.mxu0 0.0
    %2016 = vmatpush.msra.mxu0 0.0
    %2017 = vmatpush.msra.mxu0 0.0
    %2018 = vmatpush.msra.mxu0 0.0
    %2019 = vmatpush.msra.mxu0 0.0
    %2020 = vmatpush.msra.mxu0 0.0
    %2021 = vmatpush.msra.mxu0 0.0
    %2022 = vmatpush.msra.mxu0 0.0
    %2023 = vmatpush.msra.mxu0 0.0
    %2024 = vmatpush.msra.mxu0 0.0
    %v2025 = vand.u32 %v33, 4294901760
    %v2026 = vsub.f32 %v33, %v2025
    %v2027 = vand.u32 %v2026, 4294901760
    %v2028 = vsub.f32 %v2026, %v2027
    %v2029 = vand.u32 %v2028, 4294901760
    %2030 = vmatpush.msra.mxu0 %v2029
    %v2031 = vand.u32 %v32, 4294901760
    %v2032 = vsub.f32 %v32, %v2031
    %v2033 = vand.u32 %v2032, 4294901760
    %v2034 = vsub.f32 %v2032, %v2033
    %v2035 = vand.u32 %v2034, 4294901760
    %2036 = vmatpush.msra.mxu0 %v2035
    %v2037 = vand.u32 %v31, 4294901760
    %v2038 = vsub.f32 %v31, %v2037
    %v2039 = vand.u32 %v2038, 4294901760
    %v2040 = vsub.f32 %v2038, %v2039
    %v2041 = vand.u32 %v2040, 4294901760
    %2042 = vmatpush.msra.mxu0 %v2041
    %v2043 = vand.u32 %v30, 4294901760
    %v2044 = vsub.f32 %v30, %v2043
    %v2045 = vand.u32 %v2044, 4294901760
    %v2046 = vsub.f32 %v2044, %v2045
    %v2047 = vand.u32 %v2046, 4294901760
    %2048 = vmatpush.msra.mxu0 %v2047
    %v2049 = vand.u32 %v1758, 4294901760
    %2050 = vmatmul.f32.gmra.mxu0 %v2049
    %v2051 = vpop.f32.mrf.mxu0
    %v2052 = vadd.f32 %v2011, %v2051
    %2053 = vdwg.mxu0
    %2054 = vmatpush.msra.mxu0 0.0
    %2055 = vmatpush.msra.mxu0 0.0
    %2056 = vmatpush.msra.mxu0 0.0
    %2057 = vmatpush.msra.mxu0 0.0
    %2058 = vmatpush.msra.mxu0 0.0
    %2059 = vmatpush.msra.mxu0 0.0
    %2060 = vmatpush.msra.mxu0 0.0
    %2061 = vmatpush.msra.mxu0 0.0
    %2062 = vmatpush.msra.mxu0 0.0
    %2063 = vmatpush.msra.mxu0 0.0
    %2064 = vmatpush.msra.mxu0 0.0
    %2065 = vmatpush.msra.mxu0 0.0
    %v2066 = vand.u32 %v33, 4294901760
    %v2067 = vsub.f32 %v33, %v2066
    %2068 = vmatpush.msra.mxu0 %v2067
    %v2069 = vand.u32 %v32, 4294901760
    %v2070 = vsub.f32 %v32, %v2069
    %2071 = vmatpush.msra.mxu0 %v2070
    %v2072 = vand.u32 %v31, 4294901760
    %v2073 = vsub.f32 %v31, %v2072
    %2074 = vmatpush.msra.mxu0 %v2073
    %v2075 = vand.u32 %v30, 4294901760
    %v2076 = vsub.f32 %v30, %v2075
    %2077 = vmatpush.msra.mxu0 %v2076
    %v2078 = vand.u32 %v1758, 4294901760
    %v2079 = vsub.f32 %v1758, %v2078
    %2080 = vmatmul.f32.gmra.mxu0 %v2079
    %v2081 = vpop.f32.mrf.mxu0
    %v2082 = vadd.f32 %v2052, %v2081
    %2083 = vdwg.mxu0
    %2084 = vmatpush.msra.mxu0 0.0
    %2085 = vmatpush.msra.mxu0 0.0
    %2086 = vmatpush.msra.mxu0 0.0
    %2087 = vmatpush.msra.mxu0 0.0
    %2088 = vmatpush.msra.mxu0 0.0
    %2089 = vmatpush.msra.mxu0 0.0
    %2090 = vmatpush.msra.mxu0 0.0
    %2091 = vmatpush.msra.mxu0 0.0
    %2092 = vmatpush.msra.mxu0 0.0
    %2093 = vmatpush.msra.mxu0 0.0
    %2094 = vmatpush.msra.mxu0 0.0
    %2095 = vmatpush.msra.mxu0 0.0
    %v2096 = vand.u32 %v33, 4294901760
    %2097 = vmatpush.msra.mxu0 %v2096
    %v2098 = vand.u32 %v32, 4294901760
    %2099 = vmatpush.msra.mxu0 %v2098
    %v2100 = vand.u32 %v31, 4294901760
    %2101 = vmatpush.msra.mxu0 %v2100
    %v2102 = vand.u32 %v30, 4294901760
    %2103 = vmatpush.msra.mxu0 %v2102
    %v2104 = vand.u32 %v1758, 4294901760
    %v2105 = vsub.f32 %v1758, %v2104
    %v2106 = vand.u32 %v2105, 4294901760
    %2107 = vmatmul.f32.gmra.mxu0 %v2106
    %v2108 = vpop.f32.mrf.mxu0
    %v2109 = vadd.f32 %v2082, %v2108
    %2110 = vdwg.mxu0
    %2111 = vmatpush.msra.mxu0 0.0
    %2112 = vmatpush.msra.mxu0 0.0
    %2113 = vmatpush.msra.mxu0 0.0
    %2114 = vmatpush.msra.mxu0 0.0
    %2115 = vmatpush.msra.mxu0 0.0
    %2116 = vmatpush.msra.mxu0 0.0
    %2117 = vmatpush.msra.mxu0 0.0
    %2118 = vmatpush.msra.mxu0 0.0
    %2119 = vmatpush.msra.mxu0 0.0
    %2120 = vmatpush.msra.mxu0 0.0
    %2121 = vmatpush.msra.mxu0 0.0
    %2122 = vmatpush.msra.mxu0 0.0
    %v2123 = vand.u32 %v33, 4294901760
    %v2124 = vsub.f32 %v33, %v2123
    %v2125 = vand.u32 %v2124, 4294901760
    %2126 = vmatpush.msra.mxu0 %v2125
    %v2127 = vand.u32 %v32, 4294901760
    %v2128 = vsub.f32 %v32, %v2127
    %v2129 = vand.u32 %v2128, 4294901760
    %2130 = vmatpush.msra.mxu0 %v2129
    %v2131 = vand.u32 %v31, 4294901760
    %v2132 = vsub.f32 %v31, %v2131
    %v2133 = vand.u32 %v2132, 4294901760
    %2134 = vmatpush.msra.mxu0 %v2133
    %v2135 = vand.u32 %v30, 4294901760
    %v2136 = vsub.f32 %v30, %v2135
    %v2137 = vand.u32 %v2136, 4294901760
    %2138 = vmatpush.msra.mxu0 %v2137
    %v2139 = vand.u32 %v1758, 4294901760
    %2140 = vmatmul.f32.gmra.mxu0 %v2139
    %v2141 = vpop.f32.mrf.mxu0
    %v2142 = vadd.f32 %v2109, %v2141
    %2143 = vdwg.mxu0
    %2144 = vmatpush.msra.mxu0 0.0
    %2145 = vmatpush.msra.mxu0 0.0
    %2146 = vmatpush.msra.mxu0 0.0
    %2147 = vmatpush.msra.mxu0 0.0
    %2148 = vmatpush.msra.mxu0 0.0
    %2149 = vmatpush.msra.mxu0 0.0
    %2150 = vmatpush.msra.mxu0 0.0
    %2151 = vmatpush.msra.mxu0 0.0
    %2152 = vmatpush.msra.mxu0 0.0
    %2153 = vmatpush.msra.mxu0 0.0
    %2154 = vmatpush.msra.mxu0 0.0
    %2155 = vmatpush.msra.mxu0 0.0
    %v2156 = vand.u32 %v33, 4294901760
    %2157 = vmatpush.msra.mxu0 %v2156
    %v2158 = vand.u32 %v32, 4294901760
    %2159 = vmatpush.msra.mxu0 %v2158
    %v2160 = vand.u32 %v31, 4294901760
    %2161 = vmatpush.msra.mxu0 %v2160
    %v2162 = vand.u32 %v30, 4294901760
    %2163 = vmatpush.msra.mxu0 %v2162
    %v2164 = vand.u32 %v1758, 4294901760
    %2165 = vmatmul.f32.gmra.mxu0 %v2164
    %v2166 = vpop.f32.mrf.mxu0
    %v2167 = vadd.f32 %v2142, %v2166
    %2168 = vdwg.mxu0
    %2170 = vrot.lane.b32.xlu0 %v1983, 96
    %v2171 = vpop.permute.xlu0 %2170
    %v2172 = vsel %vm34, %v2171, 0
    %2174 = vmatpush.msra.mxu0 0.0
    %2175 = vmatpush.msra.mxu0 0.0
    %2176 = vmatpush.msra.mxu0 0.0
    %2177 = vmatpush.msra.mxu0 0.0
    %2178 = vmatpush.msra.mxu0 0.0
    %2179 = vmatpush.msra.mxu0 0.0
    %2180 = vmatpush.msra.mxu0 0.0
    %2181 = vmatpush.msra.mxu0 0.0
    %2182 = vmatpush.msra.mxu0 0.0
    %2183 = vmatpush.msra.mxu0 0.0
    %2184 = vmatpush.msra.mxu0 0.0
    %2185 = vmatpush.msra.mxu0 0.0
    %v2186 = vand.u32 %v226, 4294901760
    %2187 = vmatpush.msra.mxu0 %v2186
    %v2188 = vand.u32 %v225, 4294901760
    %2189 = vmatpush.msra.mxu0 %v2188
    %v2190 = vand.u32 %v224, 4294901760
    %2191 = vmatpush.msra.mxu0 %v2190
    %v2192 = vand.u32 %v223, 4294901760
    %2193 = vmatpush.msra.mxu0 %v2192
    %v2194 = vand.u32 %v2172, 4294901760
    %v2195 = vsub.f32 %v2172, %v2194
    %v2196 = vand.u32 %v2195, 4294901760
    %v2197 = vsub.f32 %v2195, %v2196
    %v2198 = vand.u32 %v2197, 4294901760
    %2199 = vmatmul.f32.gmra.mxu0 %v2198
    %v2200 = vpop.f32.mrf.mxu0
    %v2201 = vadd.f32 0.0, %v2200
    %2202 = vdwg.mxu0
    %2203 = vmatpush.msra.mxu0 0.0
    %2204 = vmatpush.msra.mxu0 0.0
    %2205 = vmatpush.msra.mxu0 0.0
    %2206 = vmatpush.msra.mxu0 0.0
    %2207 = vmatpush.msra.mxu0 0.0
    %2208 = vmatpush.msra.mxu0 0.0
    %2209 = vmatpush.msra.mxu0 0.0
    %2210 = vmatpush.msra.mxu0 0.0
    %2211 = vmatpush.msra.mxu0 0.0
    %2212 = vmatpush.msra.mxu0 0.0
    %2213 = vmatpush.msra.mxu0 0.0
    %2214 = vmatpush.msra.mxu0 0.0
    %v2215 = vand.u32 %v226, 4294901760
    %v2216 = vsub.f32 %v226, %v2215
    %v2217 = vand.u32 %v2216, 4294901760
    %v2218 = vsub.f32 %v2216, %v2217
    %v2219 = vand.u32 %v2218, 4294901760
    %2220 = vmatpush.msra.mxu0 %v2219
    %v2221 = vand.u32 %v225, 4294901760
    %v2222 = vsub.f32 %v225, %v2221
    %v2223 = vand.u32 %v2222, 4294901760
    %v2224 = vsub.f32 %v2222, %v2223
    %v2225 = vand.u32 %v2224, 4294901760
    %2226 = vmatpush.msra.mxu0 %v2225
    %v2227 = vand.u32 %v224, 4294901760
    %v2228 = vsub.f32 %v224, %v2227
    %v2229 = vand.u32 %v2228, 4294901760
    %v2230 = vsub.f32 %v2228, %v2229
    %v2231 = vand.u32 %v2230, 4294901760
    %2232 = vmatpush.msra.mxu0 %v2231
    %v2233 = vand.u32 %v223, 4294901760
    %v2234 = vsub.f32 %v223, %v2233
    %v2235 = vand.u32 %v2234, 4294901760
    %v2236 = vsub.f32 %v2234, %v2235
    %v2237 = vand.u32 %v2236, 4294901760
    %2238 = vmatpush.msra.mxu0 %v2237
    %v2239 = vand.u32 %v2172, 4294901760
    %2240 = vmatmul.f32.gmra.mxu0 %v2239
    %v2241 = vpop.f32.mrf.mxu0
    %v2242 = vadd.f32 %v2201, %v2241
    %2243 = vdwg.mxu0
    %2244 = vmatpush.msra.mxu0 0.0
    %2245 = vmatpush.msra.mxu0 0.0
    %2246 = vmatpush.msra.mxu0 0.0
    %2247 = vmatpush.msra.mxu0 0.0
    %2248 = vmatpush.msra.mxu0 0.0
    %2249 = vmatpush.msra.mxu0 0.0
    %2250 = vmatpush.msra.mxu0 0.0
    %2251 = vmatpush.msra.mxu0 0.0
    %2252 = vmatpush.msra.mxu0 0.0
    %2253 = vmatpush.msra.mxu0 0.0
    %2254 = vmatpush.msra.mxu0 0.0
    %2255 = vmatpush.msra.mxu0 0.0
    %v2256 = vand.u32 %v226, 4294901760
    %v2257 = vsub.f32 %v226, %v2256
    %2258 = vmatpush.msra.mxu0 %v2257
    %v2259 = vand.u32 %v225, 4294901760
    %v2260 = vsub.f32 %v225, %v2259
    %2261 = vmatpush.msra.mxu0 %v2260
    %v2262 = vand.u32 %v224, 4294901760
    %v2263 = vsub.f32 %v224, %v2262
    %2264 = vmatpush.msra.mxu0 %v2263
    %v2265 = vand.u32 %v223, 4294901760
    %v2266 = vsub.f32 %v223, %v2265
    %2267 = vmatpush.msra.mxu0 %v2266
    %v2268 = vand.u32 %v2172, 4294901760
    %v2269 = vsub.f32 %v2172, %v2268
    %2270 = vmatmul.f32.gmra.mxu0 %v2269
    %v2271 = vpop.f32.mrf.mxu0
    %v2272 = vadd.f32 %v2242, %v2271
    %2273 = vdwg.mxu0
    %2274 = vmatpush.msra.mxu0 0.0
    %2275 = vmatpush.msra.mxu0 0.0
    %2276 = vmatpush.msra.mxu0 0.0
    %2277 = vmatpush.msra.mxu0 0.0
    %2278 = vmatpush.msra.mxu0 0.0
    %2279 = vmatpush.msra.mxu0 0.0
    %2280 = vmatpush.msra.mxu0 0.0
    %2281 = vmatpush.msra.mxu0 0.0
    %2282 = vmatpush.msra.mxu0 0.0
    %2283 = vmatpush.msra.mxu0 0.0
    %2284 = vmatpush.msra.mxu0 0.0
    %2285 = vmatpush.msra.mxu0 0.0
    %v2286 = vand.u32 %v226, 4294901760
    %2287 = vmatpush.msra.mxu0 %v2286
    %v2288 = vand.u32 %v225, 4294901760
    %2289 = vmatpush.msra.mxu0 %v2288
    %v2290 = vand.u32 %v224, 4294901760
    %2291 = vmatpush.msra.mxu0 %v2290
    %v2292 = vand.u32 %v223, 4294901760
    %2293 = vmatpush.msra.mxu0 %v2292
    %v2294 = vand.u32 %v2172, 4294901760
    %v2295 = vsub.f32 %v2172, %v2294
    %v2296 = vand.u32 %v2295, 4294901760
    %2297 = vmatmul.f32.gmra.mxu0 %v2296
    %v2298 = vpop.f32.mrf.mxu0
    %v2299 = vadd.f32 %v2272, %v2298
    %2300 = vdwg.mxu0
    %2301 = vmatpush.msra.mxu0 0.0
    %2302 = vmatpush.msra.mxu0 0.0
    %2303 = vmatpush.msra.mxu0 0.0
    %2304 = vmatpush.msra.mxu0 0.0
    %2305 = vmatpush.msra.mxu0 0.0
    %2306 = vmatpush.msra.mxu0 0.0
    %2307 = vmatpush.msra.mxu0 0.0
    %2308 = vmatpush.msra.mxu0 0.0
    %2309 = vmatpush.msra.mxu0 0.0
    %2310 = vmatpush.msra.mxu0 0.0
    %2311 = vmatpush.msra.mxu0 0.0
    %2312 = vmatpush.msra.mxu0 0.0
    %v2313 = vand.u32 %v226, 4294901760
    %v2314 = vsub.f32 %v226, %v2313
    %v2315 = vand.u32 %v2314, 4294901760
    %2316 = vmatpush.msra.mxu0 %v2315
    %v2317 = vand.u32 %v225, 4294901760
    %v2318 = vsub.f32 %v225, %v2317
    %v2319 = vand.u32 %v2318, 4294901760
    %2320 = vmatpush.msra.mxu0 %v2319
    %v2321 = vand.u32 %v224, 4294901760
    %v2322 = vsub.f32 %v224, %v2321
    %v2323 = vand.u32 %v2322, 4294901760
    %2324 = vmatpush.msra.mxu0 %v2323
    %v2325 = vand.u32 %v223, 4294901760
    %v2326 = vsub.f32 %v223, %v2325
    %v2327 = vand.u32 %v2326, 4294901760
    %2328 = vmatpush.msra.mxu0 %v2327
    %v2329 = vand.u32 %v2172, 4294901760
    %2330 = vmatmul.f32.gmra.mxu0 %v2329
    %v2331 = vpop.f32.mrf.mxu0
    %v2332 = vadd.f32 %v2299, %v2331
    %2333 = vdwg.mxu0
    %2334 = vmatpush.msra.mxu0 0.0
    %2335 = vmatpush.msra.mxu0 0.0
    %2336 = vmatpush.msra.mxu0 0.0
    %2337 = vmatpush.msra.mxu0 0.0
    %2338 = vmatpush.msra.mxu0 0.0
    %2339 = vmatpush.msra.mxu0 0.0
    %2340 = vmatpush.msra.mxu0 0.0
    %2341 = vmatpush.msra.mxu0 0.0
    %2342 = vmatpush.msra.mxu0 0.0
    %2343 = vmatpush.msra.mxu0 0.0
    %2344 = vmatpush.msra.mxu0 0.0
    %2345 = vmatpush.msra.mxu0 0.0
    %v2346 = vand.u32 %v226, 4294901760
    %2347 = vmatpush.msra.mxu0 %v2346
    %v2348 = vand.u32 %v225, 4294901760
    %2349 = vmatpush.msra.mxu0 %v2348
    %v2350 = vand.u32 %v224, 4294901760
    %2351 = vmatpush.msra.mxu0 %v2350
    %v2352 = vand.u32 %v223, 4294901760
    %2353 = vmatpush.msra.mxu0 %v2352
    %v2354 = vand.u32 %v2172, 4294901760
    %2355 = vmatmul.f32.gmra.mxu0 %v2354
    %v2356 = vpop.f32.mrf.mxu0
    %v2357 = vadd.f32 %v2332, %v2356
    %2358 = vdwg.mxu0
    %s2359 = scalar_lea.vmem %s0, 6
    %v2360 = vld [vmem:[%s2359] sm:$0x3]
    %v2361 = vadd.f32 %v2360, %v2167
    %v2362 = vxor.u32 %v2361, 2147483648
    %v2363 = vmul.f32 %v2362, 1.442695
    %v2364 = vpow.pop %v2363
    %v2365 = vadd.f32 %v2364, 1.0
    %v2366 = vrcp.pop %v2365
    %v2367 = vmul.f32 %v2365, %v2366
    %v2368 = vsub.f32 1.0, %v2367
    %v2369 = vmul.f32 %v2366, %v2368
    %v2370 = vadd.f32 %v2366, %v2369
    %vm2371 = vweird.f32 %v2365
    %vm2372 = vweird.f32 %v2366
    %vm2373 = vmor %vm2371, %vm2372
    %v2374 = vsel %vm2373, %v2366, %v2370
    %v2375 = vand.u32 2147483647, %v2365
    %vm2376 = vcmp.eq.f32.partialorder %v2375, 8.507059e+37
    %v2377 = vand.u32 %v2365, 2147483648
    %v2378 = vor.u32 1.1754944e-38, %v2377
    %v2379 = vsel %vm2376, %v2378, %v2374
    %v2380 = vmul.f32 1.0, %v2379
    %2382 = vrot.lane.b32.xlu0 %v2167, 64
    %v2383 = vpop.permute.xlu0 %2382
    %v2385 = vmul.f32 %v2380, %v2383
    %2387 = vrot.lane.b32.xlu0 %v2385, 64
    %v2388 = vpop.permute.xlu0 %2387
    %v2390 = vadd.f32 %v2360, %v2388
    %v2391 = vtanh.pop %v2390
    %v2392 = vsub.f32 1.0, %v2380
    %2394 = vrot.lane.b32.xlu0 %v2391, 96
    %v2395 = vpop.permute.xlu0 %2394
    %v2397 = vmul.f32 %v2392, %v2395
    %v2398 = vmul.f32 %v2380, %v1754
    %v2399 = vadd.f32 %v2397, %v2398
    %2401 = vrot.lane.b32.xlu0 %v2399, 96
    %v2402 = vpop.permute.xlu0 %2401
    %v2403 = vsel %vm34, %v2402, 0
    %2405 = vmatpush.msra.mxu0 0.0
    %2406 = vmatpush.msra.mxu0 0.0
    %2407 = vmatpush.msra.mxu0 0.0
    %2408 = vmatpush.msra.mxu0 0.0
    %2409 = vmatpush.msra.mxu0 0.0
    %2410 = vmatpush.msra.mxu0 0.0
    %2411 = vmatpush.msra.mxu0 0.0
    %2412 = vmatpush.msra.mxu0 0.0
    %2413 = vmatpush.msra.mxu0 0.0
    %2414 = vmatpush.msra.mxu0 0.0
    %2415 = vmatpush.msra.mxu0 0.0
    %2416 = vmatpush.msra.mxu0 0.0
    %v2417 = vand.u32 %v461, 4294901760
    %2418 = vmatpush.msra.mxu0 %v2417
    %v2419 = vand.u32 %v460, 4294901760
    %2420 = vmatpush.msra.mxu0 %v2419
    %v2421 = vand.u32 %v459, 4294901760
    %2422 = vmatpush.msra.mxu0 %v2421
    %v2423 = vand.u32 %v458, 4294901760
    %2424 = vmatpush.msra.mxu0 %v2423
    %v2425 = vand.u32 %v2403, 4294901760
    %v2426 = vsub.f32 %v2403, %v2425
    %v2427 = vand.u32 %v2426, 4294901760
    %v2428 = vsub.f32 %v2426, %v2427
    %v2429 = vand.u32 %v2428, 4294901760
    %2430 = vmatmul.f32.gmra.mxu0 %v2429
    %v2431 = vpop.f32.mrf.mxu0
    %v2432 = vadd.f32 0.0, %v2431
    %2433 = vdwg.mxu0
    %2434 = vmatpush.msra.mxu0 0.0
    %2435 = vmatpush.msra.mxu0 0.0
    %2436 = vmatpush.msra.mxu0 0.0
    %2437 = vmatpush.msra.mxu0 0.0
    %2438 = vmatpush.msra.mxu0 0.0
    %2439 = vmatpush.msra.mxu0 0.0
    %2440 = vmatpush.msra.mxu0 0.0
    %2441 = vmatpush.msra.mxu0 0.0
    %2442 = vmatpush.msra.mxu0 0.0
    %2443 = vmatpush.msra.mxu0 0.0
    %2444 = vmatpush.msra.mxu0 0.0
    %2445 = vmatpush.msra.mxu0 0.0
    %v2446 = vand.u32 %v461, 4294901760
    %v2447 = vsub.f32 %v461, %v2446
    %v2448 = vand.u32 %v2447, 4294901760
    %v2449 = vsub.f32 %v2447, %v2448
    %v2450 = vand.u32 %v2449, 4294901760
    %2451 = vmatpush.msra.mxu0 %v2450
    %v2452 = vand.u32 %v460, 4294901760
    %v2453 = vsub.f32 %v460, %v2452
    %v2454 = vand.u32 %v2453, 4294901760
    %v2455 = vsub.f32 %v2453, %v2454
    %v2456 = vand.u32 %v2455, 4294901760
    %2457 = vmatpush.msra.mxu0 %v2456
    %v2458 = vand.u32 %v459, 4294901760
    %v2459 = vsub.f32 %v459, %v2458
    %v2460 = vand.u32 %v2459, 4294901760
    %v2461 = vsub.f32 %v2459, %v2460
    %v2462 = vand.u32 %v2461, 4294901760
    %2463 = vmatpush.msra.mxu0 %v2462
    %v2464 = vand.u32 %v458, 4294901760
    %v2465 = vsub.f32 %v458, %v2464
    %v2466 = vand.u32 %v2465, 4294901760
    %v2467 = vsub.f32 %v2465, %v2466
    %v2468 = vand.u32 %v2467, 4294901760
    %2469 = vmatpush.msra.mxu0 %v2468
    %v2470 = vand.u32 %v2403, 4294901760
    %2471 = vmatmul.f32.gmra.mxu0 %v2470
    %v2472 = vpop.f32.mrf.mxu0
    %v2473 = vadd.f32 %v2432, %v2472
    %2474 = vdwg.mxu0
    %2475 = vmatpush.msra.mxu0 0.0
    %2476 = vmatpush.msra.mxu0 0.0
    %2477 = vmatpush.msra.mxu0 0.0
    %2478 = vmatpush.msra.mxu0 0.0
    %2479 = vmatpush.msra.mxu0 0.0
    %2480 = vmatpush.msra.mxu0 0.0
    %2481 = vmatpush.msra.mxu0 0.0
    %2482 = vmatpush.msra.mxu0 0.0
    %2483 = vmatpush.msra.mxu0 0.0
    %2484 = vmatpush.msra.mxu0 0.0
    %2485 = vmatpush.msra.mxu0 0.0
    %2486 = vmatpush.msra.mxu0 0.0
    %v2487 = vand.u32 %v461, 4294901760
    %v2488 = vsub.f32 %v461, %v2487
    %2489 = vmatpush.msra.mxu0 %v2488
    %v2490 = vand.u32 %v460, 4294901760
    %v2491 = vsub.f32 %v460, %v2490
    %2492 = vmatpush.msra.mxu0 %v2491
    %v2493 = vand.u32 %v459, 4294901760
    %v2494 = vsub.f32 %v459, %v2493
    %2495 = vmatpush.msra.mxu0 %v2494
    %v2496 = vand.u32 %v458, 4294901760
    %v2497 = vsub.f32 %v458, %v2496
    %2498 = vmatpush.msra.mxu0 %v2497
    %v2499 = vand.u32 %v2403, 4294901760
    %v2500 = vsub.f32 %v2403, %v2499
    %2501 = vmatmul.f32.gmra.mxu0 %v2500
    %v2502 = vpop.f32.mrf.mxu0
    %v2503 = vadd.f32 %v2473, %v2502
    %2504 = vdwg.mxu0
    %2505 = vmatpush.msra.mxu0 0.0
    %2506 = vmatpush.msra.mxu0 0.0
    %2507 = vmatpush.msra.mxu0 0.0
    %2508 = vmatpush.msra.mxu0 0.0
    %2509 = vmatpush.msra.mxu0 0.0
    %2510 = vmatpush.msra.mxu0 0.0
    %2511 = vmatpush.msra.mxu0 0.0
    %2512 = vmatpush.msra.mxu0 0.0
    %2513 = vmatpush.msra.mxu0 0.0
    %2514 = vmatpush.msra.mxu0 0.0
    %2515 = vmatpush.msra.mxu0 0.0
    %2516 = vmatpush.msra.mxu0 0.0
    %v2517 = vand.u32 %v461, 4294901760
    %2518 = vmatpush.msra.mxu0 %v2517
    %v2519 = vand.u32 %v460, 4294901760
    %2520 = vmatpush.msra.mxu0 %v2519
    %v2521 = vand.u32 %v459, 4294901760
    %2522 = vmatpush.msra.mxu0 %v2521
    %v2523 = vand.u32 %v458, 4294901760
    %2524 = vmatpush.msra.mxu0 %v2523
    %v2525 = vand.u32 %v2403, 4294901760
    %v2526 = vsub.f32 %v2403, %v2525
    %v2527 = vand.u32 %v2526, 4294901760
    %2528 = vmatmul.f32.gmra.mxu0 %v2527
    %v2529 = vpop.f32.mrf.mxu0
    %v2530 = vadd.f32 %v2503, %v2529
    %2531 = vdwg.mxu0
    %2532 = vmatpush.msra.mxu0 0.0
    %2533 = vmatpush.msra.mxu0 0.0
    %2534 = vmatpush.msra.mxu0 0.0
    %2535 = vmatpush.msra.mxu0 0.0
    %2536 = vmatpush.msra.mxu0 0.0
    %2537 = vmatpush.msra.mxu0 0.0
    %2538 = vmatpush.msra.mxu0 0.0
    %2539 = vmatpush.msra.mxu0 0.0
    %2540 = vmatpush.msra.mxu0 0.0
    %2541 = vmatpush.msra.mxu0 0.0
    %2542 = vmatpush.msra.mxu0 0.0
    %2543 = vmatpush.msra.mxu0 0.0
    %v2544 = vand.u32 %v461, 4294901760
    %v2545 = vsub.f32 %v461, %v2544
    %v2546 = vand.u32 %v2545, 4294901760
    %2547 = vmatpush.msra.mxu0 %v2546
    %v2548 = vand.u32 %v460, 4294901760
    %v2549 = vsub.f32 %v460, %v2548
    %v2550 = vand.u32 %v2549, 4294901760
    %2551 = vmatpush.msra.mxu0 %v2550
    %v2552 = vand.u32 %v459, 4294901760
    %v2553 = vsub.f32 %v459, %v2552
    %v2554 = vand.u32 %v2553, 4294901760
    %2555 = vmatpush.msra.mxu0 %v2554
    %v2556 = vand.u32 %v458, 4294901760
    %v2557 = vsub.f32 %v458, %v2556
    %v2558 = vand.u32 %v2557, 4294901760
    %2559 = vmatpush.msra.mxu0 %v2558
    %v2560 = vand.u32 %v2403, 4294901760
    %2561 = vmatmul.f32.gmra.mxu0 %v2560
    %v2562 = vpop.f32.mrf.mxu0
    %v2563 = vadd.f32 %v2530, %v2562
    %2564 = vdwg.mxu0
    %2565 = vmatpush.msra.mxu0 0.0
    %2566 = vmatpush.msra.mxu0 0.0
    %2567 = vmatpush.msra.mxu0 0.0
    %2568 = vmatpush.msra.mxu0 0.0
    %2569 = vmatpush.msra.mxu0 0.0
    %2570 = vmatpush.msra.mxu0 0.0
    %2571 = vmatpush.msra.mxu0 0.0
    %2572 = vmatpush.msra.mxu0 0.0
    %2573 = vmatpush.msra.mxu0 0.0
    %2574 = vmatpush.msra.mxu0 0.0
    %2575 = vmatpush.msra.mxu0 0.0
    %2576 = vmatpush.msra.mxu0 0.0
    %v2577 = vand.u32 %v461, 4294901760
    %2578 = vmatpush.msra.mxu0 %v2577
    %v2579 = vand.u32 %v460, 4294901760
    %2580 = vmatpush.msra.mxu0 %v2579
    %v2581 = vand.u32 %v459, 4294901760
    %2582 = vmatpush.msra.mxu0 %v2581
    %v2583 = vand.u32 %v458, 4294901760
    %2584 = vmatpush.msra.mxu0 %v2583
    %v2585 = vand.u32 %v2403, 4294901760
    %2586 = vmatmul.f32.gmra.mxu0 %v2585
    %v2587 = vpop.f32.mrf.mxu0
    %v2588 = vadd.f32 %v2563, %v2587
    %2589 = vdwg.mxu0
    %v2590 = vadd.f32 %v2588, %v2357
    %v2591 = vxor.u32 %v2590, 2147483648
    %v2592 = vmul.f32 %v2591, 1.442695
    %v2593 = vpow.pop %v2592
    %v2594 = vadd.f32 %v2593, 1.0
    %v2595 = vrcp.pop %v2594
    %v2596 = vmul.f32 %v2594, %v2595
    %v2597 = vsub.f32 1.0, %v2596
    %v2598 = vmul.f32 %v2595, %v2597
    %v2599 = vadd.f32 %v2595, %v2598
    %vm2600 = vweird.f32 %v2594
    %vm2601 = vweird.f32 %v2595
    %vm2602 = vmor %vm2600, %vm2601
    %v2603 = vsel %vm2602, %v2595, %v2599
    %v2604 = vand.u32 2147483647, %v2594
    %vm2605 = vcmp.eq.f32.partialorder %v2604, 8.507059e+37
    %v2606 = vand.u32 %v2594, 2147483648
    %v2607 = vor.u32 1.1754944e-38, %v2606
    %v2608 = vsel %vm2605, %v2607, %v2603
    %v2609 = vmul.f32 1.0, %v2608
    %2611 = vrot.lane.b32.xlu0 %v2357, 64
    %v2612 = vpop.permute.xlu0 %2611
    %v2614 = vmul.f32 %v2609, %v2612
    %2616 = vrot.lane.b32.xlu0 %v2614, 64
    %v2617 = vpop.permute.xlu0 %2616
    %v2619 = vadd.f32 %v2588, %v2617
    %v2620 = vtanh.pop %v2619
    %v2621 = vsub.f32 1.0, %v2609
    %2623 = vrot.lane.b32.xlu0 %v2620, 96
    %v2624 = vpop.permute.xlu0 %2623
    %v2626 = vmul.f32 %v2621, %v2624
    %v2627 = vmul.f32 %v2609, %v1983
    %v2628 = vadd.f32 %v2626, %v2627
    %2629 = vmatpush.msra.mxu0 0.0
    %2630 = vmatpush.msra.mxu0 0.0
    %2631 = vmatpush.msra.mxu0 0.0
    %2632 = vmatpush.msra.mxu0 0.0
    %2633 = vmatpush.msra.mxu0 0.0
    %2634 = vmatpush.msra.mxu0 0.0
    %2635 = vmatpush.msra.mxu0 0.0
    %2636 = vmatpush.msra.mxu0 0.0
    %2637 = vmatpush.msra.mxu0 0.0
    %2638 = vmatpush.msra.mxu0 0.0
    %2639 = vmatpush.msra.mxu0 0.0
    %2640 = vmatpush.msra.mxu0 0.0
    %v2641 = vand.u32 %v33, 4294901760
    %2642 = vmatpush.msra.mxu0 %v2641
    %v2643 = vand.u32 %v32, 4294901760
    %2644 = vmatpush.msra.mxu0 %v2643
    %v2645 = vand.u32 %v31, 4294901760
    %2646 = vmatpush.msra.mxu0 %v2645
    %v2647 = vand.u32 %v30, 4294901760
    %2648 = vmatpush.msra.mxu0 %v2647
    %v2649 = vand.u32 %v2403, 4294901760
    %v2650 = vsub.f32 %v2403, %v2649
    %v2651 = vand.u32 %v2650, 4294901760
    %v2652 = vsub.f32 %v2650, %v2651
    %v2653 = vand.u32 %v2652, 4294901760
    %2654 = vmatmul.f32.gmra.mxu0 %v2653
    %v2655 = vpop.f32.mrf.mxu0
    %v2656 = vadd.f32 0.0, %v2655
    %2657 = vdwg.mxu0
    %2658 = vmatpush.msra.mxu0 0.0
    %2659 = vmatpush.msra.mxu0 0.0
    %2660 = vmatpush.msra.mxu0 0.0
    %2661 = vmatpush.msra.mxu0 0.0
    %2662 = vmatpush.msra.mxu0 0.0
    %2663 = vmatpush.msra.mxu0 0.0
    %2664 = vmatpush.msra.mxu0 0.0
    %2665 = vmatpush.msra.mxu0 0.0
    %2666 = vmatpush.msra.mxu0 0.0
    %2667 = vmatpush.msra.mxu0 0.0
    %2668 = vmatpush.msra.mxu0 0.0
    %2669 = vmatpush.msra.mxu0 0.0
    %v2670 = vand.u32 %v33, 4294901760
    %v2671 = vsub.f32 %v33, %v2670
    %v2672 = vand.u32 %v2671, 4294901760
    %v2673 = vsub.f32 %v2671, %v2672
    %v2674 = vand.u32 %v2673, 4294901760
    %2675 = vmatpush.msra.mxu0 %v2674
    %v2676 = vand.u32 %v32, 4294901760
    %v2677 = vsub.f32 %v32, %v2676
    %v2678 = vand.u32 %v2677, 4294901760
    %v2679 = vsub.f32 %v2677, %v2678
    %v2680 = vand.u32 %v2679, 4294901760
    %2681 = vmatpush.msra.mxu0 %v2680
    %v2682 = vand.u32 %v31, 4294901760
    %v2683 = vsub.f32 %v31, %v2682
    %v2684 = vand.u32 %v2683, 4294901760
    %v2685 = vsub.f32 %v2683, %v2684
    %v2686 = vand.u32 %v2685, 4294901760
    %2687 = vmatpush.msra.mxu0 %v2686
    %v2688 = vand.u32 %v30, 4294901760
    %v2689 = vsub.f32 %v30, %v2688
    %v2690 = vand.u32 %v2689, 4294901760
    %v2691 = vsub.f32 %v2689, %v2690
    %v2692 = vand.u32 %v2691, 4294901760
    %2693 = vmatpush.msra.mxu0 %v2692
    %v2694 = vand.u32 %v2403, 4294901760
    %2695 = vmatmul.f32.gmra.mxu0 %v2694
    %v2696 = vpop.f32.mrf.mxu0
    %v2697 = vadd.f32 %v2656, %v2696
    %2698 = vdwg.mxu0
    %2699 = vmatpush.msra.mxu0 0.0
    %2700 = vmatpush.msra.mxu0 0.0
    %2701 = vmatpush.msra.mxu0 0.0
    %2702 = vmatpush.msra.mxu0 0.0
    %2703 = vmatpush.msra.mxu0 0.0
    %2704 = vmatpush.msra.mxu0 0.0
    %2705 = vmatpush.msra.mxu0 0.0
    %2706 = vmatpush.msra.mxu0 0.0
    %2707 = vmatpush.msra.mxu0 0.0
    %2708 = vmatpush.msra.mxu0 0.0
    %2709 = vmatpush.msra.mxu0 0.0
    %2710 = vmatpush.msra.mxu0 0.0
    %v2711 = vand.u32 %v33, 4294901760
    %v2712 = vsub.f32 %v33, %v2711
    %2713 = vmatpush.msra.mxu0 %v2712
    %v2714 = vand.u32 %v32, 4294901760
    %v2715 = vsub.f32 %v32, %v2714
    %2716 = vmatpush.msra.mxu0 %v2715
    %v2717 = vand.u32 %v31, 4294901760
    %v2718 = vsub.f32 %v31, %v2717
    %2719 = vmatpush.msra.mxu0 %v2718
    %v2720 = vand.u32 %v30, 4294901760
    %v2721 = vsub.f32 %v30, %v2720
    %2722 = vmatpush.msra.mxu0 %v2721
    %v2723 = vand.u32 %v2403, 4294901760
    %v2724 = vsub.f32 %v2403, %v2723
    %2725 = vmatmul.f32.gmra.mxu0 %v2724
    %v2726 = vpop.f32.mrf.mxu0
    %v2727 = vadd.f32 %v2697, %v2726
    %2728 = vdwg.mxu0
    %2729 = vmatpush.msra.mxu0 0.0
    %2730 = vmatpush.msra.mxu0 0.0
    %2731 = vmatpush.msra.mxu0 0.0
    %2732 = vmatpush.msra.mxu0 0.0
    %2733 = vmatpush.msra.mxu0 0.0
    %2734 = vmatpush.msra.mxu0 0.0
    %2735 = vmatpush.msra.mxu0 0.0
    %2736 = vmatpush.msra.mxu0 0.0
    %2737 = vmatpush.msra.mxu0 0.0
    %2738 = vmatpush.msra.mxu0 0.0
    %2739 = vmatpush.msra.mxu0 0.0
    %2740 = vmatpush.msra.mxu0 0.0
    %v2741 = vand.u32 %v33, 4294901760
    %2742 = vmatpush.msra.mxu0 %v2741
    %v2743 = vand.u32 %v32, 4294901760
    %2744 = vmatpush.msra.mxu0 %v2743
    %v2745 = vand.u32 %v31, 4294901760
    %2746 = vmatpush.msra.mxu0 %v2745
    %v2747 = vand.u32 %v30, 4294901760
    %2748 = vmatpush.msra.mxu0 %v2747
    %v2749 = vand.u32 %v2403, 4294901760
    %v2750 = vsub.f32 %v2403, %v2749
    %v2751 = vand.u32 %v2750, 4294901760
    %2752 = vmatmul.f32.gmra.mxu0 %v2751
    %v2753 = vpop.f32.mrf.mxu0
    %v2754 = vadd.f32 %v2727, %v2753
    %2755 = vdwg.mxu0
    %2756 = vmatpush.msra.mxu0 0.0
    %2757 = vmatpush.msra.mxu0 0.0
    %2758 = vmatpush.msra.mxu0 0.0
    %2759 = vmatpush.msra.mxu0 0.0
    %2760 = vmatpush.msra.mxu0 0.0
    %2761 = vmatpush.msra.mxu0 0.0
    %2762 = vmatpush.msra.mxu0 0.0
    %2763 = vmatpush.msra.mxu0 0.0
    %2764 = vmatpush.msra.mxu0 0.0
    %2765 = vmatpush.msra.mxu0 0.0
    %2766 = vmatpush.msra.mxu0 0.0
    %2767 = vmatpush.msra.mxu0 0.0
    %v2768 = vand.u32 %v33, 4294901760
    %v2769 = vsub.f32 %v33, %v2768
    %v2770 = vand.u32 %v2769, 4294901760
    %2771 = vmatpush.msra.mxu0 %v2770
    %v2772 = vand.u32 %v32, 4294901760
    %v2773 = vsub.f32 %v32, %v2772
    %v2774 = vand.u32 %v2773, 4294901760
    %2775 = vmatpush.msra.mxu0 %v2774
    %v2776 = vand.u32 %v31, 4294901760
    %v2777 = vsub.f32 %v31, %v2776
    %v2778 = vand.u32 %v2777, 4294901760
    %2779 = vmatpush.msra.mxu0 %v2778
    %v2780 = vand.u32 %v30, 4294901760
    %v2781 = vsub.f32 %v30, %v2780
    %v2782 = vand.u32 %v2781, 4294901760
    %2783 = vmatpush.msra.mxu0 %v2782
    %v2784 = vand.u32 %v2403, 4294901760
    %2785 = vmatmul.f32.gmra.mxu0 %v2784
    %v2786 = vpop.f32.mrf.mxu0
    %v2787 = vadd.f32 %v2754, %v2786
    %2788 = vdwg.mxu0
    %2789 = vmatpush.msra.mxu0 0.0
    %2790 = vmatpush.msra.mxu0 0.0
    %2791 = vmatpush.msra.mxu0 0.0
    %2792 = vmatpush.msra.mxu0 0.0
    %2793 = vmatpush.msra.mxu0 0.0
    %2794 = vmatpush.msra.mxu0 0.0
    %2795 = vmatpush.msra.mxu0 0.0
    %2796 = vmatpush.msra.mxu0 0.0
    %2797 = vmatpush.msra.mxu0 0.0
    %2798 = vmatpush.msra.mxu0 0.0
    %2799 = vmatpush.msra.mxu0 0.0
    %2800 = vmatpush.msra.mxu0 0.0
    %v2801 = vand.u32 %v33, 4294901760
    %2802 = vmatpush.msra.mxu0 %v2801
    %v2803 = vand.u32 %v32, 4294901760
    %2804 = vmatpush.msra.mxu0 %v2803
    %v2805 = vand.u32 %v31, 4294901760
    %2806 = vmatpush.msra.mxu0 %v2805
    %v2807 = vand.u32 %v30, 4294901760
    %2808 = vmatpush.msra.mxu0 %v2807
    %v2809 = vand.u32 %v2403, 4294901760
    %2810 = vmatmul.f32.gmra.mxu0 %v2809
    %v2811 = vpop.f32.mrf.mxu0
    %v2812 = vadd.f32 %v2787, %v2811
    %2813 = vdwg.mxu0
    %2815 = vrot.lane.b32.xlu0 %v2628, 96
    %v2816 = vpop.permute.xlu0 %2815
    %v2817 = vsel %vm34, %v2816, 0
    %2819 = vmatpush.msra.mxu0 0.0
    %2820 = vmatpush.msra.mxu0 0.0
    %2821 = vmatpush.msra.mxu0 0.0
    %2822 = vmatpush.msra.mxu0 0.0
    %2823 = vmatpush.msra.mxu0 0.0
    %2824 = vmatpush.msra.mxu0 0.0
    %2825 = vmatpush.msra.mxu0 0.0
    %2826 = vmatpush.msra.mxu0 0.0
    %2827 = vmatpush.msra.mxu0 0.0
    %2828 = vmatpush.msra.mxu0 0.0
    %2829 = vmatpush.msra.mxu0 0.0
    %2830 = vmatpush.msra.mxu0 0.0
    %v2831 = vand.u32 %v226, 4294901760
    %2832 = vmatpush.msra.mxu0 %v2831
    %v2833 = vand.u32 %v225, 4294901760
    %2834 = vmatpush.msra.mxu0 %v2833
    %v2835 = vand.u32 %v224, 4294901760
    %2836 = vmatpush.msra.mxu0 %v2835
    %v2837 = vand.u32 %v223, 4294901760
    %2838 = vmatpush.msra.mxu0 %v2837
    %v2839 = vand.u32 %v2817, 4294901760
    %v2840 = vsub.f32 %v2817, %v2839
    %v2841 = vand.u32 %v2840, 4294901760
    %v2842 = vsub.f32 %v2840, %v2841
    %v2843 = vand.u32 %v2842, 4294901760
    %2844 = vmatmul.f32.gmra.mxu0 %v2843
    %v2845 = vpop.f32.mrf.mxu0
    %v2846 = vadd.f32 0.0, %v2845
    %2847 = vdwg.mxu0
    %2848 = vmatpush.msra.mxu0 0.0
    %2849 = vmatpush.msra.mxu0 0.0
    %2850 = vmatpush.msra.mxu0 0.0
    %2851 = vmatpush.msra.mxu0 0.0
    %2852 = vmatpush.msra.mxu0 0.0
    %2853 = vmatpush.msra.mxu0 0.0
    %2854 = vmatpush.msra.mxu0 0.0
    %2855 = vmatpush.msra.mxu0 0.0
    %2856 = vmatpush.msra.mxu0 0.0
    %2857 = vmatpush.msra.mxu0 0.0
    %2858 = vmatpush.msra.mxu0 0.0
    %2859 = vmatpush.msra.mxu0 0.0
    %v2860 = vand.u32 %v226, 4294901760
    %v2861 = vsub.f32 %v226, %v2860
    %v2862 = vand.u32 %v2861, 4294901760
    %v2863 = vsub.f32 %v2861, %v2862
    %v2864 = vand.u32 %v2863, 4294901760
    %2865 = vmatpush.msra.mxu0 %v2864
    %v2866 = vand.u32 %v225, 4294901760
    %v2867 = vsub.f32 %v225, %v2866
    %v2868 = vand.u32 %v2867, 4294901760
    %v2869 = vsub.f32 %v2867, %v2868
    %v2870 = vand.u32 %v2869, 4294901760
    %2871 = vmatpush.msra.mxu0 %v2870
    %v2872 = vand.u32 %v224, 4294901760
    %v2873 = vsub.f32 %v224, %v2872
    %v2874 = vand.u32 %v2873, 4294901760
    %v2875 = vsub.f32 %v2873, %v2874
    %v2876 = vand.u32 %v2875, 4294901760
    %2877 = vmatpush.msra.mxu0 %v2876
    %v2878 = vand.u32 %v223, 4294901760
    %v2879 = vsub.f32 %v223, %v2878
    %v2880 = vand.u32 %v2879, 4294901760
    %v2881 = vsub.f32 %v2879, %v2880
    %v2882 = vand.u32 %v2881, 4294901760
    %2883 = vmatpush.msra.mxu0 %v2882
    %v2884 = vand.u32 %v2817, 4294901760
    %2885 = vmatmul.f32.gmra.mxu0 %v2884
    %v2886 = vpop.f32.mrf.mxu0
    %v2887 = vadd.f32 %v2846, %v2886
    %2888 = vdwg.mxu0
    %2889 = vmatpush.msra.mxu0 0.0
    %2890 = vmatpush.msra.mxu0 0.0
    %2891 = vmatpush.msra.mxu0 0.0
    %2892 = vmatpush.msra.mxu0 0.0
    %2893 = vmatpush.msra.mxu0 0.0
    %2894 = vmatpush.msra.mxu0 0.0
    %2895 = vmatpush.msra.mxu0 0.0
    %2896 = vmatpush.msra.mxu0 0.0
    %2897 = vmatpush.msra.mxu0 0.0
    %2898 = vmatpush.msra.mxu0 0.0
    %2899 = vmatpush.msra.mxu0 0.0
    %2900 = vmatpush.msra.mxu0 0.0
    %v2901 = vand.u32 %v226, 4294901760
    %v2902 = vsub.f32 %v226, %v2901
    %2903 = vmatpush.msra.mxu0 %v2902
    %v2904 = vand.u32 %v225, 4294901760
    %v2905 = vsub.f32 %v225, %v2904
    %2906 = vmatpush.msra.mxu0 %v2905
    %v2907 = vand.u32 %v224, 4294901760
    %v2908 = vsub.f32 %v224, %v2907
    %2909 = vmatpush.msra.mxu0 %v2908
    %v2910 = vand.u32 %v223, 4294901760
    %v2911 = vsub.f32 %v223, %v2910
    %2912 = vmatpush.msra.mxu0 %v2911
    %v2913 = vand.u32 %v2817, 4294901760
    %v2914 = vsub.f32 %v2817, %v2913
    %2915 = vmatmul.f32.gmra.mxu0 %v2914
    %v2916 = vpop.f32.mrf.mxu0
    %v2917 = vadd.f32 %v2887, %v2916
    %2918 = vdwg.mxu0
    %2919 = vmatpush.msra.mxu0 0.0
    %2920 = vmatpush.msra.mxu0 0.0
    %2921 = vmatpush.msra.mxu0 0.0
    %2922 = vmatpush.msra.mxu0 0.0
    %2923 = vmatpush.msra.mxu0 0.0
    %2924 = vmatpush.msra.mxu0 0.0
    %2925 = vmatpush.msra.mxu0 0.0
    %2926 = vmatpush.msra.mxu0 0.0
    %2927 = vmatpush.msra.mxu0 0.0
    %2928 = vmatpush.msra.mxu0 0.0
    %2929 = vmatpush.msra.mxu0 0.0
    %2930 = vmatpush.msra.mxu0 0.0
    %v2931 = vand.u32 %v226, 4294901760
    %2932 = vmatpush.msra.mxu0 %v2931
    %v2933 = vand.u32 %v225, 4294901760
    %2934 = vmatpush.msra.mxu0 %v2933
    %v2935 = vand.u32 %v224, 4294901760
    %2936 = vmatpush.msra.mxu0 %v2935
    %v2937 = vand.u32 %v223, 4294901760
    %2938 = vmatpush.msra.mxu0 %v2937
    %v2939 = vand.u32 %v2817, 4294901760
    %v2940 = vsub.f32 %v2817, %v2939
    %v2941 = vand.u32 %v2940, 4294901760
    %2942 = vmatmul.f32.gmra.mxu0 %v2941
    %v2943 = vpop.f32.mrf.mxu0
    %v2944 = vadd.f32 %v2917, %v2943
    %2945 = vdwg.mxu0
    %2946 = vmatpush.msra.mxu0 0.0
    %2947 = vmatpush.msra.mxu0 0.0
    %2948 = vmatpush.msra.mxu0 0.0
    %2949 = vmatpush.msra.mxu0 0.0
    %2950 = vmatpush.msra.mxu0 0.0
    %2951 = vmatpush.msra.mxu0 0.0
    %2952 = vmatpush.msra.mxu0 0.0
    %2953 = vmatpush.msra.mxu0 0.0
    %2954 = vmatpush.msra.mxu0 0.0
    %2955 = vmatpush.msra.mxu0 0.0
    %2956 = vmatpush.msra.mxu0 0.0
    %2957 = vmatpush.msra.mxu0 0.0
    %v2958 = vand.u32 %v226, 4294901760
    %v2959 = vsub.f32 %v226, %v2958
    %v2960 = vand.u32 %v2959, 4294901760
    %2961 = vmatpush.msra.mxu0 %v2960
    %v2962 = vand.u32 %v225, 4294901760
    %v2963 = vsub.f32 %v225, %v2962
    %v2964 = vand.u32 %v2963, 4294901760
    %2965 = vmatpush.msra.mxu0 %v2964
    %v2966 = vand.u32 %v224, 4294901760
    %v2967 = vsub.f32 %v224, %v2966
    %v2968 = vand.u32 %v2967, 4294901760
    %2969 = vmatpush.msra.mxu0 %v2968
    %v2970 = vand.u32 %v223, 4294901760
    %v2971 = vsub.f32 %v223, %v2970
    %v2972 = vand.u32 %v2971, 4294901760
    %2973 = vmatpush.msra.mxu0 %v2972
    %v2974 = vand.u32 %v2817, 4294901760
    %2975 = vmatmul.f32.gmra.mxu0 %v2974
    %v2976 = vpop.f32.mrf.mxu0
    %v2977 = vadd.f32 %v2944, %v2976
    %2978 = vdwg.mxu0
    %2979 = vmatpush.msra.mxu0 0.0
    %2980 = vmatpush.msra.mxu0 0.0
    %2981 = vmatpush.msra.mxu0 0.0
    %2982 = vmatpush.msra.mxu0 0.0
    %2983 = vmatpush.msra.mxu0 0.0
    %2984 = vmatpush.msra.mxu0 0.0
    %2985 = vmatpush.msra.mxu0 0.0
    %2986 = vmatpush.msra.mxu0 0.0
    %2987 = vmatpush.msra.mxu0 0.0
    %2988 = vmatpush.msra.mxu0 0.0
    %2989 = vmatpush.msra.mxu0 0.0
    %2990 = vmatpush.msra.mxu0 0.0
    %v2991 = vand.u32 %v226, 4294901760
    %2992 = vmatpush.msra.mxu0 %v2991
    %v2993 = vand.u32 %v225, 4294901760
    %2994 = vmatpush.msra.mxu0 %v2993
    %v2995 = vand.u32 %v224, 4294901760
    %2996 = vmatpush.msra.mxu0 %v2995
    %v2997 = vand.u32 %v223, 4294901760
    %2998 = vmatpush.msra.mxu0 %v2997
    %v2999 = vand.u32 %v2817, 4294901760
    %3000 = vmatmul.f32.gmra.mxu0 %v2999
    %v3001 = vpop.f32.mrf.mxu0
    %v3002 = vadd.f32 %v2977, %v3001
    %3003 = vdwg.mxu0
    %s3004 = scalar_lea.vmem %s0, 8
    %v3005 = vld [vmem:[%s3004] sm:$0x3]
    %v3006 = vadd.f32 %v3005, %v2812
    %v3007 = vxor.u32 %v3006, 2147483648
    %v3008 = vmul.f32 %v3007, 1.442695
    %v3009 = vpow.pop %v3008
    %v3010 = vadd.f32 %v3009, 1.0
    %v3011 = vrcp.pop %v3010
    %v3012 = vmul.f32 %v3010, %v3011
    %v3013 = vsub.f32 1.0, %v3012
    %v3014 = vmul.f32 %v3011, %v3013
    %v3015 = vadd.f32 %v3011, %v3014
    %vm3016 = vweird.f32 %v3010
    %vm3017 = vweird.f32 %v3011
    %vm3018 = vmor %vm3016, %vm3017
    %v3019 = vsel %vm3018, %v3011, %v3015
    %v3020 = vand.u32 2147483647, %v3010
    %vm3021 = vcmp.eq.f32.partialorder %v3020, 8.507059e+37
    %v3022 = vand.u32 %v3010, 2147483648
    %v3023 = vor.u32 1.1754944e-38, %v3022
    %v3024 = vsel %vm3021, %v3023, %v3019
    %v3025 = vmul.f32 1.0, %v3024
    %3027 = vrot.lane.b32.xlu0 %v2812, 64
    %v3028 = vpop.permute.xlu0 %3027
    %v3030 = vmul.f32 %v3025, %v3028
    %3032 = vrot.lane.b32.xlu0 %v3030, 64
    %v3033 = vpop.permute.xlu0 %3032
    %v3035 = vadd.f32 %v3005, %v3033
    %v3036 = vtanh.pop %v3035
    %v3037 = vsub.f32 1.0, %v3025
    %3039 = vrot.lane.b32.xlu0 %v3036, 96
    %v3040 = vpop.permute.xlu0 %3039
    %v3042 = vmul.f32 %v3037, %v3040
    %v3043 = vmul.f32 %v3025, %v2399
    %v3044 = vadd.f32 %v3042, %v3043
    %3046 = vrot.lane.b32.xlu0 %v3044, 96
    %v3047 = vpop.permute.xlu0 %3046
    %v3048 = vsel %vm34, %v3047, 0
    %3050 = vmatpush.msra.mxu0 0.0
    %3051 = vmatpush.msra.mxu0 0.0
    %3052 = vmatpush.msra.mxu0 0.0
    %3053 = vmatpush.msra.mxu0 0.0
    %3054 = vmatpush.msra.mxu0 0.0
    %3055 = vmatpush.msra.mxu0 0.0
    %3056 = vmatpush.msra.mxu0 0.0
    %3057 = vmatpush.msra.mxu0 0.0
    %3058 = vmatpush.msra.mxu0 0.0
    %3059 = vmatpush.msra.mxu0 0.0
    %3060 = vmatpush.msra.mxu0 0.0
    %3061 = vmatpush.msra.mxu0 0.0
    %v3062 = vand.u32 %v461, 4294901760
    %3063 = vmatpush.msra.mxu0 %v3062
    %v3064 = vand.u32 %v460, 4294901760
    %3065 = vmatpush.msra.mxu0 %v3064
    %v3066 = vand.u32 %v459, 4294901760
    %3067 = vmatpush.msra.mxu0 %v3066
    %v3068 = vand.u32 %v458, 4294901760
    %3069 = vmatpush.msra.mxu0 %v3068
    %v3070 = vand.u32 %v3048, 4294901760
    %v3071 = vsub.f32 %v3048, %v3070
    %v3072 = vand.u32 %v3071, 4294901760
    %v3073 = vsub.f32 %v3071, %v3072
    %v3074 = vand.u32 %v3073, 4294901760
    %3075 = vmatmul.f32.gmra.mxu0 %v3074
    %v3076 = vpop.f32.mrf.mxu0
    %v3077 = vadd.f32 0.0, %v3076
    %3078 = vdwg.mxu0
    %3079 = vmatpush.msra.mxu0 0.0
    %3080 = vmatpush.msra.mxu0 0.0
    %3081 = vmatpush.msra.mxu0 0.0
    %3082 = vmatpush.msra.mxu0 0.0
    %3083 = vmatpush.msra.mxu0 0.0
    %3084 = vmatpush.msra.mxu0 0.0
    %3085 = vmatpush.msra.mxu0 0.0
    %3086 = vmatpush.msra.mxu0 0.0
    %3087 = vmatpush.msra.mxu0 0.0
    %3088 = vmatpush.msra.mxu0 0.0
    %3089 = vmatpush.msra.mxu0 0.0
    %3090 = vmatpush.msra.mxu0 0.0
    %v3091 = vand.u32 %v461, 4294901760
    %v3092 = vsub.f32 %v461, %v3091
    %v3093 = vand.u32 %v3092, 4294901760
    %v3094 = vsub.f32 %v3092, %v3093
    %v3095 = vand.u32 %v3094, 4294901760
    %3096 = vmatpush.msra.mxu0 %v3095
    %v3097 = vand.u32 %v460, 4294901760
    %v3098 = vsub.f32 %v460, %v3097
    %v3099 = vand.u32 %v3098, 4294901760
    %v3100 = vsub.f32 %v3098, %v3099
    %v3101 = vand.u32 %v3100, 4294901760
    %3102 = vmatpush.msra.mxu0 %v3101
    %v3103 = vand.u32 %v459, 4294901760
    %v3104 = vsub.f32 %v459, %v3103
    %v3105 = vand.u32 %v3104, 4294901760
    %v3106 = vsub.f32 %v3104, %v3105
    %v3107 = vand.u32 %v3106, 4294901760
    %3108 = vmatpush.msra.mxu0 %v3107
    %v3109 = vand.u32 %v458, 4294901760
    %v3110 = vsub.f32 %v458, %v3109
    %v3111 = vand.u32 %v3110, 4294901760
    %v3112 = vsub.f32 %v3110, %v3111
    %v3113 = vand.u32 %v3112, 4294901760
    %3114 = vmatpush.msra.mxu0 %v3113
    %v3115 = vand.u32 %v3048, 4294901760
    %3116 = vmatmul.f32.gmra.mxu0 %v3115
    %v3117 = vpop.f32.mrf.mxu0
    %v3118 = vadd.f32 %v3077, %v3117
    %3119 = vdwg.mxu0
    %3120 = vmatpush.msra.mxu0 0.0
    %3121 = vmatpush.msra.mxu0 0.0
    %3122 = vmatpush.msra.mxu0 0.0
    %3123 = vmatpush.msra.mxu0 0.0
    %3124 = vmatpush.msra.mxu0 0.0
    %3125 = vmatpush.msra.mxu0 0.0
    %3126 = vmatpush.msra.mxu0 0.0
    %3127 = vmatpush.msra.mxu0 0.0
    %3128 = vmatpush.msra.mxu0 0.0
    %3129 = vmatpush.msra.mxu0 0.0
    %3130 = vmatpush.msra.mxu0 0.0
    %3131 = vmatpush.msra.mxu0 0.0
    %v3132 = vand.u32 %v461, 4294901760
    %v3133 = vsub.f32 %v461, %v3132
    %3134 = vmatpush.msra.mxu0 %v3133
    %v3135 = vand.u32 %v460, 4294901760
    %v3136 = vsub.f32 %v460, %v3135
    %3137 = vmatpush.msra.mxu0 %v3136
    %v3138 = vand.u32 %v459, 4294901760
    %v3139 = vsub.f32 %v459, %v3138
    %3140 = vmatpush.msra.mxu0 %v3139
    %v3141 = vand.u32 %v458, 4294901760
    %v3142 = vsub.f32 %v458, %v3141
    %3143 = vmatpush.msra.mxu0 %v3142
    %v3144 = vand.u32 %v3048, 4294901760
    %v3145 = vsub.f32 %v3048, %v3144
    %3146 = vmatmul.f32.gmra.mxu0 %v3145
    %v3147 = vpop.f32.mrf.mxu0
    %v3148 = vadd.f32 %v3118, %v3147
    %3149 = vdwg.mxu0
    %3150 = vmatpush.msra.mxu0 0.0
    %3151 = vmatpush.msra.mxu0 0.0
    %3152 = vmatpush.msra.mxu0 0.0
    %3153 = vmatpush.msra.mxu0 0.0
    %3154 = vmatpush.msra.mxu0 0.0
    %3155 = vmatpush.msra.mxu0 0.0
    %3156 = vmatpush.msra.mxu0 0.0
    %3157 = vmatpush.msra.mxu0 0.0
    %3158 = vmatpush.msra.mxu0 0.0
    %3159 = vmatpush.msra.mxu0 0.0
    %3160 = vmatpush.msra.mxu0 0.0
    %3161 = vmatpush.msra.mxu0 0.0
    %v3162 = vand.u32 %v461, 4294901760
    %3163 = vmatpush.msra.mxu0 %v3162
    %v3164 = vand.u32 %v460, 4294901760
    %3165 = vmatpush.msra.mxu0 %v3164
    %v3166 = vand.u32 %v459, 4294901760
    %3167 = vmatpush.msra.mxu0 %v3166
    %v3168 = vand.u32 %v458, 4294901760
    %3169 = vmatpush.msra.mxu0 %v3168
    %v3170 = vand.u32 %v3048, 4294901760
    %v3171 = vsub.f32 %v3048, %v3170
    %v3172 = vand.u32 %v3171, 4294901760
    %3173 = vmatmul.f32.gmra.mxu0 %v3172
    %v3174 = vpop.f32.mrf.mxu0
    %v3175 = vadd.f32 %v3148, %v3174
    %3176 = vdwg.mxu0
    %3177 = vmatpush.msra.mxu0 0.0
    %3178 = vmatpush.msra.mxu0 0.0
    %3179 = vmatpush.msra.mxu0 0.0
    %3180 = vmatpush.msra.mxu0 0.0
    %3181 = vmatpush.msra.mxu0 0.0
    %3182 = vmatpush.msra.mxu0 0.0
    %3183 = vmatpush.msra.mxu0 0.0
    %3184 = vmatpush.msra.mxu0 0.0
    %3185 = vmatpush.msra.mxu0 0.0
    %3186 = vmatpush.msra.mxu0 0.0
    %3187 = vmatpush.msra.mxu0 0.0
    %3188 = vmatpush.msra.mxu0 0.0
    %v3189 = vand.u32 %v461, 4294901760
    %v3190 = vsub.f32 %v461, %v3189
    %v3191 = vand.u32 %v3190, 4294901760
    %3192 = vmatpush.msra.mxu0 %v3191
    %v3193 = vand.u32 %v460, 4294901760
    %v3194 = vsub.f32 %v460, %v3193
    %v3195 = vand.u32 %v3194, 4294901760
    %3196 = vmatpush.msra.mxu0 %v3195
    %v3197 = vand.u32 %v459, 4294901760
    %v3198 = vsub.f32 %v459, %v3197
    %v3199 = vand.u32 %v3198, 4294901760
    %3200 = vmatpush.msra.mxu0 %v3199
    %v3201 = vand.u32 %v458, 4294901760
    %v3202 = vsub.f32 %v458, %v3201
    %v3203 = vand.u32 %v3202, 4294901760
    %3204 = vmatpush.msra.mxu0 %v3203
    %v3205 = vand.u32 %v3048, 4294901760
    %3206 = vmatmul.f32.gmra.mxu0 %v3205
    %v3207 = vpop.f32.mrf.mxu0
    %v3208 = vadd.f32 %v3175, %v3207
    %3209 = vdwg.mxu0
    %3210 = vmatpush.msra.mxu0 0.0
    %3211 = vmatpush.msra.mxu0 0.0
    %3212 = vmatpush.msra.mxu0 0.0
    %3213 = vmatpush.msra.mxu0 0.0
    %3214 = vmatpush.msra.mxu0 0.0
    %3215 = vmatpush.msra.mxu0 0.0
    %3216 = vmatpush.msra.mxu0 0.0
    %3217 = vmatpush.msra.mxu0 0.0
    %3218 = vmatpush.msra.mxu0 0.0
    %3219 = vmatpush.msra.mxu0 0.0
    %3220 = vmatpush.msra.mxu0 0.0
    %3221 = vmatpush.msra.mxu0 0.0
    %v3222 = vand.u32 %v461, 4294901760
    %3223 = vmatpush.msra.mxu0 %v3222
    %v3224 = vand.u32 %v460, 4294901760
    %3225 = vmatpush.msra.mxu0 %v3224
    %v3226 = vand.u32 %v459, 4294901760
    %3227 = vmatpush.msra.mxu0 %v3226
    %v3228 = vand.u32 %v458, 4294901760
    %3229 = vmatpush.msra.mxu0 %v3228
    %v3230 = vand.u32 %v3048, 4294901760
    %3231 = vmatmul.f32.gmra.mxu0 %v3230
    %v3232 = vpop.f32.mrf.mxu0
    %v3233 = vadd.f32 %v3208, %v3232
    %3234 = vdwg.mxu0
    %v3235 = vadd.f32 %v3233, %v3002
    %v3236 = vxor.u32 %v3235, 2147483648
    %v3237 = vmul.f32 %v3236, 1.442695
    %v3238 = vpow.pop %v3237
    %v3239 = vadd.f32 %v3238, 1.0
    %v3240 = vrcp.pop %v3239
    %v3241 = vmul.f32 %v3239, %v3240
    %v3242 = vsub.f32 1.0, %v3241
    %v3243 = vmul.f32 %v3240, %v3242
    %v3244 = vadd.f32 %v3240, %v3243
    %vm3245 = vweird.f32 %v3239
    %vm3246 = vweird.f32 %v3240
    %vm3247 = vmor %vm3245, %vm3246
    %v3248 = vsel %vm3247, %v3240, %v3244
    %v3249 = vand.u32 2147483647, %v3239
    %vm3250 = vcmp.eq.f32.partialorder %v3249, 8.507059e+37
    %v3251 = vand.u32 %v3239, 2147483648
    %v3252 = vor.u32 1.1754944e-38, %v3251
    %v3253 = vsel %vm3250, %v3252, %v3248
    %v3254 = vmul.f32 1.0, %v3253
    %3256 = vrot.lane.b32.xlu0 %v3002, 64
    %v3257 = vpop.permute.xlu0 %3256
    %v3259 = vmul.f32 %v3254, %v3257
    %3261 = vrot.lane.b32.xlu0 %v3259, 64
    %v3262 = vpop.permute.xlu0 %3261
    %v3264 = vadd.f32 %v3233, %v3262
    %v3265 = vtanh.pop %v3264
    %v3266 = vsub.f32 1.0, %v3254
    %3268 = vrot.lane.b32.xlu0 %v3265, 96
    %v3269 = vpop.permute.xlu0 %3268
    %v3271 = vmul.f32 %v3266, %v3269
    %v3272 = vmul.f32 %v3254, %v2628
    %v3273 = vadd.f32 %v3271, %v3272
    %3274 = vmatpush.msra.mxu0 0.0
    %3275 = vmatpush.msra.mxu0 0.0
    %3276 = vmatpush.msra.mxu0 0.0
    %3277 = vmatpush.msra.mxu0 0.0
    %3278 = vmatpush.msra.mxu0 0.0
    %3279 = vmatpush.msra.mxu0 0.0
    %3280 = vmatpush.msra.mxu0 0.0
    %3281 = vmatpush.msra.mxu0 0.0
    %3282 = vmatpush.msra.mxu0 0.0
    %3283 = vmatpush.msra.mxu0 0.0
    %3284 = vmatpush.msra.mxu0 0.0
    %3285 = vmatpush.msra.mxu0 0.0
    %v3286 = vand.u32 %v33, 4294901760
    %3287 = vmatpush.msra.mxu0 %v3286
    %v3288 = vand.u32 %v32, 4294901760
    %3289 = vmatpush.msra.mxu0 %v3288
    %v3290 = vand.u32 %v31, 4294901760
    %3291 = vmatpush.msra.mxu0 %v3290
    %v3292 = vand.u32 %v30, 4294901760
    %3293 = vmatpush.msra.mxu0 %v3292
    %v3294 = vand.u32 %v3048, 4294901760
    %v3295 = vsub.f32 %v3048, %v3294
    %v3296 = vand.u32 %v3295, 4294901760
    %v3297 = vsub.f32 %v3295, %v3296
    %v3298 = vand.u32 %v3297, 4294901760
    %3299 = vmatmul.f32.gmra.mxu0 %v3298
    %v3300 = vpop.f32.mrf.mxu0
    %v3301 = vadd.f32 0.0, %v3300
    %3302 = vdwg.mxu0
    %3303 = vmatpush.msra.mxu0 0.0
    %3304 = vmatpush.msra.mxu0 0.0
    %3305 = vmatpush.msra.mxu0 0.0
    %3306 = vmatpush.msra.mxu0 0.0
    %3307 = vmatpush.msra.mxu0 0.0
    %3308 = vmatpush.msra.mxu0 0.0
    %3309 = vmatpush.msra.mxu0 0.0
    %3310 = vmatpush.msra.mxu0 0.0
    %3311 = vmatpush.msra.mxu0 0.0
    %3312 = vmatpush.msra.mxu0 0.0
    %3313 = vmatpush.msra.mxu0 0.0
    %3314 = vmatpush.msra.mxu0 0.0
    %v3315 = vand.u32 %v33, 4294901760
    %v3316 = vsub.f32 %v33, %v3315
    %v3317 = vand.u32 %v3316, 4294901760
    %v3318 = vsub.f32 %v3316, %v3317
    %v3319 = vand.u32 %v3318, 4294901760
    %3320 = vmatpush.msra.mxu0 %v3319
    %v3321 = vand.u32 %v32, 4294901760
    %v3322 = vsub.f32 %v32, %v3321
    %v3323 = vand.u32 %v3322, 4294901760
    %v3324 = vsub.f32 %v3322, %v3323
    %v3325 = vand.u32 %v3324, 4294901760
    %3326 = vmatpush.msra.mxu0 %v3325
    %v3327 = vand.u32 %v31, 4294901760
    %v3328 = vsub.f32 %v31, %v3327
    %v3329 = vand.u32 %v3328, 4294901760
    %v3330 = vsub.f32 %v3328, %v3329
    %v3331 = vand.u32 %v3330, 4294901760
    %3332 = vmatpush.msra.mxu0 %v3331
    %v3333 = vand.u32 %v30, 4294901760
    %v3334 = vsub.f32 %v30, %v3333
    %v3335 = vand.u32 %v3334, 4294901760
    %v3336 = vsub.f32 %v3334, %v3335
    %v3337 = vand.u32 %v3336, 4294901760
    %3338 = vmatpush.msra.mxu0 %v3337
    %v3339 = vand.u32 %v3048, 4294901760
    %3340 = vmatmul.f32.gmra.mxu0 %v3339
    %v3341 = vpop.f32.mrf.mxu0
    %v3342 = vadd.f32 %v3301, %v3341
    %3343 = vdwg.mxu0
    %3344 = vmatpush.msra.mxu0 0.0
    %3345 = vmatpush.msra.mxu0 0.0
    %3346 = vmatpush.msra.mxu0 0.0
    %3347 = vmatpush.msra.mxu0 0.0
    %3348 = vmatpush.msra.mxu0 0.0
    %3349 = vmatpush.msra.mxu0 0.0
    %3350 = vmatpush.msra.mxu0 0.0
    %3351 = vmatpush.msra.mxu0 0.0
    %3352 = vmatpush.msra.mxu0 0.0
    %3353 = vmatpush.msra.mxu0 0.0
    %3354 = vmatpush.msra.mxu0 0.0
    %3355 = vmatpush.msra.mxu0 0.0
    %v3356 = vand.u32 %v33, 4294901760
    %v3357 = vsub.f32 %v33, %v3356
    %3358 = vmatpush.msra.mxu0 %v3357
    %v3359 = vand.u32 %v32, 4294901760
    %v3360 = vsub.f32 %v32, %v3359
    %3361 = vmatpush.msra.mxu0 %v3360
    %v3362 = vand.u32 %v31, 4294901760
    %v3363 = vsub.f32 %v31, %v3362
    %3364 = vmatpush.msra.mxu0 %v3363
    %v3365 = vand.u32 %v30, 4294901760
    %v3366 = vsub.f32 %v30, %v3365
    %3367 = vmatpush.msra.mxu0 %v3366
    %v3368 = vand.u32 %v3048, 4294901760
    %v3369 = vsub.f32 %v3048, %v3368
    %3370 = vmatmul.f32.gmra.mxu0 %v3369
    %v3371 = vpop.f32.mrf.mxu0
    %v3372 = vadd.f32 %v3342, %v3371
    %3373 = vdwg.mxu0
    %3374 = vmatpush.msra.mxu0 0.0
    %3375 = vmatpush.msra.mxu0 0.0
    %3376 = vmatpush.msra.mxu0 0.0
    %3377 = vmatpush.msra.mxu0 0.0
    %3378 = vmatpush.msra.mxu0 0.0
    %3379 = vmatpush.msra.mxu0 0.0
    %3380 = vmatpush.msra.mxu0 0.0
    %3381 = vmatpush.msra.mxu0 0.0
    %3382 = vmatpush.msra.mxu0 0.0
    %3383 = vmatpush.msra.mxu0 0.0
    %3384 = vmatpush.msra.mxu0 0.0
    %3385 = vmatpush.msra.mxu0 0.0
    %v3386 = vand.u32 %v33, 4294901760
    %3387 = vmatpush.msra.mxu0 %v3386
    %v3388 = vand.u32 %v32, 4294901760
    %3389 = vmatpush.msra.mxu0 %v3388
    %v3390 = vand.u32 %v31, 4294901760
    %3391 = vmatpush.msra.mxu0 %v3390
    %v3392 = vand.u32 %v30, 4294901760
    %3393 = vmatpush.msra.mxu0 %v3392
    %v3394 = vand.u32 %v3048, 4294901760
    %v3395 = vsub.f32 %v3048, %v3394
    %v3396 = vand.u32 %v3395, 4294901760
    %3397 = vmatmul.f32.gmra.mxu0 %v3396
    %v3398 = vpop.f32.mrf.mxu0
    %v3399 = vadd.f32 %v3372, %v3398
    %3400 = vdwg.mxu0
    %3401 = vmatpush.msra.mxu0 0.0
    %3402 = vmatpush.msra.mxu0 0.0
    %3403 = vmatpush.msra.mxu0 0.0
    %3404 = vmatpush.msra.mxu0 0.0
    %3405 = vmatpush.msra.mxu0 0.0
    %3406 = vmatpush.msra.mxu0 0.0
    %3407 = vmatpush.msra.mxu0 0.0
    %3408 = vmatpush.msra.mxu0 0.0
    %3409 = vmatpush.msra.mxu0 0.0
    %3410 = vmatpush.msra.mxu0 0.0
    %3411 = vmatpush.msra.mxu0 0.0
    %3412 = vmatpush.msra.mxu0 0.0
    %v3413 = vand.u32 %v33, 4294901760
    %v3414 = vsub.f32 %v33, %v3413
    %v3415 = vand.u32 %v3414, 4294901760
    %3416 = vmatpush.msra.mxu0 %v3415
    %v3417 = vand.u32 %v32, 4294901760
    %v3418 = vsub.f32 %v32, %v3417
    %v3419 = vand.u32 %v3418, 4294901760
    %3420 = vmatpush.msra.mxu0 %v3419
    %v3421 = vand.u32 %v31, 4294901760
    %v3422 = vsub.f32 %v31, %v3421
    %v3423 = vand.u32 %v3422, 4294901760
    %3424 = vmatpush.msra.mxu0 %v3423
    %v3425 = vand.u32 %v30, 4294901760
    %v3426 = vsub.f32 %v30, %v3425
    %v3427 = vand.u32 %v3426, 4294901760
    %3428 = vmatpush.msra.mxu0 %v3427
    %v3429 = vand.u32 %v3048, 4294901760
    %3430 = vmatmul.f32.gmra.mxu0 %v3429
    %v3431 = vpop.f32.mrf.mxu0
    %v3432 = vadd.f32 %v3399, %v3431
    %3433 = vdwg.mxu0
    %3434 = vmatpush.msra.mxu0 0.0
    %3435 = vmatpush.msra.mxu0 0.0
    %3436 = vmatpush.msra.mxu0 0.0
    %3437 = vmatpush.msra.mxu0 0.0
    %3438 = vmatpush.msra.mxu0 0.0
    %3439 = vmatpush.msra.mxu0 0.0
    %3440 = vmatpush.msra.mxu0 0.0
    %3441 = vmatpush.msra.mxu0 0.0
    %3442 = vmatpush.msra.mxu0 0.0
    %3443 = vmatpush.msra.mxu0 0.0
    %3444 = vmatpush.msra.mxu0 0.0
    %3445 = vmatpush.msra.mxu0 0.0
    %v3446 = vand.u32 %v33, 4294901760
    %3447 = vmatpush.msra.mxu0 %v3446
    %v3448 = vand.u32 %v32, 4294901760
    %3449 = vmatpush.msra.mxu0 %v3448
    %v3450 = vand.u32 %v31, 4294901760
    %3451 = vmatpush.msra.mxu0 %v3450
    %v3452 = vand.u32 %v30, 4294901760
    %3453 = vmatpush.msra.mxu0 %v3452
    %v3454 = vand.u32 %v3048, 4294901760
    %3455 = vmatmul.f32.gmra.mxu0 %v3454
    %v3456 = vpop.f32.mrf.mxu0
    %v3457 = vadd.f32 %v3432, %v3456
    %3458 = vdwg.mxu0
    %3460 = vrot.lane.b32.xlu0 %v3273, 96
    %v3461 = vpop.permute.xlu0 %3460
    %v3462 = vsel %vm34, %v3461, 0
    %3464 = vmatpush.msra.mxu0 0.0
    %3465 = vmatpush.msra.mxu0 0.0
    %3466 = vmatpush.msra.mxu0 0.0
    %3467 = vmatpush.msra.mxu0 0.0
    %3468 = vmatpush.msra.mxu0 0.0
    %3469 = vmatpush.msra.mxu0 0.0
    %3470 = vmatpush.msra.mxu0 0.0
    %3471 = vmatpush.msra.mxu0 0.0
    %3472 = vmatpush.msra.mxu0 0.0
    %3473 = vmatpush.msra.mxu0 0.0
    %3474 = vmatpush.msra.mxu0 0.0
    %3475 = vmatpush.msra.mxu0 0.0
    %v3476 = vand.u32 %v226, 4294901760
    %3477 = vmatpush.msra.mxu0 %v3476
    %v3478 = vand.u32 %v225, 4294901760
    %3479 = vmatpush.msra.mxu0 %v3478
    %v3480 = vand.u32 %v224, 4294901760
    %3481 = vmatpush.msra.mxu0 %v3480
    %v3482 = vand.u32 %v223, 4294901760
    %3483 = vmatpush.msra.mxu0 %v3482
    %v3484 = vand.u32 %v3462, 4294901760
    %v3485 = vsub.f32 %v3462, %v3484
    %v3486 = vand.u32 %v3485, 4294901760
    %v3487 = vsub.f32 %v3485, %v3486
    %v3488 = vand.u32 %v3487, 4294901760
    %3489 = vmatmul.f32.gmra.mxu0 %v3488
    %v3490 = vpop.f32.mrf.mxu0
    %v3491 = vadd.f32 0.0, %v3490
    %3492 = vdwg.mxu0
    %3493 = vmatpush.msra.mxu0 0.0
    %3494 = vmatpush.msra.mxu0 0.0
    %3495 = vmatpush.msra.mxu0 0.0
    %3496 = vmatpush.msra.mxu0 0.0
    %3497 = vmatpush.msra.mxu0 0.0
    %3498 = vmatpush.msra.mxu0 0.0
    %3499 = vmatpush.msra.mxu0 0.0
    %3500 = vmatpush.msra.mxu0 0.0
    %3501 = vmatpush.msra.mxu0 0.0
    %3502 = vmatpush.msra.mxu0 0.0
    %3503 = vmatpush.msra.mxu0 0.0
    %3504 = vmatpush.msra.mxu0 0.0
    %v3505 = vand.u32 %v226, 4294901760
    %v3506 = vsub.f32 %v226, %v3505
    %v3507 = vand.u32 %v3506, 4294901760
    %v3508 = vsub.f32 %v3506, %v3507
    %v3509 = vand.u32 %v3508, 4294901760
    %3510 = vmatpush.msra.mxu0 %v3509
    %v3511 = vand.u32 %v225, 4294901760
    %v3512 = vsub.f32 %v225, %v3511
    %v3513 = vand.u32 %v3512, 4294901760
    %v3514 = vsub.f32 %v3512, %v3513
    %v3515 = vand.u32 %v3514, 4294901760
    %3516 = vmatpush.msra.mxu0 %v3515
    %v3517 = vand.u32 %v224, 4294901760
    %v3518 = vsub.f32 %v224, %v3517
    %v3519 = vand.u32 %v3518, 4294901760
    %v3520 = vsub.f32 %v3518, %v3519
    %v3521 = vand.u32 %v3520, 4294901760
    %3522 = vmatpush.msra.mxu0 %v3521
    %v3523 = vand.u32 %v223, 4294901760
    %v3524 = vsub.f32 %v223, %v3523
    %v3525 = vand.u32 %v3524, 4294901760
    %v3526 = vsub.f32 %v3524, %v3525
    %v3527 = vand.u32 %v3526, 4294901760
    %3528 = vmatpush.msra.mxu0 %v3527
    %v3529 = vand.u32 %v3462, 4294901760
    %3530 = vmatmul.f32.gmra.mxu0 %v3529
    %v3531 = vpop.f32.mrf.mxu0
    %v3532 = vadd.f32 %v3491, %v3531
    %3533 = vdwg.mxu0
    %3534 = vmatpush.msra.mxu0 0.0
    %3535 = vmatpush.msra.mxu0 0.0
    %3536 = vmatpush.msra.mxu0 0.0
    %3537 = vmatpush.msra.mxu0 0.0
    %3538 = vmatpush.msra.mxu0 0.0
    %3539 = vmatpush.msra.mxu0 0.0
    %3540 = vmatpush.msra.mxu0 0.0
    %3541 = vmatpush.msra.mxu0 0.0
    %3542 = vmatpush.msra.mxu0 0.0
    %3543 = vmatpush.msra.mxu0 0.0
    %3544 = vmatpush.msra.mxu0 0.0
    %3545 = vmatpush.msra.mxu0 0.0
    %v3546 = vand.u32 %v226, 4294901760
    %v3547 = vsub.f32 %v226, %v3546
    %3548 = vmatpush.msra.mxu0 %v3547
    %v3549 = vand.u32 %v225, 4294901760
    %v3550 = vsub.f32 %v225, %v3549
    %3551 = vmatpush.msra.mxu0 %v3550
    %v3552 = vand.u32 %v224, 4294901760
    %v3553 = vsub.f32 %v224, %v3552
    %3554 = vmatpush.msra.mxu0 %v3553
    %v3555 = vand.u32 %v223, 4294901760
    %v3556 = vsub.f32 %v223, %v3555
    %3557 = vmatpush.msra.mxu0 %v3556
    %v3558 = vand.u32 %v3462, 4294901760
    %v3559 = vsub.f32 %v3462, %v3558
    %3560 = vmatmul.f32.gmra.mxu0 %v3559
    %v3561 = vpop.f32.mrf.mxu0
    %v3562 = vadd.f32 %v3532, %v3561
    %3563 = vdwg.mxu0
    %3564 = vmatpush.msra.mxu0 0.0
    %3565 = vmatpush.msra.mxu0 0.0
    %3566 = vmatpush.msra.mxu0 0.0
    %3567 = vmatpush.msra.mxu0 0.0
    %3568 = vmatpush.msra.mxu0 0.0
    %3569 = vmatpush.msra.mxu0 0.0
    %3570 = vmatpush.msra.mxu0 0.0
    %3571 = vmatpush.msra.mxu0 0.0
    %3572 = vmatpush.msra.mxu0 0.0
    %3573 = vmatpush.msra.mxu0 0.0
    %3574 = vmatpush.msra.mxu0 0.0
    %3575 = vmatpush.msra.mxu0 0.0
    %v3576 = vand.u32 %v226, 4294901760
    %3577 = vmatpush.msra.mxu0 %v3576
    %v3578 = vand.u32 %v225, 4294901760
    %3579 = vmatpush.msra.mxu0 %v3578
    %v3580 = vand.u32 %v224, 4294901760
    %3581 = vmatpush.msra.mxu0 %v3580
    %v3582 = vand.u32 %v223, 4294901760
    %3583 = vmatpush.msra.mxu0 %v3582
    %v3584 = vand.u32 %v3462, 4294901760
    %v3585 = vsub.f32 %v3462, %v3584
    %v3586 = vand.u32 %v3585, 4294901760
    %3587 = vmatmul.f32.gmra.mxu0 %v3586
    %v3588 = vpop.f32.mrf.mxu0
    %v3589 = vadd.f32 %v3562, %v3588
    %3590 = vdwg.mxu0
    %3591 = vmatpush.msra.mxu0 0.0
    %3592 = vmatpush.msra.mxu0 0.0
    %3593 = vmatpush.msra.mxu0 0.0
    %3594 = vmatpush.msra.mxu0 0.0
    %3595 = vmatpush.msra.mxu0 0.0
    %3596 = vmatpush.msra.mxu0 0.0
    %3597 = vmatpush.msra.mxu0 0.0
    %3598 = vmatpush.msra.mxu0 0.0
    %3599 = vmatpush.msra.mxu0 0.0
    %3600 = vmatpush.msra.mxu0 0.0
    %3601 = vmatpush.msra.mxu0 0.0
    %3602 = vmatpush.msra.mxu0 0.0
    %v3603 = vand.u32 %v226, 4294901760
    %v3604 = vsub.f32 %v226, %v3603
    %v3605 = vand.u32 %v3604, 4294901760
    %3606 = vmatpush.msra.mxu0 %v3605
    %v3607 = vand.u32 %v225, 4294901760
    %v3608 = vsub.f32 %v225, %v3607
    %v3609 = vand.u32 %v3608, 4294901760
    %3610 = vmatpush.msra.mxu0 %v3609
    %v3611 = vand.u32 %v224, 4294901760
    %v3612 = vsub.f32 %v224, %v3611
    %v3613 = vand.u32 %v3612, 4294901760
    %3614 = vmatpush.msra.mxu0 %v3613
    %v3615 = vand.u32 %v223, 4294901760
    %v3616 = vsub.f32 %v223, %v3615
    %v3617 = vand.u32 %v3616, 4294901760
    %3618 = vmatpush.msra.mxu0 %v3617
    %v3619 = vand.u32 %v3462, 4294901760
    %3620 = vmatmul.f32.gmra.mxu0 %v3619
    %v3621 = vpop.f32.mrf.mxu0
    %v3622 = vadd.f32 %v3589, %v3621
    %3623 = vdwg.mxu0
    %3624 = vmatpush.msra.mxu0 0.0
    %3625 = vmatpush.msra.mxu0 0.0
    %3626 = vmatpush.msra.mxu0 0.0
    %3627 = vmatpush.msra.mxu0 0.0
    %3628 = vmatpush.msra.mxu0 0.0
    %3629 = vmatpush.msra.mxu0 0.0
    %3630 = vmatpush.msra.mxu0 0.0
    %3631 = vmatpush.msra.mxu0 0.0
    %3632 = vmatpush.msra.mxu0 0.0
    %3633 = vmatpush.msra.mxu0 0.0
    %3634 = vmatpush.msra.mxu0 0.0
    %3635 = vmatpush.msra.mxu0 0.0
    %v3636 = vand.u32 %v226, 4294901760
    %3637 = vmatpush.msra.mxu0 %v3636
    %v3638 = vand.u32 %v225, 4294901760
    %3639 = vmatpush.msra.mxu0 %v3638
    %v3640 = vand.u32 %v224, 4294901760
    %3641 = vmatpush.msra.mxu0 %v3640
    %v3642 = vand.u32 %v223, 4294901760
    %3643 = vmatpush.msra.mxu0 %v3642
    %v3644 = vand.u32 %v3462, 4294901760
    %3645 = vmatmul.f32.gmra.mxu0 %v3644
    %v3646 = vpop.f32.mrf.mxu0
    %v3647 = vadd.f32 %v3622, %v3646
    %3648 = vdwg.mxu0
    %s3649 = scalar_lea.vmem %s0, 10
    %v3650 = vld [vmem:[%s3649] sm:$0x3]
    %v3651 = vadd.f32 %v3650, %v3457
    %v3652 = vxor.u32 %v3651, 2147483648
    %v3653 = vmul.f32 %v3652, 1.442695
    %v3654 = vpow.pop %v3653
    %v3655 = vadd.f32 %v3654, 1.0
    %v3656 = vrcp.pop %v3655
    %v3657 = vmul.f32 %v3655, %v3656
    %v3658 = vsub.f32 1.0, %v3657
    %v3659 = vmul.f32 %v3656, %v3658
    %v3660 = vadd.f32 %v3656, %v3659
    %vm3661 = vweird.f32 %v3655
    %vm3662 = vweird.f32 %v3656
    %vm3663 = vmor %vm3661, %vm3662
    %v3664 = vsel %vm3663, %v3656, %v3660
    %v3665 = vand.u32 2147483647, %v3655
    %vm3666 = vcmp.eq.f32.partialorder %v3665, 8.507059e+37
    %v3667 = vand.u32 %v3655, 2147483648
    %v3668 = vor.u32 1.1754944e-38, %v3667
    %v3669 = vsel %vm3666, %v3668, %v3664
    %v3670 = vmul.f32 1.0, %v3669
    %3672 = vrot.lane.b32.xlu0 %v3457, 64
    %v3673 = vpop.permute.xlu0 %3672
    %v3675 = vmul.f32 %v3670, %v3673
    %3677 = vrot.lane.b32.xlu0 %v3675, 64
    %v3678 = vpop.permute.xlu0 %3677
    %v3680 = vadd.f32 %v3650, %v3678
    %v3681 = vtanh.pop %v3680
    %v3682 = vsub.f32 1.0, %v3670
    %3684 = vrot.lane.b32.xlu0 %v3681, 96
    %v3685 = vpop.permute.xlu0 %3684
    %v3687 = vmul.f32 %v3682, %v3685
    %v3688 = vmul.f32 %v3670, %v3044
    %v3689 = vadd.f32 %v3687, %v3688
    %3691 = vrot.lane.b32.xlu0 %v3689, 96
    %v3692 = vpop.permute.xlu0 %3691
    %v3693 = vsel %vm34, %v3692, 0
    %3695 = vmatpush.msra.mxu0 0.0
    %3696 = vmatpush.msra.mxu0 0.0
    %3697 = vmatpush.msra.mxu0 0.0
    %3698 = vmatpush.msra.mxu0 0.0
    %3699 = vmatpush.msra.mxu0 0.0
    %3700 = vmatpush.msra.mxu0 0.0
    %3701 = vmatpush.msra.mxu0 0.0
    %3702 = vmatpush.msra.mxu0 0.0
    %3703 = vmatpush.msra.mxu0 0.0
    %3704 = vmatpush.msra.mxu0 0.0
    %3705 = vmatpush.msra.mxu0 0.0
    %3706 = vmatpush.msra.mxu0 0.0
    %v3707 = vand.u32 %v461, 4294901760
    %3708 = vmatpush.msra.mxu0 %v3707
    %v3709 = vand.u32 %v460, 4294901760
    %3710 = vmatpush.msra.mxu0 %v3709
    %v3711 = vand.u32 %v459, 4294901760
    %3712 = vmatpush.msra.mxu0 %v3711
    %v3713 = vand.u32 %v458, 4294901760
    %3714 = vmatpush.msra.mxu0 %v3713
    %v3715 = vand.u32 %v3693, 4294901760
    %v3716 = vsub.f32 %v3693, %v3715
    %v3717 = vand.u32 %v3716, 4294901760
    %v3718 = vsub.f32 %v3716, %v3717
    %v3719 = vand.u32 %v3718, 4294901760
    %3720 = vmatmul.f32.gmra.mxu0 %v3719
    %v3721 = vpop.f32.mrf.mxu0
    %v3722 = vadd.f32 0.0, %v3721
    %3723 = vdwg.mxu0
    %3724 = vmatpush.msra.mxu0 0.0
    %3725 = vmatpush.msra.mxu0 0.0
    %3726 = vmatpush.msra.mxu0 0.0
    %3727 = vmatpush.msra.mxu0 0.0
    %3728 = vmatpush.msra.mxu0 0.0
    %3729 = vmatpush.msra.mxu0 0.0
    %3730 = vmatpush.msra.mxu0 0.0
    %3731 = vmatpush.msra.mxu0 0.0
    %3732 = vmatpush.msra.mxu0 0.0
    %3733 = vmatpush.msra.mxu0 0.0
    %3734 = vmatpush.msra.mxu0 0.0
    %3735 = vmatpush.msra.mxu0 0.0
    %v3736 = vand.u32 %v461, 4294901760
    %v3737 = vsub.f32 %v461, %v3736
    %v3738 = vand.u32 %v3737, 4294901760
    %v3739 = vsub.f32 %v3737, %v3738
    %v3740 = vand.u32 %v3739, 4294901760
    %3741 = vmatpush.msra.mxu0 %v3740
    %v3742 = vand.u32 %v460, 4294901760
    %v3743 = vsub.f32 %v460, %v3742
    %v3744 = vand.u32 %v3743, 4294901760
    %v3745 = vsub.f32 %v3743, %v3744
    %v3746 = vand.u32 %v3745, 4294901760
    %3747 = vmatpush.msra.mxu0 %v3746
    %v3748 = vand.u32 %v459, 4294901760
    %v3749 = vsub.f32 %v459, %v3748
    %v3750 = vand.u32 %v3749, 4294901760
    %v3751 = vsub.f32 %v3749, %v3750
    %v3752 = vand.u32 %v3751, 4294901760
    %3753 = vmatpush.msra.mxu0 %v3752
    %v3754 = vand.u32 %v458, 4294901760
    %v3755 = vsub.f32 %v458, %v3754
    %v3756 = vand.u32 %v3755, 4294901760
    %v3757 = vsub.f32 %v3755, %v3756
    %v3758 = vand.u32 %v3757, 4294901760
    %3759 = vmatpush.msra.mxu0 %v3758
    %v3760 = vand.u32 %v3693, 4294901760
    %3761 = vmatmul.f32.gmra.mxu0 %v3760
    %v3762 = vpop.f32.mrf.mxu0
    %v3763 = vadd.f32 %v3722, %v3762
    %3764 = vdwg.mxu0
    %3765 = vmatpush.msra.mxu0 0.0
    %3766 = vmatpush.msra.mxu0 0.0
    %3767 = vmatpush.msra.mxu0 0.0
    %3768 = vmatpush.msra.mxu0 0.0
    %3769 = vmatpush.msra.mxu0 0.0
    %3770 = vmatpush.msra.mxu0 0.0
    %3771 = vmatpush.msra.mxu0 0.0
    %3772 = vmatpush.msra.mxu0 0.0
    %3773 = vmatpush.msra.mxu0 0.0
    %3774 = vmatpush.msra.mxu0 0.0
    %3775 = vmatpush.msra.mxu0 0.0
    %3776 = vmatpush.msra.mxu0 0.0
    %v3777 = vand.u32 %v461, 4294901760
    %v3778 = vsub.f32 %v461, %v3777
    %3779 = vmatpush.msra.mxu0 %v3778
    %v3780 = vand.u32 %v460, 4294901760
    %v3781 = vsub.f32 %v460, %v3780
    %3782 = vmatpush.msra.mxu0 %v3781
    %v3783 = vand.u32 %v459, 4294901760
    %v3784 = vsub.f32 %v459, %v3783
    %3785 = vmatpush.msra.mxu0 %v3784
    %v3786 = vand.u32 %v458, 4294901760
    %v3787 = vsub.f32 %v458, %v3786
    %3788 = vmatpush.msra.mxu0 %v3787
    %v3789 = vand.u32 %v3693, 4294901760
    %v3790 = vsub.f32 %v3693, %v3789
    %3791 = vmatmul.f32.gmra.mxu0 %v3790
    %v3792 = vpop.f32.mrf.mxu0
    %v3793 = vadd.f32 %v3763, %v3792
    %3794 = vdwg.mxu0
    %3795 = vmatpush.msra.mxu0 0.0
    %3796 = vmatpush.msra.mxu0 0.0
    %3797 = vmatpush.msra.mxu0 0.0
    %3798 = vmatpush.msra.mxu0 0.0
    %3799 = vmatpush.msra.mxu0 0.0
    %3800 = vmatpush.msra.mxu0 0.0
    %3801 = vmatpush.msra.mxu0 0.0
    %3802 = vmatpush.msra.mxu0 0.0
    %3803 = vmatpush.msra.mxu0 0.0
    %3804 = vmatpush.msra.mxu0 0.0
    %3805 = vmatpush.msra.mxu0 0.0
    %3806 = vmatpush.msra.mxu0 0.0
    %v3807 = vand.u32 %v461, 4294901760
    %3808 = vmatpush.msra.mxu0 %v3807
    %v3809 = vand.u32 %v460, 4294901760
    %3810 = vmatpush.msra.mxu0 %v3809
    %v3811 = vand.u32 %v459, 4294901760
    %3812 = vmatpush.msra.mxu0 %v3811
    %v3813 = vand.u32 %v458, 4294901760
    %3814 = vmatpush.msra.mxu0 %v3813
    %v3815 = vand.u32 %v3693, 4294901760
    %v3816 = vsub.f32 %v3693, %v3815
    %v3817 = vand.u32 %v3816, 4294901760
    %3818 = vmatmul.f32.gmra.mxu0 %v3817
    %v3819 = vpop.f32.mrf.mxu0
    %v3820 = vadd.f32 %v3793, %v3819
    %3821 = vdwg.mxu0
    %3822 = vmatpush.msra.mxu0 0.0
    %3823 = vmatpush.msra.mxu0 0.0
    %3824 = vmatpush.msra.mxu0 0.0
    %3825 = vmatpush.msra.mxu0 0.0
    %3826 = vmatpush.msra.mxu0 0.0
    %3827 = vmatpush.msra.mxu0 0.0
    %3828 = vmatpush.msra.mxu0 0.0
    %3829 = vmatpush.msra.mxu0 0.0
    %3830 = vmatpush.msra.mxu0 0.0
    %3831 = vmatpush.msra.mxu0 0.0
    %3832 = vmatpush.msra.mxu0 0.0
    %3833 = vmatpush.msra.mxu0 0.0
    %v3834 = vand.u32 %v461, 4294901760
    %v3835 = vsub.f32 %v461, %v3834
    %v3836 = vand.u32 %v3835, 4294901760
    %3837 = vmatpush.msra.mxu0 %v3836
    %v3838 = vand.u32 %v460, 4294901760
    %v3839 = vsub.f32 %v460, %v3838
    %v3840 = vand.u32 %v3839, 4294901760
    %3841 = vmatpush.msra.mxu0 %v3840
    %v3842 = vand.u32 %v459, 4294901760
    %v3843 = vsub.f32 %v459, %v3842
    %v3844 = vand.u32 %v3843, 4294901760
    %3845 = vmatpush.msra.mxu0 %v3844
    %v3846 = vand.u32 %v458, 4294901760
    %v3847 = vsub.f32 %v458, %v3846
    %v3848 = vand.u32 %v3847, 4294901760
    %3849 = vmatpush.msra.mxu0 %v3848
    %v3850 = vand.u32 %v3693, 4294901760
    %3851 = vmatmul.f32.gmra.mxu0 %v3850
    %v3852 = vpop.f32.mrf.mxu0
    %v3853 = vadd.f32 %v3820, %v3852
    %3854 = vdwg.mxu0
    %3855 = vmatpush.msra.mxu0 0.0
    %3856 = vmatpush.msra.mxu0 0.0
    %3857 = vmatpush.msra.mxu0 0.0
    %3858 = vmatpush.msra.mxu0 0.0
    %3859 = vmatpush.msra.mxu0 0.0
    %3860 = vmatpush.msra.mxu0 0.0
    %3861 = vmatpush.msra.mxu0 0.0
    %3862 = vmatpush.msra.mxu0 0.0
    %3863 = vmatpush.msra.mxu0 0.0
    %3864 = vmatpush.msra.mxu0 0.0
    %3865 = vmatpush.msra.mxu0 0.0
    %3866 = vmatpush.msra.mxu0 0.0
    %v3867 = vand.u32 %v461, 4294901760
    %3868 = vmatpush.msra.mxu0 %v3867
    %v3869 = vand.u32 %v460, 4294901760
    %3870 = vmatpush.msra.mxu0 %v3869
    %v3871 = vand.u32 %v459, 4294901760
    %3872 = vmatpush.msra.mxu0 %v3871
    %v3873 = vand.u32 %v458, 4294901760
    %3874 = vmatpush.msra.mxu0 %v3873
    %v3875 = vand.u32 %v3693, 4294901760
    %3876 = vmatmul.f32.gmra.mxu0 %v3875
    %v3877 = vpop.f32.mrf.mxu0
    %v3878 = vadd.f32 %v3853, %v3877
    %3879 = vdwg.mxu0
    %v3880 = vadd.f32 %v3878, %v3647
    %v3881 = vxor.u32 %v3880, 2147483648
    %v3882 = vmul.f32 %v3881, 1.442695
    %v3883 = vpow.pop %v3882
    %v3884 = vadd.f32 %v3883, 1.0
    %v3885 = vrcp.pop %v3884
    %v3886 = vmul.f32 %v3884, %v3885
    %v3887 = vsub.f32 1.0, %v3886
    %v3888 = vmul.f32 %v3885, %v3887
    %v3889 = vadd.f32 %v3885, %v3888
    %vm3890 = vweird.f32 %v3884
    %vm3891 = vweird.f32 %v3885
    %vm3892 = vmor %vm3890, %vm3891
    %v3893 = vsel %vm3892, %v3885, %v3889
    %v3894 = vand.u32 2147483647, %v3884
    %vm3895 = vcmp.eq.f32.partialorder %v3894, 8.507059e+37
    %v3896 = vand.u32 %v3884, 2147483648
    %v3897 = vor.u32 1.1754944e-38, %v3896
    %v3898 = vsel %vm3895, %v3897, %v3893
    %v3899 = vmul.f32 1.0, %v3898
    %3901 = vrot.lane.b32.xlu0 %v3647, 64
    %v3902 = vpop.permute.xlu0 %3901
    %v3904 = vmul.f32 %v3899, %v3902
    %3906 = vrot.lane.b32.xlu0 %v3904, 64
    %v3907 = vpop.permute.xlu0 %3906
    %v3909 = vadd.f32 %v3878, %v3907
    %v3910 = vtanh.pop %v3909
    %v3911 = vsub.f32 1.0, %v3899
    %3913 = vrot.lane.b32.xlu0 %v3910, 96
    %v3914 = vpop.permute.xlu0 %3913
    %v3916 = vmul.f32 %v3911, %v3914
    %v3917 = vmul.f32 %v3899, %v3273
    %v3918 = vadd.f32 %v3916, %v3917
    %3919 = vmatpush.msra.mxu0 0.0
    %3920 = vmatpush.msra.mxu0 0.0
    %3921 = vmatpush.msra.mxu0 0.0
    %3922 = vmatpush.msra.mxu0 0.0
    %3923 = vmatpush.msra.mxu0 0.0
    %3924 = vmatpush.msra.mxu0 0.0
    %3925 = vmatpush.msra.mxu0 0.0
    %3926 = vmatpush.msra.mxu0 0.0
    %3927 = vmatpush.msra.mxu0 0.0
    %3928 = vmatpush.msra.mxu0 0.0
    %3929 = vmatpush.msra.mxu0 0.0
    %3930 = vmatpush.msra.mxu0 0.0
    %v3931 = vand.u32 %v33, 4294901760
    %3932 = vmatpush.msra.mxu0 %v3931
    %v3933 = vand.u32 %v32, 4294901760
    %3934 = vmatpush.msra.mxu0 %v3933
    %v3935 = vand.u32 %v31, 4294901760
    %3936 = vmatpush.msra.mxu0 %v3935
    %v3937 = vand.u32 %v30, 4294901760
    %3938 = vmatpush.msra.mxu0 %v3937
    %v3939 = vand.u32 %v3693, 4294901760
    %v3940 = vsub.f32 %v3693, %v3939
    %v3941 = vand.u32 %v3940, 4294901760
    %v3942 = vsub.f32 %v3940, %v3941
    %v3943 = vand.u32 %v3942, 4294901760
    %3944 = vmatmul.f32.gmra.mxu0 %v3943
    %v3945 = vpop.f32.mrf.mxu0
    %v3946 = vadd.f32 0.0, %v3945
    %3947 = vdwg.mxu0
    %3948 = vmatpush.msra.mxu0 0.0
    %3949 = vmatpush.msra.mxu0 0.0
    %3950 = vmatpush.msra.mxu0 0.0
    %3951 = vmatpush.msra.mxu0 0.0
    %3952 = vmatpush.msra.mxu0 0.0
    %3953 = vmatpush.msra.mxu0 0.0
    %3954 = vmatpush.msra.mxu0 0.0
    %3955 = vmatpush.msra.mxu0 0.0
    %3956 = vmatpush.msra.mxu0 0.0
    %3957 = vmatpush.msra.mxu0 0.0
    %3958 = vmatpush.msra.mxu0 0.0
    %3959 = vmatpush.msra.mxu0 0.0
    %v3960 = vand.u32 %v33, 4294901760
    %v3961 = vsub.f32 %v33, %v3960
    %v3962 = vand.u32 %v3961, 4294901760
    %v3963 = vsub.f32 %v3961, %v3962
    %v3964 = vand.u32 %v3963, 4294901760
    %3965 = vmatpush.msra.mxu0 %v3964
    %v3966 = vand.u32 %v32, 4294901760
    %v3967 = vsub.f32 %v32, %v3966
    %v3968 = vand.u32 %v3967, 4294901760
    %v3969 = vsub.f32 %v3967, %v3968
    %v3970 = vand.u32 %v3969, 4294901760
    %3971 = vmatpush.msra.mxu0 %v3970
    %v3972 = vand.u32 %v31, 4294901760
    %v3973 = vsub.f32 %v31, %v3972
    %v3974 = vand.u32 %v3973, 4294901760
    %v3975 = vsub.f32 %v3973, %v3974
    %v3976 = vand.u32 %v3975, 4294901760
    %3977 = vmatpush.msra.mxu0 %v3976
    %v3978 = vand.u32 %v30, 4294901760
    %v3979 = vsub.f32 %v30, %v3978
    %v3980 = vand.u32 %v3979, 4294901760
    %v3981 = vsub.f32 %v3979, %v3980
    %v3982 = vand.u32 %v3981, 4294901760
    %3983 = vmatpush.msra.mxu0 %v3982
    %v3984 = vand.u32 %v3693, 4294901760
    %3985 = vmatmul.f32.gmra.mxu0 %v3984
    %v3986 = vpop.f32.mrf.mxu0
    %v3987 = vadd.f32 %v3946, %v3986
    %3988 = vdwg.mxu0
    %3989 = vmatpush.msra.mxu0 0.0
    %3990 = vmatpush.msra.mxu0 0.0
    %3991 = vmatpush.msra.mxu0 0.0
    %3992 = vmatpush.msra.mxu0 0.0
    %3993 = vmatpush.msra.mxu0 0.0
    %3994 = vmatpush.msra.mxu0 0.0
    %3995 = vmatpush.msra.mxu0 0.0
    %3996 = vmatpush.msra.mxu0 0.0
    %3997 = vmatpush.msra.mxu0 0.0
    %3998 = vmatpush.msra.mxu0 0.0
    %3999 = vmatpush.msra.mxu0 0.0
    %4000 = vmatpush.msra.mxu0 0.0
    %v4001 = vand.u32 %v33, 4294901760
    %v4002 = vsub.f32 %v33, %v4001
    %4003 = vmatpush.msra.mxu0 %v4002
    %v4004 = vand.u32 %v32, 4294901760
    %v4005 = vsub.f32 %v32, %v4004
    %4006 = vmatpush.msra.mxu0 %v4005
    %v4007 = vand.u32 %v31, 4294901760
    %v4008 = vsub.f32 %v31, %v4007
    %4009 = vmatpush.msra.mxu0 %v4008
    %v4010 = vand.u32 %v30, 4294901760
    %v4011 = vsub.f32 %v30, %v4010
    %4012 = vmatpush.msra.mxu0 %v4011
    %v4013 = vand.u32 %v3693, 4294901760
    %v4014 = vsub.f32 %v3693, %v4013
    %4015 = vmatmul.f32.gmra.mxu0 %v4014
    %v4016 = vpop.f32.mrf.mxu0
    %v4017 = vadd.f32 %v3987, %v4016
    %4018 = vdwg.mxu0
    %4019 = vmatpush.msra.mxu0 0.0
    %4020 = vmatpush.msra.mxu0 0.0
    %4021 = vmatpush.msra.mxu0 0.0
    %4022 = vmatpush.msra.mxu0 0.0
    %4023 = vmatpush.msra.mxu0 0.0
    %4024 = vmatpush.msra.mxu0 0.0
    %4025 = vmatpush.msra.mxu0 0.0
    %4026 = vmatpush.msra.mxu0 0.0
    %4027 = vmatpush.msra.mxu0 0.0
    %4028 = vmatpush.msra.mxu0 0.0
    %4029 = vmatpush.msra.mxu0 0.0
    %4030 = vmatpush.msra.mxu0 0.0
    %v4031 = vand.u32 %v33, 4294901760
    %4032 = vmatpush.msra.mxu0 %v4031
    %v4033 = vand.u32 %v32, 4294901760
    %4034 = vmatpush.msra.mxu0 %v4033
    %v4035 = vand.u32 %v31, 4294901760
    %4036 = vmatpush.msra.mxu0 %v4035
    %v4037 = vand.u32 %v30, 4294901760
    %4038 = vmatpush.msra.mxu0 %v4037
    %v4039 = vand.u32 %v3693, 4294901760
    %v4040 = vsub.f32 %v3693, %v4039
    %v4041 = vand.u32 %v4040, 4294901760
    %4042 = vmatmul.f32.gmra.mxu0 %v4041
    %v4043 = vpop.f32.mrf.mxu0
    %v4044 = vadd.f32 %v4017, %v4043
    %4045 = vdwg.mxu0
    %4046 = vmatpush.msra.mxu0 0.0
    %4047 = vmatpush.msra.mxu0 0.0
    %4048 = vmatpush.msra.mxu0 0.0
    %4049 = vmatpush.msra.mxu0 0.0
    %4050 = vmatpush.msra.mxu0 0.0
    %4051 = vmatpush.msra.mxu0 0.0
    %4052 = vmatpush.msra.mxu0 0.0
    %4053 = vmatpush.msra.mxu0 0.0
    %4054 = vmatpush.msra.mxu0 0.0
    %4055 = vmatpush.msra.mxu0 0.0
    %4056 = vmatpush.msra.mxu0 0.0
    %4057 = vmatpush.msra.mxu0 0.0
    %v4058 = vand.u32 %v33, 4294901760
    %v4059 = vsub.f32 %v33, %v4058
    %v4060 = vand.u32 %v4059, 4294901760
    %4061 = vmatpush.msra.mxu0 %v4060
    %v4062 = vand.u32 %v32, 4294901760
    %v4063 = vsub.f32 %v32, %v4062
    %v4064 = vand.u32 %v4063, 4294901760
    %4065 = vmatpush.msra.mxu0 %v4064
    %v4066 = vand.u32 %v31, 4294901760
    %v4067 = vsub.f32 %v31, %v4066
    %v4068 = vand.u32 %v4067, 4294901760
    %4069 = vmatpush.msra.mxu0 %v4068
    %v4070 = vand.u32 %v30, 4294901760
    %v4071 = vsub.f32 %v30, %v4070
    %v4072 = vand.u32 %v4071, 4294901760
    %4073 = vmatpush.msra.mxu0 %v4072
    %v4074 = vand.u32 %v3693, 4294901760
    %4075 = vmatmul.f32.gmra.mxu0 %v4074
    %v4076 = vpop.f32.mrf.mxu0
    %v4077 = vadd.f32 %v4044, %v4076
    %4078 = vdwg.mxu0
    %4079 = vmatpush.msra.mxu0 0.0
    %4080 = vmatpush.msra.mxu0 0.0
    %4081 = vmatpush.msra.mxu0 0.0
    %4082 = vmatpush.msra.mxu0 0.0
    %4083 = vmatpush.msra.mxu0 0.0
    %4084 = vmatpush.msra.mxu0 0.0
    %4085 = vmatpush.msra.mxu0 0.0
    %4086 = vmatpush.msra.mxu0 0.0
    %4087 = vmatpush.msra.mxu0 0.0
    %4088 = vmatpush.msra.mxu0 0.0
    %4089 = vmatpush.msra.mxu0 0.0
    %4090 = vmatpush.msra.mxu0 0.0
    %v4091 = vand.u32 %v33, 4294901760
    %4092 = vmatpush.msra.mxu0 %v4091
    %v4093 = vand.u32 %v32, 4294901760
    %4094 = vmatpush.msra.mxu0 %v4093
    %v4095 = vand.u32 %v31, 4294901760
    %4096 = vmatpush.msra.mxu0 %v4095
    %v4097 = vand.u32 %v30, 4294901760
    %4098 = vmatpush.msra.mxu0 %v4097
    %v4099 = vand.u32 %v3693, 4294901760
    %4100 = vmatmul.f32.gmra.mxu0 %v4099
    %v4101 = vpop.f32.mrf.mxu0
    %v4102 = vadd.f32 %v4077, %v4101
    %4103 = vdwg.mxu0
    %4105 = vrot.lane.b32.xlu0 %v3918, 96
    %v4106 = vpop.permute.xlu0 %4105
    %v4107 = vsel %vm34, %v4106, 0
    %4109 = vmatpush.msra.mxu0 0.0
    %4110 = vmatpush.msra.mxu0 0.0
    %4111 = vmatpush.msra.mxu0 0.0
    %4112 = vmatpush.msra.mxu0 0.0
    %4113 = vmatpush.msra.mxu0 0.0
    %4114 = vmatpush.msra.mxu0 0.0
    %4115 = vmatpush.msra.mxu0 0.0
    %4116 = vmatpush.msra.mxu0 0.0
    %4117 = vmatpush.msra.mxu0 0.0
    %4118 = vmatpush.msra.mxu0 0.0
    %4119 = vmatpush.msra.mxu0 0.0
    %4120 = vmatpush.msra.mxu0 0.0
    %v4121 = vand.u32 %v226, 4294901760
    %4122 = vmatpush.msra.mxu0 %v4121
    %v4123 = vand.u32 %v225, 4294901760
    %4124 = vmatpush.msra.mxu0 %v4123
    %v4125 = vand.u32 %v224, 4294901760
    %4126 = vmatpush.msra.mxu0 %v4125
    %v4127 = vand.u32 %v223, 4294901760
    %4128 = vmatpush.msra.mxu0 %v4127
    %v4129 = vand.u32 %v4107, 4294901760
    %v4130 = vsub.f32 %v4107, %v4129
    %v4131 = vand.u32 %v4130, 4294901760
    %v4132 = vsub.f32 %v4130, %v4131
    %v4133 = vand.u32 %v4132, 4294901760
    %4134 = vmatmul.f32.gmra.mxu0 %v4133
    %v4135 = vpop.f32.mrf.mxu0
    %v4136 = vadd.f32 0.0, %v4135
    %4137 = vdwg.mxu0
    %4138 = vmatpush.msra.mxu0 0.0
    %4139 = vmatpush.msra.mxu0 0.0
    %4140 = vmatpush.msra.mxu0 0.0
    %4141 = vmatpush.msra.mxu0 0.0
    %4142 = vmatpush.msra.mxu0 0.0
    %4143 = vmatpush.msra.mxu0 0.0
    %4144 = vmatpush.msra.mxu0 0.0
    %4145 = vmatpush.msra.mxu0 0.0
    %4146 = vmatpush.msra.mxu0 0.0
    %4147 = vmatpush.msra.mxu0 0.0
    %4148 = vmatpush.msra.mxu0 0.0
    %4149 = vmatpush.msra.mxu0 0.0
    %v4150 = vand.u32 %v226, 4294901760
    %v4151 = vsub.f32 %v226, %v4150
    %v4152 = vand.u32 %v4151, 4294901760
    %v4153 = vsub.f32 %v4151, %v4152
    %v4154 = vand.u32 %v4153, 4294901760
    %4155 = vmatpush.msra.mxu0 %v4154
    %v4156 = vand.u32 %v225, 4294901760
    %v4157 = vsub.f32 %v225, %v4156
    %v4158 = vand.u32 %v4157, 4294901760
    %v4159 = vsub.f32 %v4157, %v4158
    %v4160 = vand.u32 %v4159, 4294901760
    %4161 = vmatpush.msra.mxu0 %v4160
    %v4162 = vand.u32 %v224, 4294901760
    %v4163 = vsub.f32 %v224, %v4162
    %v4164 = vand.u32 %v4163, 4294901760
    %v4165 = vsub.f32 %v4163, %v4164
    %v4166 = vand.u32 %v4165, 4294901760
    %4167 = vmatpush.msra.mxu0 %v4166
    %v4168 = vand.u32 %v223, 4294901760
    %v4169 = vsub.f32 %v223, %v4168
    %v4170 = vand.u32 %v4169, 4294901760
    %v4171 = vsub.f32 %v4169, %v4170
    %v4172 = vand.u32 %v4171, 4294901760
    %4173 = vmatpush.msra.mxu0 %v4172
    %v4174 = vand.u32 %v4107, 4294901760
    %4175 = vmatmul.f32.gmra.mxu0 %v4174
    %v4176 = vpop.f32.mrf.mxu0
    %v4177 = vadd.f32 %v4136, %v4176
    %4178 = vdwg.mxu0
    %4179 = vmatpush.msra.mxu0 0.0
    %4180 = vmatpush.msra.mxu0 0.0
    %4181 = vmatpush.msra.mxu0 0.0
    %4182 = vmatpush.msra.mxu0 0.0
    %4183 = vmatpush.msra.mxu0 0.0
    %4184 = vmatpush.msra.mxu0 0.0
    %4185 = vmatpush.msra.mxu0 0.0
    %4186 = vmatpush.msra.mxu0 0.0
    %4187 = vmatpush.msra.mxu0 0.0
    %4188 = vmatpush.msra.mxu0 0.0
    %4189 = vmatpush.msra.mxu0 0.0
    %4190 = vmatpush.msra.mxu0 0.0
    %v4191 = vand.u32 %v226, 4294901760
    %v4192 = vsub.f32 %v226, %v4191
    %4193 = vmatpush.msra.mxu0 %v4192
    %v4194 = vand.u32 %v225, 4294901760
    %v4195 = vsub.f32 %v225, %v4194
    %4196 = vmatpush.msra.mxu0 %v4195
    %v4197 = vand.u32 %v224, 4294901760
    %v4198 = vsub.f32 %v224, %v4197
    %4199 = vmatpush.msra.mxu0 %v4198
    %v4200 = vand.u32 %v223, 4294901760
    %v4201 = vsub.f32 %v223, %v4200
    %4202 = vmatpush.msra.mxu0 %v4201
    %v4203 = vand.u32 %v4107, 4294901760
    %v4204 = vsub.f32 %v4107, %v4203
    %4205 = vmatmul.f32.gmra.mxu0 %v4204
    %v4206 = vpop.f32.mrf.mxu0
    %v4207 = vadd.f32 %v4177, %v4206
    %4208 = vdwg.mxu0
    %4209 = vmatpush.msra.mxu0 0.0
    %4210 = vmatpush.msra.mxu0 0.0
    %4211 = vmatpush.msra.mxu0 0.0
    %4212 = vmatpush.msra.mxu0 0.0
    %4213 = vmatpush.msra.mxu0 0.0
    %4214 = vmatpush.msra.mxu0 0.0
    %4215 = vmatpush.msra.mxu0 0.0
    %4216 = vmatpush.msra.mxu0 0.0
    %4217 = vmatpush.msra.mxu0 0.0
    %4218 = vmatpush.msra.mxu0 0.0
    %4219 = vmatpush.msra.mxu0 0.0
    %4220 = vmatpush.msra.mxu0 0.0
    %v4221 = vand.u32 %v226, 4294901760
    %4222 = vmatpush.msra.mxu0 %v4221
    %v4223 = vand.u32 %v225, 4294901760
    %4224 = vmatpush.msra.mxu0 %v4223
    %v4225 = vand.u32 %v224, 4294901760
    %4226 = vmatpush.msra.mxu0 %v4225
    %v4227 = vand.u32 %v223, 4294901760
    %4228 = vmatpush.msra.mxu0 %v4227
    %v4229 = vand.u32 %v4107, 4294901760
    %v4230 = vsub.f32 %v4107, %v4229
    %v4231 = vand.u32 %v4230, 4294901760
    %4232 = vmatmul.f32.gmra.mxu0 %v4231
    %v4233 = vpop.f32.mrf.mxu0
    %v4234 = vadd.f32 %v4207, %v4233
    %4235 = vdwg.mxu0
    %4236 = vmatpush.msra.mxu0 0.0
    %4237 = vmatpush.msra.mxu0 0.0
    %4238 = vmatpush.msra.mxu0 0.0
    %4239 = vmatpush.msra.mxu0 0.0
    %4240 = vmatpush.msra.mxu0 0.0
    %4241 = vmatpush.msra.mxu0 0.0
    %4242 = vmatpush.msra.mxu0 0.0
    %4243 = vmatpush.msra.mxu0 0.0
    %4244 = vmatpush.msra.mxu0 0.0
    %4245 = vmatpush.msra.mxu0 0.0
    %4246 = vmatpush.msra.mxu0 0.0
    %4247 = vmatpush.msra.mxu0 0.0
    %v4248 = vand.u32 %v226, 4294901760
    %v4249 = vsub.f32 %v226, %v4248
    %v4250 = vand.u32 %v4249, 4294901760
    %4251 = vmatpush.msra.mxu0 %v4250
    %v4252 = vand.u32 %v225, 4294901760
    %v4253 = vsub.f32 %v225, %v4252
    %v4254 = vand.u32 %v4253, 4294901760
    %4255 = vmatpush.msra.mxu0 %v4254
    %v4256 = vand.u32 %v224, 4294901760
    %v4257 = vsub.f32 %v224, %v4256
    %v4258 = vand.u32 %v4257, 4294901760
    %4259 = vmatpush.msra.mxu0 %v4258
    %v4260 = vand.u32 %v223, 4294901760
    %v4261 = vsub.f32 %v223, %v4260
    %v4262 = vand.u32 %v4261, 4294901760
    %4263 = vmatpush.msra.mxu0 %v4262
    %v4264 = vand.u32 %v4107, 4294901760
    %4265 = vmatmul.f32.gmra.mxu0 %v4264
    %v4266 = vpop.f32.mrf.mxu0
    %v4267 = vadd.f32 %v4234, %v4266
    %4268 = vdwg.mxu0
    %4269 = vmatpush.msra.mxu0 0.0
    %4270 = vmatpush.msra.mxu0 0.0
    %4271 = vmatpush.msra.mxu0 0.0
    %4272 = vmatpush.msra.mxu0 0.0
    %4273 = vmatpush.msra.mxu0 0.0
    %4274 = vmatpush.msra.mxu0 0.0
    %4275 = vmatpush.msra.mxu0 0.0
    %4276 = vmatpush.msra.mxu0 0.0
    %4277 = vmatpush.msra.mxu0 0.0
    %4278 = vmatpush.msra.mxu0 0.0
    %4279 = vmatpush.msra.mxu0 0.0
    %4280 = vmatpush.msra.mxu0 0.0
    %v4281 = vand.u32 %v226, 4294901760
    %4282 = vmatpush.msra.mxu0 %v4281
    %v4283 = vand.u32 %v225, 4294901760
    %4284 = vmatpush.msra.mxu0 %v4283
    %v4285 = vand.u32 %v224, 4294901760
    %4286 = vmatpush.msra.mxu0 %v4285
    %v4287 = vand.u32 %v223, 4294901760
    %4288 = vmatpush.msra.mxu0 %v4287
    %v4289 = vand.u32 %v4107, 4294901760
    %4290 = vmatmul.f32.gmra.mxu0 %v4289
    %v4291 = vpop.f32.mrf.mxu0
    %v4292 = vadd.f32 %v4267, %v4291
    %4293 = vdwg.mxu0
    %s4294 = scalar_lea.vmem %s0, 12
    %v4295 = vld [vmem:[%s4294] sm:$0x3]
    %v4296 = vadd.f32 %v4295, %v4102
    %v4297 = vxor.u32 %v4296, 2147483648
    %v4298 = vmul.f32 %v4297, 1.442695
    %v4299 = vpow.pop %v4298
    %v4300 = vadd.f32 %v4299, 1.0
    %v4301 = vrcp.pop %v4300
    %v4302 = vmul.f32 %v4300, %v4301
    %v4303 = vsub.f32 1.0, %v4302
    %v4304 = vmul.f32 %v4301, %v4303
    %v4305 = vadd.f32 %v4301, %v4304
    %vm4306 = vweird.f32 %v4300
    %vm4307 = vweird.f32 %v4301
    %vm4308 = vmor %vm4306, %vm4307
    %v4309 = vsel %vm4308, %v4301, %v4305
    %v4310 = vand.u32 2147483647, %v4300
    %vm4311 = vcmp.eq.f32.partialorder %v4310, 8.507059e+37
    %v4312 = vand.u32 %v4300, 2147483648
    %v4313 = vor.u32 1.1754944e-38, %v4312
    %v4314 = vsel %vm4311, %v4313, %v4309
    %v4315 = vmul.f32 1.0, %v4314
    %4317 = vrot.lane.b32.xlu0 %v4102, 64
    %v4318 = vpop.permute.xlu0 %4317
    %v4320 = vmul.f32 %v4315, %v4318
    %4322 = vrot.lane.b32.xlu0 %v4320, 64
    %v4323 = vpop.permute.xlu0 %4322
    %v4325 = vadd.f32 %v4295, %v4323
    %v4326 = vtanh.pop %v4325
    %v4327 = vsub.f32 1.0, %v4315
    %4329 = vrot.lane.b32.xlu0 %v4326, 96
    %v4330 = vpop.permute.xlu0 %4329
    %v4332 = vmul.f32 %v4327, %v4330
    %v4333 = vmul.f32 %v4315, %v3689
    %v4334 = vadd.f32 %v4332, %v4333
    %4336 = vrot.lane.b32.xlu0 %v4334, 96
    %v4337 = vpop.permute.xlu0 %4336
    %v4338 = vsel %vm34, %v4337, 0
    %4340 = vmatpush.msra.mxu0 0.0
    %4341 = vmatpush.msra.mxu0 0.0
    %4342 = vmatpush.msra.mxu0 0.0
    %4343 = vmatpush.msra.mxu0 0.0
    %4344 = vmatpush.msra.mxu0 0.0
    %4345 = vmatpush.msra.mxu0 0.0
    %4346 = vmatpush.msra.mxu0 0.0
    %4347 = vmatpush.msra.mxu0 0.0
    %4348 = vmatpush.msra.mxu0 0.0
    %4349 = vmatpush.msra.mxu0 0.0
    %4350 = vmatpush.msra.mxu0 0.0
    %4351 = vmatpush.msra.mxu0 0.0
    %v4352 = vand.u32 %v461, 4294901760
    %4353 = vmatpush.msra.mxu0 %v4352
    %v4354 = vand.u32 %v460, 4294901760
    %4355 = vmatpush.msra.mxu0 %v4354
    %v4356 = vand.u32 %v459, 4294901760
    %4357 = vmatpush.msra.mxu0 %v4356
    %v4358 = vand.u32 %v458, 4294901760
    %4359 = vmatpush.msra.mxu0 %v4358
    %v4360 = vand.u32 %v4338, 4294901760
    %v4361 = vsub.f32 %v4338, %v4360
    %v4362 = vand.u32 %v4361, 4294901760
    %v4363 = vsub.f32 %v4361, %v4362
    %v4364 = vand.u32 %v4363, 4294901760
    %4365 = vmatmul.f32.gmra.mxu0 %v4364
    %v4366 = vpop.f32.mrf.mxu0
    %v4367 = vadd.f32 0.0, %v4366
    %4368 = vdwg.mxu0
    %4369 = vmatpush.msra.mxu0 0.0
    %4370 = vmatpush.msra.mxu0 0.0
    %4371 = vmatpush.msra.mxu0 0.0
    %4372 = vmatpush.msra.mxu0 0.0
    %4373 = vmatpush.msra.mxu0 0.0
    %4374 = vmatpush.msra.mxu0 0.0
    %4375 = vmatpush.msra.mxu0 0.0
    %4376 = vmatpush.msra.mxu0 0.0
    %4377 = vmatpush.msra.mxu0 0.0
    %4378 = vmatpush.msra.mxu0 0.0
    %4379 = vmatpush.msra.mxu0 0.0
    %4380 = vmatpush.msra.mxu0 0.0
    %v4381 = vand.u32 %v461, 4294901760
    %v4382 = vsub.f32 %v461, %v4381
    %v4383 = vand.u32 %v4382, 4294901760
    %v4384 = vsub.f32 %v4382, %v4383
    %v4385 = vand.u32 %v4384, 4294901760
    %4386 = vmatpush.msra.mxu0 %v4385
    %v4387 = vand.u32 %v460, 4294901760
    %v4388 = vsub.f32 %v460, %v4387
    %v4389 = vand.u32 %v4388, 4294901760
    %v4390 = vsub.f32 %v4388, %v4389
    %v4391 = vand.u32 %v4390, 4294901760
    %4392 = vmatpush.msra.mxu0 %v4391
    %v4393 = vand.u32 %v459, 4294901760
    %v4394 = vsub.f32 %v459, %v4393
    %v4395 = vand.u32 %v4394, 4294901760
    %v4396 = vsub.f32 %v4394, %v4395
    %v4397 = vand.u32 %v4396, 4294901760
    %4398 = vmatpush.msra.mxu0 %v4397
    %v4399 = vand.u32 %v458, 4294901760
    %v4400 = vsub.f32 %v458, %v4399
    %v4401 = vand.u32 %v4400, 4294901760
    %v4402 = vsub.f32 %v4400, %v4401
    %v4403 = vand.u32 %v4402, 4294901760
    %4404 = vmatpush.msra.mxu0 %v4403
    %v4405 = vand.u32 %v4338, 4294901760
    %4406 = vmatmul.f32.gmra.mxu0 %v4405
    %v4407 = vpop.f32.mrf.mxu0
    %v4408 = vadd.f32 %v4367, %v4407
    %4409 = vdwg.mxu0
    %4410 = vmatpush.msra.mxu0 0.0
    %4411 = vmatpush.msra.mxu0 0.0
    %4412 = vmatpush.msra.mxu0 0.0
    %4413 = vmatpush.msra.mxu0 0.0
    %4414 = vmatpush.msra.mxu0 0.0
    %4415 = vmatpush.msra.mxu0 0.0
    %4416 = vmatpush.msra.mxu0 0.0
    %4417 = vmatpush.msra.mxu0 0.0
    %4418 = vmatpush.msra.mxu0 0.0
    %4419 = vmatpush.msra.mxu0 0.0
    %4420 = vmatpush.msra.mxu0 0.0
    %4421 = vmatpush.msra.mxu0 0.0
    %v4422 = vand.u32 %v461, 4294901760
    %v4423 = vsub.f32 %v461, %v4422
    %4424 = vmatpush.msra.mxu0 %v4423
    %v4425 = vand.u32 %v460, 4294901760
    %v4426 = vsub.f32 %v460, %v4425
    %4427 = vmatpush.msra.mxu0 %v4426
    %v4428 = vand.u32 %v459, 4294901760
    %v4429 = vsub.f32 %v459, %v4428
    %4430 = vmatpush.msra.mxu0 %v4429
    %v4431 = vand.u32 %v458, 4294901760
    %v4432 = vsub.f32 %v458, %v4431
    %4433 = vmatpush.msra.mxu0 %v4432
    %v4434 = vand.u32 %v4338, 4294901760
    %v4435 = vsub.f32 %v4338, %v4434
    %4436 = vmatmul.f32.gmra.mxu0 %v4435
    %v4437 = vpop.f32.mrf.mxu0
    %v4438 = vadd.f32 %v4408, %v4437
    %4439 = vdwg.mxu0
    %4440 = vmatpush.msra.mxu0 0.0
    %4441 = vmatpush.msra.mxu0 0.0
    %4442 = vmatpush.msra.mxu0 0.0
    %4443 = vmatpush.msra.mxu0 0.0
    %4444 = vmatpush.msra.mxu0 0.0
    %4445 = vmatpush.msra.mxu0 0.0
    %4446 = vmatpush.msra.mxu0 0.0
    %4447 = vmatpush.msra.mxu0 0.0
    %4448 = vmatpush.msra.mxu0 0.0
    %4449 = vmatpush.msra.mxu0 0.0
    %4450 = vmatpush.msra.mxu0 0.0
    %4451 = vmatpush.msra.mxu0 0.0
    %v4452 = vand.u32 %v461, 4294901760
    %4453 = vmatpush.msra.mxu0 %v4452
    %v4454 = vand.u32 %v460, 4294901760
    %4455 = vmatpush.msra.mxu0 %v4454
    %v4456 = vand.u32 %v459, 4294901760
    %4457 = vmatpush.msra.mxu0 %v4456
    %v4458 = vand.u32 %v458, 4294901760
    %4459 = vmatpush.msra.mxu0 %v4458
    %v4460 = vand.u32 %v4338, 4294901760
    %v4461 = vsub.f32 %v4338, %v4460
    %v4462 = vand.u32 %v4461, 4294901760
    %4463 = vmatmul.f32.gmra.mxu0 %v4462
    %v4464 = vpop.f32.mrf.mxu0
    %v4465 = vadd.f32 %v4438, %v4464
    %4466 = vdwg.mxu0
    %4467 = vmatpush.msra.mxu0 0.0
    %4468 = vmatpush.msra.mxu0 0.0
    %4469 = vmatpush.msra.mxu0 0.0
    %4470 = vmatpush.msra.mxu0 0.0
    %4471 = vmatpush.msra.mxu0 0.0
    %4472 = vmatpush.msra.mxu0 0.0
    %4473 = vmatpush.msra.mxu0 0.0
    %4474 = vmatpush.msra.mxu0 0.0
    %4475 = vmatpush.msra.mxu0 0.0
    %4476 = vmatpush.msra.mxu0 0.0
    %4477 = vmatpush.msra.mxu0 0.0
    %4478 = vmatpush.msra.mxu0 0.0
    %v4479 = vand.u32 %v461, 4294901760
    %v4480 = vsub.f32 %v461, %v4479
    %v4481 = vand.u32 %v4480, 4294901760
    %4482 = vmatpush.msra.mxu0 %v4481
    %v4483 = vand.u32 %v460, 4294901760
    %v4484 = vsub.f32 %v460, %v4483
    %v4485 = vand.u32 %v4484, 4294901760
    %4486 = vmatpush.msra.mxu0 %v4485
    %v4487 = vand.u32 %v459, 4294901760
    %v4488 = vsub.f32 %v459, %v4487
    %v4489 = vand.u32 %v4488, 4294901760
    %4490 = vmatpush.msra.mxu0 %v4489
    %v4491 = vand.u32 %v458, 4294901760
    %v4492 = vsub.f32 %v458, %v4491
    %v4493 = vand.u32 %v4492, 4294901760
    %4494 = vmatpush.msra.mxu0 %v4493
    %v4495 = vand.u32 %v4338, 4294901760
    %4496 = vmatmul.f32.gmra.mxu0 %v4495
    %v4497 = vpop.f32.mrf.mxu0
    %v4498 = vadd.f32 %v4465, %v4497
    %4499 = vdwg.mxu0
    %4500 = vmatpush.msra.mxu0 0.0
    %4501 = vmatpush.msra.mxu0 0.0
    %4502 = vmatpush.msra.mxu0 0.0
    %4503 = vmatpush.msra.mxu0 0.0
    %4504 = vmatpush.msra.mxu0 0.0
    %4505 = vmatpush.msra.mxu0 0.0
    %4506 = vmatpush.msra.mxu0 0.0
    %4507 = vmatpush.msra.mxu0 0.0
    %4508 = vmatpush.msra.mxu0 0.0
    %4509 = vmatpush.msra.mxu0 0.0
    %4510 = vmatpush.msra.mxu0 0.0
    %4511 = vmatpush.msra.mxu0 0.0
    %v4512 = vand.u32 %v461, 4294901760
    %4513 = vmatpush.msra.mxu0 %v4512
    %v4514 = vand.u32 %v460, 4294901760
    %4515 = vmatpush.msra.mxu0 %v4514
    %v4516 = vand.u32 %v459, 4294901760
    %4517 = vmatpush.msra.mxu0 %v4516
    %v4518 = vand.u32 %v458, 4294901760
    %4519 = vmatpush.msra.mxu0 %v4518
    %v4520 = vand.u32 %v4338, 4294901760
    %4521 = vmatmul.f32.gmra.mxu0 %v4520
    %v4522 = vpop.f32.mrf.mxu0
    %v4523 = vadd.f32 %v4498, %v4522
    %4524 = vdwg.mxu0
    %v4525 = vadd.f32 %v4523, %v4292
    %v4526 = vxor.u32 %v4525, 2147483648
    %v4527 = vmul.f32 %v4526, 1.442695
    %v4528 = vpow.pop %v4527
    %v4529 = vadd.f32 %v4528, 1.0
    %v4530 = vrcp.pop %v4529
    %v4531 = vmul.f32 %v4529, %v4530
    %v4532 = vsub.f32 1.0, %v4531
    %v4533 = vmul.f32 %v4530, %v4532
    %v4534 = vadd.f32 %v4530, %v4533
    %vm4535 = vweird.f32 %v4529
    %vm4536 = vweird.f32 %v4530
    %vm4537 = vmor %vm4535, %vm4536
    %v4538 = vsel %vm4537, %v4530, %v4534
    %v4539 = vand.u32 2147483647, %v4529
    %vm4540 = vcmp.eq.f32.partialorder %v4539, 8.507059e+37
    %v4541 = vand.u32 %v4529, 2147483648
    %v4542 = vor.u32 1.1754944e-38, %v4541
    %v4543 = vsel %vm4540, %v4542, %v4538
    %v4544 = vmul.f32 1.0, %v4543
    %4546 = vrot.lane.b32.xlu0 %v4292, 64
    %v4547 = vpop.permute.xlu0 %4546
    %v4549 = vmul.f32 %v4544, %v4547
    %4551 = vrot.lane.b32.xlu0 %v4549, 64
    %v4552 = vpop.permute.xlu0 %4551
    %v4554 = vadd.f32 %v4523, %v4552
    %v4555 = vtanh.pop %v4554
    %v4556 = vsub.f32 1.0, %v4544
    %4558 = vrot.lane.b32.xlu0 %v4555, 96
    %v4559 = vpop.permute.xlu0 %4558
    %v4561 = vmul.f32 %v4556, %v4559
    %v4562 = vmul.f32 %v4544, %v3918
    %v4563 = vadd.f32 %v4561, %v4562
    %4564 = vmatpush.msra.mxu0 0.0
    %4565 = vmatpush.msra.mxu0 0.0
    %4566 = vmatpush.msra.mxu0 0.0
    %4567 = vmatpush.msra.mxu0 0.0
    %4568 = vmatpush.msra.mxu0 0.0
    %4569 = vmatpush.msra.mxu0 0.0
    %4570 = vmatpush.msra.mxu0 0.0
    %4571 = vmatpush.msra.mxu0 0.0
    %4572 = vmatpush.msra.mxu0 0.0
    %4573 = vmatpush.msra.mxu0 0.0
    %4574 = vmatpush.msra.mxu0 0.0
    %4575 = vmatpush.msra.mxu0 0.0
    %v4576 = vand.u32 %v33, 4294901760
    %4577 = vmatpush.msra.mxu0 %v4576
    %v4578 = vand.u32 %v32, 4294901760
    %4579 = vmatpush.msra.mxu0 %v4578
    %v4580 = vand.u32 %v31, 4294901760
    %4581 = vmatpush.msra.mxu0 %v4580
    %v4582 = vand.u32 %v30, 4294901760
    %4583 = vmatpush.msra.mxu0 %v4582
    %v4584 = vand.u32 %v4338, 4294901760
    %v4585 = vsub.f32 %v4338, %v4584
    %v4586 = vand.u32 %v4585, 4294901760
    %v4587 = vsub.f32 %v4585, %v4586
    %v4588 = vand.u32 %v4587, 4294901760
    %4589 = vmatmul.f32.gmra.mxu0 %v4588
    %v4590 = vpop.f32.mrf.mxu0
    %v4591 = vadd.f32 0.0, %v4590
    %4592 = vdwg.mxu0
    %4593 = vmatpush.msra.mxu0 0.0
    %4594 = vmatpush.msra.mxu0 0.0
    %4595 = vmatpush.msra.mxu0 0.0
    %4596 = vmatpush.msra.mxu0 0.0
    %4597 = vmatpush.msra.mxu0 0.0
    %4598 = vmatpush.msra.mxu0 0.0
    %4599 = vmatpush.msra.mxu0 0.0
    %4600 = vmatpush.msra.mxu0 0.0
    %4601 = vmatpush.msra.mxu0 0.0
    %4602 = vmatpush.msra.mxu0 0.0
    %4603 = vmatpush.msra.mxu0 0.0
    %4604 = vmatpush.msra.mxu0 0.0
    %v4605 = vand.u32 %v33, 4294901760
    %v4606 = vsub.f32 %v33, %v4605
    %v4607 = vand.u32 %v4606, 4294901760
    %v4608 = vsub.f32 %v4606, %v4607
    %v4609 = vand.u32 %v4608, 4294901760
    %4610 = vmatpush.msra.mxu0 %v4609
    %v4611 = vand.u32 %v32, 4294901760
    %v4612 = vsub.f32 %v32, %v4611
    %v4613 = vand.u32 %v4612, 4294901760
    %v4614 = vsub.f32 %v4612, %v4613
    %v4615 = vand.u32 %v4614, 4294901760
    %4616 = vmatpush.msra.mxu0 %v4615
    %v4617 = vand.u32 %v31, 4294901760
    %v4618 = vsub.f32 %v31, %v4617
    %v4619 = vand.u32 %v4618, 4294901760
    %v4620 = vsub.f32 %v4618, %v4619
    %v4621 = vand.u32 %v4620, 4294901760
    %4622 = vmatpush.msra.mxu0 %v4621
    %v4623 = vand.u32 %v30, 4294901760
    %v4624 = vsub.f32 %v30, %v4623
    %v4625 = vand.u32 %v4624, 4294901760
    %v4626 = vsub.f32 %v4624, %v4625
    %v4627 = vand.u32 %v4626, 4294901760
    %4628 = vmatpush.msra.mxu0 %v4627
    %v4629 = vand.u32 %v4338, 4294901760
    %4630 = vmatmul.f32.gmra.mxu0 %v4629
    %v4631 = vpop.f32.mrf.mxu0
    %v4632 = vadd.f32 %v4591, %v4631
    %4633 = vdwg.mxu0
    %4634 = vmatpush.msra.mxu0 0.0
    %4635 = vmatpush.msra.mxu0 0.0
    %4636 = vmatpush.msra.mxu0 0.0
    %4637 = vmatpush.msra.mxu0 0.0
    %4638 = vmatpush.msra.mxu0 0.0
    %4639 = vmatpush.msra.mxu0 0.0
    %4640 = vmatpush.msra.mxu0 0.0
    %4641 = vmatpush.msra.mxu0 0.0
    %4642 = vmatpush.msra.mxu0 0.0
    %4643 = vmatpush.msra.mxu0 0.0
    %4644 = vmatpush.msra.mxu0 0.0
    %4645 = vmatpush.msra.mxu0 0.0
    %v4646 = vand.u32 %v33, 4294901760
    %v4647 = vsub.f32 %v33, %v4646
    %4648 = vmatpush.msra.mxu0 %v4647
    %v4649 = vand.u32 %v32, 4294901760
    %v4650 = vsub.f32 %v32, %v4649
    %4651 = vmatpush.msra.mxu0 %v4650
    %v4652 = vand.u32 %v31, 4294901760
    %v4653 = vsub.f32 %v31, %v4652
    %4654 = vmatpush.msra.mxu0 %v4653
    %v4655 = vand.u32 %v30, 4294901760
    %v4656 = vsub.f32 %v30, %v4655
    %4657 = vmatpush.msra.mxu0 %v4656
    %v4658 = vand.u32 %v4338, 4294901760
    %v4659 = vsub.f32 %v4338, %v4658
    %4660 = vmatmul.f32.gmra.mxu0 %v4659
    %v4661 = vpop.f32.mrf.mxu0
    %v4662 = vadd.f32 %v4632, %v4661
    %4663 = vdwg.mxu0
    %4664 = vmatpush.msra.mxu0 0.0
    %4665 = vmatpush.msra.mxu0 0.0
    %4666 = vmatpush.msra.mxu0 0.0
    %4667 = vmatpush.msra.mxu0 0.0
    %4668 = vmatpush.msra.mxu0 0.0
    %4669 = vmatpush.msra.mxu0 0.0
    %4670 = vmatpush.msra.mxu0 0.0
    %4671 = vmatpush.msra.mxu0 0.0
    %4672 = vmatpush.msra.mxu0 0.0
    %4673 = vmatpush.msra.mxu0 0.0
    %4674 = vmatpush.msra.mxu0 0.0
    %4675 = vmatpush.msra.mxu0 0.0
    %v4676 = vand.u32 %v33, 4294901760
    %4677 = vmatpush.msra.mxu0 %v4676
    %v4678 = vand.u32 %v32, 4294901760
    %4679 = vmatpush.msra.mxu0 %v4678
    %v4680 = vand.u32 %v31, 4294901760
    %4681 = vmatpush.msra.mxu0 %v4680
    %v4682 = vand.u32 %v30, 4294901760
    %4683 = vmatpush.msra.mxu0 %v4682
    %v4684 = vand.u32 %v4338, 4294901760
    %v4685 = vsub.f32 %v4338, %v4684
    %v4686 = vand.u32 %v4685, 4294901760
    %4687 = vmatmul.f32.gmra.mxu0 %v4686
    %v4688 = vpop.f32.mrf.mxu0
    %v4689 = vadd.f32 %v4662, %v4688
    %4690 = vdwg.mxu0
    %4691 = vmatpush.msra.mxu0 0.0
    %4692 = vmatpush.msra.mxu0 0.0
    %4693 = vmatpush.msra.mxu0 0.0
    %4694 = vmatpush.msra.mxu0 0.0
    %4695 = vmatpush.msra.mxu0 0.0
    %4696 = vmatpush.msra.mxu0 0.0
    %4697 = vmatpush.msra.mxu0 0.0
    %4698 = vmatpush.msra.mxu0 0.0
    %4699 = vmatpush.msra.mxu0 0.0
    %4700 = vmatpush.msra.mxu0 0.0
    %4701 = vmatpush.msra.mxu0 0.0
    %4702 = vmatpush.msra.mxu0 0.0
    %v4703 = vand.u32 %v33, 4294901760
    %v4704 = vsub.f32 %v33, %v4703
    %v4705 = vand.u32 %v4704, 4294901760
    %4706 = vmatpush.msra.mxu0 %v4705
    %v4707 = vand.u32 %v32, 4294901760
    %v4708 = vsub.f32 %v32, %v4707
    %v4709 = vand.u32 %v4708, 4294901760
    %4710 = vmatpush.msra.mxu0 %v4709
    %v4711 = vand.u32 %v31, 4294901760
    %v4712 = vsub.f32 %v31, %v4711
    %v4713 = vand.u32 %v4712, 4294901760
    %4714 = vmatpush.msra.mxu0 %v4713
    %v4715 = vand.u32 %v30, 4294901760
    %v4716 = vsub.f32 %v30, %v4715
    %v4717 = vand.u32 %v4716, 4294901760
    %4718 = vmatpush.msra.mxu0 %v4717
    %v4719 = vand.u32 %v4338, 4294901760
    %4720 = vmatmul.f32.gmra.mxu0 %v4719
    %v4721 = vpop.f32.mrf.mxu0
    %v4722 = vadd.f32 %v4689, %v4721
    %4723 = vdwg.mxu0
    %4724 = vmatpush.msra.mxu0 0.0
    %4725 = vmatpush.msra.mxu0 0.0
    %4726 = vmatpush.msra.mxu0 0.0
    %4727 = vmatpush.msra.mxu0 0.0
    %4728 = vmatpush.msra.mxu0 0.0
    %4729 = vmatpush.msra.mxu0 0.0
    %4730 = vmatpush.msra.mxu0 0.0
    %4731 = vmatpush.msra.mxu0 0.0
    %4732 = vmatpush.msra.mxu0 0.0
    %4733 = vmatpush.msra.mxu0 0.0
    %4734 = vmatpush.msra.mxu0 0.0
    %4735 = vmatpush.msra.mxu0 0.0
    %v4736 = vand.u32 %v33, 4294901760
    %4737 = vmatpush.msra.mxu0 %v4736
    %v4738 = vand.u32 %v32, 4294901760
    %4739 = vmatpush.msra.mxu0 %v4738
    %v4740 = vand.u32 %v31, 4294901760
    %4741 = vmatpush.msra.mxu0 %v4740
    %v4742 = vand.u32 %v30, 4294901760
    %4743 = vmatpush.msra.mxu0 %v4742
    %v4744 = vand.u32 %v4338, 4294901760
    %4745 = vmatmul.f32.gmra.mxu0 %v4744
    %v4746 = vpop.f32.mrf.mxu0
    %v4747 = vadd.f32 %v4722, %v4746
    %4748 = vdwg.mxu0
    %4750 = vrot.lane.b32.xlu0 %v4563, 96
    %v4751 = vpop.permute.xlu0 %4750
    %v4752 = vsel %vm34, %v4751, 0
    %4754 = vmatpush.msra.mxu0 0.0
    %4755 = vmatpush.msra.mxu0 0.0
    %4756 = vmatpush.msra.mxu0 0.0
    %4757 = vmatpush.msra.mxu0 0.0
    %4758 = vmatpush.msra.mxu0 0.0
    %4759 = vmatpush.msra.mxu0 0.0
    %4760 = vmatpush.msra.mxu0 0.0
    %4761 = vmatpush.msra.mxu0 0.0
    %4762 = vmatpush.msra.mxu0 0.0
    %4763 = vmatpush.msra.mxu0 0.0
    %4764 = vmatpush.msra.mxu0 0.0
    %4765 = vmatpush.msra.mxu0 0.0
    %v4766 = vand.u32 %v226, 4294901760
    %4767 = vmatpush.msra.mxu0 %v4766
    %v4768 = vand.u32 %v225, 4294901760
    %4769 = vmatpush.msra.mxu0 %v4768
    %v4770 = vand.u32 %v224, 4294901760
    %4771 = vmatpush.msra.mxu0 %v4770
    %v4772 = vand.u32 %v223, 4294901760
    %4773 = vmatpush.msra.mxu0 %v4772
    %v4774 = vand.u32 %v4752, 4294901760
    %v4775 = vsub.f32 %v4752, %v4774
    %v4776 = vand.u32 %v4775, 4294901760
    %v4777 = vsub.f32 %v4775, %v4776
    %v4778 = vand.u32 %v4777, 4294901760
    %4779 = vmatmul.f32.gmra.mxu0 %v4778
    %v4780 = vpop.f32.mrf.mxu0
    %v4781 = vadd.f32 0.0, %v4780
    %4782 = vdwg.mxu0
    %4783 = vmatpush.msra.mxu0 0.0
    %4784 = vmatpush.msra.mxu0 0.0
    %4785 = vmatpush.msra.mxu0 0.0
    %4786 = vmatpush.msra.mxu0 0.0
    %4787 = vmatpush.msra.mxu0 0.0
    %4788 = vmatpush.msra.mxu0 0.0
    %4789 = vmatpush.msra.mxu0 0.0
    %4790 = vmatpush.msra.mxu0 0.0
    %4791 = vmatpush.msra.mxu0 0.0
    %4792 = vmatpush.msra.mxu0 0.0
    %4793 = vmatpush.msra.mxu0 0.0
    %4794 = vmatpush.msra.mxu0 0.0
    %v4795 = vand.u32 %v226, 4294901760
    %v4796 = vsub.f32 %v226, %v4795
    %v4797 = vand.u32 %v4796, 4294901760
    %v4798 = vsub.f32 %v4796, %v4797
    %v4799 = vand.u32 %v4798, 4294901760
    %4800 = vmatpush.msra.mxu0 %v4799
    %v4801 = vand.u32 %v225, 4294901760
    %v4802 = vsub.f32 %v225, %v4801
    %v4803 = vand.u32 %v4802, 4294901760
    %v4804 = vsub.f32 %v4802, %v4803
    %v4805 = vand.u32 %v4804, 4294901760
    %4806 = vmatpush.msra.mxu0 %v4805
    %v4807 = vand.u32 %v224, 4294901760
    %v4808 = vsub.f32 %v224, %v4807
    %v4809 = vand.u32 %v4808, 4294901760
    %v4810 = vsub.f32 %v4808, %v4809
    %v4811 = vand.u32 %v4810, 4294901760
    %4812 = vmatpush.msra.mxu0 %v4811
    %v4813 = vand.u32 %v223, 4294901760
    %v4814 = vsub.f32 %v223, %v4813
    %v4815 = vand.u32 %v4814, 4294901760
    %v4816 = vsub.f32 %v4814, %v4815
    %v4817 = vand.u32 %v4816, 4294901760
    %4818 = vmatpush.msra.mxu0 %v4817
    %v4819 = vand.u32 %v4752, 4294901760
    %4820 = vmatmul.f32.gmra.mxu0 %v4819
    %v4821 = vpop.f32.mrf.mxu0
    %v4822 = vadd.f32 %v4781, %v4821
    %4823 = vdwg.mxu0
    %4824 = vmatpush.msra.mxu0 0.0
    %4825 = vmatpush.msra.mxu0 0.0
    %4826 = vmatpush.msra.mxu0 0.0
    %4827 = vmatpush.msra.mxu0 0.0
    %4828 = vmatpush.msra.mxu0 0.0
    %4829 = vmatpush.msra.mxu0 0.0
    %4830 = vmatpush.msra.mxu0 0.0
    %4831 = vmatpush.msra.mxu0 0.0
    %4832 = vmatpush.msra.mxu0 0.0
    %4833 = vmatpush.msra.mxu0 0.0
    %4834 = vmatpush.msra.mxu0 0.0
    %4835 = vmatpush.msra.mxu0 0.0
    %v4836 = vand.u32 %v226, 4294901760
    %v4837 = vsub.f32 %v226, %v4836
    %4838 = vmatpush.msra.mxu0 %v4837
    %v4839 = vand.u32 %v225, 4294901760
    %v4840 = vsub.f32 %v225, %v4839
    %4841 = vmatpush.msra.mxu0 %v4840
    %v4842 = vand.u32 %v224, 4294901760
    %v4843 = vsub.f32 %v224, %v4842
    %4844 = vmatpush.msra.mxu0 %v4843
    %v4845 = vand.u32 %v223, 4294901760
    %v4846 = vsub.f32 %v223, %v4845
    %4847 = vmatpush.msra.mxu0 %v4846
    %v4848 = vand.u32 %v4752, 4294901760
    %v4849 = vsub.f32 %v4752, %v4848
    %4850 = vmatmul.f32.gmra.mxu0 %v4849
    %v4851 = vpop.f32.mrf.mxu0
    %v4852 = vadd.f32 %v4822, %v4851
    %4853 = vdwg.mxu0
    %4854 = vmatpush.msra.mxu0 0.0
    %4855 = vmatpush.msra.mxu0 0.0
    %4856 = vmatpush.msra.mxu0 0.0
    %4857 = vmatpush.msra.mxu0 0.0
    %4858 = vmatpush.msra.mxu0 0.0
    %4859 = vmatpush.msra.mxu0 0.0
    %4860 = vmatpush.msra.mxu0 0.0
    %4861 = vmatpush.msra.mxu0 0.0
    %4862 = vmatpush.msra.mxu0 0.0
    %4863 = vmatpush.msra.mxu0 0.0
    %4864 = vmatpush.msra.mxu0 0.0
    %4865 = vmatpush.msra.mxu0 0.0
    %v4866 = vand.u32 %v226, 4294901760
    %4867 = vmatpush.msra.mxu0 %v4866
    %v4868 = vand.u32 %v225, 4294901760
    %4869 = vmatpush.msra.mxu0 %v4868
    %v4870 = vand.u32 %v224, 4294901760
    %4871 = vmatpush.msra.mxu0 %v4870
    %v4872 = vand.u32 %v223, 4294901760
    %4873 = vmatpush.msra.mxu0 %v4872
    %v4874 = vand.u32 %v4752, 4294901760
    %v4875 = vsub.f32 %v4752, %v4874
    %v4876 = vand.u32 %v4875, 4294901760
    %4877 = vmatmul.f32.gmra.mxu0 %v4876
    %v4878 = vpop.f32.mrf.mxu0
    %v4879 = vadd.f32 %v4852, %v4878
    %4880 = vdwg.mxu0
    %4881 = vmatpush.msra.mxu0 0.0
    %4882 = vmatpush.msra.mxu0 0.0
    %4883 = vmatpush.msra.mxu0 0.0
    %4884 = vmatpush.msra.mxu0 0.0
    %4885 = vmatpush.msra.mxu0 0.0
    %4886 = vmatpush.msra.mxu0 0.0
    %4887 = vmatpush.msra.mxu0 0.0
    %4888 = vmatpush.msra.mxu0 0.0
    %4889 = vmatpush.msra.mxu0 0.0
    %4890 = vmatpush.msra.mxu0 0.0
    %4891 = vmatpush.msra.mxu0 0.0
    %4892 = vmatpush.msra.mxu0 0.0
    %v4893 = vand.u32 %v226, 4294901760
    %v4894 = vsub.f32 %v226, %v4893
    %v4895 = vand.u32 %v4894, 4294901760
    %4896 = vmatpush.msra.mxu0 %v4895
    %v4897 = vand.u32 %v225, 4294901760
    %v4898 = vsub.f32 %v225, %v4897
    %v4899 = vand.u32 %v4898, 4294901760
    %4900 = vmatpush.msra.mxu0 %v4899
    %v4901 = vand.u32 %v224, 4294901760
    %v4902 = vsub.f32 %v224, %v4901
    %v4903 = vand.u32 %v4902, 4294901760
    %4904 = vmatpush.msra.mxu0 %v4903
    %v4905 = vand.u32 %v223, 4294901760
    %v4906 = vsub.f32 %v223, %v4905
    %v4907 = vand.u32 %v4906, 4294901760
    %4908 = vmatpush.msra.mxu0 %v4907
    %v4909 = vand.u32 %v4752, 4294901760
    %4910 = vmatmul.f32.gmra.mxu0 %v4909
    %v4911 = vpop.f32.mrf.mxu0
    %v4912 = vadd.f32 %v4879, %v4911
    %4913 = vdwg.mxu0
    %4914 = vmatpush.msra.mxu0 0.0
    %4915 = vmatpush.msra.mxu0 0.0
    %4916 = vmatpush.msra.mxu0 0.0
    %4917 = vmatpush.msra.mxu0 0.0
    %4918 = vmatpush.msra.mxu0 0.0
    %4919 = vmatpush.msra.mxu0 0.0
    %4920 = vmatpush.msra.mxu0 0.0
    %4921 = vmatpush.msra.mxu0 0.0
    %4922 = vmatpush.msra.mxu0 0.0
    %4923 = vmatpush.msra.mxu0 0.0
    %4924 = vmatpush.msra.mxu0 0.0
    %4925 = vmatpush.msra.mxu0 0.0
    %v4926 = vand.u32 %v226, 4294901760
    %4927 = vmatpush.msra.mxu0 %v4926
    %v4928 = vand.u32 %v225, 4294901760
    %4929 = vmatpush.msra.mxu0 %v4928
    %v4930 = vand.u32 %v224, 4294901760
    %4931 = vmatpush.msra.mxu0 %v4930
    %v4932 = vand.u32 %v223, 4294901760
    %4933 = vmatpush.msra.mxu0 %v4932
    %v4934 = vand.u32 %v4752, 4294901760
    %4935 = vmatmul.f32.gmra.mxu0 %v4934
    %v4936 = vpop.f32.mrf.mxu0
    %v4937 = vadd.f32 %v4912, %v4936
    %4938 = vdwg.mxu0
    %s4939 = scalar_lea.vmem %s0, 14
    %v4940 = vld [vmem:[%s4939] sm:$0x3]
    %v4941 = vadd.f32 %v4940, %v4747
    %v4942 = vxor.u32 %v4941, 2147483648
    %v4943 = vmul.f32 %v4942, 1.442695
    %v4944 = vpow.pop %v4943
    %v4945 = vadd.f32 %v4944, 1.0
    %v4946 = vrcp.pop %v4945
    %v4947 = vmul.f32 %v4945, %v4946
    %v4948 = vsub.f32 1.0, %v4947
    %v4949 = vmul.f32 %v4946, %v4948
    %v4950 = vadd.f32 %v4946, %v4949
    %vm4951 = vweird.f32 %v4945
    %vm4952 = vweird.f32 %v4946
    %vm4953 = vmor %vm4951, %vm4952
    %v4954 = vsel %vm4953, %v4946, %v4950
    %v4955 = vand.u32 2147483647, %v4945
    %vm4956 = vcmp.eq.f32.partialorder %v4955, 8.507059e+37
    %v4957 = vand.u32 %v4945, 2147483648
    %v4958 = vor.u32 1.1754944e-38, %v4957
    %v4959 = vsel %vm4956, %v4958, %v4954
    %v4960 = vmul.f32 1.0, %v4959
    %4962 = vrot.lane.b32.xlu0 %v4747, 64
    %v4963 = vpop.permute.xlu0 %4962
    %v4965 = vmul.f32 %v4960, %v4963
    %4967 = vrot.lane.b32.xlu0 %v4965, 64
    %v4968 = vpop.permute.xlu0 %4967
    %v4970 = vadd.f32 %v4940, %v4968
    %v4971 = vtanh.pop %v4970
    %v4972 = vsub.f32 1.0, %v4960
    %4974 = vrot.lane.b32.xlu0 %v4971, 96
    %v4975 = vpop.permute.xlu0 %4974
    %v4977 = vmul.f32 %v4972, %v4975
    %v4978 = vmul.f32 %v4960, %v4334
    %v4979 = vadd.f32 %v4977, %v4978
    %4981 = vrot.lane.b32.xlu0 %v4979, 96
    %v4982 = vpop.permute.xlu0 %4981
    %v4983 = vsel %vm34, %v4982, 0
    %4985 = vmatpush.msra.mxu0 0.0
    %4986 = vmatpush.msra.mxu0 0.0
    %4987 = vmatpush.msra.mxu0 0.0
    %4988 = vmatpush.msra.mxu0 0.0
    %4989 = vmatpush.msra.mxu0 0.0
    %4990 = vmatpush.msra.mxu0 0.0
    %4991 = vmatpush.msra.mxu0 0.0
    %4992 = vmatpush.msra.mxu0 0.0
    %4993 = vmatpush.msra.mxu0 0.0
    %4994 = vmatpush.msra.mxu0 0.0
    %4995 = vmatpush.msra.mxu0 0.0
    %4996 = vmatpush.msra.mxu0 0.0
    %v4997 = vand.u32 %v461, 4294901760
    %4998 = vmatpush.msra.mxu0 %v4997
    %v4999 = vand.u32 %v460, 4294901760
    %5000 = vmatpush.msra.mxu0 %v4999
    %v5001 = vand.u32 %v459, 4294901760
    %5002 = vmatpush.msra.mxu0 %v5001
    %v5003 = vand.u32 %v458, 4294901760
    %5004 = vmatpush.msra.mxu0 %v5003
    %v5005 = vand.u32 %v4983, 4294901760
    %v5006 = vsub.f32 %v4983, %v5005
    %v5007 = vand.u32 %v5006, 4294901760
    %v5008 = vsub.f32 %v5006, %v5007
    %v5009 = vand.u32 %v5008, 4294901760
    %5010 = vmatmul.f32.gmra.mxu0 %v5009
    %v5011 = vpop.f32.mrf.mxu0
    %v5012 = vadd.f32 0.0, %v5011
    %5013 = vdwg.mxu0
    %5014 = vmatpush.msra.mxu0 0.0
    %5015 = vmatpush.msra.mxu0 0.0
    %5016 = vmatpush.msra.mxu0 0.0
    %5017 = vmatpush.msra.mxu0 0.0
    %5018 = vmatpush.msra.mxu0 0.0
    %5019 = vmatpush.msra.mxu0 0.0
    %5020 = vmatpush.msra.mxu0 0.0
    %5021 = vmatpush.msra.mxu0 0.0
    %5022 = vmatpush.msra.mxu0 0.0
    %5023 = vmatpush.msra.mxu0 0.0
    %5024 = vmatpush.msra.mxu0 0.0
    %5025 = vmatpush.msra.mxu0 0.0
    %v5026 = vand.u32 %v461, 4294901760
    %v5027 = vsub.f32 %v461, %v5026
    %v5028 = vand.u32 %v5027, 4294901760
    %v5029 = vsub.f32 %v5027, %v5028
    %v5030 = vand.u32 %v5029, 4294901760
    %5031 = vmatpush.msra.mxu0 %v5030
    %v5032 = vand.u32 %v460, 4294901760
    %v5033 = vsub.f32 %v460, %v5032
    %v5034 = vand.u32 %v5033, 4294901760
    %v5035 = vsub.f32 %v5033, %v5034
    %v5036 = vand.u32 %v5035, 4294901760
    %5037 = vmatpush.msra.mxu0 %v5036
    %v5038 = vand.u32 %v459, 4294901760
    %v5039 = vsub.f32 %v459, %v5038
    %v5040 = vand.u32 %v5039, 4294901760
    %v5041 = vsub.f32 %v5039, %v5040
    %v5042 = vand.u32 %v5041, 4294901760
    %5043 = vmatpush.msra.mxu0 %v5042
    %v5044 = vand.u32 %v458, 4294901760
    %v5045 = vsub.f32 %v458, %v5044
    %v5046 = vand.u32 %v5045, 4294901760
    %v5047 = vsub.f32 %v5045, %v5046
    %v5048 = vand.u32 %v5047, 4294901760
    %5049 = vmatpush.msra.mxu0 %v5048
    %v5050 = vand.u32 %v4983, 4294901760
    %5051 = vmatmul.f32.gmra.mxu0 %v5050
    %v5052 = vpop.f32.mrf.mxu0
    %v5053 = vadd.f32 %v5012, %v5052
    %5054 = vdwg.mxu0
    %5055 = vmatpush.msra.mxu0 0.0
    %5056 = vmatpush.msra.mxu0 0.0
    %5057 = vmatpush.msra.mxu0 0.0
    %5058 = vmatpush.msra.mxu0 0.0
    %5059 = vmatpush.msra.mxu0 0.0
    %5060 = vmatpush.msra.mxu0 0.0
    %5061 = vmatpush.msra.mxu0 0.0
    %5062 = vmatpush.msra.mxu0 0.0
    %5063 = vmatpush.msra.mxu0 0.0
    %5064 = vmatpush.msra.mxu0 0.0
    %5065 = vmatpush.msra.mxu0 0.0
    %5066 = vmatpush.msra.mxu0 0.0
    %v5067 = vand.u32 %v461, 4294901760
    %v5068 = vsub.f32 %v461, %v5067
    %5069 = vmatpush.msra.mxu0 %v5068
    %v5070 = vand.u32 %v460, 4294901760
    %v5071 = vsub.f32 %v460, %v5070
    %5072 = vmatpush.msra.mxu0 %v5071
    %v5073 = vand.u32 %v459, 4294901760
    %v5074 = vsub.f32 %v459, %v5073
    %5075 = vmatpush.msra.mxu0 %v5074
    %v5076 = vand.u32 %v458, 4294901760
    %v5077 = vsub.f32 %v458, %v5076
    %5078 = vmatpush.msra.mxu0 %v5077
    %v5079 = vand.u32 %v4983, 4294901760
    %v5080 = vsub.f32 %v4983, %v5079
    %5081 = vmatmul.f32.gmra.mxu0 %v5080
    %v5082 = vpop.f32.mrf.mxu0
    %v5083 = vadd.f32 %v5053, %v5082
    %5084 = vdwg.mxu0
    %5085 = vmatpush.msra.mxu0 0.0
    %5086 = vmatpush.msra.mxu0 0.0
    %5087 = vmatpush.msra.mxu0 0.0
    %5088 = vmatpush.msra.mxu0 0.0
    %5089 = vmatpush.msra.mxu0 0.0
    %5090 = vmatpush.msra.mxu0 0.0
    %5091 = vmatpush.msra.mxu0 0.0
    %5092 = vmatpush.msra.mxu0 0.0
    %5093 = vmatpush.msra.mxu0 0.0
    %5094 = vmatpush.msra.mxu0 0.0
    %5095 = vmatpush.msra.mxu0 0.0
    %5096 = vmatpush.msra.mxu0 0.0
    %v5097 = vand.u32 %v461, 4294901760
    %5098 = vmatpush.msra.mxu0 %v5097
    %v5099 = vand.u32 %v460, 4294901760
    %5100 = vmatpush.msra.mxu0 %v5099
    %v5101 = vand.u32 %v459, 4294901760
    %5102 = vmatpush.msra.mxu0 %v5101
    %v5103 = vand.u32 %v458, 4294901760
    %5104 = vmatpush.msra.mxu0 %v5103
    %v5105 = vand.u32 %v4983, 4294901760
    %v5106 = vsub.f32 %v4983, %v5105
    %v5107 = vand.u32 %v5106, 4294901760
    %5108 = vmatmul.f32.gmra.mxu0 %v5107
    %v5109 = vpop.f32.mrf.mxu0
    %v5110 = vadd.f32 %v5083, %v5109
    %5111 = vdwg.mxu0
    %5112 = vmatpush.msra.mxu0 0.0
    %5113 = vmatpush.msra.mxu0 0.0
    %5114 = vmatpush.msra.mxu0 0.0
    %5115 = vmatpush.msra.mxu0 0.0
    %5116 = vmatpush.msra.mxu0 0.0
    %5117 = vmatpush.msra.mxu0 0.0
    %5118 = vmatpush.msra.mxu0 0.0
    %5119 = vmatpush.msra.mxu0 0.0
    %5120 = vmatpush.msra.mxu0 0.0
    %5121 = vmatpush.msra.mxu0 0.0
    %5122 = vmatpush.msra.mxu0 0.0
    %5123 = vmatpush.msra.mxu0 0.0
    %v5124 = vand.u32 %v461, 4294901760
    %v5125 = vsub.f32 %v461, %v5124
    %v5126 = vand.u32 %v5125, 4294901760
    %5127 = vmatpush.msra.mxu0 %v5126
    %v5128 = vand.u32 %v460, 4294901760
    %v5129 = vsub.f32 %v460, %v5128
    %v5130 = vand.u32 %v5129, 4294901760
    %5131 = vmatpush.msra.mxu0 %v5130
    %v5132 = vand.u32 %v459, 4294901760
    %v5133 = vsub.f32 %v459, %v5132
    %v5134 = vand.u32 %v5133, 4294901760
    %5135 = vmatpush.msra.mxu0 %v5134
    %v5136 = vand.u32 %v458, 4294901760
    %v5137 = vsub.f32 %v458, %v5136
    %v5138 = vand.u32 %v5137, 4294901760
    %5139 = vmatpush.msra.mxu0 %v5138
    %v5140 = vand.u32 %v4983, 4294901760
    %5141 = vmatmul.f32.gmra.mxu0 %v5140
    %v5142 = vpop.f32.mrf.mxu0
    %v5143 = vadd.f32 %v5110, %v5142
    %5144 = vdwg.mxu0
    %5145 = vmatpush.msra.mxu0 0.0
    %5146 = vmatpush.msra.mxu0 0.0
    %5147 = vmatpush.msra.mxu0 0.0
    %5148 = vmatpush.msra.mxu0 0.0
    %5149 = vmatpush.msra.mxu0 0.0
    %5150 = vmatpush.msra.mxu0 0.0
    %5151 = vmatpush.msra.mxu0 0.0
    %5152 = vmatpush.msra.mxu0 0.0
    %5153 = vmatpush.msra.mxu0 0.0
    %5154 = vmatpush.msra.mxu0 0.0
    %5155 = vmatpush.msra.mxu0 0.0
    %5156 = vmatpush.msra.mxu0 0.0
    %v5157 = vand.u32 %v461, 4294901760
    %5158 = vmatpush.msra.mxu0 %v5157
    %v5159 = vand.u32 %v460, 4294901760
    %5160 = vmatpush.msra.mxu0 %v5159
    %v5161 = vand.u32 %v459, 4294901760
    %5162 = vmatpush.msra.mxu0 %v5161
    %v5163 = vand.u32 %v458, 4294901760
    %5164 = vmatpush.msra.mxu0 %v5163
    %v5165 = vand.u32 %v4983, 4294901760
    %5166 = vmatmul.f32.gmra.mxu0 %v5165
    %v5167 = vpop.f32.mrf.mxu0
    %v5168 = vadd.f32 %v5143, %v5167
    %5169 = vdwg.mxu0
    %v5170 = vadd.f32 %v5168, %v4937
    %v5171 = vxor.u32 %v5170, 2147483648
    %v5172 = vmul.f32 %v5171, 1.442695
    %v5173 = vpow.pop %v5172
    %v5174 = vadd.f32 %v5173, 1.0
    %v5175 = vrcp.pop %v5174
    %v5176 = vmul.f32 %v5174, %v5175
    %v5177 = vsub.f32 1.0, %v5176
    %v5178 = vmul.f32 %v5175, %v5177
    %v5179 = vadd.f32 %v5175, %v5178
    %vm5180 = vweird.f32 %v5174
    %vm5181 = vweird.f32 %v5175
    %vm5182 = vmor %vm5180, %vm5181
    %v5183 = vsel %vm5182, %v5175, %v5179
    %v5184 = vand.u32 2147483647, %v5174
    %vm5185 = vcmp.eq.f32.partialorder %v5184, 8.507059e+37
    %v5186 = vand.u32 %v5174, 2147483648
    %v5187 = vor.u32 1.1754944e-38, %v5186
    %v5188 = vsel %vm5185, %v5187, %v5183
    %v5189 = vmul.f32 1.0, %v5188
    %5191 = vrot.lane.b32.xlu0 %v4937, 64
    %v5192 = vpop.permute.xlu0 %5191
    %v5194 = vmul.f32 %v5189, %v5192
    %5196 = vrot.lane.b32.xlu0 %v5194, 64
    %v5197 = vpop.permute.xlu0 %5196
    %v5199 = vadd.f32 %v5168, %v5197
    %v5200 = vtanh.pop %v5199
    %v5201 = vsub.f32 1.0, %v5189
    %5203 = vrot.lane.b32.xlu0 %v5200, 96
    %v5204 = vpop.permute.xlu0 %5203
    %v5206 = vmul.f32 %v5201, %v5204
    %v5207 = vmul.f32 %v5189, %v4563
    %v5208 = vadd.f32 %v5206, %v5207
    %vm5210 = vcmask 254976
    %5211 = vst.msk [vmem:[#allocation2] sm:$0x3] %vm5210, %v4982
    %5213 = vrot.lane.b32.xlu0 %v5208, 96
    %v5214 = vpop.permute.xlu0 %5213
    %5216 = vst.msk [vmem:[#allocation3] sm:$0x3] %vm5210, %v5214
    // Predicated region
    $region26: #{deep_lstm_forward.1} parent=1 // pred_check
      %p5217 = pneg %p21
    $region27: #{deep_lstm_forward.1} parent=1 // pred_check_branch
      %5219 = sbr.rel (%p5217) target = $region29
    $region28: #{deep_lstm_forward.1} parent=1 // pred_region
      %v5220 = vlaneseq
      %v5221 = vshrl.u32 %v5220, 7
      %v5222 = vlaneseq
      %v5223 = vand.u32 %v5222, 127
      %v5224 = vmul.u32 %v5221, 2
      %vm5225 = vcmp.lt.s32.totalorder %v5224, 2
      %vm5226 = vcmp.eq.s32.totalorder %v5223, %v5224
      %vm5227 = vmand %vm5225, %vm5226
      %v5228 = vsel %vm5227, 1, 0
      %v5229 = vcvt.s32.f32 %v5228
      %vm5230 = vcmp.ge.s32.totalorder %v5224, 2
      %v5231 = vsub.s32 %v5224, 2
      %vm5232 = vcmp.eq.s32.totalorder %v5223, %v5231
      %vm5233 = vmand %vm5230, %vm5232
      %v5234 = vsel %vm5233, 1, 0
      %v5235 = vcvt.s32.f32 %v5234
      %vm5236 = vcmask 15360
      %v5238 = vsel %vm5236, %v5235, 0
      %vm5240 = vcmask 1041408
      %v5241 = vsel %vm5240, %v5214, 0
      %5243 = vmatpush.msra.mxu0 0.0
      %5244 = vmatpush.msra.mxu0 0.0
      %5245 = vmatpush.msra.mxu0 0.0
      %5246 = vmatpush.msra.mxu0 0.0
      %5247 = vmatpush.msra.mxu0 0.0
      %5248 = vmatpush.msra.mxu0 0.0
      %5249 = vmatpush.msra.mxu0 0.0
      %5250 = vmatpush.msra.mxu0 0.0
      %5251 = vmatpush.msra.mxu0 0.0
      %5252 = vmatpush.msra.mxu0 0.0
      %5253 = vmatpush.msra.mxu0 0.0
      %5254 = vmatpush.msra.mxu0 0.0
      %5255 = vmatpush.msra.mxu0 0.0
      %5256 = vmatpush.msra.mxu0 0.0
      %5257 = vmatpush.msra.mxu0 0.0
      %v5258 = vand.u32 %v5241, 4294901760
      %5259 = vmatpush.msra.mxu0 %v5258
      %v5260 = vand.u32 %v5238, 4294901760
      %v5261 = vsub.f32 %v5238, %v5260
      %v5262 = vand.u32 %v5261, 4294901760
      %v5263 = vsub.f32 %v5261, %v5262
      %v5264 = vand.u32 %v5263, 4294901760
      %5265 = vmatmul.f32.gmra.mxu0 %v5264
      %v5266 = vpop.f32.mrf.mxu0
      %v5267 = vadd.f32 0.0, %v5266
      %5268 = vdwg.mxu0
      %5269 = vmatpush.msra.mxu0 0.0
      %5270 = vmatpush.msra.mxu0 0.0
      %5271 = vmatpush.msra.mxu0 0.0
      %5272 = vmatpush.msra.mxu0 0.0
      %5273 = vmatpush.msra.mxu0 0.0
      %5274 = vmatpush.msra.mxu0 0.0
      %5275 = vmatpush.msra.mxu0 0.0
      %5276 = vmatpush.msra.mxu0 0.0
      %5277 = vmatpush.msra.mxu0 0.0
      %5278 = vmatpush.msra.mxu0 0.0
      %5279 = vmatpush.msra.mxu0 0.0
      %5280 = vmatpush.msra.mxu0 0.0
      %5281 = vmatpush.msra.mxu0 0.0
      %5282 = vmatpush.msra.mxu0 0.0
      %5283 = vmatpush.msra.mxu0 0.0
      %v5284 = vand.u32 %v5241, 4294901760
      %v5285 = vsub.f32 %v5241, %v5284
      %v5286 = vand.u32 %v5285, 4294901760
      %v5287 = vsub.f32 %v5285, %v5286
      %v5288 = vand.u32 %v5287, 4294901760
      %5289 = vmatpush.msra.mxu0 %v5288
      %v5290 = vand.u32 %v5238, 4294901760
      %5291 = vmatmul.f32.gmra.mxu0 %v5290
      %v5292 = vpop.f32.mrf.mxu0
      %v5293 = vadd.f32 %v5267, %v5292
      %5294 = vdwg.mxu0
      %5295 = vmatpush.msra.mxu0 0.0
      %5296 = vmatpush.msra.mxu0 0.0
      %5297 = vmatpush.msra.mxu0 0.0
      %5298 = vmatpush.msra.mxu0 0.0
      %5299 = vmatpush.msra.mxu0 0.0
      %5300 = vmatpush.msra.mxu0 0.0
      %5301 = vmatpush.msra.mxu0 0.0
      %5302 = vmatpush.msra.mxu0 0.0
      %5303 = vmatpush.msra.mxu0 0.0
      %5304 = vmatpush.msra.mxu0 0.0
      %5305 = vmatpush.msra.mxu0 0.0
      %5306 = vmatpush.msra.mxu0 0.0
      %5307 = vmatpush.msra.mxu0 0.0
      %5308 = vmatpush.msra.mxu0 0.0
      %5309 = vmatpush.msra.mxu0 0.0
      %v5310 = vand.u32 %v5241, 4294901760
      %v5311 = vsub.f32 %v5241, %v5310
      %5312 = vmatpush.msra.mxu0 %v5311
      %v5313 = vand.u32 %v5238, 4294901760
      %v5314 = vsub.f32 %v5238, %v5313
      %5315 = vmatmul.f32.gmra.mxu0 %v5314
      %v5316 = vpop.f32.mrf.mxu0
      %v5317 = vadd.f32 %v5293, %v5316
      %5318 = vdwg.mxu0
      %5319 = vmatpush.msra.mxu0 0.0
      %5320 = vmatpush.msra.mxu0 0.0
      %5321 = vmatpush.msra.mxu0 0.0
      %5322 = vmatpush.msra.mxu0 0.0
      %5323 = vmatpush.msra.mxu0 0.0
      %5324 = vmatpush.msra.mxu0 0.0
      %5325 = vmatpush.msra.mxu0 0.0
      %5326 = vmatpush.msra.mxu0 0.0
      %5327 = vmatpush.msra.mxu0 0.0
      %5328 = vmatpush.msra.mxu0 0.0
      %5329 = vmatpush.msra.mxu0 0.0
      %5330 = vmatpush.msra.mxu0 0.0
      %5331 = vmatpush.msra.mxu0 0.0
      %5332 = vmatpush.msra.mxu0 0.0
      %5333 = vmatpush.msra.mxu0 0.0
      %v5334 = vand.u32 %v5241, 4294901760
      %5335 = vmatpush.msra.mxu0 %v5334
      %v5336 = vand.u32 %v5238, 4294901760
      %v5337 = vsub.f32 %v5238, %v5336
      %v5338 = vand.u32 %v5337, 4294901760
      %5339 = vmatmul.f32.gmra.mxu0 %v5338
      %v5340 = vpop.f32.mrf.mxu0
      %v5341 = vadd.f32 %v5317, %v5340
      %5342 = vdwg.mxu0
      %5343 = vmatpush.msra.mxu0 0.0
      %5344 = vmatpush.msra.mxu0 0.0
      %5345 = vmatpush.msra.mxu0 0.0
      %5346 = vmatpush.msra.mxu0 0.0
      %5347 = vmatpush.msra.mxu0 0.0
      %5348 = vmatpush.msra.mxu0 0.0
      %5349 = vmatpush.msra.mxu0 0.0
      %5350 = vmatpush.msra.mxu0 0.0
      %5351 = vmatpush.msra.mxu0 0.0
      %5352 = vmatpush.msra.mxu0 0.0
      %5353 = vmatpush.msra.mxu0 0.0
      %5354 = vmatpush.msra.mxu0 0.0
      %5355 = vmatpush.msra.mxu0 0.0
      %5356 = vmatpush.msra.mxu0 0.0
      %5357 = vmatpush.msra.mxu0 0.0
      %v5358 = vand.u32 %v5241, 4294901760
      %v5359 = vsub.f32 %v5241, %v5358
      %v5360 = vand.u32 %v5359, 4294901760
      %5361 = vmatpush.msra.mxu0 %v5360
      %v5362 = vand.u32 %v5238, 4294901760
      %5363 = vmatmul.f32.gmra.mxu0 %v5362
      %v5364 = vpop.f32.mrf.mxu0
      %v5365 = vadd.f32 %v5341, %v5364
      %5366 = vdwg.mxu0
      %5367 = vmatpush.msra.mxu0 0.0
      %5368 = vmatpush.msra.mxu0 0.0
      %5369 = vmatpush.msra.mxu0 0.0
      %5370 = vmatpush.msra.mxu0 0.0
      %5371 = vmatpush.msra.mxu0 0.0
      %5372 = vmatpush.msra.mxu0 0.0
      %5373 = vmatpush.msra.mxu0 0.0
      %5374 = vmatpush.msra.mxu0 0.0
      %5375 = vmatpush.msra.mxu0 0.0
      %5376 = vmatpush.msra.mxu0 0.0
      %5377 = vmatpush.msra.mxu0 0.0
      %5378 = vmatpush.msra.mxu0 0.0
      %5379 = vmatpush.msra.mxu0 0.0
      %5380 = vmatpush.msra.mxu0 0.0
      %5381 = vmatpush.msra.mxu0 0.0
      %v5382 = vand.u32 %v5241, 4294901760
      %5383 = vmatpush.msra.mxu0 %v5382
      %v5384 = vand.u32 %v5238, 4294901760
      %5385 = vmatmul.f32.gmra.mxu0 %v5384
      %v5386 = vpop.f32.mrf.mxu0
      %v5387 = vadd.f32 %v5365, %v5386
      %5388 = vdwg.mxu0
      %v5390 = vsel %vm5236, %v5229, 0
      %v5392 = vsel %vm5240, %v4982, 0
      %5394 = vmatpush.msra.mxu0 0.0
      %5395 = vmatpush.msra.mxu0 0.0
      %5396 = vmatpush.msra.mxu0 0.0
      %5397 = vmatpush.msra.mxu0 0.0
      %5398 = vmatpush.msra.mxu0 0.0
      %5399 = vmatpush.msra.mxu0 0.0
      %5400 = vmatpush.msra.mxu0 0.0
      %5401 = vmatpush.msra.mxu0 0.0
      %5402 = vmatpush.msra.mxu0 0.0
      %5403 = vmatpush.msra.mxu0 0.0
      %5404 = vmatpush.msra.mxu0 0.0
      %5405 = vmatpush.msra.mxu0 0.0
      %5406 = vmatpush.msra.mxu0 0.0
      %5407 = vmatpush.msra.mxu0 0.0
      %5408 = vmatpush.msra.mxu0 0.0
      %v5409 = vand.u32 %v5392, 4294901760
      %5410 = vmatpush.msra.mxu0 %v5409
      %v5411 = vand.u32 %v5390, 4294901760
      %v5412 = vsub.f32 %v5390, %v5411
      %v5413 = vand.u32 %v5412, 4294901760
      %v5414 = vsub.f32 %v5412, %v5413
      %v5415 = vand.u32 %v5414, 4294901760
      %5416 = vmatmul.f32.gmra.mxu0 %v5415
      %v5417 = vpop.f32.mrf.mxu0
      %v5418 = vadd.f32 %v5387, %v5417
      %5419 = vdwg.mxu0
      %5420 = vmatpush.msra.mxu0 0.0
      %5421 = vmatpush.msra.mxu0 0.0
      %5422 = vmatpush.msra.mxu0 0.0
      %5423 = vmatpush.msra.mxu0 0.0
      %5424 = vmatpush.msra.mxu0 0.0
      %5425 = vmatpush.msra.mxu0 0.0
      %5426 = vmatpush.msra.mxu0 0.0
      %5427 = vmatpush.msra.mxu0 0.0
      %5428 = vmatpush.msra.mxu0 0.0
      %5429 = vmatpush.msra.mxu0 0.0
      %5430 = vmatpush.msra.mxu0 0.0
      %5431 = vmatpush.msra.mxu0 0.0
      %5432 = vmatpush.msra.mxu0 0.0
      %5433 = vmatpush.msra.mxu0 0.0
      %5434 = vmatpush.msra.mxu0 0.0
      %v5435 = vand.u32 %v5392, 4294901760
      %v5436 = vsub.f32 %v5392, %v5435
      %v5437 = vand.u32 %v5436, 4294901760
      %v5438 = vsub.f32 %v5436, %v5437
      %v5439 = vand.u32 %v5438, 4294901760
      %5440 = vmatpush.msra.mxu0 %v5439
      %v5441 = vand.u32 %v5390, 4294901760
      %5442 = vmatmul.f32.gmra.mxu0 %v5441
      %v5443 = vpop.f32.mrf.mxu0
      %v5444 = vadd.f32 %v5418, %v5443
      %5445 = vdwg.mxu0
      %5446 = vmatpush.msra.mxu0 0.0
      %5447 = vmatpush.msra.mxu0 0.0
      %5448 = vmatpush.msra.mxu0 0.0
      %5449 = vmatpush.msra.mxu0 0.0
      %5450 = vmatpush.msra.mxu0 0.0
      %5451 = vmatpush.msra.mxu0 0.0
      %5452 = vmatpush.msra.mxu0 0.0
      %5453 = vmatpush.msra.mxu0 0.0
      %5454 = vmatpush.msra.mxu0 0.0
      %5455 = vmatpush.msra.mxu0 0.0
      %5456 = vmatpush.msra.mxu0 0.0
      %5457 = vmatpush.msra.mxu0 0.0
      %5458 = vmatpush.msra.mxu0 0.0
      %5459 = vmatpush.msra.mxu0 0.0
      %5460 = vmatpush.msra.mxu0 0.0
      %v5461 = vand.u32 %v5392, 4294901760
      %v5462 = vsub.f32 %v5392, %v5461
      %5463 = vmatpush.msra.mxu0 %v5462
      %v5464 = vand.u32 %v5390, 4294901760
      %v5465 = vsub.f32 %v5390, %v5464
      %5466 = vmatmul.f32.gmra.mxu0 %v5465
      %v5467 = vpop.f32.mrf.mxu0
      %v5468 = vadd.f32 %v5444, %v5467
      %5469 = vdwg.mxu0
      %5470 = vmatpush.msra.mxu0 0.0
      %5471 = vmatpush.msra.mxu0 0.0
      %5472 = vmatpush.msra.mxu0 0.0
      %5473 = vmatpush.msra.mxu0 0.0
      %5474 = vmatpush.msra.mxu0 0.0
      %5475 = vmatpush.msra.mxu0 0.0
      %5476 = vmatpush.msra.mxu0 0.0
      %5477 = vmatpush.msra.mxu0 0.0
      %5478 = vmatpush.msra.mxu0 0.0
      %5479 = vmatpush.msra.mxu0 0.0
      %5480 = vmatpush.msra.mxu0 0.0
      %5481 = vmatpush.msra.mxu0 0.0
      %5482 = vmatpush.msra.mxu0 0.0
      %5483 = vmatpush.msra.mxu0 0.0
      %5484 = vmatpush.msra.mxu0 0.0
      %v5485 = vand.u32 %v5392, 4294901760
      %5486 = vmatpush.msra.mxu0 %v5485
      %v5487 = vand.u32 %v5390, 4294901760
      %v5488 = vsub.f32 %v5390, %v5487
      %v5489 = vand.u32 %v5488, 4294901760
      %5490 = vmatmul.f32.gmra.mxu0 %v5489
      %v5491 = vpop.f32.mrf.mxu0
      %v5492 = vadd.f32 %v5468, %v5491
      %5493 = vdwg.mxu0
      %5494 = vmatpush.msra.mxu0 0.0
      %5495 = vmatpush.msra.mxu0 0.0
      %5496 = vmatpush.msra.mxu0 0.0
      %5497 = vmatpush.msra.mxu0 0.0
      %5498 = vmatpush.msra.mxu0 0.0
      %5499 = vmatpush.msra.mxu0 0.0
      %5500 = vmatpush.msra.mxu0 0.0
      %5501 = vmatpush.msra.mxu0 0.0
      %5502 = vmatpush.msra.mxu0 0.0
      %5503 = vmatpush.msra.mxu0 0.0
      %5504 = vmatpush.msra.mxu0 0.0
      %5505 = vmatpush.msra.mxu0 0.0
      %5506 = vmatpush.msra.mxu0 0.0
      %5507 = vmatpush.msra.mxu0 0.0
      %5508 = vmatpush.msra.mxu0 0.0
      %v5509 = vand.u32 %v5392, 4294901760
      %v5510 = vsub.f32 %v5392, %v5509
      %v5511 = vand.u32 %v5510, 4294901760
      %5512 = vmatpush.msra.mxu0 %v5511
      %v5513 = vand.u32 %v5390, 4294901760
      %5514 = vmatmul.f32.gmra.mxu0 %v5513
      %v5515 = vpop.f32.mrf.mxu0
      %v5516 = vadd.f32 %v5492, %v5515
      %5517 = vdwg.mxu0
      %5518 = vmatpush.msra.mxu0 0.0
      %5519 = vmatpush.msra.mxu0 0.0
      %5520 = vmatpush.msra.mxu0 0.0
      %5521 = vmatpush.msra.mxu0 0.0
      %5522 = vmatpush.msra.mxu0 0.0
      %5523 = vmatpush.msra.mxu0 0.0
      %5524 = vmatpush.msra.mxu0 0.0
      %5525 = vmatpush.msra.mxu0 0.0
      %5526 = vmatpush.msra.mxu0 0.0
      %5527 = vmatpush.msra.mxu0 0.0
      %5528 = vmatpush.msra.mxu0 0.0
      %5529 = vmatpush.msra.mxu0 0.0
      %5530 = vmatpush.msra.mxu0 0.0
      %5531 = vmatpush.msra.mxu0 0.0
      %5532 = vmatpush.msra.mxu0 0.0
      %v5533 = vand.u32 %v5392, 4294901760
      %5534 = vmatpush.msra.mxu0 %v5533
      %v5535 = vand.u32 %v5390, 4294901760
      %5536 = vmatmul.f32.gmra.mxu0 %v5535
      %v5537 = vpop.f32.mrf.mxu0
      %v5538 = vadd.f32 %v5516, %v5537
      %5539 = vdwg.mxu0
      %v5540 = vadd.s32 %v5224, 1
      %vm5541 = vcmp.lt.s32.totalorder %v5540, 2
      %vm5542 = vcmp.eq.s32.totalorder %v5223, %v5540
      %vm5543 = vmand %vm5541, %vm5542
      %v5544 = vsel %vm5543, 1, 0
      %v5545 = vcvt.s32.f32 %v5544
      %vm5546 = vcmp.ge.s32.totalorder %v5540, 2
      %v5547 = vsub.s32 %v5540, 2
      %vm5548 = vcmp.eq.s32.totalorder %v5223, %v5547
      %vm5549 = vmand %vm5546, %vm5548
      %v5550 = vsel %vm5549, 1, 0
      %v5551 = vcvt.s32.f32 %v5550
      %v5553 = vsel %vm5236, %v5551, 0
      %5555 = vmatpush.msra.mxu0 0.0
      %5556 = vmatpush.msra.mxu0 0.0
      %5557 = vmatpush.msra.mxu0 0.0
      %5558 = vmatpush.msra.mxu0 0.0
      %5559 = vmatpush.msra.mxu0 0.0
      %5560 = vmatpush.msra.mxu0 0.0
      %5561 = vmatpush.msra.mxu0 0.0
      %5562 = vmatpush.msra.mxu0 0.0
      %5563 = vmatpush.msra.mxu0 0.0
      %5564 = vmatpush.msra.mxu0 0.0
      %5565 = vmatpush.msra.mxu0 0.0
      %5566 = vmatpush.msra.mxu0 0.0
      %5567 = vmatpush.msra.mxu0 0.0
      %5568 = vmatpush.msra.mxu0 0.0
      %5569 = vmatpush.msra.mxu0 0.0
      %v5570 = vand.u32 %v5241, 4294901760
      %5571 = vmatpush.msra.mxu0 %v5570
      %v5572 = vand.u32 %v5553, 4294901760
      %v5573 = vsub.f32 %v5553, %v5572
      %v5574 = vand.u32 %v5573, 4294901760
      %v5575 = vsub.f32 %v5573, %v5574
      %v5576 = vand.u32 %v5575, 4294901760
      %5577 = vmatmul.f32.gmra.mxu0 %v5576
      %v5578 = vpop.f32.mrf.mxu0
      %v5579 = vadd.f32 0.0, %v5578
      %5580 = vdwg.mxu0
      %5581 = vmatpush.msra.mxu0 0.0
      %5582 = vmatpush.msra.mxu0 0.0
      %5583 = vmatpush.msra.mxu0 0.0
      %5584 = vmatpush.msra.mxu0 0.0
      %5585 = vmatpush.msra.mxu0 0.0
      %5586 = vmatpush.msra.mxu0 0.0
      %5587 = vmatpush.msra.mxu0 0.0
      %5588 = vmatpush.msra.mxu0 0.0
      %5589 = vmatpush.msra.mxu0 0.0
      %5590 = vmatpush.msra.mxu0 0.0
      %5591 = vmatpush.msra.mxu0 0.0
      %5592 = vmatpush.msra.mxu0 0.0
      %5593 = vmatpush.msra.mxu0 0.0
      %5594 = vmatpush.msra.mxu0 0.0
      %5595 = vmatpush.msra.mxu0 0.0
      %v5596 = vand.u32 %v5241, 4294901760
      %v5597 = vsub.f32 %v5241, %v5596
      %v5598 = vand.u32 %v5597, 4294901760
      %v5599 = vsub.f32 %v5597, %v5598
      %v5600 = vand.u32 %v5599, 4294901760
      %5601 = vmatpush.msra.mxu0 %v5600
      %v5602 = vand.u32 %v5553, 4294901760
      %5603 = vmatmul.f32.gmra.mxu0 %v5602
      %v5604 = vpop.f32.mrf.mxu0
      %v5605 = vadd.f32 %v5579, %v5604
      %5606 = vdwg.mxu0
      %5607 = vmatpush.msra.mxu0 0.0
      %5608 = vmatpush.msra.mxu0 0.0
      %5609 = vmatpush.msra.mxu0 0.0
      %5610 = vmatpush.msra.mxu0 0.0
      %5611 = vmatpush.msra.mxu0 0.0
      %5612 = vmatpush.msra.mxu0 0.0
      %5613 = vmatpush.msra.mxu0 0.0
      %5614 = vmatpush.msra.mxu0 0.0
      %5615 = vmatpush.msra.mxu0 0.0
      %5616 = vmatpush.msra.mxu0 0.0
      %5617 = vmatpush.msra.mxu0 0.0
      %5618 = vmatpush.msra.mxu0 0.0
      %5619 = vmatpush.msra.mxu0 0.0
      %5620 = vmatpush.msra.mxu0 0.0
      %5621 = vmatpush.msra.mxu0 0.0
      %v5622 = vand.u32 %v5241, 4294901760
      %v5623 = vsub.f32 %v5241, %v5622
      %5624 = vmatpush.msra.mxu0 %v5623
      %v5625 = vand.u32 %v5553, 4294901760
      %v5626 = vsub.f32 %v5553, %v5625
      %5627 = vmatmul.f32.gmra.mxu0 %v5626
      %v5628 = vpop.f32.mrf.mxu0
      %v5629 = vadd.f32 %v5605, %v5628
      %5630 = vdwg.mxu0
      %5631 = vmatpush.msra.mxu0 0.0
      %5632 = vmatpush.msra.mxu0 0.0
      %5633 = vmatpush.msra.mxu0 0.0
      %5634 = vmatpush.msra.mxu0 0.0
      %5635 = vmatpush.msra.mxu0 0.0
      %5636 = vmatpush.msra.mxu0 0.0
      %5637 = vmatpush.msra.mxu0 0.0
      %5638 = vmatpush.msra.mxu0 0.0
      %5639 = vmatpush.msra.mxu0 0.0
      %5640 = vmatpush.msra.mxu0 0.0
      %5641 = vmatpush.msra.mxu0 0.0
      %5642 = vmatpush.msra.mxu0 0.0
      %5643 = vmatpush.msra.mxu0 0.0
      %5644 = vmatpush.msra.mxu0 0.0
      %5645 = vmatpush.msra.mxu0 0.0
      %v5646 = vand.u32 %v5241, 4294901760
      %5647 = vmatpush.msra.mxu0 %v5646
      %v5648 = vand.u32 %v5553, 4294901760
      %v5649 = vsub.f32 %v5553, %v5648
      %v5650 = vand.u32 %v5649, 4294901760
      %5651 = vmatmul.f32.gmra.mxu0 %v5650
      %v5652 = vpop.f32.mrf.mxu0
      %v5653 = vadd.f32 %v5629, %v5652
      %5654 = vdwg.mxu0
      %5655 = vmatpush.msra.mxu0 0.0
      %5656 = vmatpush.msra.mxu0 0.0
      %5657 = vmatpush.msra.mxu0 0.0
      %5658 = vmatpush.msra.mxu0 0.0
      %5659 = vmatpush.msra.mxu0 0.0
      %5660 = vmatpush.msra.mxu0 0.0
      %5661 = vmatpush.msra.mxu0 0.0
      %5662 = vmatpush.msra.mxu0 0.0
      %5663 = vmatpush.msra.mxu0 0.0
      %5664 = vmatpush.msra.mxu0 0.0
      %5665 = vmatpush.msra.mxu0 0.0
      %5666 = vmatpush.msra.mxu0 0.0
      %5667 = vmatpush.msra.mxu0 0.0
      %5668 = vmatpush.msra.mxu0 0.0
      %5669 = vmatpush.msra.mxu0 0.0
      %v5670 = vand.u32 %v5241, 4294901760
      %v5671 = vsub.f32 %v5241, %v5670
      %v5672 = vand.u32 %v5671, 4294901760
      %5673 = vmatpush.msra.mxu0 %v5672
      %v5674 = vand.u32 %v5553, 4294901760
      %5675 = vmatmul.f32.gmra.mxu0 %v5674
      %v5676 = vpop.f32.mrf.mxu0
      %v5677 = vadd.f32 %v5653, %v5676
      %5678 = vdwg.mxu0
      %5679 = vmatpush.msra.mxu0 0.0
      %5680 = vmatpush.msra.mxu0 0.0
      %5681 = vmatpush.msra.mxu0 0.0
      %5682 = vmatpush.msra.mxu0 0.0
      %5683 = vmatpush.msra.mxu0 0.0
      %5684 = vmatpush.msra.mxu0 0.0
      %5685 = vmatpush.msra.mxu0 0.0
      %5686 = vmatpush.msra.mxu0 0.0
      %5687 = vmatpush.msra.mxu0 0.0
      %5688 = vmatpush.msra.mxu0 0.0
      %5689 = vmatpush.msra.mxu0 0.0
      %5690 = vmatpush.msra.mxu0 0.0
      %5691 = vmatpush.msra.mxu0 0.0
      %5692 = vmatpush.msra.mxu0 0.0
      %5693 = vmatpush.msra.mxu0 0.0
      %v5694 = vand.u32 %v5241, 4294901760
      %5695 = vmatpush.msra.mxu0 %v5694
      %v5696 = vand.u32 %v5553, 4294901760
      %5697 = vmatmul.f32.gmra.mxu0 %v5696
      %v5698 = vpop.f32.mrf.mxu0
      %v5699 = vadd.f32 %v5677, %v5698
      %5700 = vdwg.mxu0
      %v5702 = vsel %vm5236, %v5545, 0
      %5704 = vmatpush.msra.mxu0 0.0
      %5705 = vmatpush.msra.mxu0 0.0
      %5706 = vmatpush.msra.mxu0 0.0
      %5707 = vmatpush.msra.mxu0 0.0
      %5708 = vmatpush.msra.mxu0 0.0
      %5709 = vmatpush.msra.mxu0 0.0
      %5710 = vmatpush.msra.mxu0 0.0
      %5711 = vmatpush.msra.mxu0 0.0
      %5712 = vmatpush.msra.mxu0 0.0
      %5713 = vmatpush.msra.mxu0 0.0
      %5714 = vmatpush.msra.mxu0 0.0
      %5715 = vmatpush.msra.mxu0 0.0
      %5716 = vmatpush.msra.mxu0 0.0
      %5717 = vmatpush.msra.mxu0 0.0
      %5718 = vmatpush.msra.mxu0 0.0
      %v5719 = vand.u32 %v5392, 4294901760
      %5720 = vmatpush.msra.mxu0 %v5719
      %v5721 = vand.u32 %v5702, 4294901760
      %v5722 = vsub.f32 %v5702, %v5721
      %v5723 = vand.u32 %v5722, 4294901760
      %v5724 = vsub.f32 %v5722, %v5723
      %v5725 = vand.u32 %v5724, 4294901760
      %5726 = vmatmul.f32.gmra.mxu0 %v5725
      %v5727 = vpop.f32.mrf.mxu0
      %v5728 = vadd.f32 %v5699, %v5727
      %5729 = vdwg.mxu0
      %5730 = vmatpush.msra.mxu0 0.0
      %5731 = vmatpush.msra.mxu0 0.0
      %5732 = vmatpush.msra.mxu0 0.0
      %5733 = vmatpush.msra.mxu0 0.0
      %5734 = vmatpush.msra.mxu0 0.0
      %5735 = vmatpush.msra.mxu0 0.0
      %5736 = vmatpush.msra.mxu0 0.0
      %5737 = vmatpush.msra.mxu0 0.0
      %5738 = vmatpush.msra.mxu0 0.0
      %5739 = vmatpush.msra.mxu0 0.0
      %5740 = vmatpush.msra.mxu0 0.0
      %5741 = vmatpush.msra.mxu0 0.0
      %5742 = vmatpush.msra.mxu0 0.0
      %5743 = vmatpush.msra.mxu0 0.0
      %5744 = vmatpush.msra.mxu0 0.0
      %v5745 = vand.u32 %v5392, 4294901760
      %v5746 = vsub.f32 %v5392, %v5745
      %v5747 = vand.u32 %v5746, 4294901760
      %v5748 = vsub.f32 %v5746, %v5747
      %v5749 = vand.u32 %v5748, 4294901760
      %5750 = vmatpush.msra.mxu0 %v5749
      %v5751 = vand.u32 %v5702, 4294901760
      %5752 = vmatmul.f32.gmra.mxu0 %v5751
      %v5753 = vpop.f32.mrf.mxu0
      %v5754 = vadd.f32 %v5728, %v5753
      %5755 = vdwg.mxu0
      %5756 = vmatpush.msra.mxu0 0.0
      %5757 = vmatpush.msra.mxu0 0.0
      %5758 = vmatpush.msra.mxu0 0.0
      %5759 = vmatpush.msra.mxu0 0.0
      %5760 = vmatpush.msra.mxu0 0.0
      %5761 = vmatpush.msra.mxu0 0.0
      %5762 = vmatpush.msra.mxu0 0.0
      %5763 = vmatpush.msra.mxu0 0.0
      %5764 = vmatpush.msra.mxu0 0.0
      %5765 = vmatpush.msra.mxu0 0.0
      %5766 = vmatpush.msra.mxu0 0.0
      %5767 = vmatpush.msra.mxu0 0.0
      %5768 = vmatpush.msra.mxu0 0.0
      %5769 = vmatpush.msra.mxu0 0.0
      %5770 = vmatpush.msra.mxu0 0.0
      %v5771 = vand.u32 %v5392, 4294901760
      %v5772 = vsub.f32 %v5392, %v5771
      %5773 = vmatpush.msra.mxu0 %v5772
      %v5774 = vand.u32 %v5702, 4294901760
      %v5775 = vsub.f32 %v5702, %v5774
      %5776 = vmatmul.f32.gmra.mxu0 %v5775
      %v5777 = vpop.f32.mrf.mxu0
      %v5778 = vadd.f32 %v5754, %v5777
      %5779 = vdwg.mxu0
      %5780 = vmatpush.msra.mxu0 0.0
      %5781 = vmatpush.msra.mxu0 0.0
      %5782 = vmatpush.msra.mxu0 0.0
      %5783 = vmatpush.msra.mxu0 0.0
      %5784 = vmatpush.msra.mxu0 0.0
      %5785 = vmatpush.msra.mxu0 0.0
      %5786 = vmatpush.msra.mxu0 0.0
      %5787 = vmatpush.msra.mxu0 0.0
      %5788 = vmatpush.msra.mxu0 0.0
      %5789 = vmatpush.msra.mxu0 0.0
      %5790 = vmatpush.msra.mxu0 0.0
      %5791 = vmatpush.msra.mxu0 0.0
      %5792 = vmatpush.msra.mxu0 0.0
      %5793 = vmatpush.msra.mxu0 0.0
      %5794 = vmatpush.msra.mxu0 0.0
      %v5795 = vand.u32 %v5392, 4294901760
      %5796 = vmatpush.msra.mxu0 %v5795
      %v5797 = vand.u32 %v5702, 4294901760
      %v5798 = vsub.f32 %v5702, %v5797
      %v5799 = vand.u32 %v5798, 4294901760
      %5800 = vmatmul.f32.gmra.mxu0 %v5799
      %v5801 = vpop.f32.mrf.mxu0
      %v5802 = vadd.f32 %v5778, %v5801
      %5803 = vdwg.mxu0
      %5804 = vmatpush.msra.mxu0 0.0
      %5805 = vmatpush.msra.mxu0 0.0
      %5806 = vmatpush.msra.mxu0 0.0
      %5807 = vmatpush.msra.mxu0 0.0
      %5808 = vmatpush.msra.mxu0 0.0
      %5809 = vmatpush.msra.mxu0 0.0
      %5810 = vmatpush.msra.mxu0 0.0
      %5811 = vmatpush.msra.mxu0 0.0
      %5812 = vmatpush.msra.mxu0 0.0
      %5813 = vmatpush.msra.mxu0 0.0
      %5814 = vmatpush.msra.mxu0 0.0
      %5815 = vmatpush.msra.mxu0 0.0
      %5816 = vmatpush.msra.mxu0 0.0
      %5817 = vmatpush.msra.mxu0 0.0
      %5818 = vmatpush.msra.mxu0 0.0
      %v5819 = vand.u32 %v5392, 4294901760
      %v5820 = vsub.f32 %v5392, %v5819
      %v5821 = vand.u32 %v5820, 4294901760
      %5822 = vmatpush.msra.mxu0 %v5821
      %v5823 = vand.u32 %v5702, 4294901760
      %5824 = vmatmul.f32.gmra.mxu0 %v5823
      %v5825 = vpop.f32.mrf.mxu0
      %v5826 = vadd.f32 %v5802, %v5825
      %5827 = vdwg.mxu0
      %5828 = vmatpush.msra.mxu0 0.0
      %5829 = vmatpush.msra.mxu0 0.0
      %5830 = vmatpush.msra.mxu0 0.0
      %5831 = vmatpush.msra.mxu0 0.0
      %5832 = vmatpush.msra.mxu0 0.0
      %5833 = vmatpush.msra.mxu0 0.0
      %5834 = vmatpush.msra.mxu0 0.0
      %5835 = vmatpush.msra.mxu0 0.0
      %5836 = vmatpush.msra.mxu0 0.0
      %5837 = vmatpush.msra.mxu0 0.0
      %5838 = vmatpush.msra.mxu0 0.0
      %5839 = vmatpush.msra.mxu0 0.0
      %5840 = vmatpush.msra.mxu0 0.0
      %5841 = vmatpush.msra.mxu0 0.0
      %5842 = vmatpush.msra.mxu0 0.0
      %v5843 = vand.u32 %v5392, 4294901760
      %5844 = vmatpush.msra.mxu0 %v5843
      %v5845 = vand.u32 %v5702, 4294901760
      %5846 = vmatmul.f32.gmra.mxu0 %v5845
      %v5847 = vpop.f32.mrf.mxu0
      %v5848 = vadd.f32 %v5826, %v5847
      %5849 = vdwg.mxu0
      %v5850 = vld [vmem:[%s4] sm:$0xff]
      %v5851 = vld [vmem:[%s4 + $0x8] sm:$0xff]
      %v5852 = vld [vmem:[%s4 + $0x10] sm:$0xff]
      %v5853 = vld [vmem:[%s4 + $0x18] sm:$0xff]
      %v5854 = vld [vmem:[%s4 + $0x20] sm:$0xff]
      %v5855 = vld [vmem:[%s4 + $0x28] sm:$0xff]
      %v5856 = vld [vmem:[%s4 + $0x30] sm:$0xff]
      %v5857 = vld [vmem:[%s4 + $0x38] sm:$0xff]
      %v5859 = vsel %vm34, %v5848, 0
      %5861 = vmatpush.msra.mxu0 0.0
      %5862 = vmatpush.msra.mxu0 0.0
      %5863 = vmatpush.msra.mxu0 0.0
      %5864 = vmatpush.msra.mxu0 0.0
      %5865 = vmatpush.msra.mxu0 0.0
      %5866 = vmatpush.msra.mxu0 0.0
      %5867 = vmatpush.msra.mxu0 0.0
      %5868 = vmatpush.msra.mxu0 0.0
      %5869 = vmatpush.msra.mxu0 0.0
      %5870 = vmatpush.msra.mxu0 0.0
      %5871 = vmatpush.msra.mxu0 0.0
      %5872 = vmatpush.msra.mxu0 0.0
      %v5873 = vand.u32 %v5857, 4294901760
      %5874 = vmatpush.msra.mxu0 %v5873
      %v5875 = vand.u32 %v5856, 4294901760
      %5876 = vmatpush.msra.mxu0 %v5875
      %v5877 = vand.u32 %v5855, 4294901760
      %5878 = vmatpush.msra.mxu0 %v5877
      %v5879 = vand.u32 %v5854, 4294901760
      %5880 = vmatpush.msra.mxu0 %v5879
      %v5881 = vand.u32 %v5859, 4294901760
      %v5882 = vsub.f32 %v5859, %v5881
      %v5883 = vand.u32 %v5882, 4294901760
      %v5884 = vsub.f32 %v5882, %v5883
      %v5885 = vand.u32 %v5884, 4294901760
      %5886 = vmatmul.f32.gmra.mxu0 %v5885
      %v5887 = vpop.f32.mrf.mxu0
      %v5888 = vadd.f32 0.0, %v5887
      %5889 = vdwg.mxu0
      %5890 = vmatpush.msra.mxu0 0.0
      %5891 = vmatpush.msra.mxu0 0.0
      %5892 = vmatpush.msra.mxu0 0.0
      %5893 = vmatpush.msra.mxu0 0.0
      %5894 = vmatpush.msra.mxu0 0.0
      %5895 = vmatpush.msra.mxu0 0.0
      %5896 = vmatpush.msra.mxu0 0.0
      %5897 = vmatpush.msra.mxu0 0.0
      %5898 = vmatpush.msra.mxu0 0.0
      %5899 = vmatpush.msra.mxu0 0.0
      %5900 = vmatpush.msra.mxu0 0.0
      %5901 = vmatpush.msra.mxu0 0.0
      %v5902 = vand.u32 %v5857, 4294901760
      %v5903 = vsub.f32 %v5857, %v5902
      %v5904 = vand.u32 %v5903, 4294901760
      %v5905 = vsub.f32 %v5903, %v5904
      %v5906 = vand.u32 %v5905, 4294901760
      %5907 = vmatpush.msra.mxu0 %v5906
      %v5908 = vand.u32 %v5856, 4294901760
      %v5909 = vsub.f32 %v5856, %v5908
      %v5910 = vand.u32 %v5909, 4294901760
      %v5911 = vsub.f32 %v5909, %v5910
      %v5912 = vand.u32 %v5911, 4294901760
      %5913 = vmatpush.msra.mxu0 %v5912
      %v5914 = vand.u32 %v5855, 4294901760
      %v5915 = vsub.f32 %v5855, %v5914
      %v5916 = vand.u32 %v5915, 4294901760
      %v5917 = vsub.f32 %v5915, %v5916
      %v5918 = vand.u32 %v5917, 4294901760
      %5919 = vmatpush.msra.mxu0 %v5918
      %v5920 = vand.u32 %v5854, 4294901760
      %v5921 = vsub.f32 %v5854, %v5920
      %v5922 = vand.u32 %v5921, 4294901760
      %v5923 = vsub.f32 %v5921, %v5922
      %v5924 = vand.u32 %v5923, 4294901760
      %5925 = vmatpush.msra.mxu0 %v5924
      %v5926 = vand.u32 %v5859, 4294901760
      %5927 = vmatmul.f32.gmra.mxu0 %v5926
      %v5928 = vpop.f32.mrf.mxu0
      %v5929 = vadd.f32 %v5888, %v5928
      %5930 = vdwg.mxu0
      %5931 = vmatpush.msra.mxu0 0.0
      %5932 = vmatpush.msra.mxu0 0.0
      %5933 = vmatpush.msra.mxu0 0.0
      %5934 = vmatpush.msra.mxu0 0.0
      %5935 = vmatpush.msra.mxu0 0.0
      %5936 = vmatpush.msra.mxu0 0.0
      %5937 = vmatpush.msra.mxu0 0.0
      %5938 = vmatpush.msra.mxu0 0.0
      %5939 = vmatpush.msra.mxu0 0.0
      %5940 = vmatpush.msra.mxu0 0.0
      %5941 = vmatpush.msra.mxu0 0.0
      %5942 = vmatpush.msra.mxu0 0.0
      %v5943 = vand.u32 %v5857, 4294901760
      %v5944 = vsub.f32 %v5857, %v5943
      %5945 = vmatpush.msra.mxu0 %v5944
      %v5946 = vand.u32 %v5856, 4294901760
      %v5947 = vsub.f32 %v5856, %v5946
      %5948 = vmatpush.msra.mxu0 %v5947
      %v5949 = vand.u32 %v5855, 4294901760
      %v5950 = vsub.f32 %v5855, %v5949
      %5951 = vmatpush.msra.mxu0 %v5950
      %v5952 = vand.u32 %v5854, 4294901760
      %v5953 = vsub.f32 %v5854, %v5952
      %5954 = vmatpush.msra.mxu0 %v5953
      %v5955 = vand.u32 %v5859, 4294901760
      %v5956 = vsub.f32 %v5859, %v5955
      %5957 = vmatmul.f32.gmra.mxu0 %v5956
      %v5958 = vpop.f32.mrf.mxu0
      %v5959 = vadd.f32 %v5929, %v5958
      %5960 = vdwg.mxu0
      %5961 = vmatpush.msra.mxu0 0.0
      %5962 = vmatpush.msra.mxu0 0.0
      %5963 = vmatpush.msra.mxu0 0.0
      %5964 = vmatpush.msra.mxu0 0.0
      %5965 = vmatpush.msra.mxu0 0.0
      %5966 = vmatpush.msra.mxu0 0.0
      %5967 = vmatpush.msra.mxu0 0.0
      %5968 = vmatpush.msra.mxu0 0.0
      %5969 = vmatpush.msra.mxu0 0.0
      %5970 = vmatpush.msra.mxu0 0.0
      %5971 = vmatpush.msra.mxu0 0.0
      %5972 = vmatpush.msra.mxu0 0.0
      %v5973 = vand.u32 %v5857, 4294901760
      %5974 = vmatpush.msra.mxu0 %v5973
      %v5975 = vand.u32 %v5856, 4294901760
      %5976 = vmatpush.msra.mxu0 %v5975
      %v5977 = vand.u32 %v5855, 4294901760
      %5978 = vmatpush.msra.mxu0 %v5977
      %v5979 = vand.u32 %v5854, 4294901760
      %5980 = vmatpush.msra.mxu0 %v5979
      %v5981 = vand.u32 %v5859, 4294901760
      %v5982 = vsub.f32 %v5859, %v5981
      %v5983 = vand.u32 %v5982, 4294901760
      %5984 = vmatmul.f32.gmra.mxu0 %v5983
      %v5985 = vpop.f32.mrf.mxu0
      %v5986 = vadd.f32 %v5959, %v5985
      %5987 = vdwg.mxu0
      %5988 = vmatpush.msra.mxu0 0.0
      %5989 = vmatpush.msra.mxu0 0.0
      %5990 = vmatpush.msra.mxu0 0.0
      %5991 = vmatpush.msra.mxu0 0.0
      %5992 = vmatpush.msra.mxu0 0.0
      %5993 = vmatpush.msra.mxu0 0.0
      %5994 = vmatpush.msra.mxu0 0.0
      %5995 = vmatpush.msra.mxu0 0.0
      %5996 = vmatpush.msra.mxu0 0.0
      %5997 = vmatpush.msra.mxu0 0.0
      %5998 = vmatpush.msra.mxu0 0.0
      %5999 = vmatpush.msra.mxu0 0.0
      %v6000 = vand.u32 %v5857, 4294901760
      %v6001 = vsub.f32 %v5857, %v6000
      %v6002 = vand.u32 %v6001, 4294901760
      %6003 = vmatpush.msra.mxu0 %v6002
      %v6004 = vand.u32 %v5856, 4294901760
      %v6005 = vsub.f32 %v5856, %v6004
      %v6006 = vand.u32 %v6005, 4294901760
      %6007 = vmatpush.msra.mxu0 %v6006
      %v6008 = vand.u32 %v5855, 4294901760
      %v6009 = vsub.f32 %v5855, %v6008
      %v6010 = vand.u32 %v6009, 4294901760
      %6011 = vmatpush.msra.mxu0 %v6010
      %v6012 = vand.u32 %v5854, 4294901760
      %v6013 = vsub.f32 %v5854, %v6012
      %v6014 = vand.u32 %v6013, 4294901760
      %6015 = vmatpush.msra.mxu0 %v6014
      %v6016 = vand.u32 %v5859, 4294901760
      %6017 = vmatmul.f32.gmra.mxu0 %v6016
      %v6018 = vpop.f32.mrf.mxu0
      %v6019 = vadd.f32 %v5986, %v6018
      %6020 = vdwg.mxu0
      %6021 = vmatpush.msra.mxu0 0.0
      %6022 = vmatpush.msra.mxu0 0.0
      %6023 = vmatpush.msra.mxu0 0.0
      %6024 = vmatpush.msra.mxu0 0.0
      %6025 = vmatpush.msra.mxu0 0.0
      %6026 = vmatpush.msra.mxu0 0.0
      %6027 = vmatpush.msra.mxu0 0.0
      %6028 = vmatpush.msra.mxu0 0.0
      %6029 = vmatpush.msra.mxu0 0.0
      %6030 = vmatpush.msra.mxu0 0.0
      %6031 = vmatpush.msra.mxu0 0.0
      %6032 = vmatpush.msra.mxu0 0.0
      %v6033 = vand.u32 %v5857, 4294901760
      %6034 = vmatpush.msra.mxu0 %v6033
      %v6035 = vand.u32 %v5856, 4294901760
      %6036 = vmatpush.msra.mxu0 %v6035
      %v6037 = vand.u32 %v5855, 4294901760
      %6038 = vmatpush.msra.mxu0 %v6037
      %v6039 = vand.u32 %v5854, 4294901760
      %6040 = vmatpush.msra.mxu0 %v6039
      %v6041 = vand.u32 %v5859, 4294901760
      %6042 = vmatmul.f32.gmra.mxu0 %v6041
      %v6043 = vpop.f32.mrf.mxu0
      %v6044 = vadd.f32 %v6019, %v6043
      %6045 = vdwg.mxu0
      %v6047 = vsel %vm34, %v5538, 0
      %6049 = vmatpush.msra.mxu0 0.0
      %6050 = vmatpush.msra.mxu0 0.0
      %6051 = vmatpush.msra.mxu0 0.0
      %6052 = vmatpush.msra.mxu0 0.0
      %6053 = vmatpush.msra.mxu0 0.0
      %6054 = vmatpush.msra.mxu0 0.0
      %6055 = vmatpush.msra.mxu0 0.0
      %6056 = vmatpush.msra.mxu0 0.0
      %6057 = vmatpush.msra.mxu0 0.0
      %6058 = vmatpush.msra.mxu0 0.0
      %6059 = vmatpush.msra.mxu0 0.0
      %6060 = vmatpush.msra.mxu0 0.0
      %v6061 = vand.u32 %v5853, 4294901760
      %6062 = vmatpush.msra.mxu0 %v6061
      %v6063 = vand.u32 %v5852, 4294901760
      %6064 = vmatpush.msra.mxu0 %v6063
      %v6065 = vand.u32 %v5851, 4294901760
      %6066 = vmatpush.msra.mxu0 %v6065
      %v6067 = vand.u32 %v5850, 4294901760
      %6068 = vmatpush.msra.mxu0 %v6067
      %v6069 = vand.u32 %v6047, 4294901760
      %v6070 = vsub.f32 %v6047, %v6069
      %v6071 = vand.u32 %v6070, 4294901760
      %v6072 = vsub.f32 %v6070, %v6071
      %v6073 = vand.u32 %v6072, 4294901760
      %6074 = vmatmul.f32.gmra.mxu0 %v6073
      %v6075 = vpop.f32.mrf.mxu0
      %v6076 = vadd.f32 %v6044, %v6075
      %6077 = vdwg.mxu0
      %6078 = vmatpush.msra.mxu0 0.0
      %6079 = vmatpush.msra.mxu0 0.0
      %6080 = vmatpush.msra.mxu0 0.0
      %6081 = vmatpush.msra.mxu0 0.0
      %6082 = vmatpush.msra.mxu0 0.0
      %6083 = vmatpush.msra.mxu0 0.0
      %6084 = vmatpush.msra.mxu0 0.0
      %6085 = vmatpush.msra.mxu0 0.0
      %6086 = vmatpush.msra.mxu0 0.0
      %6087 = vmatpush.msra.mxu0 0.0
      %6088 = vmatpush.msra.mxu0 0.0
      %6089 = vmatpush.msra.mxu0 0.0
      %v6090 = vand.u32 %v5853, 4294901760
      %v6091 = vsub.f32 %v5853, %v6090
      %v6092 = vand.u32 %v6091, 4294901760
      %v6093 = vsub.f32 %v6091, %v6092
      %v6094 = vand.u32 %v6093, 4294901760
      %6095 = vmatpush.msra.mxu0 %v6094
      %v6096 = vand.u32 %v5852, 4294901760
      %v6097 = vsub.f32 %v5852, %v6096
      %v6098 = vand.u32 %v6097, 4294901760
      %v6099 = vsub.f32 %v6097, %v6098
      %v6100 = vand.u32 %v6099, 4294901760
      %6101 = vmatpush.msra.mxu0 %v6100
      %v6102 = vand.u32 %v5851, 4294901760
      %v6103 = vsub.f32 %v5851, %v6102
      %v6104 = vand.u32 %v6103, 4294901760
      %v6105 = vsub.f32 %v6103, %v6104
      %v6106 = vand.u32 %v6105, 4294901760
      %6107 = vmatpush.msra.mxu0 %v6106
      %v6108 = vand.u32 %v5850, 4294901760
      %v6109 = vsub.f32 %v5850, %v6108
      %v6110 = vand.u32 %v6109, 4294901760
      %v6111 = vsub.f32 %v6109, %v6110
      %v6112 = vand.u32 %v6111, 4294901760
      %6113 = vmatpush.msra.mxu0 %v6112
      %v6114 = vand.u32 %v6047, 4294901760
      %6115 = vmatmul.f32.gmra.mxu0 %v6114
      %v6116 = vpop.f32.mrf.mxu0
      %v6117 = vadd.f32 %v6076, %v6116
      %6118 = vdwg.mxu0
      %6119 = vmatpush.msra.mxu0 0.0
      %6120 = vmatpush.msra.mxu0 0.0
      %6121 = vmatpush.msra.mxu0 0.0
      %6122 = vmatpush.msra.mxu0 0.0
      %6123 = vmatpush.msra.mxu0 0.0
      %6124 = vmatpush.msra.mxu0 0.0
      %6125 = vmatpush.msra.mxu0 0.0
      %6126 = vmatpush.msra.mxu0 0.0
      %6127 = vmatpush.msra.mxu0 0.0
      %6128 = vmatpush.msra.mxu0 0.0
      %6129 = vmatpush.msra.mxu0 0.0
      %6130 = vmatpush.msra.mxu0 0.0
      %v6131 = vand.u32 %v5853, 4294901760
      %v6132 = vsub.f32 %v5853, %v6131
      %6133 = vmatpush.msra.mxu0 %v6132
      %v6134 = vand.u32 %v5852, 4294901760
      %v6135 = vsub.f32 %v5852, %v6134
      %6136 = vmatpush.msra.mxu0 %v6135
      %v6137 = vand.u32 %v5851, 4294901760
      %v6138 = vsub.f32 %v5851, %v6137
      %6139 = vmatpush.msra.mxu0 %v6138
      %v6140 = vand.u32 %v5850, 4294901760
      %v6141 = vsub.f32 %v5850, %v6140
      %6142 = vmatpush.msra.mxu0 %v6141
      %v6143 = vand.u32 %v6047, 4294901760
      %v6144 = vsub.f32 %v6047, %v6143
      %6145 = vmatmul.f32.gmra.mxu0 %v6144
      %v6146 = vpop.f32.mrf.mxu0
      %v6147 = vadd.f32 %v6117, %v6146
      %6148 = vdwg.mxu0
      %6149 = vmatpush.msra.mxu0 0.0
      %6150 = vmatpush.msra.mxu0 0.0
      %6151 = vmatpush.msra.mxu0 0.0
      %6152 = vmatpush.msra.mxu0 0.0
      %6153 = vmatpush.msra.mxu0 0.0
      %6154 = vmatpush.msra.mxu0 0.0
      %6155 = vmatpush.msra.mxu0 0.0
      %6156 = vmatpush.msra.mxu0 0.0
      %6157 = vmatpush.msra.mxu0 0.0
      %6158 = vmatpush.msra.mxu0 0.0
      %6159 = vmatpush.msra.mxu0 0.0
      %6160 = vmatpush.msra.mxu0 0.0
      %v6161 = vand.u32 %v5853, 4294901760
      %6162 = vmatpush.msra.mxu0 %v6161
      %v6163 = vand.u32 %v5852, 4294901760
      %6164 = vmatpush.msra.mxu0 %v6163
      %v6165 = vand.u32 %v5851, 4294901760
      %6166 = vmatpush.msra.mxu0 %v6165
      %v6167 = vand.u32 %v5850, 4294901760
      %6168 = vmatpush.msra.mxu0 %v6167
      %v6169 = vand.u32 %v6047, 4294901760
      %v6170 = vsub.f32 %v6047, %v6169
      %v6171 = vand.u32 %v6170, 4294901760
      %6172 = vmatmul.f32.gmra.mxu0 %v6171
      %v6173 = vpop.f32.mrf.mxu0
      %v6174 = vadd.f32 %v6147, %v6173
      %6175 = vdwg.mxu0
      %6176 = vmatpush.msra.mxu0 0.0
      %6177 = vmatpush.msra.mxu0 0.0
      %6178 = vmatpush.msra.mxu0 0.0
      %6179 = vmatpush.msra.mxu0 0.0
      %6180 = vmatpush.msra.mxu0 0.0
      %6181 = vmatpush.msra.mxu0 0.0
      %6182 = vmatpush.msra.mxu0 0.0
      %6183 = vmatpush.msra.mxu0 0.0
      %6184 = vmatpush.msra.mxu0 0.0
      %6185 = vmatpush.msra.mxu0 0.0
      %6186 = vmatpush.msra.mxu0 0.0
      %6187 = vmatpush.msra.mxu0 0.0
      %v6188 = vand.u32 %v5853, 4294901760
      %v6189 = vsub.f32 %v5853, %v6188
      %v6190 = vand.u32 %v6189, 4294901760
      %6191 = vmatpush.msra.mxu0 %v6190
      %v6192 = vand.u32 %v5852, 4294901760
      %v6193 = vsub.f32 %v5852, %v6192
      %v6194 = vand.u32 %v6193, 4294901760
      %6195 = vmatpush.msra.mxu0 %v6194
      %v6196 = vand.u32 %v5851, 4294901760
      %v6197 = vsub.f32 %v5851, %v6196
      %v6198 = vand.u32 %v6197, 4294901760
      %6199 = vmatpush.msra.mxu0 %v6198
      %v6200 = vand.u32 %v5850, 4294901760
      %v6201 = vsub.f32 %v5850, %v6200
      %v6202 = vand.u32 %v6201, 4294901760
      %6203 = vmatpush.msra.mxu0 %v6202
      %v6204 = vand.u32 %v6047, 4294901760
      %6205 = vmatmul.f32.gmra.mxu0 %v6204
      %v6206 = vpop.f32.mrf.mxu0
      %v6207 = vadd.f32 %v6174, %v6206
      %6208 = vdwg.mxu0
      %6209 = vmatpush.msra.mxu0 0.0
      %6210 = vmatpush.msra.mxu0 0.0
      %6211 = vmatpush.msra.mxu0 0.0
      %6212 = vmatpush.msra.mxu0 0.0
      %6213 = vmatpush.msra.mxu0 0.0
      %6214 = vmatpush.msra.mxu0 0.0
      %6215 = vmatpush.msra.mxu0 0.0
      %6216 = vmatpush.msra.mxu0 0.0
      %6217 = vmatpush.msra.mxu0 0.0
      %6218 = vmatpush.msra.mxu0 0.0
      %6219 = vmatpush.msra.mxu0 0.0
      %6220 = vmatpush.msra.mxu0 0.0
      %v6221 = vand.u32 %v5853, 4294901760
      %6222 = vmatpush.msra.mxu0 %v6221
      %v6223 = vand.u32 %v5852, 4294901760
      %6224 = vmatpush.msra.mxu0 %v6223
      %v6225 = vand.u32 %v5851, 4294901760
      %6226 = vmatpush.msra.mxu0 %v6225
      %v6227 = vand.u32 %v5850, 4294901760
      %6228 = vmatpush.msra.mxu0 %v6227
      %v6229 = vand.u32 %v6047, 4294901760
      %6230 = vmatmul.f32.gmra.mxu0 %v6229
      %v6231 = vpop.f32.mrf.mxu0
      %v6232 = vadd.f32 %v6207, %v6231
      %6233 = vdwg.mxu0
      %vm6234 = vcmask 17408
      %6235 = vst.msk [vmem:[#allocation4] sm:$0x3] %vm6234, %v6232
    $region29: #{deep_lstm_forward.1} parent=1 // pred_fallthru
      _
    // Predicated region
    $region30: #{deep_lstm_forward.1} parent=1 // pred_check
      _
    $region31: #{deep_lstm_forward.1} parent=1 // pred_check_branch
      %6237 = sbr.rel (0) target = $region33
    $region32: #{deep_lstm_forward.1} parent=1 // pred_region
      %6239 = vsyncadd [#allocation5], 0
      %s6241 = sshll.u32 [#allocation4], 4
      %s6242 = int_to_ptr.vmem [resolvable:$true] %s6241
      %s6243 = sshll.u32 %s5, 4
      %s6244 = int_to_ptr.hbm [resolvable:$true] %s6243
      %6246 = dma.vmem_to_hbm [thread:$0]  %s6242, 32, %s6244, [#allocation5]
    $region33: #{deep_lstm_forward.1} parent=1 // pred_fallthru
      _
    // Predicated region
    $region34: #{deep_lstm_forward.1} parent=1 // pred_check
      _
    $region35: #{deep_lstm_forward.1} parent=1 // pred_check_branch
      %6248 = sbr.rel (0) target = $region37
    $region36: #{deep_lstm_forward.1} parent=1 // pred_region
      %6250 = dma.done [#allocation5], 32
    $region37: #{deep_lstm_forward.1} parent=1 // pred_fallthru
      _
    %6251 = vsyncpa [#allocation5], 1

</llo_original>
